<compile_context>
chip_gen: v7x
topology: tpu7x:2x2x1
jax: 0.10.0
libtpu: 0.0.40
codegen_flags: <defaults>
</compile_context>

<pallas_src>
import functools

import jax
import jax.numpy as jnp
from jax import lax
from jax.experimental import pallas as pl
from jax.experimental.pallas import tpu as pltpu

# ----- config (Configs.*) ---------------------------------------------------
D_IN = 32          # Configs.input_dim (== glove dim)
D_OUT = 64         # Configs.output_dim (bert hidden size stand-in)
NUM_CLASS = 4      # Configs.num_class
NUM_SRC = 4        # num_src concepts per utterance
NUM_DST = 4        # num_dst concepts per src
SEQ_LIM = 5        # concept token length
CHUNK = 8          # chunk_size == number of utterances in this test
VOCAB = 64         # glove vocab stand-in
LAMB = 0.5         # Configs.lamb (use_fixed=True)
EPS = 1e-8
NEG = -1e30        # large finite negative for masking (avoids -inf -> NaN)

# ----- packed parameter slab: one (PARAM_ROWS, D_IN) f32 array, one DMA ------
_OFF_FW_W = 0                        # (D_OUT, D_IN) fw weight, pre-transposed
_OFF_FWC_W = _OFF_FW_W + D_OUT       # (D_IN, D_IN)  fw_concept, pre-transposed
_OFF_FUS_W = _OFF_FWC_W + D_IN       # (D_IN, D_IN)  fusion_2, pre-transposed
_OFF_LIN2_WT = _OFF_FUS_W + D_IN     # (D_IN, *) linear_2^T in cols [0, NUM_CLASS)
_OFF_R = _OFF_LIN2_WT + D_IN         # (3, D_IN)     relation vectors (padded to 8 rows)
_OFF_EMB = _OFF_R + 8                # (VOCAB, D_IN) glove table
_OFF_FW_B = _OFF_EMB + VOCAB         # bias rows
_OFF_FWC_B = _OFF_FW_B + 1
_OFF_FUS_B = _OFF_FWC_B + 1
_OFF_LIN2_B = _OFF_FUS_B + 1         # cols [0, NUM_CLASS)
PARAM_ROWS = ((_OFF_LIN2_B + 1 + 7) // 8) * 8

_VMEM = functools.partial(pl.BlockSpec, memory_space=pltpu.MemorySpace.VMEM)


# ----------------------------------------------------------------------------
# Single fused forward kernel
# ----------------------------------------------------------------------------
def _fused_forward_kernel(dial_ref, p_ref, ids_ref, sel_ref, wsm_ref, rels_ref,
                          il_ref, logp_ref, loss_ref,
                          cpt_s, src_s, dst_s, *, len_dial):
    N = dial_ref.shape[0]
    C, S, T = rels_ref.shape

    # ---- parameter slab views (static ref slices, pre-transposed at init) ----
    fw_w = p_ref[_OFF_FW_W:_OFF_FW_W + D_OUT, :]               # (D_OUT, D_IN)
    fwc_w = p_ref[_OFF_FWC_W:_OFF_FWC_W + D_IN, :]             # (D_IN, D_IN)
    fus_w = p_ref[_OFF_FUS_W:_OFF_FUS_W + D_IN, :]             # (D_IN, D_IN)
    lin2_w = p_ref[_OFF_LIN2_WT:_OFF_LIN2_WT + D_IN, 0:NUM_CLASS]  # (D_IN, 4)
    r_tab = p_ref[_OFF_R:_OFF_R + 3, :]                        # (3, D_IN)
    emb = p_ref[_OFF_EMB:_OFF_EMB + VOCAB, :]                  # (VOCAB, D_IN)
    fw_b = p_ref[_OFF_FW_B:_OFF_FW_B + 1, :]
    fwc_b = p_ref[_OFF_FWC_B:_OFF_FWC_B + 1, :]
    fus_b = p_ref[_OFF_FUS_B:_OFF_FUS_B + 1, :]
    lin2_b = p_ref[_OFF_LIN2_B:_OFF_LIN2_B + 1, 0:NUM_CLASS]

    # ---- fw linear + out_[utt_idx] gather via in-kernel one-hot matmul ------
    out_full = jnp.dot(dial_ref[...], fw_w,
                       preferred_element_type=jnp.float32) + fw_b        # (N, D)
    utt = il_ref[:, 0:1]                                                  # (C,1)
    utt_oh = (lax.broadcasted_iota(jnp.int32, (C, N), 1) == utt
              ).astype(jnp.float32)
    out_utt = jnp.dot(utt_oh, out_full, preferred_element_type=jnp.float32)  # (C,D)

    # ---- get_cpt_emb: glove bag (one-hot matmul) + masked mean + fw_concept -
    # src rows (C*S) and dst rows (C*S*T) are concatenated -> one big matmul.
    ids = ids_ref[...]                                                    # (R, L) int
    sel = sel_ref[...]                                                    # (R, L)
    rows = ids.shape[0]
    voc_iota = lax.broadcasted_iota(jnp.int32, (rows, SEQ_LIM, VOCAB), 2)
    bag = jnp.sum((voc_iota == ids[:, :, None]).astype(jnp.float32)
                  * sel[:, :, None], axis=1)                              # (R, VOCAB)
    inv_cnt = pl.reciprocal(
        jnp.maximum(jnp.sum(sel, axis=1, keepdims=True), EPS), approx=True)
    mean_emb = jnp.dot(bag, emb, preferred_element_type=jnp.float32) * inv_cnt
    cpt_s[...] = (jnp.dot(mean_emb, fwc_w, preferred_element_type=jnp.float32)
                  + fwc_b)                                                # (R, D)

    # ---- repack flat concept rows into structured (C,S,D) / (C,S,T,D) -------
    for c in range(C):
        src_s[c, :, :] = cpt_s[c * S:(c + 1) * S, :]
    for c in range(C):
        for s in range(S):
            base = C * S + (c * S + s) * T
            dst_s[c, s, :, :] = cpt_s[base:base + T, :]
    src = src_s[...]                                                      # (C,S,D)
    dst = dst_s[...]                                                      # (C,S,T,D)

    # ---- symbolic_proc -------------------------------------------------------
    weights = wsm_ref[0]                                                  # (C,S,T)
    sentics = wsm_ref[1]                                                  # (C,S,T)
    masks_f = wsm_ref[2]                                                  # (C,S,T)
    src_cnt = wsm_ref[3][:, :, 0:1]                                       # (C,S,1)
    masks_b = masks_f != 0.0
    src_nz = (src_cnt != 0.0).astype(jnp.float32)                         # (C,S,1)

    ou = out_utt[:, None, None, :]                                        # (C,1,1,D)
    dotp = jnp.sum(ou * dst, axis=-1)                                     # (C,S,T)
    n1 = jnp.sqrt(jnp.sum(ou * ou, axis=-1))                              # (C,1,1)
    n2 = jnp.sqrt(jnp.sum(dst * dst, axis=-1))                            # (C,S,T)
    cosine = jnp.abs(dotp * pl.reciprocal(jnp.maximum(n1 * n2, EPS),
                                          approx=True))
    omega = LAMB * (weights * cosine) + (1.0 - LAMB) * jnp.abs(sentics)
    omega = jnp.where(masks_b, omega, NEG)
    pe = jnp.exp(omega - jnp.max(omega, axis=-1, keepdims=True))
    soft_omega = pe * pl.reciprocal(jnp.sum(pe, axis=-1, keepdims=True),
                                    approx=True)
    alpha = src_cnt * soft_omega                                          # (C,S,T)
    cpt_emb = alpha[..., None] * dst                                      # (C,S,T,D)

    # ---- rel_fun == 'vector': r[rels] selected in-kernel (no XLA gather) ----
    rx = rels_ref[...][..., None]                                         # (C,S,T,1)
    r_vec = jnp.where(rx == 0, r_tab[0:1, :],
                      jnp.where(rx == 1, r_tab[1:2, :], r_tab[2:3, :]))   # (C,S,T,D)
    re_vec = r_vec * cpt_emb

    s_score = jnp.sum(src[:, :, None, :] * re_vec, axis=-1)               # (C,S,T)
    s_score = jnp.where(masks_b, s_score, NEG)
    ps = jnp.exp(s_score - jnp.max(s_score, axis=-1, keepdims=True))
    alpha2 = ps * pl.reciprocal(jnp.sum(ps, axis=-1, keepdims=True),
                                approx=True)
    alpha2 = alpha2 * src_nz
    src_new = src + jnp.sum(alpha2[..., None] * re_vec, axis=2)           # (C,S,D)

    # ---- att_type == 'dot_att' ----------------------------------------------
    dot_sum = jnp.sum(src_new * out_utt[:, None, :], axis=-1, keepdims=True)
    src_any = jnp.sum(masks_f, axis=-1, keepdims=True) > 0.0              # (C,S,1)
    dot_sum = jnp.where(src_any, dot_sum, NEG)
    pd = jnp.exp(dot_sum - jnp.max(dot_sum, axis=1, keepdims=True))
    att = pd * pl.reciprocal(jnp.sum(pd, axis=1, keepdims=True), approx=True)
    att = att * src_nz                                                    # (C,S,1)
    symbolic = jnp.sum(att * src_new, axis=1)                             # (C,D)

    # ---- feat + classifier (fusion_2 -> tanh -> linear_2 -> log_softmax) ----
    # hidden_rgcn is zeros (see TODO at top); dropout is identity (eval mode).
    feat = out_utt + symbolic
    h = jnp.tanh(jnp.dot(feat, fus_w, preferred_element_type=jnp.float32)
                 + fus_b)
    logits = jnp.dot(h, lin2_w, preferred_element_type=jnp.float32) + lin2_b
    m = jnp.max(logits, axis=-1, keepdims=True)
    lse = jnp.log(jnp.sum(jnp.exp(logits - m), axis=-1, keepdims=True)) + m
    logp = logits - lse
    logp_ref[...] = logp

    # ---- NLLLoss(mean) / len_dial, fused in-kernel ---------------------------
    lbl = il_ref[:, 1:2]                                                  # (C,1)
    cls_oh = (lax.broadcasted_iota(jnp.int32, (C, NUM_CLASS), 1) == lbl
              ).astype(jnp.float32)
    picked = jnp.sum(cls_oh * logp, axis=-1, keepdims=True)               # (C,1)
    loss_ref[...] = (-jnp.sum(picked, axis=0, keepdims=True)
                     * (1.0 / (C * len_dial)))


# ----------------------------------------------------------------------------
# Parameter init: deterministic synthetic weights, packed + pre-transposed once
# ----------------------------------------------------------------------------
def init_params(key):
    ks = jax.random.split(key, 6)

    def lin(k, out_dim, in_dim):
        kw, kb = jax.random.split(k)
        w = jax.random.normal(kw, (out_dim, in_dim), jnp.float32) * 0.05
        b = jax.random.normal(kb, (out_dim,), jnp.float32) * 0.01
        return w, b

    fw_w, fw_b = lin(ks[0], D_IN, D_OUT)            # self.fw
    fwc_w, fwc_b = lin(ks[1], D_IN, D_IN)           # self.fw_concept
    fus_w, fus_b = lin(ks[2], D_IN, D_IN)           # self.fusion_2
    lin2_w, lin2_b = lin(ks[3], NUM_CLASS, D_IN)    # self.linear_2
    r = jax.random.normal(ks[4], (3, D_IN), jnp.float32) * 0.1
    emb = jax.random.normal(ks[5], (VOCAB, D_IN), jnp.float32) * 0.1

    slab = jnp.zeros((PARAM_ROWS, D_IN), jnp.float32)
    slab = slab.at[_OFF_FW_W:_OFF_FW_W + D_OUT].set(fw_w.T)
    slab = slab.at[_OFF_FWC_W:_OFF_FWC_W + D_IN].set(fwc_w.T)
    slab = slab.at[_OFF_FUS_W:_OFF_FUS_W + D_IN].set(fus_w.T)
    slab = slab.at[_OFF_LIN2_WT:_OFF_LIN2_WT + D_IN, 0:NUM_CLASS].set(lin2_w.T)
    slab = slab.at[_OFF_R:_OFF_R + 3].set(r)
    slab = slab.at[_OFF_EMB:_OFF_EMB + VOCAB].set(emb)
    slab = slab.at[_OFF_FW_B, :].set(fw_b)
    slab = slab.at[_OFF_FWC_B, :].set(fwc_b)
    slab = slab.at[_OFF_FUS_B, :].set(fus_b)
    slab = slab.at[_OFF_LIN2_B, 0:NUM_CLASS].set(lin2_b)
    return slab


# ----------------------------------------------------------------------------
# One-time input packing (part of input prep, not the hot path)
# ----------------------------------------------------------------------------
def pack_chunk_inputs(srcs_ids, srcs_sel, dsts_ids, dsts_sel,
                      weights, sentics, masks, src_masks, rels,
                      utt_idx, label):
    ids = jnp.concatenate([srcs_ids.reshape(-1, SEQ_LIM),
                           dsts_ids.reshape(-1, SEQ_LIM)], axis=0).astype(jnp.int32)
    sel = jnp.concatenate([srcs_sel.reshape(-1, SEQ_LIM),
                           dsts_sel.reshape(-1, SEQ_LIM)], axis=0).astype(jnp.float32)
    wsm = jnp.stack([weights, sentics, masks,
                     jnp.broadcast_to(src_masks[:, :, None], masks.shape)],
                    axis=0).astype(jnp.float32)                       # (4,C,S,T)
    idx_lbl = jnp.stack([utt_idx, label[utt_idx]], axis=1).astype(jnp.int32)
    return ids, sel, wsm, rels.astype(jnp.int32), idx_lbl


# ----------------------------------------------------------------------------
# Forward: a single fused pallas_call
# ----------------------------------------------------------------------------
@jax.jit
def model_forward(param_slab, dial_sel, cpt_ids, cpt_sel, wsm, rels, idx_lbl):
    n_dial = dial_sel.shape[0]
    c = idx_lbl.shape[0]
    cpt_rows = cpt_ids.shape[0]
    kernel = functools.partial(_fused_forward_kernel, len_dial=n_dial)
    logp, loss = pl.pallas_call(
        kernel,
        out_shape=(jax.ShapeDtypeStruct((c, NUM_CLASS), jnp.float32),
                   jax.ShapeDtypeStruct((1, 1), jnp.float32)),
        in_specs=[_VMEM()] * 7,
        out_specs=(_VMEM(), _VMEM()),
        scratch_shapes=[
            pltpu.VMEM((cpt_rows, D_IN), jnp.float32),        # flat concept embs
            pltpu.VMEM((c, NUM_SRC, D_IN), jnp.float32),      # src (C,S,D)
            pltpu.VMEM((c, NUM_SRC, NUM_DST, D_IN), jnp.float32),  # dst (C,S,T,D)
        ],
    )(dial_sel, param_slab, cpt_ids, cpt_sel, wsm, rels, idx_lbl)
    return logp, loss[0, 0]


# ----------------------------------------------------------------------------
if __name__ == "__main__":
    key = jax.random.PRNGKey(0)
    pkey, dkey = jax.random.split(key)
    param_slab = init_params(pkey)

    ks = jax.random.split(dkey, 8)
    N = CHUNK
    dial_sel = jax.random.normal(ks[0], (N, D_OUT), jnp.float32)

    srcs_ids = jax.random.randint(ks[1], (CHUNK, NUM_SRC, SEQ_LIM), 0, VOCAB)
    srcs_sel = jnp.ones((CHUNK, NUM_SRC, SEQ_LIM), jnp.float32)
    dsts_ids = jax.random.randint(ks[2], (CHUNK, NUM_SRC * NUM_DST, SEQ_LIM), 0, VOCAB)
    dsts_sel = jnp.ones((CHUNK, NUM_SRC * NUM_DST, SEQ_LIM), jnp.float32)

    weights = jax.random.uniform(ks[3], (CHUNK, NUM_SRC, NUM_DST), jnp.float32)
    sentics = jax.random.uniform(ks[4], (CHUNK, NUM_SRC, NUM_DST), jnp.float32,
                                 minval=-1.0, maxval=1.0)
    # masks: drop the last dst per src (each src row keeps >=1 valid dst)
    masks = jnp.ones((CHUNK, NUM_SRC, NUM_DST), jnp.float32)
    masks = masks.at[:, :, NUM_DST - 1].set(0.0)
    src_masks = jnp.sum(masks, axis=-1)                                  # counts
    rels = jax.random.randint(ks[5], (CHUNK, NUM_SRC, NUM_DST), 0, 3)
    utt_idx = jnp.arange(CHUNK)
    label = jax.random.randint(ks[6], (N,), 0, NUM_CLASS)

    cpt_ids, cpt_sel, wsm, rels_i, idx_lbl = pack_chunk_inputs(
        srcs_ids, srcs_sel, dsts_ids, dsts_sel,
        weights, sentics, masks, src_masks, rels, utt_idx, label)

    output, loss = model_forward(param_slab, dial_sel, cpt_ids, cpt_sel,
                                 wsm, rels_i, idx_lbl)
    output = jax.block_until_ready(output)
    loss = jax.block_until_ready(loss)

    assert output.shape == (CHUNK, NUM_CLASS)
    # rows of a log_softmax must sum (in prob space) to ~1
    assert jnp.allclose(jnp.sum(jnp.exp(output), axis=-1), 1.0, atol=1e-4)
    assert bool(jnp.isfinite(loss))
    print("KERNEL_OK")
</pallas_src>

<mosaic_0001>
module attributes {stable_mosaic.version = 11 : i64} {
  func.func @_fused_forward_kernel(%arg0: memref<8x64xf32, #tpu.memory_space<vmem>>, %arg1: memref<240x32xf32, #tpu.memory_space<vmem>>, %arg2: memref<160x5xi32, #tpu.memory_space<vmem>>, %arg3: memref<160x5xf32, #tpu.memory_space<vmem>>, %arg4: memref<4x8x4x4xf32, #tpu.memory_space<vmem>>, %arg5: memref<8x4x4xi32, #tpu.memory_space<vmem>>, %arg6: memref<8x2xi32, #tpu.memory_space<vmem>>, %arg7: memref<8x4xf32, #tpu.memory_space<vmem>>, %arg8: memref<1x1xf32, #tpu.memory_space<vmem>>, %arg9: memref<160x32xf32, #tpu.memory_space<vmem>>, %arg10: memref<8x4x32xf32, #tpu.memory_space<vmem>>, %arg11: memref<8x4x4x32xf32, #tpu.memory_space<vmem>>) attributes {dimension_semantics = [], scalar_prefetch = 0 : i64, scratch_operands = 3 : i64, tpu.core_type = #tpu.core_type<tc>} {
    %c0 = arith.constant 0 : index
    %c0_0 = arith.constant 0 : index
    %0 = vector.load %arg1[%c0, %c0_0] : memref<240x32xf32, #tpu.memory_space<vmem>>, vector<64x32xf32>
    %c64 = arith.constant 64 : index
    %c0_1 = arith.constant 0 : index
    %1 = vector.load %arg1[%c64, %c0_1] : memref<240x32xf32, #tpu.memory_space<vmem>>, vector<32x32xf32>
    %c96 = arith.constant 96 : index
    %c0_2 = arith.constant 0 : index
    %2 = vector.load %arg1[%c96, %c0_2] : memref<240x32xf32, #tpu.memory_space<vmem>>, vector<32x32xf32>
    %c128 = arith.constant 128 : index
    %c0_3 = arith.constant 0 : index
    %3 = vector.load %arg1[%c128, %c0_3] : memref<240x32xf32, #tpu.memory_space<vmem>>, vector<32x4xf32>
    %c160 = arith.constant 160 : index
    %c0_4 = arith.constant 0 : index
    %4 = vector.load %arg1[%c160, %c0_4] : memref<240x32xf32, #tpu.memory_space<vmem>>, vector<3x32xf32>
    %c168 = arith.constant 168 : index
    %c0_5 = arith.constant 0 : index
    %5 = vector.load %arg1[%c168, %c0_5] : memref<240x32xf32, #tpu.memory_space<vmem>>, vector<64x32xf32>
    %c232 = arith.constant 232 : index
    %c0_6 = arith.constant 0 : index
    %6 = vector.load %arg1[%c232, %c0_6] : memref<240x32xf32, #tpu.memory_space<vmem>>, vector<1x32xf32>
    %c233 = arith.constant 233 : index
    %c0_7 = arith.constant 0 : index
    %7 = vector.load %arg1[%c233, %c0_7] : memref<240x32xf32, #tpu.memory_space<vmem>>, vector<1x32xf32>
    %c234 = arith.constant 234 : index
    %c0_8 = arith.constant 0 : index
    %8 = vector.load %arg1[%c234, %c0_8] : memref<240x32xf32, #tpu.memory_space<vmem>>, vector<1x32xf32>
    %c235 = arith.constant 235 : index
    %c0_9 = arith.constant 0 : index
    %9 = vector.load %arg1[%c235, %c0_9] : memref<240x32xf32, #tpu.memory_space<vmem>>, vector<1x4xf32>
    %c0_10 = arith.constant 0 : index
    %c0_11 = arith.constant 0 : index
    %10 = vector.load %arg0[%c0_10, %c0_11] : memref<8x64xf32, #tpu.memory_space<vmem>>, vector<8x64xf32>
    %cst = arith.constant dense<0.000000e+00> : vector<8x32xf32>
    %11 = tpu.matmul %10, %0, %cst {dimension_numbers = #tpu.dot_dimension_numbers<[1], [0], [0], [1], [0, 0, 1, 1], [], []>} : vector<8x64xf32>, vector<64x32xf32>, vector<8x32xf32> -> vector<8x32xf32>
    %12 = vector.broadcast %6 : vector<1x32xf32> to vector<8x32xf32>
    %13 = arith.addf %11, %12 : vector<8x32xf32>
    %c0_12 = arith.constant 0 : index
    %c0_13 = arith.constant 0 : index
    %14 = vector.load %arg6[%c0_12, %c0_13] : memref<8x2xi32, #tpu.memory_space<vmem>>, vector<8x1xi32>
    %15 = tpu.iota {dimensions = array<i32: 1>} : vector<8x8xi32>
    %16 = vector.broadcast %14 : vector<8x1xi32> to vector<8x8xi32>
    %17 = arith.cmpi eq, %15, %16 : vector<8x8xi32>
    %18 = arith.extui %17 : vector<8x8xi1> to vector<8x8xi32>
    %19 = arith.sitofp %18 : vector<8x8xi32> to vector<8x8xf32>
    %cst_14 = arith.constant dense<0.000000e+00> : vector<8x32xf32>
    %20 = tpu.matmul %19, %13, %cst_14 {dimension_numbers = #tpu.dot_dimension_numbers<[1], [0], [0], [1], [0, 0, 1, 1], [], []>} : vector<8x8xf32>, vector<8x32xf32>, vector<8x32xf32> -> vector<8x32xf32>
    %c0_15 = arith.constant 0 : index
    %c0_16 = arith.constant 0 : index
    %21 = vector.load %arg2[%c0_15, %c0_16] : memref<160x5xi32, #tpu.memory_space<vmem>>, vector<160x5xi32>
    %c0_17 = arith.constant 0 : index
    %c0_18 = arith.constant 0 : index
    %22 = vector.load %arg3[%c0_17, %c0_18] : memref<160x5xf32, #tpu.memory_space<vmem>>, vector<160x5xf32>
    %23 = tpu.iota {dimensions = array<i32: 2>} : vector<160x5x64xi32>
    %24 = vector.shape_cast %21 : vector<160x5xi32> to vector<160x5x1xi32>
    %25 = vector.broadcast %24 : vector<160x5x1xi32> to vector<160x5x64xi32>
    %26 = arith.cmpi eq, %23, %25 : vector<160x5x64xi32>
    %27 = arith.extui %26 : vector<160x5x64xi1> to vector<160x5x64xi32>
    %28 = arith.sitofp %27 : vector<160x5x64xi32> to vector<160x5x64xf32>
    %29 = vector.shape_cast %22 : vector<160x5xf32> to vector<160x5x1xf32>
    %30 = vector.broadcast %29 : vector<160x5x1xf32> to vector<160x5x64xf32>
    %31 = arith.mulf %28, %30 : vector<160x5x64xf32>
    %cst_19 = arith.constant dense<0.000000e+00> : vector<160x64xf32>
    %32 = vector.multi_reduction <add>, %31, %cst_19 [1] : vector<160x5x64xf32> to vector<160x64xf32>
    %cst_20 = arith.constant dense<0.000000e+00> : vector<160xf32>
    %33 = vector.multi_reduction <add>, %22, %cst_20 [1] : vector<160x5xf32> to vector<160xf32>
    %34 = vector.shape_cast %33 : vector<160xf32> to vector<160x1xf32>
    %cst_21 = arith.constant 9.99999993E-9 : f32
    %35 = vector.broadcast %cst_21 : f32 to vector<160x1xf32>
    %36 = arith.maximumf %34, %35 : vector<160x1xf32>
    %37 = tpu.reciprocal %36 {approx = true} : vector<160x1xf32> -> vector<160x1xf32>
    %cst_22 = arith.constant dense<0.000000e+00> : vector<160x32xf32>
    %38 = tpu.matmul %32, %5, %cst_22 {dimension_numbers = #tpu.dot_dimension_numbers<[1], [0], [0], [1], [0, 0, 1, 1], [], []>} : vector<160x64xf32>, vector<64x32xf32>, vector<160x32xf32> -> vector<160x32xf32>
    %39 = vector.broadcast %37 : vector<160x1xf32> to vector<160x32xf32>
    %40 = arith.mulf %38, %39 : vector<160x32xf32>
    %cst_23 = arith.constant dense<0.000000e+00> : vector<160x32xf32>
    %41 = tpu.matmul %40, %1, %cst_23 {dimension_numbers = #tpu.dot_dimension_numbers<[1], [0], [0], [1], [0, 0, 1, 1], [], []>} : vector<160x32xf32>, vector<32x32xf32>, vector<160x32xf32> -> vector<160x32xf32>
    %42 = vector.broadcast %7 : vector<1x32xf32> to vector<160x32xf32>
    %43 = arith.addf %41, %42 : vector<160x32xf32>
    %c0_24 = arith.constant 0 : index
    %c0_25 = arith.constant 0 : index
    %44 = vector.load %arg9[%c0_24, %c0_25] : memref<160x32xf32, #tpu.memory_space<vmem>>, vector<160x32xf32>
    tpu.vector_store %arg9[%c0_24, %c0_25], %43 {strides = array<i32>} : memref<160x32xf32, #tpu.memory_space<vmem>>, vector<160x32xf32>,
    %c0_26 = arith.constant 0 : index
    %c0_27 = arith.constant 0 : index
    %45 = vector.load %arg9[%c0_26, %c0_27] : memref<160x32xf32, #tpu.memory_space<vmem>>, vector<4x32xf32>
    %c0_28 = arith.constant 0 : index
    %c0_29 = arith.constant 0 : index
    %c0_30 = arith.constant 0 : index
    %46 = vector.load %arg10[%c0_28, %c0_29, %c0_30] : memref<8x4x32xf32, #tpu.memory_space<vmem>>, vector<1x4x32xf32>
    %47 = vector.shape_cast %46 : vector<1x4x32xf32> to vector<4x32xf32>
    %48 = vector.shape_cast %45 : vector<4x32xf32> to vector<1x4x32xf32>
    tpu.vector_store %arg10[%c0_28, %c0_29, %c0_30], %48 {strides = array<i32>} : memref<8x4x32xf32, #tpu.memory_space<vmem>>, vector<1x4x32xf32>,
    %c4 = arith.constant 4 : index
    %c0_31 = arith.constant 0 : index
    %49 = vector.load %arg9[%c4, %c0_31] : memref<160x32xf32, #tpu.memory_space<vmem>>, vector<4x32xf32>
    %c1 = arith.constant 1 : index
    %c0_32 = arith.constant 0 : index
    %c0_33 = arith.constant 0 : index
    %50 = vector.load %arg10[%c1, %c0_32, %c0_33] : memref<8x4x32xf32, #tpu.memory_space<vmem>>, vector<1x4x32xf32>
    %51 = vector.shape_cast %50 : vector<1x4x32xf32> to vector<4x32xf32>
    %52 = vector.shape_cast %49 : vector<4x32xf32> to vector<1x4x32xf32>
    tpu.vector_store %arg10[%c1, %c0_32, %c0_33], %52 {strides = array<i32>} : memref<8x4x32xf32, #tpu.memory_space<vmem>>, vector<1x4x32xf32>,
    %c8 = arith.constant 8 : index
    %c0_34 = arith.constant 0 : index
    %53 = vector.load %arg9[%c8, %c0_34] : memref<160x32xf32, #tpu.memory_space<vmem>>, vector<4x32xf32>
    %c2 = arith.constant 2 : index
    %c0_35 = arith.constant 0 : index
    %c0_36 = arith.constant 0 : index
    %54 = vector.load %arg10[%c2, %c0_35, %c0_36] : memref<8x4x32xf32, #tpu.memory_space<vmem>>, vector<1x4x32xf32>
    %55 = vector.shape_cast %54 : vector<1x4x32xf32> to vector<4x32xf32>
    %56 = vector.shape_cast %53 : vector<4x32xf32> to vector<1x4x32xf32>
    tpu.vector_store %arg10[%c2, %c0_35, %c0_36], %56 {strides = array<i32>} : memref<8x4x32xf32, #tpu.memory_space<vmem>>, vector<1x4x32xf32>,
    %c12 = arith.constant 12 : index
    %c0_37 = arith.constant 0 : index
    %57 = vector.load %arg9[%c12, %c0_37] : memref<160x32xf32, #tpu.memory_space<vmem>>, vector<4x32xf32>
    %c3 = arith.constant 3 : index
    %c0_38 = arith.constant 0 : index
    %c0_39 = arith.constant 0 : index
    %58 = vector.load %arg10[%c3, %c0_38, %c0_39] : memref<8x4x32xf32, #tpu.memory_space<vmem>>, vector<1x4x32xf32>
    %59 = vector.shape_cast %58 : vector<1x4x32xf32> to vector<4x32xf32>
    %60 = vector.shape_cast %57 : vector<4x32xf32> to vector<1x4x32xf32>
    tpu.vector_store %arg10[%c3, %c0_38, %c0_39], %60 {strides = array<i32>} : memref<8x4x32xf32, #tpu.memory_space<vmem>>, vector<1x4x32xf32>,
    %c16 = arith.constant 16 : index
    %c0_40 = arith.constant 0 : index
    %61 = vector.load %arg9[%c16, %c0_40] : memref<160x32xf32, #tpu.memory_space<vmem>>, vector<4x32xf32>
    %c4_41 = arith.constant 4 : index
    %c0_42 = arith.constant 0 : index
    %c0_43 = arith.constant 0 : index
    %62 = vector.load %arg10[%c4_41, %c0_42, %c0_43] : memref<8x4x32xf32, #tpu.memory_space<vmem>>, vector<1x4x32xf32>
    %63 = vector.shape_cast %62 : vector<1x4x32xf32> to vector<4x32xf32>
    %64 = vector.shape_cast %61 : vector<4x32xf32> to vector<1x4x32xf32>
    tpu.vector_store %arg10[%c4_41, %c0_42, %c0_43], %64 {strides = array<i32>} : memref<8x4x32xf32, #tpu.memory_space<vmem>>, vector<1x4x32xf32>,
    %c20 = arith.constant 20 : index
    %c0_44 = arith.constant 0 : index
    %65 = vector.load %arg9[%c20, %c0_44] : memref<160x32xf32, #tpu.memory_space<vmem>>, vector<4x32xf32>
    %c5 = arith.constant 5 : index
    %c0_45 = arith.constant 0 : index
    %c0_46 = arith.constant 0 : index
    %66 = vector.load %arg10[%c5, %c0_45, %c0_46] : memref<8x4x32xf32, #tpu.memory_space<vmem>>, vector<1x4x32xf32>
    %67 = vector.shape_cast %66 : vector<1x4x32xf32> to vector<4x32xf32>
    %68 = vector.shape_cast %65 : vector<4x32xf32> to vector<1x4x32xf32>
    tpu.vector_store %arg10[%c5, %c0_45, %c0_46], %68 {strides = array<i32>} : memref<8x4x32xf32, #tpu.memory_space<vmem>>, vector<1x4x32xf32>,
    %c24 = arith.constant 24 : index
    %c0_47 = arith.constant 0 : index
    %69 = vector.load %arg9[%c24, %c0_47] : memref<160x32xf32, #tpu.memory_space<vmem>>, vector<4x32xf32>
    %c6 = arith.constant 6 : index
    %c0_48 = arith.constant 0 : index
    %c0_49 = arith.constant 0 : index
    %70 = vector.load %arg10[%c6, %c0_48, %c0_49] : memref<8x4x32xf32, #tpu.memory_space<vmem>>, vector<1x4x32xf32>
    %71 = vector.shape_cast %70 : vector<1x4x32xf32> to vector<4x32xf32>
    %72 = vector.shape_cast %69 : vector<4x32xf32> to vector<1x4x32xf32>
    tpu.vector_store %arg10[%c6, %c0_48, %c0_49], %72 {strides = array<i32>} : memref<8x4x32xf32, #tpu.memory_space<vmem>>, vector<1x4x32xf32>,
    %c28 = arith.constant 28 : index
    %c0_50 = arith.constant 0 : index
    %73 = vector.load %arg9[%c28, %c0_50] : memref<160x32xf32, #tpu.memory_space<vmem>>, vector<4x32xf32>
    %c7 = arith.constant 7 : index
    %c0_51 = arith.constant 0 : index
    %c0_52 = arith.constant 0 : index
    %74 = vector.load %arg10[%c7, %c0_51, %c0_52] : memref<8x4x32xf32, #tpu.memory_space<vmem>>, vector<1x4x32xf32>
    %75 = vector.shape_cast %74 : vector<1x4x32xf32> to vector<4x32xf32>
    %76 = vector.shape_cast %73 : vector<4x32xf32> to vector<1x4x32xf32>
    tpu.vector_store %arg10[%c7, %c0_51, %c0_52], %76 {strides = array<i32>} : memref<8x4x32xf32, #tpu.memory_space<vmem>>, vector<1x4x32xf32>,
    %c32 = arith.constant 32 : index
    %c0_53 = arith.constant 0 : index
    %77 = vector.load %arg9[%c32, %c0_53] : memref<160x32xf32, #tpu.memory_space<vmem>>, vector<4x32xf32>
    %c0_54 = arith.constant 0 : index
    %c0_55 = arith.constant 0 : index
    %c0_56 = arith.constant 0 : index
    %c0_57 = arith.constant 0 : index
    %78 = vector.load %arg11[%c0_54, %c0_55, %c0_56, %c0_57] : memref<8x4x4x32xf32, #tpu.memory_space<vmem>>, vector<1x1x4x32xf32>
    %79 = vector.shape_cast %78 : vector<1x1x4x32xf32> to vector<4x32xf32>
    %80 = vector.shape_cast %77 : vector<4x32xf32> to vector<1x1x4x32xf32>
    tpu.vector_store %arg11[%c0_54, %c0_55, %c0_56, %c0_57], %80 {strides = array<i32>} : memref<8x4x4x32xf32, #tpu.memory_space<vmem>>, vector<1x1x4x32xf32>,
    %c36 = arith.constant 36 : index
    %c0_58 = arith.constant 0 : index
    %81 = vector.load %arg9[%c36, %c0_58] : memref<160x32xf32, #tpu.memory_space<vmem>>, vector<4x32xf32>
    %c0_59 = arith.constant 0 : index
    %c1_60 = arith.constant 1 : index
    %c0_61 = arith.constant 0 : index
    %c0_62 = arith.constant 0 : index
    %82 = vector.load %arg11[%c0_59, %c1_60, %c0_61, %c0_62] : memref<8x4x4x32xf32, #tpu.memory_space<vmem>>, vector<1x1x4x32xf32>
    %83 = vector.shape_cast %82 : vector<1x1x4x32xf32> to vector<4x32xf32>
    %84 = vector.shape_cast %81 : vector<4x32xf32> to vector<1x1x4x32xf32>
    tpu.vector_store %arg11[%c0_59, %c1_60, %c0_61, %c0_62], %84 {strides = array<i32>} : memref<8x4x4x32xf32, #tpu.memory_space<vmem>>, vector<1x1x4x32xf32>,
    %c40 = arith.constant 40 : index
    %c0_63 = arith.constant 0 : index
    %85 = vector.load %arg9[%c40, %c0_63] : memref<160x32xf32, #tpu.memory_space<vmem>>, vector<4x32xf32>
    %c0_64 = arith.constant 0 : index
    %c2_65 = arith.constant 2 : index
    %c0_66 = arith.constant 0 : index
    %c0_67 = arith.constant 0 : index
    %86 = vector.load %arg11[%c0_64, %c2_65, %c0_66, %c0_67] : memref<8x4x4x32xf32, #tpu.memory_space<vmem>>, vector<1x1x4x32xf32>
    %87 = vector.shape_cast %86 : vector<1x1x4x32xf32> to vector<4x32xf32>
    %88 = vector.shape_cast %85 : vector<4x32xf32> to vector<1x1x4x32xf32>
    tpu.vector_store %arg11[%c0_64, %c2_65, %c0_66, %c0_67], %88 {strides = array<i32>} : memref<8x4x4x32xf32, #tpu.memory_space<vmem>>, vector<1x1x4x32xf32>,
    %c44 = arith.constant 44 : index
    %c0_68 = arith.constant 0 : index
    %89 = vector.load %arg9[%c44, %c0_68] : memref<160x32xf32, #tpu.memory_space<vmem>>, vector<4x32xf32>
    %c0_69 = arith.constant 0 : index
    %c3_70 = arith.constant 3 : index
    %c0_71 = arith.constant 0 : index
    %c0_72 = arith.constant 0 : index
    %90 = vector.load %arg11[%c0_69, %c3_70, %c0_71, %c0_72] : memref<8x4x4x32xf32, #tpu.memory_space<vmem>>, vector<1x1x4x32xf32>
    %91 = vector.shape_cast %90 : vector<1x1x4x32xf32> to vector<4x32xf32>
    %92 = vector.shape_cast %89 : vector<4x32xf32> to vector<1x1x4x32xf32>
    tpu.vector_store %arg11[%c0_69, %c3_70, %c0_71, %c0_72], %92 {strides = array<i32>} : memref<8x4x4x32xf32, #tpu.memory_space<vmem>>, vector<1x1x4x32xf32>,
    %c48 = arith.constant 48 : index
    %c0_73 = arith.constant 0 : index
    %93 = vector.load %arg9[%c48, %c0_73] : memref<160x32xf32, #tpu.memory_space<vmem>>, vector<4x32xf32>
    %c1_74 = arith.constant 1 : index
    %c0_75 = arith.constant 0 : index
    %c0_76 = arith.constant 0 : index
    %c0_77 = arith.constant 0 : index
    %94 = vector.load %arg11[%c1_74, %c0_75, %c0_76, %c0_77] : memref<8x4x4x32xf32, #tpu.memory_space<vmem>>, vector<1x1x4x32xf32>
    %95 = vector.shape_cast %94 : vector<1x1x4x32xf32> to vector<4x32xf32>
    %96 = vector.shape_cast %93 : vector<4x32xf32> to vector<1x1x4x32xf32>
    tpu.vector_store %arg11[%c1_74, %c0_75, %c0_76, %c0_77], %96 {strides = array<i32>} : memref<8x4x4x32xf32, #tpu.memory_space<vmem>>, vector<1x1x4x32xf32>,
    %c52 = arith.constant 52 : index
    %c0_78 = arith.constant 0 : index
    %97 = vector.load %arg9[%c52, %c0_78] : memref<160x32xf32, #tpu.memory_space<vmem>>, vector<4x32xf32>
    %c1_79 = arith.constant 1 : index
    %c1_80 = arith.constant 1 : index
    %c0_81 = arith.constant 0 : index
    %c0_82 = arith.constant 0 : index
    %98 = vector.load %arg11[%c1_79, %c1_80, %c0_81, %c0_82] : memref<8x4x4x32xf32, #tpu.memory_space<vmem>>, vector<1x1x4x32xf32>
    %99 = vector.shape_cast %98 : vector<1x1x4x32xf32> to vector<4x32xf32>
    %100 = vector.shape_cast %97 : vector<4x32xf32> to vector<1x1x4x32xf32>
    tpu.vector_store %arg11[%c1_79, %c1_80, %c0_81, %c0_82], %100 {strides = array<i32>} : memref<8x4x4x32xf32, #tpu.memory_space<vmem>>, vector<1x1x4x32xf32>,
    %c56 = arith.constant 56 : index
    %c0_83 = arith.constant 0 : index
    %101 = vector.load %arg9[%c56, %c0_83] : memref<160x32xf32, #tpu.memory_space<vmem>>, vector<4x32xf32>
    %c1_84 = arith.constant 1 : index
    %c2_85 = arith.constant 2 : index
    %c0_86 = arith.constant 0 : index
    %c0_87 = arith.constant 0 : index
    %102 = vector.load %arg11[%c1_84, %c2_85, %c0_86, %c0_87] : memref<8x4x4x32xf32, #tpu.memory_space<vmem>>, vector<1x1x4x32xf32>
    %103 = vector.shape_cast %102 : vector<1x1x4x32xf32> to vector<4x32xf32>
    %104 = vector.shape_cast %101 : vector<4x32xf32> to vector<1x1x4x32xf32>
    tpu.vector_store %arg11[%c1_84, %c2_85, %c0_86, %c0_87], %104 {strides = array<i32>} : memref<8x4x4x32xf32, #tpu.memory_space<vmem>>, vector<1x1x4x32xf32>,
    %c60 = arith.constant 60 : index
    %c0_88 = arith.constant 0 : index
    %105 = vector.load %arg9[%c60, %c0_88] : memref<160x32xf32, #tpu.memory_space<vmem>>, vector<4x32xf32>
    %c1_89 = arith.constant 1 : index
    %c3_90 = arith.constant 3 : index
    %c0_91 = arith.constant 0 : index
    %c0_92 = arith.constant 0 : index
    %106 = vector.load %arg11[%c1_89, %c3_90, %c0_91, %c0_92] : memref<8x4x4x32xf32, #tpu.memory_space<vmem>>, vector<1x1x4x32xf32>
    %107 = vector.shape_cast %106 : vector<1x1x4x32xf32> to vector<4x32xf32>
    %108 = vector.shape_cast %105 : vector<4x32xf32> to vector<1x1x4x32xf32>
    tpu.vector_store %arg11[%c1_89, %c3_90, %c0_91, %c0_92], %108 {strides = array<i32>} : memref<8x4x4x32xf32, #tpu.memory_space<vmem>>, vector<1x1x4x32xf32>,
    %c64_93 = arith.constant 64 : index
    %c0_94 = arith.constant 0 : index
    %109 = vector.load %arg9[%c64_93, %c0_94] : memref<160x32xf32, #tpu.memory_space<vmem>>, vector<4x32xf32>
    %c2_95 = arith.constant 2 : index
    %c0_96 = arith.constant 0 : index
    %c0_97 = arith.constant 0 : index
    %c0_98 = arith.constant 0 : index
    %110 = vector.load %arg11[%c2_95, %c0_96, %c0_97, %c0_98] : memref<8x4x4x32xf32, #tpu.memory_space<vmem>>, vector<1x1x4x32xf32>
    %111 = vector.shape_cast %110 : vector<1x1x4x32xf32> to vector<4x32xf32>
    %112 = vector.shape_cast %109 : vector<4x32xf32> to vector<1x1x4x32xf32>
    tpu.vector_store %arg11[%c2_95, %c0_96, %c0_97, %c0_98], %112 {strides = array<i32>} : memref<8x4x4x32xf32, #tpu.memory_space<vmem>>, vector<1x1x4x32xf32>,
    %c68 = arith.constant 68 : index
    %c0_99 = arith.constant 0 : index
    %113 = vector.load %arg9[%c68, %c0_99] : memref<160x32xf32, #tpu.memory_space<vmem>>, vector<4x32xf32>
    %c2_100 = arith.constant 2 : index
    %c1_101 = arith.constant 1 : index
    %c0_102 = arith.constant 0 : index
    %c0_103 = arith.constant 0 : index
    %114 = vector.load %arg11[%c2_100, %c1_101, %c0_102, %c0_103] : memref<8x4x4x32xf32, #tpu.memory_space<vmem>>, vector<1x1x4x32xf32>
    %115 = vector.shape_cast %114 : vector<1x1x4x32xf32> to vector<4x32xf32>
    %116 = vector.shape_cast %113 : vector<4x32xf32> to vector<1x1x4x32xf32>
    tpu.vector_store %arg11[%c2_100, %c1_101, %c0_102, %c0_103], %116 {strides = array<i32>} : memref<8x4x4x32xf32, #tpu.memory_space<vmem>>, vector<1x1x4x32xf32>,
    %c72 = arith.constant 72 : index
    %c0_104 = arith.constant 0 : index
    %117 = vector.load %arg9[%c72, %c0_104] : memref<160x32xf32, #tpu.memory_space<vmem>>, vector<4x32xf32>
    %c2_105 = arith.constant 2 : index
    %c2_106 = arith.constant 2 : index
    %c0_107 = arith.constant 0 : index
    %c0_108 = arith.constant 0 : index
    %118 = vector.load %arg11[%c2_105, %c2_106, %c0_107, %c0_108] : memref<8x4x4x32xf32, #tpu.memory_space<vmem>>, vector<1x1x4x32xf32>
    %119 = vector.shape_cast %118 : vector<1x1x4x32xf32> to vector<4x32xf32>
    %120 = vector.shape_cast %117 : vector<4x32xf32> to vector<1x1x4x32xf32>
    tpu.vector_store %arg11[%c2_105, %c2_106, %c0_107, %c0_108], %120 {strides = array<i32>} : memref<8x4x4x32xf32, #tpu.memory_space<vmem>>, vector<1x1x4x32xf32>,
    %c76 = arith.constant 76 : index
    %c0_109 = arith.constant 0 : index
    %121 = vector.load %arg9[%c76, %c0_109] : memref<160x32xf32, #tpu.memory_space<vmem>>, vector<4x32xf32>
    %c2_110 = arith.constant 2 : index
    %c3_111 = arith.constant 3 : index
    %c0_112 = arith.constant 0 : index
    %c0_113 = arith.constant 0 : index
    %122 = vector.load %arg11[%c2_110, %c3_111, %c0_112, %c0_113] : memref<8x4x4x32xf32, #tpu.memory_space<vmem>>, vector<1x1x4x32xf32>
    %123 = vector.shape_cast %122 : vector<1x1x4x32xf32> to vector<4x32xf32>
    %124 = vector.shape_cast %121 : vector<4x32xf32> to vector<1x1x4x32xf32>
    tpu.vector_store %arg11[%c2_110, %c3_111, %c0_112, %c0_113], %124 {strides = array<i32>} : memref<8x4x4x32xf32, #tpu.memory_space<vmem>>, vector<1x1x4x32xf32>,
    %c80 = arith.constant 80 : index
    %c0_114 = arith.constant 0 : index
    %125 = vector.load %arg9[%c80, %c0_114] : memref<160x32xf32, #tpu.memory_space<vmem>>, vector<4x32xf32>
    %c3_115 = arith.constant 3 : index
    %c0_116 = arith.constant 0 : index
    %c0_117 = arith.constant 0 : index
    %c0_118 = arith.constant 0 : index
    %126 = vector.load %arg11[%c3_115, %c0_116, %c0_117, %c0_118] : memref<8x4x4x32xf32, #tpu.memory_space<vmem>>, vector<1x1x4x32xf32>
    %127 = vector.shape_cast %126 : vector<1x1x4x32xf32> to vector<4x32xf32>
    %128 = vector.shape_cast %125 : vector<4x32xf32> to vector<1x1x4x32xf32>
    tpu.vector_store %arg11[%c3_115, %c0_116, %c0_117, %c0_118], %128 {strides = array<i32>} : memref<8x4x4x32xf32, #tpu.memory_space<vmem>>, vector<1x1x4x32xf32>,
    %c84 = arith.constant 84 : index
    %c0_119 = arith.constant 0 : index
    %129 = vector.load %arg9[%c84, %c0_119] : memref<160x32xf32, #tpu.memory_space<vmem>>, vector<4x32xf32>
    %c3_120 = arith.constant 3 : index
    %c1_121 = arith.constant 1 : index
    %c0_122 = arith.constant 0 : index
    %c0_123 = arith.constant 0 : index
    %130 = vector.load %arg11[%c3_120, %c1_121, %c0_122, %c0_123] : memref<8x4x4x32xf32, #tpu.memory_space<vmem>>, vector<1x1x4x32xf32>
    %131 = vector.shape_cast %130 : vector<1x1x4x32xf32> to vector<4x32xf32>
    %132 = vector.shape_cast %129 : vector<4x32xf32> to vector<1x1x4x32xf32>
    tpu.vector_store %arg11[%c3_120, %c1_121, %c0_122, %c0_123], %132 {strides = array<i32>} : memref<8x4x4x32xf32, #tpu.memory_space<vmem>>, vector<1x1x4x32xf32>,
    %c88 = arith.constant 88 : index
    %c0_124 = arith.constant 0 : index
    %133 = vector.load %arg9[%c88, %c0_124] : memref<160x32xf32, #tpu.memory_space<vmem>>, vector<4x32xf32>
    %c3_125 = arith.constant 3 : index
    %c2_126 = arith.constant 2 : index
    %c0_127 = arith.constant 0 : index
    %c0_128 = arith.constant 0 : index
    %134 = vector.load %arg11[%c3_125, %c2_126, %c0_127, %c0_128] : memref<8x4x4x32xf32, #tpu.memory_space<vmem>>, vector<1x1x4x32xf32>
    %135 = vector.shape_cast %134 : vector<1x1x4x32xf32> to vector<4x32xf32>
    %136 = vector.shape_cast %133 : vector<4x32xf32> to vector<1x1x4x32xf32>
    tpu.vector_store %arg11[%c3_125, %c2_126, %c0_127, %c0_128], %136 {strides = array<i32>} : memref<8x4x4x32xf32, #tpu.memory_space<vmem>>, vector<1x1x4x32xf32>,
    %c92 = arith.constant 92 : index
    %c0_129 = arith.constant 0 : index
    %137 = vector.load %arg9[%c92, %c0_129] : memref<160x32xf32, #tpu.memory_space<vmem>>, vector<4x32xf32>
    %c3_130 = arith.constant 3 : index
    %c3_131 = arith.constant 3 : index
    %c0_132 = arith.constant 0 : index
    %c0_133 = arith.constant 0 : index
    %138 = vector.load %arg11[%c3_130, %c3_131, %c0_132, %c0_133] : memref<8x4x4x32xf32, #tpu.memory_space<vmem>>, vector<1x1x4x32xf32>
    %139 = vector.shape_cast %138 : vector<1x1x4x32xf32> to vector<4x32xf32>
    %140 = vector.shape_cast %137 : vector<4x32xf32> to vector<1x1x4x32xf32>
    tpu.vector_store %arg11[%c3_130, %c3_131, %c0_132, %c0_133], %140 {strides = array<i32>} : memref<8x4x4x32xf32, #tpu.memory_space<vmem>>, vector<1x1x4x32xf32>,
    %c96_134 = arith.constant 96 : index
    %c0_135 = arith.constant 0 : index
    %141 = vector.load %arg9[%c96_134, %c0_135] : memref<160x32xf32, #tpu.memory_space<vmem>>, vector<4x32xf32>
    %c4_136 = arith.constant 4 : index
    %c0_137 = arith.constant 0 : index
    %c0_138 = arith.constant 0 : index
    %c0_139 = arith.constant 0 : index
    %142 = vector.load %arg11[%c4_136, %c0_137, %c0_138, %c0_139] : memref<8x4x4x32xf32, #tpu.memory_space<vmem>>, vector<1x1x4x32xf32>
    %143 = vector.shape_cast %142 : vector<1x1x4x32xf32> to vector<4x32xf32>
    %144 = vector.shape_cast %141 : vector<4x32xf32> to vector<1x1x4x32xf32>
    tpu.vector_store %arg11[%c4_136, %c0_137, %c0_138, %c0_139], %144 {strides = array<i32>} : memref<8x4x4x32xf32, #tpu.memory_space<vmem>>, vector<1x1x4x32xf32>,
    %c100 = arith.constant 100 : index
    %c0_140 = arith.constant 0 : index
    %145 = vector.load %arg9[%c100, %c0_140] : memref<160x32xf32, #tpu.memory_space<vmem>>, vector<4x32xf32>
    %c4_141 = arith.constant 4 : index
    %c1_142 = arith.constant 1 : index
    %c0_143 = arith.constant 0 : index
    %c0_144 = arith.constant 0 : index
    %146 = vector.load %arg11[%c4_141, %c1_142, %c0_143, %c0_144] : memref<8x4x4x32xf32, #tpu.memory_space<vmem>>, vector<1x1x4x32xf32>
    %147 = vector.shape_cast %146 : vector<1x1x4x32xf32> to vector<4x32xf32>
    %148 = vector.shape_cast %145 : vector<4x32xf32> to vector<1x1x4x32xf32>
    tpu.vector_store %arg11[%c4_141, %c1_142, %c0_143, %c0_144], %148 {strides = array<i32>} : memref<8x4x4x32xf32, #tpu.memory_space<vmem>>, vector<1x1x4x32xf32>,
    %c104 = arith.constant 104 : index
    %c0_145 = arith.constant 0 : index
    %149 = vector.load %arg9[%c104, %c0_145] : memref<160x32xf32, #tpu.memory_space<vmem>>, vector<4x32xf32>
    %c4_146 = arith.constant 4 : index
    %c2_147 = arith.constant 2 : index
    %c0_148 = arith.constant 0 : index
    %c0_149 = arith.constant 0 : index
    %150 = vector.load %arg11[%c4_146, %c2_147, %c0_148, %c0_149] : memref<8x4x4x32xf32, #tpu.memory_space<vmem>>, vector<1x1x4x32xf32>
    %151 = vector.shape_cast %150 : vector<1x1x4x32xf32> to vector<4x32xf32>
    %152 = vector.shape_cast %149 : vector<4x32xf32> to vector<1x1x4x32xf32>
    tpu.vector_store %arg11[%c4_146, %c2_147, %c0_148, %c0_149], %152 {strides = array<i32>} : memref<8x4x4x32xf32, #tpu.memory_space<vmem>>, vector<1x1x4x32xf32>,
    %c108 = arith.constant 108 : index
    %c0_150 = arith.constant 0 : index
    %153 = vector.load %arg9[%c108, %c0_150] : memref<160x32xf32, #tpu.memory_space<vmem>>, vector<4x32xf32>
    %c4_151 = arith.constant 4 : index
    %c3_152 = arith.constant 3 : index
    %c0_153 = arith.constant 0 : index
    %c0_154 = arith.constant 0 : index
    %154 = vector.load %arg11[%c4_151, %c3_152, %c0_153, %c0_154] : memref<8x4x4x32xf32, #tpu.memory_space<vmem>>, vector<1x1x4x32xf32>
    %155 = vector.shape_cast %154 : vector<1x1x4x32xf32> to vector<4x32xf32>
    %156 = vector.shape_cast %153 : vector<4x32xf32> to vector<1x1x4x32xf32>
    tpu.vector_store %arg11[%c4_151, %c3_152, %c0_153, %c0_154], %156 {strides = array<i32>} : memref<8x4x4x32xf32, #tpu.memory_space<vmem>>, vector<1x1x4x32xf32>,
    %c112 = arith.constant 112 : index
    %c0_155 = arith.constant 0 : index
    %157 = vector.load %arg9[%c112, %c0_155] : memref<160x32xf32, #tpu.memory_space<vmem>>, vector<4x32xf32>
    %c5_156 = arith.constant 5 : index
    %c0_157 = arith.constant 0 : index
    %c0_158 = arith.constant 0 : index
    %c0_159 = arith.constant 0 : index
    %158 = vector.load %arg11[%c5_156, %c0_157, %c0_158, %c0_159] : memref<8x4x4x32xf32, #tpu.memory_space<vmem>>, vector<1x1x4x32xf32>
    %159 = vector.shape_cast %158 : vector<1x1x4x32xf32> to vector<4x32xf32>
    %160 = vector.shape_cast %157 : vector<4x32xf32> to vector<1x1x4x32xf32>
    tpu.vector_store %arg11[%c5_156, %c0_157, %c0_158, %c0_159], %160 {strides = array<i32>} : memref<8x4x4x32xf32, #tpu.memory_space<vmem>>, vector<1x1x4x32xf32>,
    %c116 = arith.constant 116 : index
    %c0_160 = arith.constant 0 : index
    %161 = vector.load %arg9[%c116, %c0_160] : memref<160x32xf32, #tpu.memory_space<vmem>>, vector<4x32xf32>
    %c5_161 = arith.constant 5 : index
    %c1_162 = arith.constant 1 : index
    %c0_163 = arith.constant 0 : index
    %c0_164 = arith.constant 0 : index
    %162 = vector.load %arg11[%c5_161, %c1_162, %c0_163, %c0_164] : memref<8x4x4x32xf32, #tpu.memory_space<vmem>>, vector<1x1x4x32xf32>
    %163 = vector.shape_cast %162 : vector<1x1x4x32xf32> to vector<4x32xf32>
    %164 = vector.shape_cast %161 : vector<4x32xf32> to vector<1x1x4x32xf32>
    tpu.vector_store %arg11[%c5_161, %c1_162, %c0_163, %c0_164], %164 {strides = array<i32>} : memref<8x4x4x32xf32, #tpu.memory_space<vmem>>, vector<1x1x4x32xf32>,
    %c120 = arith.constant 120 : index
    %c0_165 = arith.constant 0 : index
    %165 = vector.load %arg9[%c120, %c0_165] : memref<160x32xf32, #tpu.memory_space<vmem>>, vector<4x32xf32>
    %c5_166 = arith.constant 5 : index
    %c2_167 = arith.constant 2 : index
    %c0_168 = arith.constant 0 : index
    %c0_169 = arith.constant 0 : index
    %166 = vector.load %arg11[%c5_166, %c2_167, %c0_168, %c0_169] : memref<8x4x4x32xf32, #tpu.memory_space<vmem>>, vector<1x1x4x32xf32>
    %167 = vector.shape_cast %166 : vector<1x1x4x32xf32> to vector<4x32xf32>
    %168 = vector.shape_cast %165 : vector<4x32xf32> to vector<1x1x4x32xf32>
    tpu.vector_store %arg11[%c5_166, %c2_167, %c0_168, %c0_169], %168 {strides = array<i32>} : memref<8x4x4x32xf32, #tpu.memory_space<vmem>>, vector<1x1x4x32xf32>,
    %c124 = arith.constant 124 : index
    %c0_170 = arith.constant 0 : index
    %169 = vector.load %arg9[%c124, %c0_170] : memref<160x32xf32, #tpu.memory_space<vmem>>, vector<4x32xf32>
    %c5_171 = arith.constant 5 : index
    %c3_172 = arith.constant 3 : index
    %c0_173 = arith.constant 0 : index
    %c0_174 = arith.constant 0 : index
    %170 = vector.load %arg11[%c5_171, %c3_172, %c0_173, %c0_174] : memref<8x4x4x32xf32, #tpu.memory_space<vmem>>, vector<1x1x4x32xf32>
    %171 = vector.shape_cast %170 : vector<1x1x4x32xf32> to vector<4x32xf32>
    %172 = vector.shape_cast %169 : vector<4x32xf32> to vector<1x1x4x32xf32>
    tpu.vector_store %arg11[%c5_171, %c3_172, %c0_173, %c0_174], %172 {strides = array<i32>} : memref<8x4x4x32xf32, #tpu.memory_space<vmem>>, vector<1x1x4x32xf32>,
    %c128_175 = arith.constant 128 : index
    %c0_176 = arith.constant 0 : index
    %173 = vector.load %arg9[%c128_175, %c0_176] : memref<160x32xf32, #tpu.memory_space<vmem>>, vector<4x32xf32>
    %c6_177 = arith.constant 6 : index
    %c0_178 = arith.constant 0 : index
    %c0_179 = arith.constant 0 : index
    %c0_180 = arith.constant 0 : index
    %174 = vector.load %arg11[%c6_177, %c0_178, %c0_179, %c0_180] : memref<8x4x4x32xf32, #tpu.memory_space<vmem>>, vector<1x1x4x32xf32>
    %175 = vector.shape_cast %174 : vector<1x1x4x32xf32> to vector<4x32xf32>
    %176 = vector.shape_cast %173 : vector<4x32xf32> to vector<1x1x4x32xf32>
    tpu.vector_store %arg11[%c6_177, %c0_178, %c0_179, %c0_180], %176 {strides = array<i32>} : memref<8x4x4x32xf32, #tpu.memory_space<vmem>>, vector<1x1x4x32xf32>,
    %c132 = arith.constant 132 : index
    %c0_181 = arith.constant 0 : index
    %177 = vector.load %arg9[%c132, %c0_181] : memref<160x32xf32, #tpu.memory_space<vmem>>, vector<4x32xf32>
    %c6_182 = arith.constant 6 : index
    %c1_183 = arith.constant 1 : index
    %c0_184 = arith.constant 0 : index
    %c0_185 = arith.constant 0 : index
    %178 = vector.load %arg11[%c6_182, %c1_183, %c0_184, %c0_185] : memref<8x4x4x32xf32, #tpu.memory_space<vmem>>, vector<1x1x4x32xf32>
    %179 = vector.shape_cast %178 : vector<1x1x4x32xf32> to vector<4x32xf32>
    %180 = vector.shape_cast %177 : vector<4x32xf32> to vector<1x1x4x32xf32>
    tpu.vector_store %arg11[%c6_182, %c1_183, %c0_184, %c0_185], %180 {strides = array<i32>} : memref<8x4x4x32xf32, #tpu.memory_space<vmem>>, vector<1x1x4x32xf32>,
    %c136 = arith.constant 136 : index
    %c0_186 = arith.constant 0 : index
    %181 = vector.load %arg9[%c136, %c0_186] : memref<160x32xf32, #tpu.memory_space<vmem>>, vector<4x32xf32>
    %c6_187 = arith.constant 6 : index
    %c2_188 = arith.constant 2 : index
    %c0_189 = arith.constant 0 : index
    %c0_190 = arith.constant 0 : index
    %182 = vector.load %arg11[%c6_187, %c2_188, %c0_189, %c0_190] : memref<8x4x4x32xf32, #tpu.memory_space<vmem>>, vector<1x1x4x32xf32>
    %183 = vector.shape_cast %182 : vector<1x1x4x32xf32> to vector<4x32xf32>
    %184 = vector.shape_cast %181 : vector<4x32xf32> to vector<1x1x4x32xf32>
    tpu.vector_store %arg11[%c6_187, %c2_188, %c0_189, %c0_190], %184 {strides = array<i32>} : memref<8x4x4x32xf32, #tpu.memory_space<vmem>>, vector<1x1x4x32xf32>,
    %c140 = arith.constant 140 : index
    %c0_191 = arith.constant 0 : index
    %185 = vector.load %arg9[%c140, %c0_191] : memref<160x32xf32, #tpu.memory_space<vmem>>, vector<4x32xf32>
    %c6_192 = arith.constant 6 : index
    %c3_193 = arith.constant 3 : index
    %c0_194 = arith.constant 0 : index
    %c0_195 = arith.constant 0 : index
    %186 = vector.load %arg11[%c6_192, %c3_193, %c0_194, %c0_195] : memref<8x4x4x32xf32, #tpu.memory_space<vmem>>, vector<1x1x4x32xf32>
    %187 = vector.shape_cast %186 : vector<1x1x4x32xf32> to vector<4x32xf32>
    %188 = vector.shape_cast %185 : vector<4x32xf32> to vector<1x1x4x32xf32>
    tpu.vector_store %arg11[%c6_192, %c3_193, %c0_194, %c0_195], %188 {strides = array<i32>} : memref<8x4x4x32xf32, #tpu.memory_space<vmem>>, vector<1x1x4x32xf32>,
    %c144 = arith.constant 144 : index
    %c0_196 = arith.constant 0 : index
    %189 = vector.load %arg9[%c144, %c0_196] : memref<160x32xf32, #tpu.memory_space<vmem>>, vector<4x32xf32>
    %c7_197 = arith.constant 7 : index
    %c0_198 = arith.constant 0 : index
    %c0_199 = arith.constant 0 : index
    %c0_200 = arith.constant 0 : index
    %190 = vector.load %arg11[%c7_197, %c0_198, %c0_199, %c0_200] : memref<8x4x4x32xf32, #tpu.memory_space<vmem>>, vector<1x1x4x32xf32>
    %191 = vector.shape_cast %190 : vector<1x1x4x32xf32> to vector<4x32xf32>
    %192 = vector.shape_cast %189 : vector<4x32xf32> to vector<1x1x4x32xf32>
    tpu.vector_store %arg11[%c7_197, %c0_198, %c0_199, %c0_200], %192 {strides = array<i32>} : memref<8x4x4x32xf32, #tpu.memory_space<vmem>>, vector<1x1x4x32xf32>,
    %c148 = arith.constant 148 : index
    %c0_201 = arith.constant 0 : index
    %193 = vector.load %arg9[%c148, %c0_201] : memref<160x32xf32, #tpu.memory_space<vmem>>, vector<4x32xf32>
    %c7_202 = arith.constant 7 : index
    %c1_203 = arith.constant 1 : index
    %c0_204 = arith.constant 0 : index
    %c0_205 = arith.constant 0 : index
    %194 = vector.load %arg11[%c7_202, %c1_203, %c0_204, %c0_205] : memref<8x4x4x32xf32, #tpu.memory_space<vmem>>, vector<1x1x4x32xf32>
    %195 = vector.shape_cast %194 : vector<1x1x4x32xf32> to vector<4x32xf32>
    %196 = vector.shape_cast %193 : vector<4x32xf32> to vector<1x1x4x32xf32>
    tpu.vector_store %arg11[%c7_202, %c1_203, %c0_204, %c0_205], %196 {strides = array<i32>} : memref<8x4x4x32xf32, #tpu.memory_space<vmem>>, vector<1x1x4x32xf32>,
    %c152 = arith.constant 152 : index
    %c0_206 = arith.constant 0 : index
    %197 = vector.load %arg9[%c152, %c0_206] : memref<160x32xf32, #tpu.memory_space<vmem>>, vector<4x32xf32>
    %c7_207 = arith.constant 7 : index
    %c2_208 = arith.constant 2 : index
    %c0_209 = arith.constant 0 : index
    %c0_210 = arith.constant 0 : index
    %198 = vector.load %arg11[%c7_207, %c2_208, %c0_209, %c0_210] : memref<8x4x4x32xf32, #tpu.memory_space<vmem>>, vector<1x1x4x32xf32>
    %199 = vector.shape_cast %198 : vector<1x1x4x32xf32> to vector<4x32xf32>
    %200 = vector.shape_cast %197 : vector<4x32xf32> to vector<1x1x4x32xf32>
    tpu.vector_store %arg11[%c7_207, %c2_208, %c0_209, %c0_210], %200 {strides = array<i32>} : memref<8x4x4x32xf32, #tpu.memory_space<vmem>>, vector<1x1x4x32xf32>,
    %c156 = arith.constant 156 : index
    %c0_211 = arith.constant 0 : index
    %201 = vector.load %arg9[%c156, %c0_211] : memref<160x32xf32, #tpu.memory_space<vmem>>, vector<4x32xf32>
    %c7_212 = arith.constant 7 : index
    %c3_213 = arith.constant 3 : index
    %c0_214 = arith.constant 0 : index
    %c0_215 = arith.constant 0 : index
    %202 = vector.load %arg11[%c7_212, %c3_213, %c0_214, %c0_215] : memref<8x4x4x32xf32, #tpu.memory_space<vmem>>, vector<1x1x4x32xf32>
    %203 = vector.shape_cast %202 : vector<1x1x4x32xf32> to vector<4x32xf32>
    %204 = vector.shape_cast %201 : vector<4x32xf32> to vector<1x1x4x32xf32>
    tpu.vector_store %arg11[%c7_212, %c3_213, %c0_214, %c0_215], %204 {strides = array<i32>} : memref<8x4x4x32xf32, #tpu.memory_space<vmem>>, vector<1x1x4x32xf32>,
    %c0_216 = arith.constant 0 : index
    %c0_217 = arith.constant 0 : index
    %c0_218 = arith.constant 0 : index
    %205 = vector.load %arg10[%c0_216, %c0_217, %c0_218] : memref<8x4x32xf32, #tpu.memory_space<vmem>>, vector<8x4x32xf32>
    %c0_219 = arith.constant 0 : index
    %c0_220 = arith.constant 0 : index
    %c0_221 = arith.constant 0 : index
    %c0_222 = arith.constant 0 : index
    %206 = vector.load %arg11[%c0_219, %c0_220, %c0_221, %c0_222] : memref<8x4x4x32xf32, #tpu.memory_space<vmem>>, vector<8x4x4x32xf32>
    %c0_223 = arith.constant 0 : index
    %c0_224 = arith.constant 0 : index
    %c0_225 = arith.constant 0 : index
    %c0_226 = arith.constant 0 : index
    %207 = vector.load %arg4[%c0_223, %c0_224, %c0_225, %c0_226] : memref<4x8x4x4xf32, #tpu.memory_space<vmem>>, vector<1x8x4x4xf32>
    %208 = vector.shape_cast %207 : vector<1x8x4x4xf32> to vector<8x4x4xf32>
    %c1_227 = arith.constant 1 : index
    %c0_228 = arith.constant 0 : index
    %c0_229 = arith.constant 0 : index
    %c0_230 = arith.constant 0 : index
    %209 = vector.load %arg4[%c1_227, %c0_228, %c0_229, %c0_230] : memref<4x8x4x4xf32, #tpu.memory_space<vmem>>, vector<1x8x4x4xf32>
    %210 = vector.shape_cast %209 : vector<1x8x4x4xf32> to vector<8x4x4xf32>
    %c2_231 = arith.constant 2 : index
    %c0_232 = arith.constant 0 : index
    %c0_233 = arith.constant 0 : index
    %c0_234 = arith.constant 0 : index
    %211 = vector.load %arg4[%c2_231, %c0_232, %c0_233, %c0_234] : memref<4x8x4x4xf32, #tpu.memory_space<vmem>>, vector<1x8x4x4xf32>
    %212 = vector.shape_cast %211 : vector<1x8x4x4xf32> to vector<8x4x4xf32>
    %c3_235 = arith.constant 3 : index
    %c0_236 = arith.constant 0 : index
    %c0_237 = arith.constant 0 : index
    %c0_238 = arith.constant 0 : index
    %213 = vector.load %arg4[%c3_235, %c0_236, %c0_237, %c0_238] : memref<4x8x4x4xf32, #tpu.memory_space<vmem>>, vector<1x8x4x4xf32>
    %214 = vector.shape_cast %213 : vector<1x8x4x4xf32> to vector<8x4x4xf32>
    %215 = vector.extract_strided_slice %214 {offsets = [0, 0, 0], sizes = [8, 4, 1], strides = [1, 1, 1]} : vector<8x4x4xf32> to vector<8x4x1xf32>
    %cst_239 = arith.constant 0.000000e+00 : f32
    %216 = vector.broadcast %cst_239 : f32 to vector<8x4x4xf32>
    %217 = arith.cmpf one, %212, %216 : vector<8x4x4xf32>
    %cst_240 = arith.constant 0.000000e+00 : f32
    %218 = vector.broadcast %cst_240 : f32 to vector<8x4x1xf32>
    %219 = arith.cmpf one, %215, %218 : vector<8x4x1xf32>
    %220 = arith.extui %219 : vector<8x4x1xi1> to vector<8x4x1xi32>
    %221 = arith.sitofp %220 : vector<8x4x1xi32> to vector<8x4x1xf32>
    %222 = vector.shape_cast %20 : vector<8x32xf32> to vector<8x1x1x32xf32>
    %223 = vector.broadcast %222 : vector<8x1x1x32xf32> to vector<8x4x4x32xf32>
    %224 = arith.mulf %223, %206 : vector<8x4x4x32xf32>
    %cst_241 = arith.constant dense<0.000000e+00> : vector<8x4x4xf32>
    %225 = vector.multi_reduction <add>, %224, %cst_241 [3] : vector<8x4x4x32xf32> to vector<8x4x4xf32>
    %226 = arith.mulf %222, %222 : vector<8x1x1x32xf32>
    %cst_242 = arith.constant dense<0.000000e+00> : vector<8x1x1xf32>
    %227 = vector.multi_reduction <add>, %226, %cst_242 [3] : vector<8x1x1x32xf32> to vector<8x1x1xf32>
    %228 = math.sqrt %227 : vector<8x1x1xf32>
    %229 = arith.mulf %206, %206 : vector<8x4x4x32xf32>
    %cst_243 = arith.constant dense<0.000000e+00> : vector<8x4x4xf32>
    %230 = vector.multi_reduction <add>, %229, %cst_243 [3] : vector<8x4x4x32xf32> to vector<8x4x4xf32>
    %231 = math.sqrt %230 : vector<8x4x4xf32>
    %232 = vector.broadcast %228 : vector<8x1x1xf32> to vector<8x4x4xf32>
    %233 = arith.mulf %232, %231 : vector<8x4x4xf32>
    %cst_244 = arith.constant 9.99999993E-9 : f32
    %234 = vector.broadcast %cst_244 : f32 to vector<8x4x4xf32>
    %235 = arith.maximumf %233, %234 : vector<8x4x4xf32>
    %236 = tpu.reciprocal %235 {approx = true} : vector<8x4x4xf32> -> vector<8x4x4xf32>
    %237 = arith.mulf %225, %236 : vector<8x4x4xf32>
    %238 = math.absf %237 : vector<8x4x4xf32>
    %239 = arith.mulf %208, %238 : vector<8x4x4xf32>
    %cst_245 = arith.constant 5.000000e-01 : f32
    %240 = vector.broadcast %cst_245 : f32 to vector<8x4x4xf32>
    %241 = arith.mulf %240, %239 : vector<8x4x4xf32>
    %242 = math.absf %210 : vector<8x4x4xf32>
    %cst_246 = arith.constant 5.000000e-01 : f32
    %243 = vector.broadcast %cst_246 : f32 to vector<8x4x4xf32>
    %244 = arith.mulf %243, %242 : vector<8x4x4xf32>
    %245 = arith.addf %241, %244 : vector<8x4x4xf32>
    %cst_247 = arith.constant -1.000000e+30 : f32
    %246 = vector.broadcast %cst_247 : f32 to vector<8x4x4xf32>
    %247 = arith.select %217, %245, %246 : vector<8x4x4xi1>, vector<8x4x4xf32>
    %cst_248 = arith.constant dense<0xFF800000> : vector<8x4xf32>
    %248 = vector.multi_reduction <maximumf>, %247, %cst_248 [2] : vector<8x4x4xf32> to vector<8x4xf32>
    %249 = vector.shape_cast %248 : vector<8x4xf32> to vector<8x4x1xf32>
    %250 = vector.broadcast %249 : vector<8x4x1xf32> to vector<8x4x4xf32>
    %251 = arith.subf %247, %250 : vector<8x4x4xf32>
    %252 = math.exp %251 : vector<8x4x4xf32>
    %cst_249 = arith.constant dense<0.000000e+00> : vector<8x4xf32>
    %253 = vector.multi_reduction <add>, %252, %cst_249 [2] : vector<8x4x4xf32> to vector<8x4xf32>
    %254 = vector.shape_cast %253 : vector<8x4xf32> to vector<8x4x1xf32>
    %255 = tpu.reciprocal %254 {approx = true} : vector<8x4x1xf32> -> vector<8x4x1xf32>
    %256 = vector.broadcast %255 : vector<8x4x1xf32> to vector<8x4x4xf32>
    %257 = arith.mulf %252, %256 : vector<8x4x4xf32>
    %258 = vector.broadcast %215 : vector<8x4x1xf32> to vector<8x4x4xf32>
    %259 = arith.mulf %258, %257 : vector<8x4x4xf32>
    %260 = vector.shape_cast %259 : vector<8x4x4xf32> to vector<8x4x4x1xf32>
    %261 = vector.broadcast %260 : vector<8x4x4x1xf32> to vector<8x4x4x32xf32>
    %262 = arith.mulf %261, %206 : vector<8x4x4x32xf32>
    %c0_250 = arith.constant 0 : index
    %c0_251 = arith.constant 0 : index
    %c0_252 = arith.constant 0 : index
    %263 = vector.load %arg5[%c0_250, %c0_251, %c0_252] : memref<8x4x4xi32, #tpu.memory_space<vmem>>, vector<8x4x4xi32>
    %264 = vector.shape_cast %263 : vector<8x4x4xi32> to vector<8x4x4x1xi32>
    %c0_i32 = arith.constant 0 : i32
    %265 = vector.broadcast %c0_i32 : i32 to vector<8x4x4x1xi32>
    %266 = arith.cmpi eq, %264, %265 : vector<8x4x4x1xi32>
    %267 = vector.extract_strided_slice %4 {offsets = [0, 0], sizes = [1, 32], strides = [1, 1]} : vector<3x32xf32> to vector<1x32xf32>
    %c1_i32 = arith.constant 1 : i32
    %268 = vector.broadcast %c1_i32 : i32 to vector<8x4x4x1xi32>
    %269 = arith.cmpi eq, %264, %268 : vector<8x4x4x1xi32>
    %270 = vector.extract_strided_slice %4 {offsets = [1, 0], sizes = [1, 32], strides = [1, 1]} : vector<3x32xf32> to vector<1x32xf32>
    %271 = vector.extract_strided_slice %4 {offsets = [2, 0], sizes = [1, 32], strides = [1, 1]} : vector<3x32xf32> to vector<1x32xf32>
    %272 = vector.shape_cast %269 : vector<8x4x4x1xi1> to vector<8x4x4x1xi1>
    %273 = vector.broadcast %272 : vector<8x4x4x1xi1> to vector<8x4x4x32xi1>
    %274 = vector.shape_cast %270 : vector<1x32xf32> to vector<1x1x1x32xf32>
    %275 = vector.broadcast %274 : vector<1x1x1x32xf32> to vector<8x4x4x32xf32>
    %276 = vector.shape_cast %271 : vector<1x32xf32> to vector<1x1x1x32xf32>
    %277 = vector.broadcast %276 : vector<1x1x1x32xf32> to vector<8x4x4x32xf32>
    %278 = arith.select %273, %275, %277 : vector<8x4x4x32xi1>, vector<8x4x4x32xf32>
    %279 = vector.shape_cast %266 : vector<8x4x4x1xi1> to vector<8x4x4x1xi1>
    %280 = vector.broadcast %279 : vector<8x4x4x1xi1> to vector<8x4x4x32xi1>
    %281 = vector.shape_cast %267 : vector<1x32xf32> to vector<1x1x1x32xf32>
    %282 = vector.broadcast %281 : vector<1x1x1x32xf32> to vector<8x4x4x32xf32>
    %283 = arith.select %280, %282, %278 : vector<8x4x4x32xi1>, vector<8x4x4x32xf32>
    %284 = arith.mulf %283, %262 : vector<8x4x4x32xf32>
    %285 = vector.shape_cast %205 : vector<8x4x32xf32> to vector<8x4x1x32xf32>
    %286 = vector.broadcast %285 : vector<8x4x1x32xf32> to vector<8x4x4x32xf32>
    %287 = arith.mulf %286, %284 : vector<8x4x4x32xf32>
    %cst_253 = arith.constant dense<0.000000e+00> : vector<8x4x4xf32>
    %288 = vector.multi_reduction <add>, %287, %cst_253 [3] : vector<8x4x4x32xf32> to vector<8x4x4xf32>
    %cst_254 = arith.constant -1.000000e+30 : f32
    %289 = vector.broadcast %cst_254 : f32 to vector<8x4x4xf32>
    %290 = arith.select %217, %288, %289 : vector<8x4x4xi1>, vector<8x4x4xf32>
    %cst_255 = arith.constant dense<0xFF800000> : vector<8x4xf32>
    %291 = vector.multi_reduction <maximumf>, %290, %cst_255 [2] : vector<8x4x4xf32> to vector<8x4xf32>
    %292 = vector.shape_cast %291 : vector<8x4xf32> to vector<8x4x1xf32>
    %293 = vector.broadcast %292 : vector<8x4x1xf32> to vector<8x4x4xf32>
    %294 = arith.subf %290, %293 : vector<8x4x4xf32>
    %295 = math.exp %294 : vector<8x4x4xf32>
    %cst_256 = arith.constant dense<0.000000e+00> : vector<8x4xf32>
    %296 = vector.multi_reduction <add>, %295, %cst_256 [2] : vector<8x4x4xf32> to vector<8x4xf32>
    %297 = vector.shape_cast %296 : vector<8x4xf32> to vector<8x4x1xf32>
    %298 = tpu.reciprocal %297 {approx = true} : vector<8x4x1xf32> -> vector<8x4x1xf32>
    %299 = vector.broadcast %298 : vector<8x4x1xf32> to vector<8x4x4xf32>
    %300 = arith.mulf %295, %299 : vector<8x4x4xf32>
    %301 = vector.broadcast %221 : vector<8x4x1xf32> to vector<8x4x4xf32>
    %302 = arith.mulf %300, %301 : vector<8x4x4xf32>
    %303 = vector.shape_cast %302 : vector<8x4x4xf32> to vector<8x4x4x1xf32>
    %304 = vector.broadcast %303 : vector<8x4x4x1xf32> to vector<8x4x4x32xf32>
    %305 = arith.mulf %304, %284 : vector<8x4x4x32xf32>
    %cst_257 = arith.constant dense<0.000000e+00> : vector<8x4x32xf32>
    %306 = vector.multi_reduction <add>, %305, %cst_257 [2] : vector<8x4x4x32xf32> to vector<8x4x32xf32>
    %307 = arith.addf %205, %306 : vector<8x4x32xf32>
    %308 = vector.shape_cast %20 : vector<8x32xf32> to vector<8x1x32xf32>
    %309 = vector.broadcast %308 : vector<8x1x32xf32> to vector<8x4x32xf32>
    %310 = arith.mulf %307, %309 : vector<8x4x32xf32>
    %cst_258 = arith.constant dense<0.000000e+00> : vector<8x4xf32>
    %311 = vector.multi_reduction <add>, %310, %cst_258 [2] : vector<8x4x32xf32> to vector<8x4xf32>
    %312 = vector.shape_cast %311 : vector<8x4xf32> to vector<8x4x1xf32>
    %cst_259 = arith.constant dense<0.000000e+00> : vector<8x4xf32>
    %313 = vector.multi_reduction <add>, %212, %cst_259 [2] : vector<8x4x4xf32> to vector<8x4xf32>
    %314 = vector.shape_cast %313 : vector<8x4xf32> to vector<8x4x1xf32>
    %cst_260 = arith.constant 0.000000e+00 : f32
    %315 = vector.broadcast %cst_260 : f32 to vector<8x4x1xf32>
    %316 = arith.cmpf ogt, %314, %315 : vector<8x4x1xf32>
    %cst_261 = arith.constant -1.000000e+30 : f32
    %317 = vector.broadcast %cst_261 : f32 to vector<8x4x1xf32>
    %318 = arith.select %316, %312, %317 : vector<8x4x1xi1>, vector<8x4x1xf32>
    %cst_262 = arith.constant dense<0xFF800000> : vector<8x1xf32>
    %319 = vector.multi_reduction <maximumf>, %318, %cst_262 [1] : vector<8x4x1xf32> to vector<8x1xf32>
    %320 = vector.shape_cast %319 : vector<8x1xf32> to vector<8x1x1xf32>
    %321 = vector.broadcast %320 : vector<8x1x1xf32> to vector<8x4x1xf32>
    %322 = arith.subf %318, %321 : vector<8x4x1xf32>
    %323 = math.exp %322 : vector<8x4x1xf32>
    %cst_263 = arith.constant dense<0.000000e+00> : vector<8x1xf32>
    %324 = vector.multi_reduction <add>, %323, %cst_263 [1] : vector<8x4x1xf32> to vector<8x1xf32>
    %325 = vector.shape_cast %324 : vector<8x1xf32> to vector<8x1x1xf32>
    %326 = tpu.reciprocal %325 {approx = true} : vector<8x1x1xf32> -> vector<8x1x1xf32>
    %327 = vector.broadcast %326 : vector<8x1x1xf32> to vector<8x4x1xf32>
    %328 = arith.mulf %323, %327 : vector<8x4x1xf32>
    %329 = arith.mulf %328, %221 : vector<8x4x1xf32>
    %330 = vector.broadcast %329 : vector<8x4x1xf32> to vector<8x4x32xf32>
    %331 = arith.mulf %330, %307 : vector<8x4x32xf32>
    %cst_264 = arith.constant dense<0.000000e+00> : vector<8x32xf32>
    %332 = vector.multi_reduction <add>, %331, %cst_264 [1] : vector<8x4x32xf32> to vector<8x32xf32>
    %333 = arith.addf %20, %332 : vector<8x32xf32>
    %cst_265 = arith.constant dense<0.000000e+00> : vector<8x32xf32>
    %334 = tpu.matmul %333, %2, %cst_265 {dimension_numbers = #tpu.dot_dimension_numbers<[1], [0], [0], [1], [0, 0, 1, 1], [], []>} : vector<8x32xf32>, vector<32x32xf32>, vector<8x32xf32> -> vector<8x32xf32>
    %335 = vector.broadcast %8 : vector<1x32xf32> to vector<8x32xf32>
    %336 = arith.addf %334, %335 : vector<8x32xf32>
    %337 = math.tanh %336 : vector<8x32xf32>
    %cst_266 = arith.constant dense<0.000000e+00> : vector<8x4xf32>
    %338 = tpu.matmul %337, %3, %cst_266 {dimension_numbers = #tpu.dot_dimension_numbers<[1], [0], [0], [1], [0, 0, 1, 1], [], []>} : vector<8x32xf32>, vector<32x4xf32>, vector<8x4xf32> -> vector<8x4xf32>
    %339 = vector.broadcast %9 : vector<1x4xf32> to vector<8x4xf32>
    %340 = arith.addf %338, %339 : vector<8x4xf32>
    %cst_267 = arith.constant dense<0xFF800000> : vector<8xf32>
    %341 = vector.multi_reduction <maximumf>, %340, %cst_267 [1] : vector<8x4xf32> to vector<8xf32>
    %342 = vector.shape_cast %341 : vector<8xf32> to vector<8x1xf32>
    %343 = vector.broadcast %342 : vector<8x1xf32> to vector<8x4xf32>
    %344 = arith.subf %340, %343 : vector<8x4xf32>
    %345 = math.exp %344 : vector<8x4xf32>
    %cst_268 = arith.constant dense<0.000000e+00> : vector<8xf32>
    %346 = vector.multi_reduction <add>, %345, %cst_268 [1] : vector<8x4xf32> to vector<8xf32>
    %347 = vector.shape_cast %346 : vector<8xf32> to vector<8x1xf32>
    %348 = math.log %347 : vector<8x1xf32>
    %349 = arith.addf %348, %342 : vector<8x1xf32>
    %350 = vector.broadcast %349 : vector<8x1xf32> to vector<8x4xf32>
    %351 = arith.subf %340, %350 : vector<8x4xf32>
    %c0_269 = arith.constant 0 : index
    %c0_270 = arith.constant 0 : index
    %352 = vector.load %arg7[%c0_269, %c0_270] : memref<8x4xf32, #tpu.memory_space<vmem>>, vector<8x4xf32>
    tpu.vector_store %arg7[%c0_269, %c0_270], %351 {strides = array<i32>} : memref<8x4xf32, #tpu.memory_space<vmem>>, vector<8x4xf32>,
    %c0_271 = arith.constant 0 : index
    %c1_272 = arith.constant 1 : index
    %353 = vector.load %arg6[%c0_271, %c1_272] : memref<8x2xi32, #tpu.memory_space<vmem>>, vector<8x1xi32>
    %354 = tpu.iota {dimensions = array<i32: 1>} : vector<8x4xi32>
    %355 = vector.broadcast %353 : vector<8x1xi32> to vector<8x4xi32>
    %356 = arith.cmpi eq, %354, %355 : vector<8x4xi32>
    %357 = arith.extui %356 : vector<8x4xi1> to vector<8x4xi32>
    %358 = arith.sitofp %357 : vector<8x4xi32> to vector<8x4xf32>
    %359 = arith.mulf %358, %351 : vector<8x4xf32>
    %cst_273 = arith.constant dense<0.000000e+00> : vector<8xf32>
    %360 = vector.multi_reduction <add>, %359, %cst_273 [1] : vector<8x4xf32> to vector<8xf32>
    %361 = vector.shape_cast %360 : vector<8xf32> to vector<8x1xf32>
    %cst_274 = arith.constant dense<0.000000e+00> : vector<1xf32>
    %362 = vector.multi_reduction <add>, %361, %cst_274 [0] : vector<8x1xf32> to vector<1xf32>
    %363 = vector.shape_cast %362 : vector<1xf32> to vector<1x1xf32>
    %cst_275 = arith.constant 0.000000e+00 : f32
    %364 = vector.broadcast %cst_275 : f32 to vector<1x1xf32>
    %365 = arith.subf %364, %363 : vector<1x1xf32>
    %cst_276 = arith.constant 1.562500e-02 : f32
    %366 = vector.broadcast %cst_276 : f32 to vector<1x1xf32>
    %367 = arith.mulf %365, %366 : vector<1x1xf32>
    %c0_277 = arith.constant 0 : index
    %c0_278 = arith.constant 0 : index
    %368 = vector.load %arg8[%c0_277, %c0_278] : memref<1x1xf32, #tpu.memory_space<vmem>>, vector<1x1xf32>
    tpu.vector_store %arg8[%c0_277, %c0_278], %367 {strides = array<i32>} : memref<1x1xf32, #tpu.memory_space<vmem>>, vector<1x1xf32>,
    return
  }
}

</mosaic_0001>

<llo_original>
// kernel: model_forward.1
$region0: #{model_forward.1}
  #allocation0 [shape = 'u32[]', space=smem, size = 0x4, offset = 0x4, fixed_abs, tag = 'smem constant byte address 0x4 - core index']
  #allocation1 [shape = 'u32[144,128]{1,0:T(1,128)}', space=vmem, size = 0x12000, scoped, tag = 'internal scratch']
  #allocation2 [shape = 'f32[160,32]{1,0:T(8,128)}', space=vmem, size = 0x14000, scoped, tag = 'scratch operand']
  #allocation3 [shape = 'f32[8,4,32]{2,1,0:T(4,128)}', space=vmem, size = 0x4000, scoped, tag = 'scratch operand']
  #allocation4 [shape = 'f32[8,4,4,32]{3,2,1,0:T(4,128)}', space=vmem, size = 0x10000, scoped, tag = 'scratch operand']
  %s0 = inlined_call_operand.vmem [shape: f32[8,64], index: 0, kind: input, shape index: {}]
  %s1 = inlined_call_operand.vmem [shape: f32[240,32], index: 1, kind: input, shape index: {}]
  %s2 = inlined_call_operand.vmem [shape: s32[160,5], index: 2, kind: input, shape index: {}]
  %s3 = inlined_call_operand.vmem [shape: f32[160,5], index: 3, kind: input, shape index: {}]
  %s4 = inlined_call_operand.vmem [shape: f32[4,8,4,4], index: 4, kind: input, shape index: {}]
  %s5 = inlined_call_operand.vmem [shape: s32[8,4,4], index: 5, kind: input, shape index: {}]
  %s6 = inlined_call_operand.vmem [shape: s32[8,2], index: 6, kind: input, shape index: {}]
  %s7 = inlined_call_operand.vmem [shape: f32[8,4], index: 7, kind: output, shape index: {0}]
  %s8 = inlined_call_operand.hbm [shape: f32[1,1], index: 8, kind: output, shape index: {1}]
  %9 = xla_tuple %s7, %s8
  %s10 = sld [smem:[#allocation0]]
  $region46: #{model_forward.1} parent=0
    _
  %s12 = ssub.s32 1, %s10
  %s13 = scalar_select 0, %s12, %s10
  $region1: #{model_forward.1} parent=0
    #allocation5 [shape = 'u8[512]{0}', space=vmem, size = 0x400, scoped, tag = 'output window, operand 1, single buffered']
    #allocation6 [shape = 's32[1]{0}', space=sflag, size = 0x4, scoped, tag = 'scoped memory for model_forward.1']
    %14 = vsyncpa [#allocation6], 0
    // Predicated region
    $region2: #{model_forward.1} parent=1 // pred_check
      _
    $region3: #{model_forward.1} parent=1 // pred_check_branch
      %16 = sbr.rel (0) target = $region5
    $region4: #{model_forward.1} parent=1 // pred_region
      _
    $region5: #{model_forward.1} parent=1 // pred_fallthru
      _
    // Predicated region
    $region6: #{model_forward.1} parent=1 // pred_check
      _
    $region7: #{model_forward.1} parent=1 // pred_check_branch
      %18 = sbr.rel (0) target = $region9
    $region8: #{model_forward.1} parent=1 // pred_region
      _
    $region9: #{model_forward.1} parent=1 // pred_fallthru
      _
    // Predicated region
    $region10: #{model_forward.1} parent=1 // pred_check
      _
    $region11: #{model_forward.1} parent=1 // pred_check_branch
      %20 = sbr.rel (0) target = $region13
    $region12: #{model_forward.1} parent=1 // pred_region
      _
    $region13: #{model_forward.1} parent=1 // pred_fallthru
      _
    // Predicated region
    $region14: #{model_forward.1} parent=1 // pred_check
      _
    $region15: #{model_forward.1} parent=1 // pred_check_branch
      %22 = sbr.rel (0) target = $region17
    $region16: #{model_forward.1} parent=1 // pred_region
      _
    $region17: #{model_forward.1} parent=1 // pred_fallthru
      _
    // Predicated region
    $region18: #{model_forward.1} parent=1 // pred_check
      _
    $region19: #{model_forward.1} parent=1 // pred_check_branch
      %24 = sbr.rel (0) target = $region21
    $region20: #{model_forward.1} parent=1 // pred_region
      _
    $region21: #{model_forward.1} parent=1 // pred_fallthru
      _
    // Predicated region
    $region22: #{model_forward.1} parent=1 // pred_check
      _
    $region23: #{model_forward.1} parent=1 // pred_check_branch
      %26 = sbr.rel (0) target = $region25
    $region24: #{model_forward.1} parent=1 // pred_region
      _
    $region25: #{model_forward.1} parent=1 // pred_fallthru
      _
    // Predicated region
    $region26: #{model_forward.1} parent=1 // pred_check
      _
    $region27: #{model_forward.1} parent=1 // pred_check_branch
      %28 = sbr.rel (0) target = $region29
    $region28: #{model_forward.1} parent=1 // pred_region
      _
    $region29: #{model_forward.1} parent=1 // pred_fallthru
      _
    %v29 = vld [vmem:[%s1] sm:$0xff]
    %v30 = vld [vmem:[%s1 + $0x8] sm:$0xff]
    %v31 = vld [vmem:[%s1 + $0x10] sm:$0xff]
    %v32 = vld [vmem:[%s1 + $0x18] sm:$0xff]
    %v33 = vld [vmem:[%s1 + $0x20] sm:$0xff]
    %v34 = vld [vmem:[%s1 + $0x28] sm:$0xff]
    %v35 = vld [vmem:[%s1 + $0x30] sm:$0xff]
    %v36 = vld [vmem:[%s1 + $0x38] sm:$0xff]
    %v37 = vld [vmem:[%s1 + $0x40] sm:$0xff]
    %v38 = vld [vmem:[%s1 + $0x48] sm:$0xff]
    %v39 = vld [vmem:[%s1 + $0x50] sm:$0xff]
    %v40 = vld [vmem:[%s1 + $0x58] sm:$0xff]
    %v41 = vld [vmem:[%s1 + $0x60] sm:$0xff]
    %v42 = vld [vmem:[%s1 + $0x68] sm:$0xff]
    %v43 = vld [vmem:[%s1 + $0x70] sm:$0xff]
    %v44 = vld [vmem:[%s1 + $0x78] sm:$0xff]
    %v45 = vld [vmem:[%s1 + $0x80] sm:$0xff]
    %v46 = vld [vmem:[%s1 + $0x88] sm:$0xff]
    %v47 = vld [vmem:[%s1 + $0x90] sm:$0xff]
    %v48 = vld [vmem:[%s1 + $0x98] sm:$0xff]
    %v49 = vld [vmem:[%s1 + $0xa0] sm:$0x7]
    %v50 = vld [vmem:[%s1 + $0xa8] sm:$0xff]
    %v51 = vld [vmem:[%s1 + $0xb0] sm:$0xff]
    %v52 = vld [vmem:[%s1 + $0xb8] sm:$0xff]
    %v53 = vld [vmem:[%s1 + $0xc0] sm:$0xff]
    %v54 = vld [vmem:[%s1 + $0xc8] sm:$0xff]
    %v55 = vld [vmem:[%s1 + $0xd0] sm:$0xff]
    %v56 = vld [vmem:[%s1 + $0xd8] sm:$0xff]
    %v57 = vld [vmem:[%s1 + $0xe0] sm:$0xff]
    %v58 = vld [vmem:[%s1 + $0xe8] sm:$0x1]
    %v59 = vld [vmem:[%s1 + $0xe9] sm:$0x1]
    %v60 = vld [vmem:[%s1 + $0xea] sm:$0x1]
    %v61 = vld [vmem:[%s1 + $0xeb] sm:$0x1]
    %v62 = vld [vmem:[%s0] sm:$0xff]
    %v63 = vlaneseq
    %v64 = vshrl.u32 %v63, 7
    %v65 = vsub.s32 0, %v64
    %v66 = vrot.slane %v58, %v65
    %vm67 = vcmask 523264
    %v69 = vsel %vm67, %v62, 0
    %71 = vmatprep.subr.mxu0 0.0
    %72 = vmatpush1.msra.mxu0 %v29
    %73 = vmatprep.subr.mxu0 0.0
    %74 = vmatpush1.msra.mxu0 %v30
    %75 = vmatprep.subr.mxu0 0.0
    %76 = vmatpush1.msra.mxu0 %v31
    %77 = vmatprep.subr.mxu0 0.0
    %78 = vmatpush1.msra.mxu0 %v32
    %79 = vmatprep.subr.mxu0 0.0
    %80 = vmatpush1.msra.mxu0 %v33
    %81 = vmatprep.subr.mxu0 0.0
    %82 = vmatpush1.msra.mxu0 %v34
    %83 = vmatprep.subr.mxu0 0.0
    %84 = vmatpush1.msra.mxu0 %v35
    %85 = vmatprep.subr.mxu0 0.0
    %86 = vmatpush1.msra.mxu0 %v36
    %87 = vmatprep.subr.mxu0 0.0
    %88 = vmatpush1.msra.mxu0 0.0
    %89 = vmatprep.subr.mxu0 0.0
    %90 = vmatpush1.msra.mxu0 0.0
    %91 = vmatprep.subr.mxu0 0.0
    %92 = vmatpush1.msra.mxu0 0.0
    %93 = vmatprep.subr.mxu0 0.0
    %94 = vmatpush1.msra.mxu0 0.0
    %95 = vmatprep.subr.mxu0 0.0
    %96 = vmatpush1.msra.mxu0 0.0
    %97 = vmatprep.subr.mxu0 0.0
    %98 = vmatpush1.msra.mxu0 0.0
    %99 = vmatprep.subr.mxu0 0.0
    %100 = vmatpush1.msra.mxu0 0.0
    %101 = vmatprep.subr.mxu0 0.0
    %102 = vmatpush1.msra.mxu0 0.0
    %103 = vmatprep.subr.mxu0 0.0
    %104 = vmatpush1.msra.mxu0 0.0
    %105 = vmatprep.subr.mxu0 0.0
    %106 = vmatpush1.msra.mxu0 0.0
    %107 = vmatprep.subr.mxu0 0.0
    %108 = vmatpush1.msra.mxu0 0.0
    %109 = vmatprep.subr.mxu0 0.0
    %110 = vmatpush1.msra.mxu0 0.0
    %111 = vmatprep.subr.mxu0 0.0
    %112 = vmatpush1.msra.mxu0 0.0
    %113 = vmatprep.subr.mxu0 0.0
    %114 = vmatpush1.msra.mxu0 0.0
    %115 = vmatprep.subr.mxu0 0.0
    %116 = vmatpush1.msra.mxu0 0.0
    %117 = vmatprep.subr.mxu0 0.0
    %118 = vmatpush1.msra.mxu0 0.0
    %119 = vmatprep.subr.mxu0 0.0
    %120 = vmatpush1.msra.mxu0 0.0
    %121 = vmatprep.subr.mxu0 0.0
    %122 = vmatpush1.msra.mxu0 0.0
    %123 = vmatprep.subr.mxu0 0.0
    %124 = vmatpush1.msra.mxu0 0.0
    %125 = vmatprep.subr.mxu0 0.0
    %126 = vmatpush1.msra.mxu0 0.0
    %127 = vmatprep.subr.mxu0 0.0
    %128 = vmatpush1.msra.mxu0 0.0
    %129 = vmatprep.subr.mxu0 0.0
    %130 = vmatpush1.msra.mxu0 0.0
    %131 = vmatprep.subr.mxu0 0.0
    %132 = vmatpush1.msra.mxu0 0.0
    %133 = vmatprep.subr.mxu0 0.0
    %134 = vmatpush1.msra.mxu0 0.0
    %135 = vmatprep.mubr.f32.mxu0 0.0
    %136 = vmatmul.mubr.f32.gmra.mrb[0].mxu0 %v69
    %v137 = vpop.f32.mrb[0].mxu0
    %v138 = vadd.f32 %v66, %v137
    %v139 = vpop.f32.mrb[0].mxu0
    %140 = vdwg.mxu0
    %v141 = vld [vmem:[%s6] sm:$0xff]
    %v142 = vlaneseq
    %v143 = vand.u32 %v142, 127
    %144 = vset.pattern.permute.xlu0 0
    %145 = vperm.xlu0 %144, %v141
    %v146 = vpop.permute.xlu0 %145
    %vm147 = vcmp.eq.s32.totalorder %v143, %v146
    %v148 = vsel %vm147, 1, 0
    %v149 = vcvt.s32.f32 %v148
    %vm150 = vcmask 64512
    %v152 = vsel %vm150, %v149, 0
    %154 = vmatprep.subr.mxu0 0.0
    %155 = vmatpush1.msra.mxu0 %v138
    %156 = vmatprep.subr.mxu0 0.0
    %157 = vmatpush1.msra.mxu0 0.0
    %158 = vmatprep.subr.mxu0 0.0
    %159 = vmatpush1.msra.mxu0 0.0
    %160 = vmatprep.subr.mxu0 0.0
    %161 = vmatpush1.msra.mxu0 0.0
    %162 = vmatprep.subr.mxu0 0.0
    %163 = vmatpush1.msra.mxu0 0.0
    %164 = vmatprep.subr.mxu0 0.0
    %165 = vmatpush1.msra.mxu0 0.0
    %166 = vmatprep.subr.mxu0 0.0
    %167 = vmatpush1.msra.mxu0 0.0
    %168 = vmatprep.subr.mxu0 0.0
    %169 = vmatpush1.msra.mxu0 0.0
    %170 = vmatprep.subr.mxu0 0.0
    %171 = vmatpush1.msra.mxu0 0.0
    %172 = vmatprep.subr.mxu0 0.0
    %173 = vmatpush1.msra.mxu0 0.0
    %174 = vmatprep.subr.mxu0 0.0
    %175 = vmatpush1.msra.mxu0 0.0
    %176 = vmatprep.subr.mxu0 0.0
    %177 = vmatpush1.msra.mxu0 0.0
    %178 = vmatprep.subr.mxu0 0.0
    %179 = vmatpush1.msra.mxu0 0.0
    %180 = vmatprep.subr.mxu0 0.0
    %181 = vmatpush1.msra.mxu0 0.0
    %182 = vmatprep.subr.mxu0 0.0
    %183 = vmatpush1.msra.mxu0 0.0
    %184 = vmatprep.subr.mxu0 0.0
    %185 = vmatpush1.msra.mxu0 0.0
    %186 = vmatprep.subr.mxu0 0.0
    %187 = vmatpush1.msra.mxu0 0.0
    %188 = vmatprep.subr.mxu0 0.0
    %189 = vmatpush1.msra.mxu0 0.0
    %190 = vmatprep.subr.mxu0 0.0
    %191 = vmatpush1.msra.mxu0 0.0
    %192 = vmatprep.subr.mxu0 0.0
    %193 = vmatpush1.msra.mxu0 0.0
    %194 = vmatprep.subr.mxu0 0.0
    %195 = vmatpush1.msra.mxu0 0.0
    %196 = vmatprep.subr.mxu0 0.0
    %197 = vmatpush1.msra.mxu0 0.0
    %198 = vmatprep.subr.mxu0 0.0
    %199 = vmatpush1.msra.mxu0 0.0
    %200 = vmatprep.subr.mxu0 0.0
    %201 = vmatpush1.msra.mxu0 0.0
    %202 = vmatprep.subr.mxu0 0.0
    %203 = vmatpush1.msra.mxu0 0.0
    %204 = vmatprep.subr.mxu0 0.0
    %205 = vmatpush1.msra.mxu0 0.0
    %206 = vmatprep.subr.mxu0 0.0
    %207 = vmatpush1.msra.mxu0 0.0
    %208 = vmatprep.subr.mxu0 0.0
    %209 = vmatpush1.msra.mxu0 0.0
    %210 = vmatprep.subr.mxu0 0.0
    %211 = vmatpush1.msra.mxu0 0.0
    %212 = vmatprep.subr.mxu0 0.0
    %213 = vmatpush1.msra.mxu0 0.0
    %214 = vmatprep.subr.mxu0 0.0
    %215 = vmatpush1.msra.mxu0 0.0
    %216 = vmatprep.subr.mxu0 0.0
    %217 = vmatpush1.msra.mxu0 0.0
    %218 = vmatprep.mubr.f32.mxu0 0.0
    %219 = vmatmul.mubr.f32.gmra.mrb[0].mxu0 %v152
    %v220 = vpop.f32.mrb[0].mxu0
    %v221 = vadd.f32 0.0, %v220
    %v222 = vpop.f32.mrb[0].mxu0
    %223 = vdwg.mxu0
    %v224 = vld [vmem:[%s2] sm:$0xff]
    %v225 = vld [vmem:[%s2 + $0x8] sm:$0xff]
    %v226 = vld [vmem:[%s2 + $0x10] sm:$0xff]
    %v227 = vld [vmem:[%s2 + $0x18] sm:$0xff]
    %v228 = vld [vmem:[%s2 + $0x20] sm:$0xff]
    %v229 = vld [vmem:[%s2 + $0x28] sm:$0xff]
    %v230 = vld [vmem:[%s2 + $0x30] sm:$0xff]
    %v231 = vld [vmem:[%s2 + $0x38] sm:$0xff]
    %v232 = vld [vmem:[%s2 + $0x40] sm:$0xff]
    %v233 = vld [vmem:[%s2 + $0x48] sm:$0xff]
    %v234 = vld [vmem:[%s2 + $0x50] sm:$0xff]
    %v235 = vld [vmem:[%s2 + $0x58] sm:$0xff]
    %v236 = vld [vmem:[%s2 + $0x60] sm:$0xff]
    %v237 = vld [vmem:[%s2 + $0x68] sm:$0xff]
    %v238 = vld [vmem:[%s2 + $0x70] sm:$0xff]
    %v239 = vld [vmem:[%s2 + $0x78] sm:$0xff]
    %v240 = vld [vmem:[%s2 + $0x80] sm:$0xff]
    %v241 = vld [vmem:[%s2 + $0x88] sm:$0xff]
    %v242 = vld [vmem:[%s2 + $0x90] sm:$0xff]
    %v243 = vld [vmem:[%s2 + $0x98] sm:$0xff]
    %v244 = vld [vmem:[%s3] sm:$0xff]
    %v245 = vld [vmem:[%s3 + $0x8] sm:$0xff]
    %v246 = vld [vmem:[%s3 + $0x10] sm:$0xff]
    %v247 = vld [vmem:[%s3 + $0x18] sm:$0xff]
    %v248 = vld [vmem:[%s3 + $0x20] sm:$0xff]
    %v249 = vld [vmem:[%s3 + $0x28] sm:$0xff]
    %v250 = vld [vmem:[%s3 + $0x30] sm:$0xff]
    %v251 = vld [vmem:[%s3 + $0x38] sm:$0xff]
    %v252 = vld [vmem:[%s3 + $0x40] sm:$0xff]
    %v253 = vld [vmem:[%s3 + $0x48] sm:$0xff]
    %v254 = vld [vmem:[%s3 + $0x50] sm:$0xff]
    %v255 = vld [vmem:[%s3 + $0x58] sm:$0xff]
    %v256 = vld [vmem:[%s3 + $0x60] sm:$0xff]
    %v257 = vld [vmem:[%s3 + $0x68] sm:$0xff]
    %v258 = vld [vmem:[%s3 + $0x70] sm:$0xff]
    %v259 = vld [vmem:[%s3 + $0x78] sm:$0xff]
    %v260 = vld [vmem:[%s3 + $0x80] sm:$0xff]
    %v261 = vld [vmem:[%s3 + $0x88] sm:$0xff]
    %v262 = vld [vmem:[%s3 + $0x90] sm:$0xff]
    %v263 = vld [vmem:[%s3 + $0x98] sm:$0xff]
    %v264 = vlaneseq
    %v265 = vshrl.u32 %v264, 7
    %v266 = vsub.s32 0, %v265
    %v267 = vrot.slane %v224, %v266
    %269 = vbcast.lane.b32.xlu0 %v267, 256
    %v270 = vpop.permute.xlu0 %269
    %v271 = vlaneseq
    %v272 = vshrl.u32 %v271, 7
    %v273 = vsub.s32 1, %v272
    %v274 = vrot.slane %v224, %v273
    %276 = vbcast.lane.b32.xlu0 %v274, 256
    %v277 = vpop.permute.xlu0 %276
    %v278 = vlaneseq
    %v279 = vshrl.u32 %v278, 7
    %v280 = vsub.s32 2, %v279
    %v281 = vrot.slane %v224, %v280
    %283 = vbcast.lane.b32.xlu0 %v281, 256
    %v284 = vpop.permute.xlu0 %283
    %v285 = vlaneseq
    %v286 = vshrl.u32 %v285, 7
    %v287 = vsub.s32 3, %v286
    %v288 = vrot.slane %v224, %v287
    %290 = vbcast.lane.b32.xlu0 %v288, 256
    %v291 = vpop.permute.xlu0 %290
    %v292 = vlaneseq
    %v293 = vshrl.u32 %v292, 7
    %v294 = vsub.s32 4, %v293
    %v295 = vrot.slane %v224, %v294
    %297 = vbcast.lane.b32.xlu0 %v295, 256
    %v298 = vpop.permute.xlu0 %297
    %v299 = vlaneseq
    %v300 = vshrl.u32 %v299, 7
    %v301 = vsub.s32 5, %v300
    %v302 = vrot.slane %v224, %v301
    %304 = vbcast.lane.b32.xlu0 %v302, 256
    %v305 = vpop.permute.xlu0 %304
    %v306 = vlaneseq
    %v307 = vshrl.u32 %v306, 7
    %v308 = vsub.s32 6, %v307
    %v309 = vrot.slane %v224, %v308
    %311 = vbcast.lane.b32.xlu0 %v309, 256
    %v312 = vpop.permute.xlu0 %311
    %v313 = vlaneseq
    %v314 = vshrl.u32 %v313, 7
    %v315 = vsub.s32 7, %v314
    %v316 = vrot.slane %v224, %v315
    %318 = vbcast.lane.b32.xlu0 %v316, 256
    %v319 = vpop.permute.xlu0 %318
    %v320 = vlaneseq
    %v321 = vshrl.u32 %v320, 7
    %v322 = vsub.s32 0, %v321
    %v323 = vrot.slane %v225, %v322
    %325 = vbcast.lane.b32.xlu0 %v323, 256
    %v326 = vpop.permute.xlu0 %325
    %v327 = vlaneseq
    %v328 = vshrl.u32 %v327, 7
    %v329 = vsub.s32 1, %v328
    %v330 = vrot.slane %v225, %v329
    %332 = vbcast.lane.b32.xlu0 %v330, 256
    %v333 = vpop.permute.xlu0 %332
    %v334 = vlaneseq
    %v335 = vshrl.u32 %v334, 7
    %v336 = vsub.s32 2, %v335
    %v337 = vrot.slane %v225, %v336
    %339 = vbcast.lane.b32.xlu0 %v337, 256
    %v340 = vpop.permute.xlu0 %339
    %v341 = vlaneseq
    %v342 = vshrl.u32 %v341, 7
    %v343 = vsub.s32 3, %v342
    %v344 = vrot.slane %v225, %v343
    %346 = vbcast.lane.b32.xlu0 %v344, 256
    %v347 = vpop.permute.xlu0 %346
    %v348 = vlaneseq
    %v349 = vshrl.u32 %v348, 7
    %v350 = vsub.s32 4, %v349
    %v351 = vrot.slane %v225, %v350
    %353 = vbcast.lane.b32.xlu0 %v351, 256
    %v354 = vpop.permute.xlu0 %353
    %v355 = vlaneseq
    %v356 = vshrl.u32 %v355, 7
    %v357 = vsub.s32 5, %v356
    %v358 = vrot.slane %v225, %v357
    %360 = vbcast.lane.b32.xlu0 %v358, 256
    %v361 = vpop.permute.xlu0 %360
    %v362 = vlaneseq
    %v363 = vshrl.u32 %v362, 7
    %v364 = vsub.s32 6, %v363
    %v365 = vrot.slane %v225, %v364
    %367 = vbcast.lane.b32.xlu0 %v365, 256
    %v368 = vpop.permute.xlu0 %367
    %v369 = vlaneseq
    %v370 = vshrl.u32 %v369, 7
    %v371 = vsub.s32 7, %v370
    %v372 = vrot.slane %v225, %v371
    %374 = vbcast.lane.b32.xlu0 %v372, 256
    %v375 = vpop.permute.xlu0 %374
    %v376 = vlaneseq
    %v377 = vshrl.u32 %v376, 7
    %v378 = vsub.s32 0, %v377
    %v379 = vrot.slane %v226, %v378
    %381 = vbcast.lane.b32.xlu0 %v379, 256
    %v382 = vpop.permute.xlu0 %381
    %v383 = vlaneseq
    %v384 = vshrl.u32 %v383, 7
    %v385 = vsub.s32 1, %v384
    %v386 = vrot.slane %v226, %v385
    %388 = vbcast.lane.b32.xlu0 %v386, 256
    %v389 = vpop.permute.xlu0 %388
    %v390 = vlaneseq
    %v391 = vshrl.u32 %v390, 7
    %v392 = vsub.s32 2, %v391
    %v393 = vrot.slane %v226, %v392
    %395 = vbcast.lane.b32.xlu0 %v393, 256
    %v396 = vpop.permute.xlu0 %395
    %v397 = vlaneseq
    %v398 = vshrl.u32 %v397, 7
    %v399 = vsub.s32 3, %v398
    %v400 = vrot.slane %v226, %v399
    %402 = vbcast.lane.b32.xlu0 %v400, 256
    %v403 = vpop.permute.xlu0 %402
    %v404 = vlaneseq
    %v405 = vshrl.u32 %v404, 7
    %v406 = vsub.s32 4, %v405
    %v407 = vrot.slane %v226, %v406
    %409 = vbcast.lane.b32.xlu0 %v407, 256
    %v410 = vpop.permute.xlu0 %409
    %v411 = vlaneseq
    %v412 = vshrl.u32 %v411, 7
    %v413 = vsub.s32 5, %v412
    %v414 = vrot.slane %v226, %v413
    %416 = vbcast.lane.b32.xlu0 %v414, 256
    %v417 = vpop.permute.xlu0 %416
    %v418 = vlaneseq
    %v419 = vshrl.u32 %v418, 7
    %v420 = vsub.s32 6, %v419
    %v421 = vrot.slane %v226, %v420
    %423 = vbcast.lane.b32.xlu0 %v421, 256
    %v424 = vpop.permute.xlu0 %423
    %v425 = vlaneseq
    %v426 = vshrl.u32 %v425, 7
    %v427 = vsub.s32 7, %v426
    %v428 = vrot.slane %v226, %v427
    %430 = vbcast.lane.b32.xlu0 %v428, 256
    %v431 = vpop.permute.xlu0 %430
    %v432 = vlaneseq
    %v433 = vshrl.u32 %v432, 7
    %v434 = vsub.s32 0, %v433
    %v435 = vrot.slane %v227, %v434
    %437 = vbcast.lane.b32.xlu0 %v435, 256
    %v438 = vpop.permute.xlu0 %437
    %v439 = vlaneseq
    %v440 = vshrl.u32 %v439, 7
    %v441 = vsub.s32 1, %v440
    %v442 = vrot.slane %v227, %v441
    %444 = vbcast.lane.b32.xlu0 %v442, 256
    %v445 = vpop.permute.xlu0 %444
    %v446 = vlaneseq
    %v447 = vshrl.u32 %v446, 7
    %v448 = vsub.s32 2, %v447
    %v449 = vrot.slane %v227, %v448
    %451 = vbcast.lane.b32.xlu0 %v449, 256
    %v452 = vpop.permute.xlu0 %451
    %v453 = vlaneseq
    %v454 = vshrl.u32 %v453, 7
    %v455 = vsub.s32 3, %v454
    %v456 = vrot.slane %v227, %v455
    %458 = vbcast.lane.b32.xlu0 %v456, 256
    %v459 = vpop.permute.xlu0 %458
    %v460 = vlaneseq
    %v461 = vshrl.u32 %v460, 7
    %v462 = vsub.s32 4, %v461
    %v463 = vrot.slane %v227, %v462
    %465 = vbcast.lane.b32.xlu0 %v463, 256
    %v466 = vpop.permute.xlu0 %465
    %v467 = vlaneseq
    %v468 = vshrl.u32 %v467, 7
    %v469 = vsub.s32 5, %v468
    %v470 = vrot.slane %v227, %v469
    %472 = vbcast.lane.b32.xlu0 %v470, 256
    %v473 = vpop.permute.xlu0 %472
    %v474 = vlaneseq
    %v475 = vshrl.u32 %v474, 7
    %v476 = vsub.s32 6, %v475
    %v477 = vrot.slane %v227, %v476
    %479 = vbcast.lane.b32.xlu0 %v477, 256
    %v480 = vpop.permute.xlu0 %479
    %v481 = vlaneseq
    %v482 = vshrl.u32 %v481, 7
    %v483 = vsub.s32 7, %v482
    %v484 = vrot.slane %v227, %v483
    %486 = vbcast.lane.b32.xlu0 %v484, 256
    %v487 = vpop.permute.xlu0 %486
    %v488 = vlaneseq
    %v489 = vshrl.u32 %v488, 7
    %v490 = vsub.s32 0, %v489
    %v491 = vrot.slane %v228, %v490
    %493 = vbcast.lane.b32.xlu0 %v491, 256
    %v494 = vpop.permute.xlu0 %493
    %v495 = vlaneseq
    %v496 = vshrl.u32 %v495, 7
    %v497 = vsub.s32 1, %v496
    %v498 = vrot.slane %v228, %v497
    %500 = vbcast.lane.b32.xlu0 %v498, 256
    %v501 = vpop.permute.xlu0 %500
    %v502 = vlaneseq
    %v503 = vshrl.u32 %v502, 7
    %v504 = vsub.s32 2, %v503
    %v505 = vrot.slane %v228, %v504
    %507 = vbcast.lane.b32.xlu0 %v505, 256
    %v508 = vpop.permute.xlu0 %507
    %v509 = vlaneseq
    %v510 = vshrl.u32 %v509, 7
    %v511 = vsub.s32 3, %v510
    %v512 = vrot.slane %v228, %v511
    %514 = vbcast.lane.b32.xlu0 %v512, 256
    %v515 = vpop.permute.xlu0 %514
    %v516 = vlaneseq
    %v517 = vshrl.u32 %v516, 7
    %v518 = vsub.s32 4, %v517
    %v519 = vrot.slane %v228, %v518
    %521 = vbcast.lane.b32.xlu0 %v519, 256
    %v522 = vpop.permute.xlu0 %521
    %v523 = vlaneseq
    %v524 = vshrl.u32 %v523, 7
    %v525 = vsub.s32 5, %v524
    %v526 = vrot.slane %v228, %v525
    %528 = vbcast.lane.b32.xlu0 %v526, 256
    %v529 = vpop.permute.xlu0 %528
    %v530 = vlaneseq
    %v531 = vshrl.u32 %v530, 7
    %v532 = vsub.s32 6, %v531
    %v533 = vrot.slane %v228, %v532
    %535 = vbcast.lane.b32.xlu0 %v533, 256
    %v536 = vpop.permute.xlu0 %535
    %v537 = vlaneseq
    %v538 = vshrl.u32 %v537, 7
    %v539 = vsub.s32 7, %v538
    %v540 = vrot.slane %v228, %v539
    %542 = vbcast.lane.b32.xlu0 %v540, 256
    %v543 = vpop.permute.xlu0 %542
    %v544 = vlaneseq
    %v545 = vshrl.u32 %v544, 7
    %v546 = vsub.s32 0, %v545
    %v547 = vrot.slane %v229, %v546
    %549 = vbcast.lane.b32.xlu0 %v547, 256
    %v550 = vpop.permute.xlu0 %549
    %v551 = vlaneseq
    %v552 = vshrl.u32 %v551, 7
    %v553 = vsub.s32 1, %v552
    %v554 = vrot.slane %v229, %v553
    %556 = vbcast.lane.b32.xlu0 %v554, 256
    %v557 = vpop.permute.xlu0 %556
    %v558 = vlaneseq
    %v559 = vshrl.u32 %v558, 7
    %v560 = vsub.s32 2, %v559
    %v561 = vrot.slane %v229, %v560
    %563 = vbcast.lane.b32.xlu0 %v561, 256
    %v564 = vpop.permute.xlu0 %563
    %v565 = vlaneseq
    %v566 = vshrl.u32 %v565, 7
    %v567 = vsub.s32 3, %v566
    %v568 = vrot.slane %v229, %v567
    %570 = vbcast.lane.b32.xlu0 %v568, 256
    %v571 = vpop.permute.xlu0 %570
    %v572 = vlaneseq
    %v573 = vshrl.u32 %v572, 7
    %v574 = vsub.s32 4, %v573
    %v575 = vrot.slane %v229, %v574
    %577 = vbcast.lane.b32.xlu0 %v575, 256
    %v578 = vpop.permute.xlu0 %577
    %v579 = vlaneseq
    %v580 = vshrl.u32 %v579, 7
    %v581 = vsub.s32 5, %v580
    %v582 = vrot.slane %v229, %v581
    %584 = vbcast.lane.b32.xlu0 %v582, 256
    %v585 = vpop.permute.xlu0 %584
    %v586 = vlaneseq
    %v587 = vshrl.u32 %v586, 7
    %v588 = vsub.s32 6, %v587
    %v589 = vrot.slane %v229, %v588
    %591 = vbcast.lane.b32.xlu0 %v589, 256
    %v592 = vpop.permute.xlu0 %591
    %v593 = vlaneseq
    %v594 = vshrl.u32 %v593, 7
    %v595 = vsub.s32 7, %v594
    %v596 = vrot.slane %v229, %v595
    %598 = vbcast.lane.b32.xlu0 %v596, 256
    %v599 = vpop.permute.xlu0 %598
    %v600 = vlaneseq
    %v601 = vshrl.u32 %v600, 7
    %v602 = vsub.s32 0, %v601
    %v603 = vrot.slane %v230, %v602
    %605 = vbcast.lane.b32.xlu0 %v603, 256
    %v606 = vpop.permute.xlu0 %605
    %v607 = vlaneseq
    %v608 = vshrl.u32 %v607, 7
    %v609 = vsub.s32 1, %v608
    %v610 = vrot.slane %v230, %v609
    %612 = vbcast.lane.b32.xlu0 %v610, 256
    %v613 = vpop.permute.xlu0 %612
    %v614 = vlaneseq
    %v615 = vshrl.u32 %v614, 7
    %v616 = vsub.s32 2, %v615
    %v617 = vrot.slane %v230, %v616
    %619 = vbcast.lane.b32.xlu0 %v617, 256
    %v620 = vpop.permute.xlu0 %619
    %v621 = vlaneseq
    %v622 = vshrl.u32 %v621, 7
    %v623 = vsub.s32 3, %v622
    %v624 = vrot.slane %v230, %v623
    %626 = vbcast.lane.b32.xlu0 %v624, 256
    %v627 = vpop.permute.xlu0 %626
    %v628 = vlaneseq
    %v629 = vshrl.u32 %v628, 7
    %v630 = vsub.s32 4, %v629
    %v631 = vrot.slane %v230, %v630
    %633 = vbcast.lane.b32.xlu0 %v631, 256
    %v634 = vpop.permute.xlu0 %633
    %v635 = vlaneseq
    %v636 = vshrl.u32 %v635, 7
    %v637 = vsub.s32 5, %v636
    %v638 = vrot.slane %v230, %v637
    %640 = vbcast.lane.b32.xlu0 %v638, 256
    %v641 = vpop.permute.xlu0 %640
    %v642 = vlaneseq
    %v643 = vshrl.u32 %v642, 7
    %v644 = vsub.s32 6, %v643
    %v645 = vrot.slane %v230, %v644
    %647 = vbcast.lane.b32.xlu0 %v645, 256
    %v648 = vpop.permute.xlu0 %647
    %v649 = vlaneseq
    %v650 = vshrl.u32 %v649, 7
    %v651 = vsub.s32 7, %v650
    %v652 = vrot.slane %v230, %v651
    %654 = vbcast.lane.b32.xlu0 %v652, 256
    %v655 = vpop.permute.xlu0 %654
    %v656 = vlaneseq
    %v657 = vshrl.u32 %v656, 7
    %v658 = vsub.s32 0, %v657
    %v659 = vrot.slane %v231, %v658
    %661 = vbcast.lane.b32.xlu0 %v659, 256
    %v662 = vpop.permute.xlu0 %661
    %v663 = vlaneseq
    %v664 = vshrl.u32 %v663, 7
    %v665 = vsub.s32 1, %v664
    %v666 = vrot.slane %v231, %v665
    %668 = vbcast.lane.b32.xlu0 %v666, 256
    %v669 = vpop.permute.xlu0 %668
    %v670 = vlaneseq
    %v671 = vshrl.u32 %v670, 7
    %v672 = vsub.s32 2, %v671
    %v673 = vrot.slane %v231, %v672
    %675 = vbcast.lane.b32.xlu0 %v673, 256
    %v676 = vpop.permute.xlu0 %675
    %v677 = vlaneseq
    %v678 = vshrl.u32 %v677, 7
    %v679 = vsub.s32 3, %v678
    %v680 = vrot.slane %v231, %v679
    %682 = vbcast.lane.b32.xlu0 %v680, 256
    %v683 = vpop.permute.xlu0 %682
    %v684 = vlaneseq
    %v685 = vshrl.u32 %v684, 7
    %v686 = vsub.s32 4, %v685
    %v687 = vrot.slane %v231, %v686
    %689 = vbcast.lane.b32.xlu0 %v687, 256
    %v690 = vpop.permute.xlu0 %689
    %v691 = vlaneseq
    %v692 = vshrl.u32 %v691, 7
    %v693 = vsub.s32 5, %v692
    %v694 = vrot.slane %v231, %v693
    %696 = vbcast.lane.b32.xlu0 %v694, 256
    %v697 = vpop.permute.xlu0 %696
    %v698 = vlaneseq
    %v699 = vshrl.u32 %v698, 7
    %v700 = vsub.s32 6, %v699
    %v701 = vrot.slane %v231, %v700
    %703 = vbcast.lane.b32.xlu0 %v701, 256
    %v704 = vpop.permute.xlu0 %703
    %v705 = vlaneseq
    %v706 = vshrl.u32 %v705, 7
    %v707 = vsub.s32 7, %v706
    %v708 = vrot.slane %v231, %v707
    %710 = vbcast.lane.b32.xlu0 %v708, 256
    %v711 = vpop.permute.xlu0 %710
    %v712 = vlaneseq
    %v713 = vshrl.u32 %v712, 7
    %v714 = vsub.s32 0, %v713
    %v715 = vrot.slane %v232, %v714
    %717 = vbcast.lane.b32.xlu0 %v715, 256
    %v718 = vpop.permute.xlu0 %717
    %v719 = vlaneseq
    %v720 = vshrl.u32 %v719, 7
    %v721 = vsub.s32 1, %v720
    %v722 = vrot.slane %v232, %v721
    %724 = vbcast.lane.b32.xlu0 %v722, 256
    %v725 = vpop.permute.xlu0 %724
    %v726 = vlaneseq
    %v727 = vshrl.u32 %v726, 7
    %v728 = vsub.s32 2, %v727
    %v729 = vrot.slane %v232, %v728
    %731 = vbcast.lane.b32.xlu0 %v729, 256
    %v732 = vpop.permute.xlu0 %731
    %v733 = vlaneseq
    %v734 = vshrl.u32 %v733, 7
    %v735 = vsub.s32 3, %v734
    %v736 = vrot.slane %v232, %v735
    %738 = vbcast.lane.b32.xlu0 %v736, 256
    %v739 = vpop.permute.xlu0 %738
    %v740 = vlaneseq
    %v741 = vshrl.u32 %v740, 7
    %v742 = vsub.s32 4, %v741
    %v743 = vrot.slane %v232, %v742
    %745 = vbcast.lane.b32.xlu0 %v743, 256
    %v746 = vpop.permute.xlu0 %745
    %v747 = vlaneseq
    %v748 = vshrl.u32 %v747, 7
    %v749 = vsub.s32 5, %v748
    %v750 = vrot.slane %v232, %v749
    %752 = vbcast.lane.b32.xlu0 %v750, 256
    %v753 = vpop.permute.xlu0 %752
    %v754 = vlaneseq
    %v755 = vshrl.u32 %v754, 7
    %v756 = vsub.s32 6, %v755
    %v757 = vrot.slane %v232, %v756
    %759 = vbcast.lane.b32.xlu0 %v757, 256
    %v760 = vpop.permute.xlu0 %759
    %v761 = vlaneseq
    %v762 = vshrl.u32 %v761, 7
    %v763 = vsub.s32 7, %v762
    %v764 = vrot.slane %v232, %v763
    %766 = vbcast.lane.b32.xlu0 %v764, 256
    %v767 = vpop.permute.xlu0 %766
    %v768 = vlaneseq
    %v769 = vshrl.u32 %v768, 7
    %v770 = vsub.s32 0, %v769
    %v771 = vrot.slane %v233, %v770
    %773 = vbcast.lane.b32.xlu0 %v771, 256
    %v774 = vpop.permute.xlu0 %773
    %v775 = vlaneseq
    %v776 = vshrl.u32 %v775, 7
    %v777 = vsub.s32 1, %v776
    %v778 = vrot.slane %v233, %v777
    %780 = vbcast.lane.b32.xlu0 %v778, 256
    %v781 = vpop.permute.xlu0 %780
    %v782 = vlaneseq
    %v783 = vshrl.u32 %v782, 7
    %v784 = vsub.s32 2, %v783
    %v785 = vrot.slane %v233, %v784
    %787 = vbcast.lane.b32.xlu0 %v785, 256
    %v788 = vpop.permute.xlu0 %787
    %v789 = vlaneseq
    %v790 = vshrl.u32 %v789, 7
    %v791 = vsub.s32 3, %v790
    %v792 = vrot.slane %v233, %v791
    %794 = vbcast.lane.b32.xlu0 %v792, 256
    %v795 = vpop.permute.xlu0 %794
    %v796 = vlaneseq
    %v797 = vshrl.u32 %v796, 7
    %v798 = vsub.s32 4, %v797
    %v799 = vrot.slane %v233, %v798
    %801 = vbcast.lane.b32.xlu0 %v799, 256
    %v802 = vpop.permute.xlu0 %801
    %v803 = vlaneseq
    %v804 = vshrl.u32 %v803, 7
    %v805 = vsub.s32 5, %v804
    %v806 = vrot.slane %v233, %v805
    %808 = vbcast.lane.b32.xlu0 %v806, 256
    %v809 = vpop.permute.xlu0 %808
    %v810 = vlaneseq
    %v811 = vshrl.u32 %v810, 7
    %v812 = vsub.s32 6, %v811
    %v813 = vrot.slane %v233, %v812
    %815 = vbcast.lane.b32.xlu0 %v813, 256
    %v816 = vpop.permute.xlu0 %815
    %v817 = vlaneseq
    %v818 = vshrl.u32 %v817, 7
    %v819 = vsub.s32 7, %v818
    %v820 = vrot.slane %v233, %v819
    %822 = vbcast.lane.b32.xlu0 %v820, 256
    %v823 = vpop.permute.xlu0 %822
    %v824 = vlaneseq
    %v825 = vshrl.u32 %v824, 7
    %v826 = vsub.s32 0, %v825
    %v827 = vrot.slane %v234, %v826
    %829 = vbcast.lane.b32.xlu0 %v827, 256
    %v830 = vpop.permute.xlu0 %829
    %v831 = vlaneseq
    %v832 = vshrl.u32 %v831, 7
    %v833 = vsub.s32 1, %v832
    %v834 = vrot.slane %v234, %v833
    %836 = vbcast.lane.b32.xlu0 %v834, 256
    %v837 = vpop.permute.xlu0 %836
    %v838 = vlaneseq
    %v839 = vshrl.u32 %v838, 7
    %v840 = vsub.s32 2, %v839
    %v841 = vrot.slane %v234, %v840
    %843 = vbcast.lane.b32.xlu0 %v841, 256
    %v844 = vpop.permute.xlu0 %843
    %v845 = vlaneseq
    %v846 = vshrl.u32 %v845, 7
    %v847 = vsub.s32 3, %v846
    %v848 = vrot.slane %v234, %v847
    %850 = vbcast.lane.b32.xlu0 %v848, 256
    %v851 = vpop.permute.xlu0 %850
    %v852 = vlaneseq
    %v853 = vshrl.u32 %v852, 7
    %v854 = vsub.s32 4, %v853
    %v855 = vrot.slane %v234, %v854
    %857 = vbcast.lane.b32.xlu0 %v855, 256
    %v858 = vpop.permute.xlu0 %857
    %v859 = vlaneseq
    %v860 = vshrl.u32 %v859, 7
    %v861 = vsub.s32 5, %v860
    %v862 = vrot.slane %v234, %v861
    %864 = vbcast.lane.b32.xlu0 %v862, 256
    %v865 = vpop.permute.xlu0 %864
    %v866 = vlaneseq
    %v867 = vshrl.u32 %v866, 7
    %v868 = vsub.s32 6, %v867
    %v869 = vrot.slane %v234, %v868
    %871 = vbcast.lane.b32.xlu0 %v869, 256
    %v872 = vpop.permute.xlu0 %871
    %v873 = vlaneseq
    %v874 = vshrl.u32 %v873, 7
    %v875 = vsub.s32 7, %v874
    %v876 = vrot.slane %v234, %v875
    %878 = vbcast.lane.b32.xlu0 %v876, 256
    %v879 = vpop.permute.xlu0 %878
    %v880 = vlaneseq
    %v881 = vshrl.u32 %v880, 7
    %v882 = vsub.s32 0, %v881
    %v883 = vrot.slane %v235, %v882
    %885 = vbcast.lane.b32.xlu0 %v883, 256
    %v886 = vpop.permute.xlu0 %885
    %v887 = vlaneseq
    %v888 = vshrl.u32 %v887, 7
    %v889 = vsub.s32 1, %v888
    %v890 = vrot.slane %v235, %v889
    %892 = vbcast.lane.b32.xlu0 %v890, 256
    %v893 = vpop.permute.xlu0 %892
    %v894 = vlaneseq
    %v895 = vshrl.u32 %v894, 7
    %v896 = vsub.s32 2, %v895
    %v897 = vrot.slane %v235, %v896
    %899 = vbcast.lane.b32.xlu0 %v897, 256
    %v900 = vpop.permute.xlu0 %899
    %v901 = vlaneseq
    %v902 = vshrl.u32 %v901, 7
    %v903 = vsub.s32 3, %v902
    %v904 = vrot.slane %v235, %v903
    %906 = vbcast.lane.b32.xlu0 %v904, 256
    %v907 = vpop.permute.xlu0 %906
    %v908 = vlaneseq
    %v909 = vshrl.u32 %v908, 7
    %v910 = vsub.s32 4, %v909
    %v911 = vrot.slane %v235, %v910
    %913 = vbcast.lane.b32.xlu0 %v911, 256
    %v914 = vpop.permute.xlu0 %913
    %v915 = vlaneseq
    %v916 = vshrl.u32 %v915, 7
    %v917 = vsub.s32 5, %v916
    %v918 = vrot.slane %v235, %v917
    %920 = vbcast.lane.b32.xlu0 %v918, 256
    %v921 = vpop.permute.xlu0 %920
    %v922 = vlaneseq
    %v923 = vshrl.u32 %v922, 7
    %v924 = vsub.s32 6, %v923
    %v925 = vrot.slane %v235, %v924
    %927 = vbcast.lane.b32.xlu0 %v925, 256
    %v928 = vpop.permute.xlu0 %927
    %v929 = vlaneseq
    %v930 = vshrl.u32 %v929, 7
    %v931 = vsub.s32 7, %v930
    %v932 = vrot.slane %v235, %v931
    %934 = vbcast.lane.b32.xlu0 %v932, 256
    %v935 = vpop.permute.xlu0 %934
    %v936 = vlaneseq
    %v937 = vshrl.u32 %v936, 7
    %v938 = vsub.s32 0, %v937
    %v939 = vrot.slane %v236, %v938
    %941 = vbcast.lane.b32.xlu0 %v939, 256
    %v942 = vpop.permute.xlu0 %941
    %v943 = vlaneseq
    %v944 = vshrl.u32 %v943, 7
    %v945 = vsub.s32 1, %v944
    %v946 = vrot.slane %v236, %v945
    %948 = vbcast.lane.b32.xlu0 %v946, 256
    %v949 = vpop.permute.xlu0 %948
    %v950 = vlaneseq
    %v951 = vshrl.u32 %v950, 7
    %v952 = vsub.s32 2, %v951
    %v953 = vrot.slane %v236, %v952
    %955 = vbcast.lane.b32.xlu0 %v953, 256
    %v956 = vpop.permute.xlu0 %955
    %v957 = vlaneseq
    %v958 = vshrl.u32 %v957, 7
    %v959 = vsub.s32 3, %v958
    %v960 = vrot.slane %v236, %v959
    %962 = vbcast.lane.b32.xlu0 %v960, 256
    %v963 = vpop.permute.xlu0 %962
    %v964 = vlaneseq
    %v965 = vshrl.u32 %v964, 7
    %v966 = vsub.s32 4, %v965
    %v967 = vrot.slane %v236, %v966
    %969 = vbcast.lane.b32.xlu0 %v967, 256
    %v970 = vpop.permute.xlu0 %969
    %v971 = vlaneseq
    %v972 = vshrl.u32 %v971, 7
    %v973 = vsub.s32 5, %v972
    %v974 = vrot.slane %v236, %v973
    %976 = vbcast.lane.b32.xlu0 %v974, 256
    %v977 = vpop.permute.xlu0 %976
    %v978 = vlaneseq
    %v979 = vshrl.u32 %v978, 7
    %v980 = vsub.s32 6, %v979
    %v981 = vrot.slane %v236, %v980
    %983 = vbcast.lane.b32.xlu0 %v981, 256
    %v984 = vpop.permute.xlu0 %983
    %v985 = vlaneseq
    %v986 = vshrl.u32 %v985, 7
    %v987 = vsub.s32 7, %v986
    %v988 = vrot.slane %v236, %v987
    %990 = vbcast.lane.b32.xlu0 %v988, 256
    %v991 = vpop.permute.xlu0 %990
    %v992 = vlaneseq
    %v993 = vshrl.u32 %v992, 7
    %v994 = vsub.s32 0, %v993
    %v995 = vrot.slane %v237, %v994
    %997 = vbcast.lane.b32.xlu0 %v995, 256
    %v998 = vpop.permute.xlu0 %997
    %v999 = vlaneseq
    %v1000 = vshrl.u32 %v999, 7
    %v1001 = vsub.s32 1, %v1000
    %v1002 = vrot.slane %v237, %v1001
    %1004 = vbcast.lane.b32.xlu0 %v1002, 256
    %v1005 = vpop.permute.xlu0 %1004
    %v1006 = vlaneseq
    %v1007 = vshrl.u32 %v1006, 7
    %v1008 = vsub.s32 2, %v1007
    %v1009 = vrot.slane %v237, %v1008
    %1011 = vbcast.lane.b32.xlu0 %v1009, 256
    %v1012 = vpop.permute.xlu0 %1011
    %v1013 = vlaneseq
    %v1014 = vshrl.u32 %v1013, 7
    %v1015 = vsub.s32 3, %v1014
    %v1016 = vrot.slane %v237, %v1015
    %1018 = vbcast.lane.b32.xlu0 %v1016, 256
    %v1019 = vpop.permute.xlu0 %1018
    %v1020 = vlaneseq
    %v1021 = vshrl.u32 %v1020, 7
    %v1022 = vsub.s32 4, %v1021
    %v1023 = vrot.slane %v237, %v1022
    %1025 = vbcast.lane.b32.xlu0 %v1023, 256
    %v1026 = vpop.permute.xlu0 %1025
    %v1027 = vlaneseq
    %v1028 = vshrl.u32 %v1027, 7
    %v1029 = vsub.s32 5, %v1028
    %v1030 = vrot.slane %v237, %v1029
    %1032 = vbcast.lane.b32.xlu0 %v1030, 256
    %v1033 = vpop.permute.xlu0 %1032
    %v1034 = vlaneseq
    %v1035 = vshrl.u32 %v1034, 7
    %v1036 = vsub.s32 6, %v1035
    %v1037 = vrot.slane %v237, %v1036
    %1039 = vbcast.lane.b32.xlu0 %v1037, 256
    %v1040 = vpop.permute.xlu0 %1039
    %v1041 = vlaneseq
    %v1042 = vshrl.u32 %v1041, 7
    %v1043 = vsub.s32 7, %v1042
    %v1044 = vrot.slane %v237, %v1043
    %1046 = vbcast.lane.b32.xlu0 %v1044, 256
    %v1047 = vpop.permute.xlu0 %1046
    %v1048 = vlaneseq
    %v1049 = vshrl.u32 %v1048, 7
    %v1050 = vsub.s32 0, %v1049
    %v1051 = vrot.slane %v238, %v1050
    %1053 = vbcast.lane.b32.xlu0 %v1051, 256
    %v1054 = vpop.permute.xlu0 %1053
    %v1055 = vlaneseq
    %v1056 = vshrl.u32 %v1055, 7
    %v1057 = vsub.s32 1, %v1056
    %v1058 = vrot.slane %v238, %v1057
    %1060 = vbcast.lane.b32.xlu0 %v1058, 256
    %v1061 = vpop.permute.xlu0 %1060
    %v1062 = vlaneseq
    %v1063 = vshrl.u32 %v1062, 7
    %v1064 = vsub.s32 2, %v1063
    %v1065 = vrot.slane %v238, %v1064
    %1067 = vbcast.lane.b32.xlu0 %v1065, 256
    %v1068 = vpop.permute.xlu0 %1067
    %v1069 = vlaneseq
    %v1070 = vshrl.u32 %v1069, 7
    %v1071 = vsub.s32 3, %v1070
    %v1072 = vrot.slane %v238, %v1071
    %1074 = vbcast.lane.b32.xlu0 %v1072, 256
    %v1075 = vpop.permute.xlu0 %1074
    %v1076 = vlaneseq
    %v1077 = vshrl.u32 %v1076, 7
    %v1078 = vsub.s32 4, %v1077
    %v1079 = vrot.slane %v238, %v1078
    %1081 = vbcast.lane.b32.xlu0 %v1079, 256
    %v1082 = vpop.permute.xlu0 %1081
    %v1083 = vlaneseq
    %v1084 = vshrl.u32 %v1083, 7
    %v1085 = vsub.s32 5, %v1084
    %v1086 = vrot.slane %v238, %v1085
    %1088 = vbcast.lane.b32.xlu0 %v1086, 256
    %v1089 = vpop.permute.xlu0 %1088
    %v1090 = vlaneseq
    %v1091 = vshrl.u32 %v1090, 7
    %v1092 = vsub.s32 6, %v1091
    %v1093 = vrot.slane %v238, %v1092
    %1095 = vbcast.lane.b32.xlu0 %v1093, 256
    %v1096 = vpop.permute.xlu0 %1095
    %v1097 = vlaneseq
    %v1098 = vshrl.u32 %v1097, 7
    %v1099 = vsub.s32 7, %v1098
    %v1100 = vrot.slane %v238, %v1099
    %1102 = vbcast.lane.b32.xlu0 %v1100, 256
    %v1103 = vpop.permute.xlu0 %1102
    %v1104 = vlaneseq
    %v1105 = vshrl.u32 %v1104, 7
    %v1106 = vsub.s32 0, %v1105
    %v1107 = vrot.slane %v239, %v1106
    %1109 = vbcast.lane.b32.xlu0 %v1107, 256
    %v1110 = vpop.permute.xlu0 %1109
    %v1111 = vlaneseq
    %v1112 = vshrl.u32 %v1111, 7
    %v1113 = vsub.s32 1, %v1112
    %v1114 = vrot.slane %v239, %v1113
    %1116 = vbcast.lane.b32.xlu0 %v1114, 256
    %v1117 = vpop.permute.xlu0 %1116
    %v1118 = vlaneseq
    %v1119 = vshrl.u32 %v1118, 7
    %v1120 = vsub.s32 2, %v1119
    %v1121 = vrot.slane %v239, %v1120
    %1123 = vbcast.lane.b32.xlu0 %v1121, 256
    %v1124 = vpop.permute.xlu0 %1123
    %v1125 = vlaneseq
    %v1126 = vshrl.u32 %v1125, 7
    %v1127 = vsub.s32 3, %v1126
    %v1128 = vrot.slane %v239, %v1127
    %1130 = vbcast.lane.b32.xlu0 %v1128, 256
    %v1131 = vpop.permute.xlu0 %1130
    %v1132 = vlaneseq
    %v1133 = vshrl.u32 %v1132, 7
    %v1134 = vsub.s32 4, %v1133
    %v1135 = vrot.slane %v239, %v1134
    %1137 = vbcast.lane.b32.xlu0 %v1135, 256
    %v1138 = vpop.permute.xlu0 %1137
    %v1139 = vlaneseq
    %v1140 = vshrl.u32 %v1139, 7
    %v1141 = vsub.s32 5, %v1140
    %v1142 = vrot.slane %v239, %v1141
    %1144 = vbcast.lane.b32.xlu0 %v1142, 256
    %v1145 = vpop.permute.xlu0 %1144
    %v1146 = vlaneseq
    %v1147 = vshrl.u32 %v1146, 7
    %v1148 = vsub.s32 6, %v1147
    %v1149 = vrot.slane %v239, %v1148
    %1151 = vbcast.lane.b32.xlu0 %v1149, 256
    %v1152 = vpop.permute.xlu0 %1151
    %v1153 = vlaneseq
    %v1154 = vshrl.u32 %v1153, 7
    %v1155 = vsub.s32 7, %v1154
    %v1156 = vrot.slane %v239, %v1155
    %1158 = vbcast.lane.b32.xlu0 %v1156, 256
    %v1159 = vpop.permute.xlu0 %1158
    %v1160 = vlaneseq
    %v1161 = vshrl.u32 %v1160, 7
    %v1162 = vsub.s32 0, %v1161
    %v1163 = vrot.slane %v240, %v1162
    %1165 = vbcast.lane.b32.xlu0 %v1163, 256
    %v1166 = vpop.permute.xlu0 %1165
    %v1167 = vlaneseq
    %v1168 = vshrl.u32 %v1167, 7
    %v1169 = vsub.s32 1, %v1168
    %v1170 = vrot.slane %v240, %v1169
    %1172 = vbcast.lane.b32.xlu0 %v1170, 256
    %v1173 = vpop.permute.xlu0 %1172
    %v1174 = vlaneseq
    %v1175 = vshrl.u32 %v1174, 7
    %v1176 = vsub.s32 2, %v1175
    %v1177 = vrot.slane %v240, %v1176
    %1179 = vbcast.lane.b32.xlu0 %v1177, 256
    %v1180 = vpop.permute.xlu0 %1179
    %v1181 = vlaneseq
    %v1182 = vshrl.u32 %v1181, 7
    %v1183 = vsub.s32 3, %v1182
    %v1184 = vrot.slane %v240, %v1183
    %1186 = vbcast.lane.b32.xlu0 %v1184, 256
    %v1187 = vpop.permute.xlu0 %1186
    %v1188 = vlaneseq
    %v1189 = vshrl.u32 %v1188, 7
    %v1190 = vsub.s32 4, %v1189
    %v1191 = vrot.slane %v240, %v1190
    %1193 = vbcast.lane.b32.xlu0 %v1191, 256
    %v1194 = vpop.permute.xlu0 %1193
    %v1195 = vlaneseq
    %v1196 = vshrl.u32 %v1195, 7
    %v1197 = vsub.s32 5, %v1196
    %v1198 = vrot.slane %v240, %v1197
    %1200 = vbcast.lane.b32.xlu0 %v1198, 256
    %v1201 = vpop.permute.xlu0 %1200
    %v1202 = vlaneseq
    %v1203 = vshrl.u32 %v1202, 7
    %v1204 = vsub.s32 6, %v1203
    %v1205 = vrot.slane %v240, %v1204
    %1207 = vbcast.lane.b32.xlu0 %v1205, 256
    %v1208 = vpop.permute.xlu0 %1207
    %v1209 = vlaneseq
    %v1210 = vshrl.u32 %v1209, 7
    %v1211 = vsub.s32 7, %v1210
    %v1212 = vrot.slane %v240, %v1211
    %1214 = vbcast.lane.b32.xlu0 %v1212, 256
    %v1215 = vpop.permute.xlu0 %1214
    %v1216 = vlaneseq
    %v1217 = vshrl.u32 %v1216, 7
    %v1218 = vsub.s32 0, %v1217
    %v1219 = vrot.slane %v241, %v1218
    %1221 = vbcast.lane.b32.xlu0 %v1219, 256
    %v1222 = vpop.permute.xlu0 %1221
    %v1223 = vlaneseq
    %v1224 = vshrl.u32 %v1223, 7
    %v1225 = vsub.s32 1, %v1224
    %v1226 = vrot.slane %v241, %v1225
    %1228 = vbcast.lane.b32.xlu0 %v1226, 256
    %v1229 = vpop.permute.xlu0 %1228
    %v1230 = vlaneseq
    %v1231 = vshrl.u32 %v1230, 7
    %v1232 = vsub.s32 2, %v1231
    %v1233 = vrot.slane %v241, %v1232
    %1235 = vbcast.lane.b32.xlu0 %v1233, 256
    %v1236 = vpop.permute.xlu0 %1235
    %v1237 = vlaneseq
    %v1238 = vshrl.u32 %v1237, 7
    %v1239 = vsub.s32 3, %v1238
    %v1240 = vrot.slane %v241, %v1239
    %1242 = vbcast.lane.b32.xlu0 %v1240, 256
    %v1243 = vpop.permute.xlu0 %1242
    %v1244 = vlaneseq
    %v1245 = vshrl.u32 %v1244, 7
    %v1246 = vsub.s32 4, %v1245
    %v1247 = vrot.slane %v241, %v1246
    %1249 = vbcast.lane.b32.xlu0 %v1247, 256
    %v1250 = vpop.permute.xlu0 %1249
    %v1251 = vlaneseq
    %v1252 = vshrl.u32 %v1251, 7
    %v1253 = vsub.s32 5, %v1252
    %v1254 = vrot.slane %v241, %v1253
    %1256 = vbcast.lane.b32.xlu0 %v1254, 256
    %v1257 = vpop.permute.xlu0 %1256
    %v1258 = vlaneseq
    %v1259 = vshrl.u32 %v1258, 7
    %v1260 = vsub.s32 6, %v1259
    %v1261 = vrot.slane %v241, %v1260
    %1263 = vbcast.lane.b32.xlu0 %v1261, 256
    %v1264 = vpop.permute.xlu0 %1263
    %v1265 = vlaneseq
    %v1266 = vshrl.u32 %v1265, 7
    %v1267 = vsub.s32 7, %v1266
    %v1268 = vrot.slane %v241, %v1267
    %1270 = vbcast.lane.b32.xlu0 %v1268, 256
    %v1271 = vpop.permute.xlu0 %1270
    %v1272 = vlaneseq
    %v1273 = vshrl.u32 %v1272, 7
    %v1274 = vsub.s32 0, %v1273
    %v1275 = vrot.slane %v242, %v1274
    %1277 = vbcast.lane.b32.xlu0 %v1275, 256
    %v1278 = vpop.permute.xlu0 %1277
    %v1279 = vlaneseq
    %v1280 = vshrl.u32 %v1279, 7
    %v1281 = vsub.s32 1, %v1280
    %v1282 = vrot.slane %v242, %v1281
    %1284 = vbcast.lane.b32.xlu0 %v1282, 256
    %v1285 = vpop.permute.xlu0 %1284
    %v1286 = vlaneseq
    %v1287 = vshrl.u32 %v1286, 7
    %v1288 = vsub.s32 2, %v1287
    %v1289 = vrot.slane %v242, %v1288
    %1291 = vbcast.lane.b32.xlu0 %v1289, 256
    %v1292 = vpop.permute.xlu0 %1291
    %v1293 = vlaneseq
    %v1294 = vshrl.u32 %v1293, 7
    %v1295 = vsub.s32 3, %v1294
    %v1296 = vrot.slane %v242, %v1295
    %1298 = vbcast.lane.b32.xlu0 %v1296, 256
    %v1299 = vpop.permute.xlu0 %1298
    %v1300 = vlaneseq
    %v1301 = vshrl.u32 %v1300, 7
    %v1302 = vsub.s32 4, %v1301
    %v1303 = vrot.slane %v242, %v1302
    %1305 = vbcast.lane.b32.xlu0 %v1303, 256
    %v1306 = vpop.permute.xlu0 %1305
    %v1307 = vlaneseq
    %v1308 = vshrl.u32 %v1307, 7
    %v1309 = vsub.s32 5, %v1308
    %v1310 = vrot.slane %v242, %v1309
    %1312 = vbcast.lane.b32.xlu0 %v1310, 256
    %v1313 = vpop.permute.xlu0 %1312
    %v1314 = vlaneseq
    %v1315 = vshrl.u32 %v1314, 7
    %v1316 = vsub.s32 6, %v1315
    %v1317 = vrot.slane %v242, %v1316
    %1319 = vbcast.lane.b32.xlu0 %v1317, 256
    %v1320 = vpop.permute.xlu0 %1319
    %v1321 = vlaneseq
    %v1322 = vshrl.u32 %v1321, 7
    %v1323 = vsub.s32 7, %v1322
    %v1324 = vrot.slane %v242, %v1323
    %1326 = vbcast.lane.b32.xlu0 %v1324, 256
    %v1327 = vpop.permute.xlu0 %1326
    %v1328 = vlaneseq
    %v1329 = vshrl.u32 %v1328, 7
    %v1330 = vsub.s32 0, %v1329
    %v1331 = vrot.slane %v243, %v1330
    %1333 = vbcast.lane.b32.xlu0 %v1331, 256
    %v1334 = vpop.permute.xlu0 %1333
    %v1335 = vlaneseq
    %v1336 = vshrl.u32 %v1335, 7
    %v1337 = vsub.s32 1, %v1336
    %v1338 = vrot.slane %v243, %v1337
    %1340 = vbcast.lane.b32.xlu0 %v1338, 256
    %v1341 = vpop.permute.xlu0 %1340
    %v1342 = vlaneseq
    %v1343 = vshrl.u32 %v1342, 7
    %v1344 = vsub.s32 2, %v1343
    %v1345 = vrot.slane %v243, %v1344
    %1347 = vbcast.lane.b32.xlu0 %v1345, 256
    %v1348 = vpop.permute.xlu0 %1347
    %v1349 = vlaneseq
    %v1350 = vshrl.u32 %v1349, 7
    %v1351 = vsub.s32 3, %v1350
    %v1352 = vrot.slane %v243, %v1351
    %1354 = vbcast.lane.b32.xlu0 %v1352, 256
    %v1355 = vpop.permute.xlu0 %1354
    %v1356 = vlaneseq
    %v1357 = vshrl.u32 %v1356, 7
    %v1358 = vsub.s32 4, %v1357
    %v1359 = vrot.slane %v243, %v1358
    %1361 = vbcast.lane.b32.xlu0 %v1359, 256
    %v1362 = vpop.permute.xlu0 %1361
    %v1363 = vlaneseq
    %v1364 = vshrl.u32 %v1363, 7
    %v1365 = vsub.s32 5, %v1364
    %v1366 = vrot.slane %v243, %v1365
    %1368 = vbcast.lane.b32.xlu0 %v1366, 256
    %v1369 = vpop.permute.xlu0 %1368
    %v1370 = vlaneseq
    %v1371 = vshrl.u32 %v1370, 7
    %v1372 = vsub.s32 6, %v1371
    %v1373 = vrot.slane %v243, %v1372
    %1375 = vbcast.lane.b32.xlu0 %v1373, 256
    %v1376 = vpop.permute.xlu0 %1375
    %v1377 = vlaneseq
    %v1378 = vshrl.u32 %v1377, 7
    %v1379 = vsub.s32 7, %v1378
    %v1380 = vrot.slane %v243, %v1379
    %1382 = vbcast.lane.b32.xlu0 %v1380, 256
    %v1383 = vpop.permute.xlu0 %1382
    %vm1384 = vcmp.eq.s32.totalorder %v143, %v270
    %vm1385 = vcmp.eq.s32.totalorder %v143, %v277
    %vm1386 = vcmp.eq.s32.totalorder %v143, %v284
    %vm1387 = vcmp.eq.s32.totalorder %v143, %v291
    %vm1388 = vcmp.eq.s32.totalorder %v143, %v298
    %vm1389 = vcmp.eq.s32.totalorder %v143, %v305
    %vm1390 = vcmp.eq.s32.totalorder %v143, %v312
    %vm1391 = vcmp.eq.s32.totalorder %v143, %v319
    %vm1392 = vcmp.eq.s32.totalorder %v143, %v326
    %vm1393 = vcmp.eq.s32.totalorder %v143, %v333
    %vm1394 = vcmp.eq.s32.totalorder %v143, %v340
    %vm1395 = vcmp.eq.s32.totalorder %v143, %v347
    %vm1396 = vcmp.eq.s32.totalorder %v143, %v354
    %vm1397 = vcmp.eq.s32.totalorder %v143, %v361
    %vm1398 = vcmp.eq.s32.totalorder %v143, %v368
    %vm1399 = vcmp.eq.s32.totalorder %v143, %v375
    %vm1400 = vcmp.eq.s32.totalorder %v143, %v382
    %vm1401 = vcmp.eq.s32.totalorder %v143, %v389
    %vm1402 = vcmp.eq.s32.totalorder %v143, %v396
    %vm1403 = vcmp.eq.s32.totalorder %v143, %v403
    %vm1404 = vcmp.eq.s32.totalorder %v143, %v410
    %vm1405 = vcmp.eq.s32.totalorder %v143, %v417
    %vm1406 = vcmp.eq.s32.totalorder %v143, %v424
    %vm1407 = vcmp.eq.s32.totalorder %v143, %v431
    %vm1408 = vcmp.eq.s32.totalorder %v143, %v438
    %vm1409 = vcmp.eq.s32.totalorder %v143, %v445
    %vm1410 = vcmp.eq.s32.totalorder %v143, %v452
    %vm1411 = vcmp.eq.s32.totalorder %v143, %v459
    %vm1412 = vcmp.eq.s32.totalorder %v143, %v466
    %vm1413 = vcmp.eq.s32.totalorder %v143, %v473
    %vm1414 = vcmp.eq.s32.totalorder %v143, %v480
    %vm1415 = vcmp.eq.s32.totalorder %v143, %v487
    %vm1416 = vcmp.eq.s32.totalorder %v143, %v494
    %vm1417 = vcmp.eq.s32.totalorder %v143, %v501
    %vm1418 = vcmp.eq.s32.totalorder %v143, %v508
    %vm1419 = vcmp.eq.s32.totalorder %v143, %v515
    %vm1420 = vcmp.eq.s32.totalorder %v143, %v522
    %vm1421 = vcmp.eq.s32.totalorder %v143, %v529
    %vm1422 = vcmp.eq.s32.totalorder %v143, %v536
    %vm1423 = vcmp.eq.s32.totalorder %v143, %v543
    %vm1424 = vcmp.eq.s32.totalorder %v143, %v550
    %vm1425 = vcmp.eq.s32.totalorder %v143, %v557
    %vm1426 = vcmp.eq.s32.totalorder %v143, %v564
    %vm1427 = vcmp.eq.s32.totalorder %v143, %v571
    %vm1428 = vcmp.eq.s32.totalorder %v143, %v578
    %vm1429 = vcmp.eq.s32.totalorder %v143, %v585
    %vm1430 = vcmp.eq.s32.totalorder %v143, %v592
    %vm1431 = vcmp.eq.s32.totalorder %v143, %v599
    %vm1432 = vcmp.eq.s32.totalorder %v143, %v606
    %vm1433 = vcmp.eq.s32.totalorder %v143, %v613
    %vm1434 = vcmp.eq.s32.totalorder %v143, %v620
    %vm1435 = vcmp.eq.s32.totalorder %v143, %v627
    %vm1436 = vcmp.eq.s32.totalorder %v143, %v634
    %vm1437 = vcmp.eq.s32.totalorder %v143, %v641
    %vm1438 = vcmp.eq.s32.totalorder %v143, %v648
    %vm1439 = vcmp.eq.s32.totalorder %v143, %v655
    %vm1440 = vcmp.eq.s32.totalorder %v143, %v662
    %vm1441 = vcmp.eq.s32.totalorder %v143, %v669
    %vm1442 = vcmp.eq.s32.totalorder %v143, %v676
    %vm1443 = vcmp.eq.s32.totalorder %v143, %v683
    %vm1444 = vcmp.eq.s32.totalorder %v143, %v690
    %vm1445 = vcmp.eq.s32.totalorder %v143, %v697
    %vm1446 = vcmp.eq.s32.totalorder %v143, %v704
    %vm1447 = vcmp.eq.s32.totalorder %v143, %v711
    %vm1448 = vcmp.eq.s32.totalorder %v143, %v718
    %vm1449 = vcmp.eq.s32.totalorder %v143, %v725
    %vm1450 = vcmp.eq.s32.totalorder %v143, %v732
    %vm1451 = vcmp.eq.s32.totalorder %v143, %v739
    %vm1452 = vcmp.eq.s32.totalorder %v143, %v746
    %vm1453 = vcmp.eq.s32.totalorder %v143, %v753
    %vm1454 = vcmp.eq.s32.totalorder %v143, %v760
    %vm1455 = vcmp.eq.s32.totalorder %v143, %v767
    %vm1456 = vcmp.eq.s32.totalorder %v143, %v774
    %vm1457 = vcmp.eq.s32.totalorder %v143, %v781
    %vm1458 = vcmp.eq.s32.totalorder %v143, %v788
    %vm1459 = vcmp.eq.s32.totalorder %v143, %v795
    %vm1460 = vcmp.eq.s32.totalorder %v143, %v802
    %vm1461 = vcmp.eq.s32.totalorder %v143, %v809
    %vm1462 = vcmp.eq.s32.totalorder %v143, %v816
    %vm1463 = vcmp.eq.s32.totalorder %v143, %v823
    %vm1464 = vcmp.eq.s32.totalorder %v143, %v830
    %vm1465 = vcmp.eq.s32.totalorder %v143, %v837
    %vm1466 = vcmp.eq.s32.totalorder %v143, %v844
    %vm1467 = vcmp.eq.s32.totalorder %v143, %v851
    %vm1468 = vcmp.eq.s32.totalorder %v143, %v858
    %vm1469 = vcmp.eq.s32.totalorder %v143, %v865
    %vm1470 = vcmp.eq.s32.totalorder %v143, %v872
    %vm1471 = vcmp.eq.s32.totalorder %v143, %v879
    %vm1472 = vcmp.eq.s32.totalorder %v143, %v886
    %vm1473 = vcmp.eq.s32.totalorder %v143, %v893
    %vm1474 = vcmp.eq.s32.totalorder %v143, %v900
    %vm1475 = vcmp.eq.s32.totalorder %v143, %v907
    %vm1476 = vcmp.eq.s32.totalorder %v143, %v914
    %vm1477 = vcmp.eq.s32.totalorder %v143, %v921
    %vm1478 = vcmp.eq.s32.totalorder %v143, %v928
    %vm1479 = vcmp.eq.s32.totalorder %v143, %v935
    %vm1480 = vcmp.eq.s32.totalorder %v143, %v942
    %vm1481 = vcmp.eq.s32.totalorder %v143, %v949
    %vm1482 = vcmp.eq.s32.totalorder %v143, %v956
    %vm1483 = vcmp.eq.s32.totalorder %v143, %v963
    %vm1484 = vcmp.eq.s32.totalorder %v143, %v970
    %vm1485 = vcmp.eq.s32.totalorder %v143, %v977
    %vm1486 = vcmp.eq.s32.totalorder %v143, %v984
    %vm1487 = vcmp.eq.s32.totalorder %v143, %v991
    %vm1488 = vcmp.eq.s32.totalorder %v143, %v998
    %vm1489 = vcmp.eq.s32.totalorder %v143, %v1005
    %vm1490 = vcmp.eq.s32.totalorder %v143, %v1012
    %vm1491 = vcmp.eq.s32.totalorder %v143, %v1019
    %vm1492 = vcmp.eq.s32.totalorder %v143, %v1026
    %vm1493 = vcmp.eq.s32.totalorder %v143, %v1033
    %vm1494 = vcmp.eq.s32.totalorder %v143, %v1040
    %vm1495 = vcmp.eq.s32.totalorder %v143, %v1047
    %vm1496 = vcmp.eq.s32.totalorder %v143, %v1054
    %vm1497 = vcmp.eq.s32.totalorder %v143, %v1061
    %vm1498 = vcmp.eq.s32.totalorder %v143, %v1068
    %vm1499 = vcmp.eq.s32.totalorder %v143, %v1075
    %vm1500 = vcmp.eq.s32.totalorder %v143, %v1082
    %vm1501 = vcmp.eq.s32.totalorder %v143, %v1089
    %vm1502 = vcmp.eq.s32.totalorder %v143, %v1096
    %vm1503 = vcmp.eq.s32.totalorder %v143, %v1103
    %vm1504 = vcmp.eq.s32.totalorder %v143, %v1110
    %vm1505 = vcmp.eq.s32.totalorder %v143, %v1117
    %vm1506 = vcmp.eq.s32.totalorder %v143, %v1124
    %vm1507 = vcmp.eq.s32.totalorder %v143, %v1131
    %vm1508 = vcmp.eq.s32.totalorder %v143, %v1138
    %vm1509 = vcmp.eq.s32.totalorder %v143, %v1145
    %vm1510 = vcmp.eq.s32.totalorder %v143, %v1152
    %vm1511 = vcmp.eq.s32.totalorder %v143, %v1159
    %vm1512 = vcmp.eq.s32.totalorder %v143, %v1166
    %vm1513 = vcmp.eq.s32.totalorder %v143, %v1173
    %vm1514 = vcmp.eq.s32.totalorder %v143, %v1180
    %vm1515 = vcmp.eq.s32.totalorder %v143, %v1187
    %vm1516 = vcmp.eq.s32.totalorder %v143, %v1194
    %vm1517 = vcmp.eq.s32.totalorder %v143, %v1201
    %vm1518 = vcmp.eq.s32.totalorder %v143, %v1208
    %vm1519 = vcmp.eq.s32.totalorder %v143, %v1215
    %vm1520 = vcmp.eq.s32.totalorder %v143, %v1222
    %vm1521 = vcmp.eq.s32.totalorder %v143, %v1229
    %vm1522 = vcmp.eq.s32.totalorder %v143, %v1236
    %vm1523 = vcmp.eq.s32.totalorder %v143, %v1243
    %vm1524 = vcmp.eq.s32.totalorder %v143, %v1250
    %vm1525 = vcmp.eq.s32.totalorder %v143, %v1257
    %vm1526 = vcmp.eq.s32.totalorder %v143, %v1264
    %vm1527 = vcmp.eq.s32.totalorder %v143, %v1271
    %vm1528 = vcmp.eq.s32.totalorder %v143, %v1278
    %vm1529 = vcmp.eq.s32.totalorder %v143, %v1285
    %vm1530 = vcmp.eq.s32.totalorder %v143, %v1292
    %vm1531 = vcmp.eq.s32.totalorder %v143, %v1299
    %vm1532 = vcmp.eq.s32.totalorder %v143, %v1306
    %vm1533 = vcmp.eq.s32.totalorder %v143, %v1313
    %vm1534 = vcmp.eq.s32.totalorder %v143, %v1320
    %vm1535 = vcmp.eq.s32.totalorder %v143, %v1327
    %vm1536 = vcmp.eq.s32.totalorder %v143, %v1334
    %vm1537 = vcmp.eq.s32.totalorder %v143, %v1341
    %vm1538 = vcmp.eq.s32.totalorder %v143, %v1348
    %vm1539 = vcmp.eq.s32.totalorder %v143, %v1355
    %vm1540 = vcmp.eq.s32.totalorder %v143, %v1362
    %vm1541 = vcmp.eq.s32.totalorder %v143, %v1369
    %vm1542 = vcmp.eq.s32.totalorder %v143, %v1376
    %vm1543 = vcmp.eq.s32.totalorder %v143, %v1383
    %v1544 = vsel %vm1384, 1, 0
    %v1545 = vsel %vm1385, 1, 0
    %v1546 = vsel %vm1386, 1, 0
    %v1547 = vsel %vm1387, 1, 0
    %v1548 = vsel %vm1388, 1, 0
    %v1549 = vsel %vm1389, 1, 0
    %v1550 = vsel %vm1390, 1, 0
    %v1551 = vsel %vm1391, 1, 0
    %v1552 = vsel %vm1392, 1, 0
    %v1553 = vsel %vm1393, 1, 0
    %v1554 = vsel %vm1394, 1, 0
    %v1555 = vsel %vm1395, 1, 0
    %v1556 = vsel %vm1396, 1, 0
    %v1557 = vsel %vm1397, 1, 0
    %v1558 = vsel %vm1398, 1, 0
    %v1559 = vsel %vm1399, 1, 0
    %v1560 = vsel %vm1400, 1, 0
    %v1561 = vsel %vm1401, 1, 0
    %v1562 = vsel %vm1402, 1, 0
    %v1563 = vsel %vm1403, 1, 0
    %v1564 = vsel %vm1404, 1, 0
    %v1565 = vsel %vm1405, 1, 0
    %v1566 = vsel %vm1406, 1, 0
    %v1567 = vsel %vm1407, 1, 0
    %v1568 = vsel %vm1408, 1, 0
    %v1569 = vsel %vm1409, 1, 0
    %v1570 = vsel %vm1410, 1, 0
    %v1571 = vsel %vm1411, 1, 0
    %v1572 = vsel %vm1412, 1, 0
    %v1573 = vsel %vm1413, 1, 0
    %v1574 = vsel %vm1414, 1, 0
    %v1575 = vsel %vm1415, 1, 0
    %v1576 = vsel %vm1416, 1, 0
    %v1577 = vsel %vm1417, 1, 0
    %v1578 = vsel %vm1418, 1, 0
    %v1579 = vsel %vm1419, 1, 0
    %v1580 = vsel %vm1420, 1, 0
    %v1581 = vsel %vm1421, 1, 0
    %v1582 = vsel %vm1422, 1, 0
    %v1583 = vsel %vm1423, 1, 0
    %v1584 = vsel %vm1424, 1, 0
    %v1585 = vsel %vm1425, 1, 0
    %v1586 = vsel %vm1426, 1, 0
    %v1587 = vsel %vm1427, 1, 0
    %v1588 = vsel %vm1428, 1, 0
    %v1589 = vsel %vm1429, 1, 0
    %v1590 = vsel %vm1430, 1, 0
    %v1591 = vsel %vm1431, 1, 0
    %v1592 = vsel %vm1432, 1, 0
    %v1593 = vsel %vm1433, 1, 0
    %v1594 = vsel %vm1434, 1, 0
    %v1595 = vsel %vm1435, 1, 0
    %v1596 = vsel %vm1436, 1, 0
    %v1597 = vsel %vm1437, 1, 0
    %v1598 = vsel %vm1438, 1, 0
    %v1599 = vsel %vm1439, 1, 0
    %v1600 = vsel %vm1440, 1, 0
    %v1601 = vsel %vm1441, 1, 0
    %v1602 = vsel %vm1442, 1, 0
    %v1603 = vsel %vm1443, 1, 0
    %v1604 = vsel %vm1444, 1, 0
    %v1605 = vsel %vm1445, 1, 0
    %v1606 = vsel %vm1446, 1, 0
    %v1607 = vsel %vm1447, 1, 0
    %v1608 = vsel %vm1448, 1, 0
    %v1609 = vsel %vm1449, 1, 0
    %v1610 = vsel %vm1450, 1, 0
    %v1611 = vsel %vm1451, 1, 0
    %v1612 = vsel %vm1452, 1, 0
    %v1613 = vsel %vm1453, 1, 0
    %v1614 = vsel %vm1454, 1, 0
    %v1615 = vsel %vm1455, 1, 0
    %v1616 = vsel %vm1456, 1, 0
    %v1617 = vsel %vm1457, 1, 0
    %v1618 = vsel %vm1458, 1, 0
    %v1619 = vsel %vm1459, 1, 0
    %v1620 = vsel %vm1460, 1, 0
    %v1621 = vsel %vm1461, 1, 0
    %v1622 = vsel %vm1462, 1, 0
    %v1623 = vsel %vm1463, 1, 0
    %v1624 = vsel %vm1464, 1, 0
    %v1625 = vsel %vm1465, 1, 0
    %v1626 = vsel %vm1466, 1, 0
    %v1627 = vsel %vm1467, 1, 0
    %v1628 = vsel %vm1468, 1, 0
    %v1629 = vsel %vm1469, 1, 0
    %v1630 = vsel %vm1470, 1, 0
    %v1631 = vsel %vm1471, 1, 0
    %v1632 = vsel %vm1472, 1, 0
    %v1633 = vsel %vm1473, 1, 0
    %v1634 = vsel %vm1474, 1, 0
    %v1635 = vsel %vm1475, 1, 0
    %v1636 = vsel %vm1476, 1, 0
    %v1637 = vsel %vm1477, 1, 0
    %v1638 = vsel %vm1478, 1, 0
    %v1639 = vsel %vm1479, 1, 0
    %v1640 = vsel %vm1480, 1, 0
    %v1641 = vsel %vm1481, 1, 0
    %v1642 = vsel %vm1482, 1, 0
    %v1643 = vsel %vm1483, 1, 0
    %v1644 = vsel %vm1484, 1, 0
    %v1645 = vsel %vm1485, 1, 0
    %v1646 = vsel %vm1486, 1, 0
    %v1647 = vsel %vm1487, 1, 0
    %v1648 = vsel %vm1488, 1, 0
    %v1649 = vsel %vm1489, 1, 0
    %v1650 = vsel %vm1490, 1, 0
    %v1651 = vsel %vm1491, 1, 0
    %v1652 = vsel %vm1492, 1, 0
    %v1653 = vsel %vm1493, 1, 0
    %v1654 = vsel %vm1494, 1, 0
    %v1655 = vsel %vm1495, 1, 0
    %v1656 = vsel %vm1496, 1, 0
    %v1657 = vsel %vm1497, 1, 0
    %v1658 = vsel %vm1498, 1, 0
    %v1659 = vsel %vm1499, 1, 0
    %v1660 = vsel %vm1500, 1, 0
    %v1661 = vsel %vm1501, 1, 0
    %v1662 = vsel %vm1502, 1, 0
    %v1663 = vsel %vm1503, 1, 0
    %v1664 = vsel %vm1504, 1, 0
    %v1665 = vsel %vm1505, 1, 0
    %v1666 = vsel %vm1506, 1, 0
    %v1667 = vsel %vm1507, 1, 0
    %v1668 = vsel %vm1508, 1, 0
    %v1669 = vsel %vm1509, 1, 0
    %v1670 = vsel %vm1510, 1, 0
    %v1671 = vsel %vm1511, 1, 0
    %v1672 = vsel %vm1512, 1, 0
    %v1673 = vsel %vm1513, 1, 0
    %v1674 = vsel %vm1514, 1, 0
    %v1675 = vsel %vm1515, 1, 0
    %v1676 = vsel %vm1516, 1, 0
    %v1677 = vsel %vm1517, 1, 0
    %v1678 = vsel %vm1518, 1, 0
    %v1679 = vsel %vm1519, 1, 0
    %v1680 = vsel %vm1520, 1, 0
    %v1681 = vsel %vm1521, 1, 0
    %v1682 = vsel %vm1522, 1, 0
    %v1683 = vsel %vm1523, 1, 0
    %v1684 = vsel %vm1524, 1, 0
    %v1685 = vsel %vm1525, 1, 0
    %v1686 = vsel %vm1526, 1, 0
    %v1687 = vsel %vm1527, 1, 0
    %v1688 = vsel %vm1528, 1, 0
    %v1689 = vsel %vm1529, 1, 0
    %v1690 = vsel %vm1530, 1, 0
    %v1691 = vsel %vm1531, 1, 0
    %v1692 = vsel %vm1532, 1, 0
    %v1693 = vsel %vm1533, 1, 0
    %v1694 = vsel %vm1534, 1, 0
    %v1695 = vsel %vm1535, 1, 0
    %v1696 = vsel %vm1536, 1, 0
    %v1697 = vsel %vm1537, 1, 0
    %v1698 = vsel %vm1538, 1, 0
    %v1699 = vsel %vm1539, 1, 0
    %v1700 = vsel %vm1540, 1, 0
    %v1701 = vsel %vm1541, 1, 0
    %v1702 = vsel %vm1542, 1, 0
    %v1703 = vsel %vm1543, 1, 0
    %v1704 = vcvt.s32.f32 %v1544
    %v1705 = vcvt.s32.f32 %v1545
    %v1706 = vcvt.s32.f32 %v1546
    %v1707 = vcvt.s32.f32 %v1547
    %v1708 = vcvt.s32.f32 %v1548
    %v1709 = vcvt.s32.f32 %v1549
    %v1710 = vcvt.s32.f32 %v1550
    %v1711 = vcvt.s32.f32 %v1551
    %v1712 = vcvt.s32.f32 %v1552
    %v1713 = vcvt.s32.f32 %v1553
    %v1714 = vcvt.s32.f32 %v1554
    %v1715 = vcvt.s32.f32 %v1555
    %v1716 = vcvt.s32.f32 %v1556
    %v1717 = vcvt.s32.f32 %v1557
    %v1718 = vcvt.s32.f32 %v1558
    %v1719 = vcvt.s32.f32 %v1559
    %v1720 = vcvt.s32.f32 %v1560
    %v1721 = vcvt.s32.f32 %v1561
    %v1722 = vcvt.s32.f32 %v1562
    %v1723 = vcvt.s32.f32 %v1563
    %v1724 = vcvt.s32.f32 %v1564
    %v1725 = vcvt.s32.f32 %v1565
    %v1726 = vcvt.s32.f32 %v1566
    %v1727 = vcvt.s32.f32 %v1567
    %v1728 = vcvt.s32.f32 %v1568
    %v1729 = vcvt.s32.f32 %v1569
    %v1730 = vcvt.s32.f32 %v1570
    %v1731 = vcvt.s32.f32 %v1571
    %v1732 = vcvt.s32.f32 %v1572
    %v1733 = vcvt.s32.f32 %v1573
    %v1734 = vcvt.s32.f32 %v1574
    %v1735 = vcvt.s32.f32 %v1575
    %v1736 = vcvt.s32.f32 %v1576
    %v1737 = vcvt.s32.f32 %v1577
    %v1738 = vcvt.s32.f32 %v1578
    %v1739 = vcvt.s32.f32 %v1579
    %v1740 = vcvt.s32.f32 %v1580
    %v1741 = vcvt.s32.f32 %v1581
    %v1742 = vcvt.s32.f32 %v1582
    %v1743 = vcvt.s32.f32 %v1583
    %v1744 = vcvt.s32.f32 %v1584
    %v1745 = vcvt.s32.f32 %v1585
    %v1746 = vcvt.s32.f32 %v1586
    %v1747 = vcvt.s32.f32 %v1587
    %v1748 = vcvt.s32.f32 %v1588
    %v1749 = vcvt.s32.f32 %v1589
    %v1750 = vcvt.s32.f32 %v1590
    %v1751 = vcvt.s32.f32 %v1591
    %v1752 = vcvt.s32.f32 %v1592
    %v1753 = vcvt.s32.f32 %v1593
    %v1754 = vcvt.s32.f32 %v1594
    %v1755 = vcvt.s32.f32 %v1595
    %v1756 = vcvt.s32.f32 %v1596
    %v1757 = vcvt.s32.f32 %v1597
    %v1758 = vcvt.s32.f32 %v1598
    %v1759 = vcvt.s32.f32 %v1599
    %v1760 = vcvt.s32.f32 %v1600
    %v1761 = vcvt.s32.f32 %v1601
    %v1762 = vcvt.s32.f32 %v1602
    %v1763 = vcvt.s32.f32 %v1603
    %v1764 = vcvt.s32.f32 %v1604
    %v1765 = vcvt.s32.f32 %v1605
    %v1766 = vcvt.s32.f32 %v1606
    %v1767 = vcvt.s32.f32 %v1607
    %v1768 = vcvt.s32.f32 %v1608
    %v1769 = vcvt.s32.f32 %v1609
    %v1770 = vcvt.s32.f32 %v1610
    %v1771 = vcvt.s32.f32 %v1611
    %v1772 = vcvt.s32.f32 %v1612
    %v1773 = vcvt.s32.f32 %v1613
    %v1774 = vcvt.s32.f32 %v1614
    %v1775 = vcvt.s32.f32 %v1615
    %v1776 = vcvt.s32.f32 %v1616
    %v1777 = vcvt.s32.f32 %v1617
    %v1778 = vcvt.s32.f32 %v1618
    %v1779 = vcvt.s32.f32 %v1619
    %v1780 = vcvt.s32.f32 %v1620
    %v1781 = vcvt.s32.f32 %v1621
    %v1782 = vcvt.s32.f32 %v1622
    %v1783 = vcvt.s32.f32 %v1623
    %v1784 = vcvt.s32.f32 %v1624
    %v1785 = vcvt.s32.f32 %v1625
    %v1786 = vcvt.s32.f32 %v1626
    %v1787 = vcvt.s32.f32 %v1627
    %v1788 = vcvt.s32.f32 %v1628
    %v1789 = vcvt.s32.f32 %v1629
    %v1790 = vcvt.s32.f32 %v1630
    %v1791 = vcvt.s32.f32 %v1631
    %v1792 = vcvt.s32.f32 %v1632
    %v1793 = vcvt.s32.f32 %v1633
    %v1794 = vcvt.s32.f32 %v1634
    %v1795 = vcvt.s32.f32 %v1635
    %v1796 = vcvt.s32.f32 %v1636
    %v1797 = vcvt.s32.f32 %v1637
    %v1798 = vcvt.s32.f32 %v1638
    %v1799 = vcvt.s32.f32 %v1639
    %v1800 = vcvt.s32.f32 %v1640
    %v1801 = vcvt.s32.f32 %v1641
    %v1802 = vcvt.s32.f32 %v1642
    %v1803 = vcvt.s32.f32 %v1643
    %v1804 = vcvt.s32.f32 %v1644
    %v1805 = vcvt.s32.f32 %v1645
    %v1806 = vcvt.s32.f32 %v1646
    %v1807 = vcvt.s32.f32 %v1647
    %v1808 = vcvt.s32.f32 %v1648
    %v1809 = vcvt.s32.f32 %v1649
    %v1810 = vcvt.s32.f32 %v1650
    %v1811 = vcvt.s32.f32 %v1651
    %v1812 = vcvt.s32.f32 %v1652
    %v1813 = vcvt.s32.f32 %v1653
    %v1814 = vcvt.s32.f32 %v1654
    %v1815 = vcvt.s32.f32 %v1655
    %v1816 = vcvt.s32.f32 %v1656
    %v1817 = vcvt.s32.f32 %v1657
    %v1818 = vcvt.s32.f32 %v1658
    %v1819 = vcvt.s32.f32 %v1659
    %v1820 = vcvt.s32.f32 %v1660
    %v1821 = vcvt.s32.f32 %v1661
    %v1822 = vcvt.s32.f32 %v1662
    %v1823 = vcvt.s32.f32 %v1663
    %v1824 = vcvt.s32.f32 %v1664
    %v1825 = vcvt.s32.f32 %v1665
    %v1826 = vcvt.s32.f32 %v1666
    %v1827 = vcvt.s32.f32 %v1667
    %v1828 = vcvt.s32.f32 %v1668
    %v1829 = vcvt.s32.f32 %v1669
    %v1830 = vcvt.s32.f32 %v1670
    %v1831 = vcvt.s32.f32 %v1671
    %v1832 = vcvt.s32.f32 %v1672
    %v1833 = vcvt.s32.f32 %v1673
    %v1834 = vcvt.s32.f32 %v1674
    %v1835 = vcvt.s32.f32 %v1675
    %v1836 = vcvt.s32.f32 %v1676
    %v1837 = vcvt.s32.f32 %v1677
    %v1838 = vcvt.s32.f32 %v1678
    %v1839 = vcvt.s32.f32 %v1679
    %v1840 = vcvt.s32.f32 %v1680
    %v1841 = vcvt.s32.f32 %v1681
    %v1842 = vcvt.s32.f32 %v1682
    %v1843 = vcvt.s32.f32 %v1683
    %v1844 = vcvt.s32.f32 %v1684
    %v1845 = vcvt.s32.f32 %v1685
    %v1846 = vcvt.s32.f32 %v1686
    %v1847 = vcvt.s32.f32 %v1687
    %v1848 = vcvt.s32.f32 %v1688
    %v1849 = vcvt.s32.f32 %v1689
    %v1850 = vcvt.s32.f32 %v1690
    %v1851 = vcvt.s32.f32 %v1691
    %v1852 = vcvt.s32.f32 %v1692
    %v1853 = vcvt.s32.f32 %v1693
    %v1854 = vcvt.s32.f32 %v1694
    %v1855 = vcvt.s32.f32 %v1695
    %v1856 = vcvt.s32.f32 %v1696
    %v1857 = vcvt.s32.f32 %v1697
    %v1858 = vcvt.s32.f32 %v1698
    %v1859 = vcvt.s32.f32 %v1699
    %v1860 = vcvt.s32.f32 %v1700
    %v1861 = vcvt.s32.f32 %v1701
    %v1862 = vcvt.s32.f32 %v1702
    %v1863 = vcvt.s32.f32 %v1703
    %v1864 = vlaneseq
    %v1865 = vshrl.u32 %v1864, 7
    %v1866 = vsub.s32 0, %v1865
    %v1867 = vrot.slane %v244, %v1866
    %1869 = vbcast.lane.b32.xlu0 %v1867, 256
    %v1870 = vpop.permute.xlu0 %1869
    %v1871 = vlaneseq
    %v1872 = vshrl.u32 %v1871, 7
    %v1873 = vsub.s32 1, %v1872
    %v1874 = vrot.slane %v244, %v1873
    %1876 = vbcast.lane.b32.xlu0 %v1874, 256
    %v1877 = vpop.permute.xlu0 %1876
    %v1878 = vlaneseq
    %v1879 = vshrl.u32 %v1878, 7
    %v1880 = vsub.s32 2, %v1879
    %v1881 = vrot.slane %v244, %v1880
    %1883 = vbcast.lane.b32.xlu0 %v1881, 256
    %v1884 = vpop.permute.xlu0 %1883
    %v1885 = vlaneseq
    %v1886 = vshrl.u32 %v1885, 7
    %v1887 = vsub.s32 3, %v1886
    %v1888 = vrot.slane %v244, %v1887
    %1890 = vbcast.lane.b32.xlu0 %v1888, 256
    %v1891 = vpop.permute.xlu0 %1890
    %v1892 = vlaneseq
    %v1893 = vshrl.u32 %v1892, 7
    %v1894 = vsub.s32 4, %v1893
    %v1895 = vrot.slane %v244, %v1894
    %1897 = vbcast.lane.b32.xlu0 %v1895, 256
    %v1898 = vpop.permute.xlu0 %1897
    %v1899 = vlaneseq
    %v1900 = vshrl.u32 %v1899, 7
    %v1901 = vsub.s32 5, %v1900
    %v1902 = vrot.slane %v244, %v1901
    %1904 = vbcast.lane.b32.xlu0 %v1902, 256
    %v1905 = vpop.permute.xlu0 %1904
    %v1906 = vlaneseq
    %v1907 = vshrl.u32 %v1906, 7
    %v1908 = vsub.s32 6, %v1907
    %v1909 = vrot.slane %v244, %v1908
    %1911 = vbcast.lane.b32.xlu0 %v1909, 256
    %v1912 = vpop.permute.xlu0 %1911
    %v1913 = vlaneseq
    %v1914 = vshrl.u32 %v1913, 7
    %v1915 = vsub.s32 7, %v1914
    %v1916 = vrot.slane %v244, %v1915
    %1918 = vbcast.lane.b32.xlu0 %v1916, 256
    %v1919 = vpop.permute.xlu0 %1918
    %v1920 = vlaneseq
    %v1921 = vshrl.u32 %v1920, 7
    %v1922 = vsub.s32 0, %v1921
    %v1923 = vrot.slane %v245, %v1922
    %1925 = vbcast.lane.b32.xlu0 %v1923, 256
    %v1926 = vpop.permute.xlu0 %1925
    %v1927 = vlaneseq
    %v1928 = vshrl.u32 %v1927, 7
    %v1929 = vsub.s32 1, %v1928
    %v1930 = vrot.slane %v245, %v1929
    %1932 = vbcast.lane.b32.xlu0 %v1930, 256
    %v1933 = vpop.permute.xlu0 %1932
    %v1934 = vlaneseq
    %v1935 = vshrl.u32 %v1934, 7
    %v1936 = vsub.s32 2, %v1935
    %v1937 = vrot.slane %v245, %v1936
    %1939 = vbcast.lane.b32.xlu0 %v1937, 256
    %v1940 = vpop.permute.xlu0 %1939
    %v1941 = vlaneseq
    %v1942 = vshrl.u32 %v1941, 7
    %v1943 = vsub.s32 3, %v1942
    %v1944 = vrot.slane %v245, %v1943
    %1946 = vbcast.lane.b32.xlu0 %v1944, 256
    %v1947 = vpop.permute.xlu0 %1946
    %v1948 = vlaneseq
    %v1949 = vshrl.u32 %v1948, 7
    %v1950 = vsub.s32 4, %v1949
    %v1951 = vrot.slane %v245, %v1950
    %1953 = vbcast.lane.b32.xlu0 %v1951, 256
    %v1954 = vpop.permute.xlu0 %1953
    %v1955 = vlaneseq
    %v1956 = vshrl.u32 %v1955, 7
    %v1957 = vsub.s32 5, %v1956
    %v1958 = vrot.slane %v245, %v1957
    %1960 = vbcast.lane.b32.xlu0 %v1958, 256
    %v1961 = vpop.permute.xlu0 %1960
    %v1962 = vlaneseq
    %v1963 = vshrl.u32 %v1962, 7
    %v1964 = vsub.s32 6, %v1963
    %v1965 = vrot.slane %v245, %v1964
    %1967 = vbcast.lane.b32.xlu0 %v1965, 256
    %v1968 = vpop.permute.xlu0 %1967
    %v1969 = vlaneseq
    %v1970 = vshrl.u32 %v1969, 7
    %v1971 = vsub.s32 7, %v1970
    %v1972 = vrot.slane %v245, %v1971
    %1974 = vbcast.lane.b32.xlu0 %v1972, 256
    %v1975 = vpop.permute.xlu0 %1974
    %v1976 = vlaneseq
    %v1977 = vshrl.u32 %v1976, 7
    %v1978 = vsub.s32 0, %v1977
    %v1979 = vrot.slane %v246, %v1978
    %1981 = vbcast.lane.b32.xlu0 %v1979, 256
    %v1982 = vpop.permute.xlu0 %1981
    %v1983 = vlaneseq
    %v1984 = vshrl.u32 %v1983, 7
    %v1985 = vsub.s32 1, %v1984
    %v1986 = vrot.slane %v246, %v1985
    %1988 = vbcast.lane.b32.xlu0 %v1986, 256
    %v1989 = vpop.permute.xlu0 %1988
    %v1990 = vlaneseq
    %v1991 = vshrl.u32 %v1990, 7
    %v1992 = vsub.s32 2, %v1991
    %v1993 = vrot.slane %v246, %v1992
    %1995 = vbcast.lane.b32.xlu0 %v1993, 256
    %v1996 = vpop.permute.xlu0 %1995
    %v1997 = vlaneseq
    %v1998 = vshrl.u32 %v1997, 7
    %v1999 = vsub.s32 3, %v1998
    %v2000 = vrot.slane %v246, %v1999
    %2002 = vbcast.lane.b32.xlu0 %v2000, 256
    %v2003 = vpop.permute.xlu0 %2002
    %v2004 = vlaneseq
    %v2005 = vshrl.u32 %v2004, 7
    %v2006 = vsub.s32 4, %v2005
    %v2007 = vrot.slane %v246, %v2006
    %2009 = vbcast.lane.b32.xlu0 %v2007, 256
    %v2010 = vpop.permute.xlu0 %2009
    %v2011 = vlaneseq
    %v2012 = vshrl.u32 %v2011, 7
    %v2013 = vsub.s32 5, %v2012
    %v2014 = vrot.slane %v246, %v2013
    %2016 = vbcast.lane.b32.xlu0 %v2014, 256
    %v2017 = vpop.permute.xlu0 %2016
    %v2018 = vlaneseq
    %v2019 = vshrl.u32 %v2018, 7
    %v2020 = vsub.s32 6, %v2019
    %v2021 = vrot.slane %v246, %v2020
    %2023 = vbcast.lane.b32.xlu0 %v2021, 256
    %v2024 = vpop.permute.xlu0 %2023
    %v2025 = vlaneseq
    %v2026 = vshrl.u32 %v2025, 7
    %v2027 = vsub.s32 7, %v2026
    %v2028 = vrot.slane %v246, %v2027
    %2030 = vbcast.lane.b32.xlu0 %v2028, 256
    %v2031 = vpop.permute.xlu0 %2030
    %v2032 = vlaneseq
    %v2033 = vshrl.u32 %v2032, 7
    %v2034 = vsub.s32 0, %v2033
    %v2035 = vrot.slane %v247, %v2034
    %2037 = vbcast.lane.b32.xlu0 %v2035, 256
    %v2038 = vpop.permute.xlu0 %2037
    %v2039 = vlaneseq
    %v2040 = vshrl.u32 %v2039, 7
    %v2041 = vsub.s32 1, %v2040
    %v2042 = vrot.slane %v247, %v2041
    %2044 = vbcast.lane.b32.xlu0 %v2042, 256
    %v2045 = vpop.permute.xlu0 %2044
    %v2046 = vlaneseq
    %v2047 = vshrl.u32 %v2046, 7
    %v2048 = vsub.s32 2, %v2047
    %v2049 = vrot.slane %v247, %v2048
    %2051 = vbcast.lane.b32.xlu0 %v2049, 256
    %v2052 = vpop.permute.xlu0 %2051
    %v2053 = vlaneseq
    %v2054 = vshrl.u32 %v2053, 7
    %v2055 = vsub.s32 3, %v2054
    %v2056 = vrot.slane %v247, %v2055
    %2058 = vbcast.lane.b32.xlu0 %v2056, 256
    %v2059 = vpop.permute.xlu0 %2058
    %v2060 = vlaneseq
    %v2061 = vshrl.u32 %v2060, 7
    %v2062 = vsub.s32 4, %v2061
    %v2063 = vrot.slane %v247, %v2062
    %2065 = vbcast.lane.b32.xlu0 %v2063, 256
    %v2066 = vpop.permute.xlu0 %2065
    %v2067 = vlaneseq
    %v2068 = vshrl.u32 %v2067, 7
    %v2069 = vsub.s32 5, %v2068
    %v2070 = vrot.slane %v247, %v2069
    %2072 = vbcast.lane.b32.xlu0 %v2070, 256
    %v2073 = vpop.permute.xlu0 %2072
    %v2074 = vlaneseq
    %v2075 = vshrl.u32 %v2074, 7
    %v2076 = vsub.s32 6, %v2075
    %v2077 = vrot.slane %v247, %v2076
    %2079 = vbcast.lane.b32.xlu0 %v2077, 256
    %v2080 = vpop.permute.xlu0 %2079
    %v2081 = vlaneseq
    %v2082 = vshrl.u32 %v2081, 7
    %v2083 = vsub.s32 7, %v2082
    %v2084 = vrot.slane %v247, %v2083
    %2086 = vbcast.lane.b32.xlu0 %v2084, 256
    %v2087 = vpop.permute.xlu0 %2086
    %v2088 = vlaneseq
    %v2089 = vshrl.u32 %v2088, 7
    %v2090 = vsub.s32 0, %v2089
    %v2091 = vrot.slane %v248, %v2090
    %2093 = vbcast.lane.b32.xlu0 %v2091, 256
    %v2094 = vpop.permute.xlu0 %2093
    %v2095 = vlaneseq
    %v2096 = vshrl.u32 %v2095, 7
    %v2097 = vsub.s32 1, %v2096
    %v2098 = vrot.slane %v248, %v2097
    %2100 = vbcast.lane.b32.xlu0 %v2098, 256
    %v2101 = vpop.permute.xlu0 %2100
    %v2102 = vlaneseq
    %v2103 = vshrl.u32 %v2102, 7
    %v2104 = vsub.s32 2, %v2103
    %v2105 = vrot.slane %v248, %v2104
    %2107 = vbcast.lane.b32.xlu0 %v2105, 256
    %v2108 = vpop.permute.xlu0 %2107
    %v2109 = vlaneseq
    %v2110 = vshrl.u32 %v2109, 7
    %v2111 = vsub.s32 3, %v2110
    %v2112 = vrot.slane %v248, %v2111
    %2114 = vbcast.lane.b32.xlu0 %v2112, 256
    %v2115 = vpop.permute.xlu0 %2114
    %v2116 = vlaneseq
    %v2117 = vshrl.u32 %v2116, 7
    %v2118 = vsub.s32 4, %v2117
    %v2119 = vrot.slane %v248, %v2118
    %2121 = vbcast.lane.b32.xlu0 %v2119, 256
    %v2122 = vpop.permute.xlu0 %2121
    %v2123 = vlaneseq
    %v2124 = vshrl.u32 %v2123, 7
    %v2125 = vsub.s32 5, %v2124
    %v2126 = vrot.slane %v248, %v2125
    %2128 = vbcast.lane.b32.xlu0 %v2126, 256
    %v2129 = vpop.permute.xlu0 %2128
    %v2130 = vlaneseq
    %v2131 = vshrl.u32 %v2130, 7
    %v2132 = vsub.s32 6, %v2131
    %v2133 = vrot.slane %v248, %v2132
    %2135 = vbcast.lane.b32.xlu0 %v2133, 256
    %v2136 = vpop.permute.xlu0 %2135
    %v2137 = vlaneseq
    %v2138 = vshrl.u32 %v2137, 7
    %v2139 = vsub.s32 7, %v2138
    %v2140 = vrot.slane %v248, %v2139
    %2142 = vbcast.lane.b32.xlu0 %v2140, 256
    %v2143 = vpop.permute.xlu0 %2142
    %v2144 = vlaneseq
    %v2145 = vshrl.u32 %v2144, 7
    %v2146 = vsub.s32 0, %v2145
    %v2147 = vrot.slane %v249, %v2146
    %2149 = vbcast.lane.b32.xlu0 %v2147, 256
    %v2150 = vpop.permute.xlu0 %2149
    %v2151 = vlaneseq
    %v2152 = vshrl.u32 %v2151, 7
    %v2153 = vsub.s32 1, %v2152
    %v2154 = vrot.slane %v249, %v2153
    %2156 = vbcast.lane.b32.xlu0 %v2154, 256
    %v2157 = vpop.permute.xlu0 %2156
    %v2158 = vlaneseq
    %v2159 = vshrl.u32 %v2158, 7
    %v2160 = vsub.s32 2, %v2159
    %v2161 = vrot.slane %v249, %v2160
    %2163 = vbcast.lane.b32.xlu0 %v2161, 256
    %v2164 = vpop.permute.xlu0 %2163
    %v2165 = vlaneseq
    %v2166 = vshrl.u32 %v2165, 7
    %v2167 = vsub.s32 3, %v2166
    %v2168 = vrot.slane %v249, %v2167
    %2170 = vbcast.lane.b32.xlu0 %v2168, 256
    %v2171 = vpop.permute.xlu0 %2170
    %v2172 = vlaneseq
    %v2173 = vshrl.u32 %v2172, 7
    %v2174 = vsub.s32 4, %v2173
    %v2175 = vrot.slane %v249, %v2174
    %2177 = vbcast.lane.b32.xlu0 %v2175, 256
    %v2178 = vpop.permute.xlu0 %2177
    %v2179 = vlaneseq
    %v2180 = vshrl.u32 %v2179, 7
    %v2181 = vsub.s32 5, %v2180
    %v2182 = vrot.slane %v249, %v2181
    %2184 = vbcast.lane.b32.xlu0 %v2182, 256
    %v2185 = vpop.permute.xlu0 %2184
    %v2186 = vlaneseq
    %v2187 = vshrl.u32 %v2186, 7
    %v2188 = vsub.s32 6, %v2187
    %v2189 = vrot.slane %v249, %v2188
    %2191 = vbcast.lane.b32.xlu0 %v2189, 256
    %v2192 = vpop.permute.xlu0 %2191
    %v2193 = vlaneseq
    %v2194 = vshrl.u32 %v2193, 7
    %v2195 = vsub.s32 7, %v2194
    %v2196 = vrot.slane %v249, %v2195
    %2198 = vbcast.lane.b32.xlu0 %v2196, 256
    %v2199 = vpop.permute.xlu0 %2198
    %v2200 = vlaneseq
    %v2201 = vshrl.u32 %v2200, 7
    %v2202 = vsub.s32 0, %v2201
    %v2203 = vrot.slane %v250, %v2202
    %2205 = vbcast.lane.b32.xlu0 %v2203, 256
    %v2206 = vpop.permute.xlu0 %2205
    %v2207 = vlaneseq
    %v2208 = vshrl.u32 %v2207, 7
    %v2209 = vsub.s32 1, %v2208
    %v2210 = vrot.slane %v250, %v2209
    %2212 = vbcast.lane.b32.xlu0 %v2210, 256
    %v2213 = vpop.permute.xlu0 %2212
    %v2214 = vlaneseq
    %v2215 = vshrl.u32 %v2214, 7
    %v2216 = vsub.s32 2, %v2215
    %v2217 = vrot.slane %v250, %v2216
    %2219 = vbcast.lane.b32.xlu0 %v2217, 256
    %v2220 = vpop.permute.xlu0 %2219
    %v2221 = vlaneseq
    %v2222 = vshrl.u32 %v2221, 7
    %v2223 = vsub.s32 3, %v2222
    %v2224 = vrot.slane %v250, %v2223
    %2226 = vbcast.lane.b32.xlu0 %v2224, 256
    %v2227 = vpop.permute.xlu0 %2226
    %v2228 = vlaneseq
    %v2229 = vshrl.u32 %v2228, 7
    %v2230 = vsub.s32 4, %v2229
    %v2231 = vrot.slane %v250, %v2230
    %2233 = vbcast.lane.b32.xlu0 %v2231, 256
    %v2234 = vpop.permute.xlu0 %2233
    %v2235 = vlaneseq
    %v2236 = vshrl.u32 %v2235, 7
    %v2237 = vsub.s32 5, %v2236
    %v2238 = vrot.slane %v250, %v2237
    %2240 = vbcast.lane.b32.xlu0 %v2238, 256
    %v2241 = vpop.permute.xlu0 %2240
    %v2242 = vlaneseq
    %v2243 = vshrl.u32 %v2242, 7
    %v2244 = vsub.s32 6, %v2243
    %v2245 = vrot.slane %v250, %v2244
    %2247 = vbcast.lane.b32.xlu0 %v2245, 256
    %v2248 = vpop.permute.xlu0 %2247
    %v2249 = vlaneseq
    %v2250 = vshrl.u32 %v2249, 7
    %v2251 = vsub.s32 7, %v2250
    %v2252 = vrot.slane %v250, %v2251
    %2254 = vbcast.lane.b32.xlu0 %v2252, 256
    %v2255 = vpop.permute.xlu0 %2254
    %v2256 = vlaneseq
    %v2257 = vshrl.u32 %v2256, 7
    %v2258 = vsub.s32 0, %v2257
    %v2259 = vrot.slane %v251, %v2258
    %2261 = vbcast.lane.b32.xlu0 %v2259, 256
    %v2262 = vpop.permute.xlu0 %2261
    %v2263 = vlaneseq
    %v2264 = vshrl.u32 %v2263, 7
    %v2265 = vsub.s32 1, %v2264
    %v2266 = vrot.slane %v251, %v2265
    %2268 = vbcast.lane.b32.xlu0 %v2266, 256
    %v2269 = vpop.permute.xlu0 %2268
    %v2270 = vlaneseq
    %v2271 = vshrl.u32 %v2270, 7
    %v2272 = vsub.s32 2, %v2271
    %v2273 = vrot.slane %v251, %v2272
    %2275 = vbcast.lane.b32.xlu0 %v2273, 256
    %v2276 = vpop.permute.xlu0 %2275
    %v2277 = vlaneseq
    %v2278 = vshrl.u32 %v2277, 7
    %v2279 = vsub.s32 3, %v2278
    %v2280 = vrot.slane %v251, %v2279
    %2282 = vbcast.lane.b32.xlu0 %v2280, 256
    %v2283 = vpop.permute.xlu0 %2282
    %v2284 = vlaneseq
    %v2285 = vshrl.u32 %v2284, 7
    %v2286 = vsub.s32 4, %v2285
    %v2287 = vrot.slane %v251, %v2286
    %2289 = vbcast.lane.b32.xlu0 %v2287, 256
    %v2290 = vpop.permute.xlu0 %2289
    %v2291 = vlaneseq
    %v2292 = vshrl.u32 %v2291, 7
    %v2293 = vsub.s32 5, %v2292
    %v2294 = vrot.slane %v251, %v2293
    %2296 = vbcast.lane.b32.xlu0 %v2294, 256
    %v2297 = vpop.permute.xlu0 %2296
    %v2298 = vlaneseq
    %v2299 = vshrl.u32 %v2298, 7
    %v2300 = vsub.s32 6, %v2299
    %v2301 = vrot.slane %v251, %v2300
    %2303 = vbcast.lane.b32.xlu0 %v2301, 256
    %v2304 = vpop.permute.xlu0 %2303
    %v2305 = vlaneseq
    %v2306 = vshrl.u32 %v2305, 7
    %v2307 = vsub.s32 7, %v2306
    %v2308 = vrot.slane %v251, %v2307
    %2310 = vbcast.lane.b32.xlu0 %v2308, 256
    %v2311 = vpop.permute.xlu0 %2310
    %v2312 = vlaneseq
    %v2313 = vshrl.u32 %v2312, 7
    %v2314 = vsub.s32 0, %v2313
    %v2315 = vrot.slane %v252, %v2314
    %2317 = vbcast.lane.b32.xlu0 %v2315, 256
    %v2318 = vpop.permute.xlu0 %2317
    %v2319 = vlaneseq
    %v2320 = vshrl.u32 %v2319, 7
    %v2321 = vsub.s32 1, %v2320
    %v2322 = vrot.slane %v252, %v2321
    %2324 = vbcast.lane.b32.xlu0 %v2322, 256
    %v2325 = vpop.permute.xlu0 %2324
    %v2326 = vlaneseq
    %v2327 = vshrl.u32 %v2326, 7
    %v2328 = vsub.s32 2, %v2327
    %v2329 = vrot.slane %v252, %v2328
    %2331 = vbcast.lane.b32.xlu0 %v2329, 256
    %v2332 = vpop.permute.xlu0 %2331
    %v2333 = vlaneseq
    %v2334 = vshrl.u32 %v2333, 7
    %v2335 = vsub.s32 3, %v2334
    %v2336 = vrot.slane %v252, %v2335
    %2338 = vbcast.lane.b32.xlu0 %v2336, 256
    %v2339 = vpop.permute.xlu0 %2338
    %v2340 = vlaneseq
    %v2341 = vshrl.u32 %v2340, 7
    %v2342 = vsub.s32 4, %v2341
    %v2343 = vrot.slane %v252, %v2342
    %2345 = vbcast.lane.b32.xlu0 %v2343, 256
    %v2346 = vpop.permute.xlu0 %2345
    %v2347 = vlaneseq
    %v2348 = vshrl.u32 %v2347, 7
    %v2349 = vsub.s32 5, %v2348
    %v2350 = vrot.slane %v252, %v2349
    %2352 = vbcast.lane.b32.xlu0 %v2350, 256
    %v2353 = vpop.permute.xlu0 %2352
    %v2354 = vlaneseq
    %v2355 = vshrl.u32 %v2354, 7
    %v2356 = vsub.s32 6, %v2355
    %v2357 = vrot.slane %v252, %v2356
    %2359 = vbcast.lane.b32.xlu0 %v2357, 256
    %v2360 = vpop.permute.xlu0 %2359
    %v2361 = vlaneseq
    %v2362 = vshrl.u32 %v2361, 7
    %v2363 = vsub.s32 7, %v2362
    %v2364 = vrot.slane %v252, %v2363
    %2366 = vbcast.lane.b32.xlu0 %v2364, 256
    %v2367 = vpop.permute.xlu0 %2366
    %v2368 = vlaneseq
    %v2369 = vshrl.u32 %v2368, 7
    %v2370 = vsub.s32 0, %v2369
    %v2371 = vrot.slane %v253, %v2370
    %2373 = vbcast.lane.b32.xlu0 %v2371, 256
    %v2374 = vpop.permute.xlu0 %2373
    %v2375 = vlaneseq
    %v2376 = vshrl.u32 %v2375, 7
    %v2377 = vsub.s32 1, %v2376
    %v2378 = vrot.slane %v253, %v2377
    %2380 = vbcast.lane.b32.xlu0 %v2378, 256
    %v2381 = vpop.permute.xlu0 %2380
    %v2382 = vlaneseq
    %v2383 = vshrl.u32 %v2382, 7
    %v2384 = vsub.s32 2, %v2383
    %v2385 = vrot.slane %v253, %v2384
    %2387 = vbcast.lane.b32.xlu0 %v2385, 256
    %v2388 = vpop.permute.xlu0 %2387
    %v2389 = vlaneseq
    %v2390 = vshrl.u32 %v2389, 7
    %v2391 = vsub.s32 3, %v2390
    %v2392 = vrot.slane %v253, %v2391
    %2394 = vbcast.lane.b32.xlu0 %v2392, 256
    %v2395 = vpop.permute.xlu0 %2394
    %v2396 = vlaneseq
    %v2397 = vshrl.u32 %v2396, 7
    %v2398 = vsub.s32 4, %v2397
    %v2399 = vrot.slane %v253, %v2398
    %2401 = vbcast.lane.b32.xlu0 %v2399, 256
    %v2402 = vpop.permute.xlu0 %2401
    %v2403 = vlaneseq
    %v2404 = vshrl.u32 %v2403, 7
    %v2405 = vsub.s32 5, %v2404
    %v2406 = vrot.slane %v253, %v2405
    %2408 = vbcast.lane.b32.xlu0 %v2406, 256
    %v2409 = vpop.permute.xlu0 %2408
    %v2410 = vlaneseq
    %v2411 = vshrl.u32 %v2410, 7
    %v2412 = vsub.s32 6, %v2411
    %v2413 = vrot.slane %v253, %v2412
    %2415 = vbcast.lane.b32.xlu0 %v2413, 256
    %v2416 = vpop.permute.xlu0 %2415
    %v2417 = vlaneseq
    %v2418 = vshrl.u32 %v2417, 7
    %v2419 = vsub.s32 7, %v2418
    %v2420 = vrot.slane %v253, %v2419
    %2422 = vbcast.lane.b32.xlu0 %v2420, 256
    %v2423 = vpop.permute.xlu0 %2422
    %v2424 = vlaneseq
    %v2425 = vshrl.u32 %v2424, 7
    %v2426 = vsub.s32 0, %v2425
    %v2427 = vrot.slane %v254, %v2426
    %2429 = vbcast.lane.b32.xlu0 %v2427, 256
    %v2430 = vpop.permute.xlu0 %2429
    %v2431 = vlaneseq
    %v2432 = vshrl.u32 %v2431, 7
    %v2433 = vsub.s32 1, %v2432
    %v2434 = vrot.slane %v254, %v2433
    %2436 = vbcast.lane.b32.xlu0 %v2434, 256
    %v2437 = vpop.permute.xlu0 %2436
    %v2438 = vlaneseq
    %v2439 = vshrl.u32 %v2438, 7
    %v2440 = vsub.s32 2, %v2439
    %v2441 = vrot.slane %v254, %v2440
    %2443 = vbcast.lane.b32.xlu0 %v2441, 256
    %v2444 = vpop.permute.xlu0 %2443
    %v2445 = vlaneseq
    %v2446 = vshrl.u32 %v2445, 7
    %v2447 = vsub.s32 3, %v2446
    %v2448 = vrot.slane %v254, %v2447
    %2450 = vbcast.lane.b32.xlu0 %v2448, 256
    %v2451 = vpop.permute.xlu0 %2450
    %v2452 = vlaneseq
    %v2453 = vshrl.u32 %v2452, 7
    %v2454 = vsub.s32 4, %v2453
    %v2455 = vrot.slane %v254, %v2454
    %2457 = vbcast.lane.b32.xlu0 %v2455, 256
    %v2458 = vpop.permute.xlu0 %2457
    %v2459 = vlaneseq
    %v2460 = vshrl.u32 %v2459, 7
    %v2461 = vsub.s32 5, %v2460
    %v2462 = vrot.slane %v254, %v2461
    %2464 = vbcast.lane.b32.xlu0 %v2462, 256
    %v2465 = vpop.permute.xlu0 %2464
    %v2466 = vlaneseq
    %v2467 = vshrl.u32 %v2466, 7
    %v2468 = vsub.s32 6, %v2467
    %v2469 = vrot.slane %v254, %v2468
    %2471 = vbcast.lane.b32.xlu0 %v2469, 256
    %v2472 = vpop.permute.xlu0 %2471
    %v2473 = vlaneseq
    %v2474 = vshrl.u32 %v2473, 7
    %v2475 = vsub.s32 7, %v2474
    %v2476 = vrot.slane %v254, %v2475
    %2478 = vbcast.lane.b32.xlu0 %v2476, 256
    %v2479 = vpop.permute.xlu0 %2478
    %v2480 = vlaneseq
    %v2481 = vshrl.u32 %v2480, 7
    %v2482 = vsub.s32 0, %v2481
    %v2483 = vrot.slane %v255, %v2482
    %2485 = vbcast.lane.b32.xlu0 %v2483, 256
    %v2486 = vpop.permute.xlu0 %2485
    %v2487 = vlaneseq
    %v2488 = vshrl.u32 %v2487, 7
    %v2489 = vsub.s32 1, %v2488
    %v2490 = vrot.slane %v255, %v2489
    %2492 = vbcast.lane.b32.xlu0 %v2490, 256
    %v2493 = vpop.permute.xlu0 %2492
    %v2494 = vlaneseq
    %v2495 = vshrl.u32 %v2494, 7
    %v2496 = vsub.s32 2, %v2495
    %v2497 = vrot.slane %v255, %v2496
    %2499 = vbcast.lane.b32.xlu0 %v2497, 256
    %v2500 = vpop.permute.xlu0 %2499
    %v2501 = vlaneseq
    %v2502 = vshrl.u32 %v2501, 7
    %v2503 = vsub.s32 3, %v2502
    %v2504 = vrot.slane %v255, %v2503
    %2506 = vbcast.lane.b32.xlu0 %v2504, 256
    %v2507 = vpop.permute.xlu0 %2506
    %v2508 = vlaneseq
    %v2509 = vshrl.u32 %v2508, 7
    %v2510 = vsub.s32 4, %v2509
    %v2511 = vrot.slane %v255, %v2510
    %2513 = vbcast.lane.b32.xlu0 %v2511, 256
    %v2514 = vpop.permute.xlu0 %2513
    %v2515 = vlaneseq
    %v2516 = vshrl.u32 %v2515, 7
    %v2517 = vsub.s32 5, %v2516
    %v2518 = vrot.slane %v255, %v2517
    %2520 = vbcast.lane.b32.xlu0 %v2518, 256
    %v2521 = vpop.permute.xlu0 %2520
    %v2522 = vlaneseq
    %v2523 = vshrl.u32 %v2522, 7
    %v2524 = vsub.s32 6, %v2523
    %v2525 = vrot.slane %v255, %v2524
    %2527 = vbcast.lane.b32.xlu0 %v2525, 256
    %v2528 = vpop.permute.xlu0 %2527
    %v2529 = vlaneseq
    %v2530 = vshrl.u32 %v2529, 7
    %v2531 = vsub.s32 7, %v2530
    %v2532 = vrot.slane %v255, %v2531
    %2534 = vbcast.lane.b32.xlu0 %v2532, 256
    %v2535 = vpop.permute.xlu0 %2534
    %v2536 = vlaneseq
    %v2537 = vshrl.u32 %v2536, 7
    %v2538 = vsub.s32 0, %v2537
    %v2539 = vrot.slane %v256, %v2538
    %2541 = vbcast.lane.b32.xlu0 %v2539, 256
    %v2542 = vpop.permute.xlu0 %2541
    %v2543 = vlaneseq
    %v2544 = vshrl.u32 %v2543, 7
    %v2545 = vsub.s32 1, %v2544
    %v2546 = vrot.slane %v256, %v2545
    %2548 = vbcast.lane.b32.xlu0 %v2546, 256
    %v2549 = vpop.permute.xlu0 %2548
    %v2550 = vlaneseq
    %v2551 = vshrl.u32 %v2550, 7
    %v2552 = vsub.s32 2, %v2551
    %v2553 = vrot.slane %v256, %v2552
    %2555 = vbcast.lane.b32.xlu0 %v2553, 256
    %v2556 = vpop.permute.xlu0 %2555
    %v2557 = vlaneseq
    %v2558 = vshrl.u32 %v2557, 7
    %v2559 = vsub.s32 3, %v2558
    %v2560 = vrot.slane %v256, %v2559
    %2562 = vbcast.lane.b32.xlu0 %v2560, 256
    %v2563 = vpop.permute.xlu0 %2562
    %v2564 = vlaneseq
    %v2565 = vshrl.u32 %v2564, 7
    %v2566 = vsub.s32 4, %v2565
    %v2567 = vrot.slane %v256, %v2566
    %2569 = vbcast.lane.b32.xlu0 %v2567, 256
    %v2570 = vpop.permute.xlu0 %2569
    %v2571 = vlaneseq
    %v2572 = vshrl.u32 %v2571, 7
    %v2573 = vsub.s32 5, %v2572
    %v2574 = vrot.slane %v256, %v2573
    %2576 = vbcast.lane.b32.xlu0 %v2574, 256
    %v2577 = vpop.permute.xlu0 %2576
    %v2578 = vlaneseq
    %v2579 = vshrl.u32 %v2578, 7
    %v2580 = vsub.s32 6, %v2579
    %v2581 = vrot.slane %v256, %v2580
    %2583 = vbcast.lane.b32.xlu0 %v2581, 256
    %v2584 = vpop.permute.xlu0 %2583
    %v2585 = vlaneseq
    %v2586 = vshrl.u32 %v2585, 7
    %v2587 = vsub.s32 7, %v2586
    %v2588 = vrot.slane %v256, %v2587
    %2590 = vbcast.lane.b32.xlu0 %v2588, 256
    %v2591 = vpop.permute.xlu0 %2590
    %v2592 = vlaneseq
    %v2593 = vshrl.u32 %v2592, 7
    %v2594 = vsub.s32 0, %v2593
    %v2595 = vrot.slane %v257, %v2594
    %2597 = vbcast.lane.b32.xlu0 %v2595, 256
    %v2598 = vpop.permute.xlu0 %2597
    %v2599 = vlaneseq
    %v2600 = vshrl.u32 %v2599, 7
    %v2601 = vsub.s32 1, %v2600
    %v2602 = vrot.slane %v257, %v2601
    %2604 = vbcast.lane.b32.xlu0 %v2602, 256
    %v2605 = vpop.permute.xlu0 %2604
    %v2606 = vlaneseq
    %v2607 = vshrl.u32 %v2606, 7
    %v2608 = vsub.s32 2, %v2607
    %v2609 = vrot.slane %v257, %v2608
    %2611 = vbcast.lane.b32.xlu0 %v2609, 256
    %v2612 = vpop.permute.xlu0 %2611
    %v2613 = vlaneseq
    %v2614 = vshrl.u32 %v2613, 7
    %v2615 = vsub.s32 3, %v2614
    %v2616 = vrot.slane %v257, %v2615
    %2618 = vbcast.lane.b32.xlu0 %v2616, 256
    %v2619 = vpop.permute.xlu0 %2618
    %v2620 = vlaneseq
    %v2621 = vshrl.u32 %v2620, 7
    %v2622 = vsub.s32 4, %v2621
    %v2623 = vrot.slane %v257, %v2622
    %2625 = vbcast.lane.b32.xlu0 %v2623, 256
    %v2626 = vpop.permute.xlu0 %2625
    %v2627 = vlaneseq
    %v2628 = vshrl.u32 %v2627, 7
    %v2629 = vsub.s32 5, %v2628
    %v2630 = vrot.slane %v257, %v2629
    %2632 = vbcast.lane.b32.xlu0 %v2630, 256
    %v2633 = vpop.permute.xlu0 %2632
    %v2634 = vlaneseq
    %v2635 = vshrl.u32 %v2634, 7
    %v2636 = vsub.s32 6, %v2635
    %v2637 = vrot.slane %v257, %v2636
    %2639 = vbcast.lane.b32.xlu0 %v2637, 256
    %v2640 = vpop.permute.xlu0 %2639
    %v2641 = vlaneseq
    %v2642 = vshrl.u32 %v2641, 7
    %v2643 = vsub.s32 7, %v2642
    %v2644 = vrot.slane %v257, %v2643
    %2646 = vbcast.lane.b32.xlu0 %v2644, 256
    %v2647 = vpop.permute.xlu0 %2646
    %v2648 = vlaneseq
    %v2649 = vshrl.u32 %v2648, 7
    %v2650 = vsub.s32 0, %v2649
    %v2651 = vrot.slane %v258, %v2650
    %2653 = vbcast.lane.b32.xlu0 %v2651, 256
    %v2654 = vpop.permute.xlu0 %2653
    %v2655 = vlaneseq
    %v2656 = vshrl.u32 %v2655, 7
    %v2657 = vsub.s32 1, %v2656
    %v2658 = vrot.slane %v258, %v2657
    %2660 = vbcast.lane.b32.xlu0 %v2658, 256
    %v2661 = vpop.permute.xlu0 %2660
    %v2662 = vlaneseq
    %v2663 = vshrl.u32 %v2662, 7
    %v2664 = vsub.s32 2, %v2663
    %v2665 = vrot.slane %v258, %v2664
    %2667 = vbcast.lane.b32.xlu0 %v2665, 256
    %v2668 = vpop.permute.xlu0 %2667
    %v2669 = vlaneseq
    %v2670 = vshrl.u32 %v2669, 7
    %v2671 = vsub.s32 3, %v2670
    %v2672 = vrot.slane %v258, %v2671
    %2674 = vbcast.lane.b32.xlu0 %v2672, 256
    %v2675 = vpop.permute.xlu0 %2674
    %v2676 = vlaneseq
    %v2677 = vshrl.u32 %v2676, 7
    %v2678 = vsub.s32 4, %v2677
    %v2679 = vrot.slane %v258, %v2678
    %2681 = vbcast.lane.b32.xlu0 %v2679, 256
    %v2682 = vpop.permute.xlu0 %2681
    %v2683 = vlaneseq
    %v2684 = vshrl.u32 %v2683, 7
    %v2685 = vsub.s32 5, %v2684
    %v2686 = vrot.slane %v258, %v2685
    %2688 = vbcast.lane.b32.xlu0 %v2686, 256
    %v2689 = vpop.permute.xlu0 %2688
    %v2690 = vlaneseq
    %v2691 = vshrl.u32 %v2690, 7
    %v2692 = vsub.s32 6, %v2691
    %v2693 = vrot.slane %v258, %v2692
    %2695 = vbcast.lane.b32.xlu0 %v2693, 256
    %v2696 = vpop.permute.xlu0 %2695
    %v2697 = vlaneseq
    %v2698 = vshrl.u32 %v2697, 7
    %v2699 = vsub.s32 7, %v2698
    %v2700 = vrot.slane %v258, %v2699
    %2702 = vbcast.lane.b32.xlu0 %v2700, 256
    %v2703 = vpop.permute.xlu0 %2702
    %v2704 = vlaneseq
    %v2705 = vshrl.u32 %v2704, 7
    %v2706 = vsub.s32 0, %v2705
    %v2707 = vrot.slane %v259, %v2706
    %2709 = vbcast.lane.b32.xlu0 %v2707, 256
    %v2710 = vpop.permute.xlu0 %2709
    %v2711 = vlaneseq
    %v2712 = vshrl.u32 %v2711, 7
    %v2713 = vsub.s32 1, %v2712
    %v2714 = vrot.slane %v259, %v2713
    %2716 = vbcast.lane.b32.xlu0 %v2714, 256
    %v2717 = vpop.permute.xlu0 %2716
    %v2718 = vlaneseq
    %v2719 = vshrl.u32 %v2718, 7
    %v2720 = vsub.s32 2, %v2719
    %v2721 = vrot.slane %v259, %v2720
    %2723 = vbcast.lane.b32.xlu0 %v2721, 256
    %v2724 = vpop.permute.xlu0 %2723
    %v2725 = vlaneseq
    %v2726 = vshrl.u32 %v2725, 7
    %v2727 = vsub.s32 3, %v2726
    %v2728 = vrot.slane %v259, %v2727
    %2730 = vbcast.lane.b32.xlu0 %v2728, 256
    %v2731 = vpop.permute.xlu0 %2730
    %v2732 = vlaneseq
    %v2733 = vshrl.u32 %v2732, 7
    %v2734 = vsub.s32 4, %v2733
    %v2735 = vrot.slane %v259, %v2734
    %2737 = vbcast.lane.b32.xlu0 %v2735, 256
    %v2738 = vpop.permute.xlu0 %2737
    %v2739 = vlaneseq
    %v2740 = vshrl.u32 %v2739, 7
    %v2741 = vsub.s32 5, %v2740
    %v2742 = vrot.slane %v259, %v2741
    %2744 = vbcast.lane.b32.xlu0 %v2742, 256
    %v2745 = vpop.permute.xlu0 %2744
    %v2746 = vlaneseq
    %v2747 = vshrl.u32 %v2746, 7
    %v2748 = vsub.s32 6, %v2747
    %v2749 = vrot.slane %v259, %v2748
    %2751 = vbcast.lane.b32.xlu0 %v2749, 256
    %v2752 = vpop.permute.xlu0 %2751
    %v2753 = vlaneseq
    %v2754 = vshrl.u32 %v2753, 7
    %v2755 = vsub.s32 7, %v2754
    %v2756 = vrot.slane %v259, %v2755
    %2758 = vbcast.lane.b32.xlu0 %v2756, 256
    %v2759 = vpop.permute.xlu0 %2758
    %v2760 = vlaneseq
    %v2761 = vshrl.u32 %v2760, 7
    %v2762 = vsub.s32 0, %v2761
    %v2763 = vrot.slane %v260, %v2762
    %2765 = vbcast.lane.b32.xlu0 %v2763, 256
    %v2766 = vpop.permute.xlu0 %2765
    %v2767 = vlaneseq
    %v2768 = vshrl.u32 %v2767, 7
    %v2769 = vsub.s32 1, %v2768
    %v2770 = vrot.slane %v260, %v2769
    %2772 = vbcast.lane.b32.xlu0 %v2770, 256
    %v2773 = vpop.permute.xlu0 %2772
    %v2774 = vlaneseq
    %v2775 = vshrl.u32 %v2774, 7
    %v2776 = vsub.s32 2, %v2775
    %v2777 = vrot.slane %v260, %v2776
    %2779 = vbcast.lane.b32.xlu0 %v2777, 256
    %v2780 = vpop.permute.xlu0 %2779
    %v2781 = vlaneseq
    %v2782 = vshrl.u32 %v2781, 7
    %v2783 = vsub.s32 3, %v2782
    %v2784 = vrot.slane %v260, %v2783
    %2786 = vbcast.lane.b32.xlu0 %v2784, 256
    %v2787 = vpop.permute.xlu0 %2786
    %v2788 = vlaneseq
    %v2789 = vshrl.u32 %v2788, 7
    %v2790 = vsub.s32 4, %v2789
    %v2791 = vrot.slane %v260, %v2790
    %2793 = vbcast.lane.b32.xlu0 %v2791, 256
    %v2794 = vpop.permute.xlu0 %2793
    %v2795 = vlaneseq
    %v2796 = vshrl.u32 %v2795, 7
    %v2797 = vsub.s32 5, %v2796
    %v2798 = vrot.slane %v260, %v2797
    %2800 = vbcast.lane.b32.xlu0 %v2798, 256
    %v2801 = vpop.permute.xlu0 %2800
    %v2802 = vlaneseq
    %v2803 = vshrl.u32 %v2802, 7
    %v2804 = vsub.s32 6, %v2803
    %v2805 = vrot.slane %v260, %v2804
    %2807 = vbcast.lane.b32.xlu0 %v2805, 256
    %v2808 = vpop.permute.xlu0 %2807
    %v2809 = vlaneseq
    %v2810 = vshrl.u32 %v2809, 7
    %v2811 = vsub.s32 7, %v2810
    %v2812 = vrot.slane %v260, %v2811
    %2814 = vbcast.lane.b32.xlu0 %v2812, 256
    %v2815 = vpop.permute.xlu0 %2814
    %v2816 = vlaneseq
    %v2817 = vshrl.u32 %v2816, 7
    %v2818 = vsub.s32 0, %v2817
    %v2819 = vrot.slane %v261, %v2818
    %2821 = vbcast.lane.b32.xlu0 %v2819, 256
    %v2822 = vpop.permute.xlu0 %2821
    %v2823 = vlaneseq
    %v2824 = vshrl.u32 %v2823, 7
    %v2825 = vsub.s32 1, %v2824
    %v2826 = vrot.slane %v261, %v2825
    %2828 = vbcast.lane.b32.xlu0 %v2826, 256
    %v2829 = vpop.permute.xlu0 %2828
    %v2830 = vlaneseq
    %v2831 = vshrl.u32 %v2830, 7
    %v2832 = vsub.s32 2, %v2831
    %v2833 = vrot.slane %v261, %v2832
    %2835 = vbcast.lane.b32.xlu0 %v2833, 256
    %v2836 = vpop.permute.xlu0 %2835
    %v2837 = vlaneseq
    %v2838 = vshrl.u32 %v2837, 7
    %v2839 = vsub.s32 3, %v2838
    %v2840 = vrot.slane %v261, %v2839
    %2842 = vbcast.lane.b32.xlu0 %v2840, 256
    %v2843 = vpop.permute.xlu0 %2842
    %v2844 = vlaneseq
    %v2845 = vshrl.u32 %v2844, 7
    %v2846 = vsub.s32 4, %v2845
    %v2847 = vrot.slane %v261, %v2846
    %2849 = vbcast.lane.b32.xlu0 %v2847, 256
    %v2850 = vpop.permute.xlu0 %2849
    %v2851 = vlaneseq
    %v2852 = vshrl.u32 %v2851, 7
    %v2853 = vsub.s32 5, %v2852
    %v2854 = vrot.slane %v261, %v2853
    %2856 = vbcast.lane.b32.xlu0 %v2854, 256
    %v2857 = vpop.permute.xlu0 %2856
    %v2858 = vlaneseq
    %v2859 = vshrl.u32 %v2858, 7
    %v2860 = vsub.s32 6, %v2859
    %v2861 = vrot.slane %v261, %v2860
    %2863 = vbcast.lane.b32.xlu0 %v2861, 256
    %v2864 = vpop.permute.xlu0 %2863
    %v2865 = vlaneseq
    %v2866 = vshrl.u32 %v2865, 7
    %v2867 = vsub.s32 7, %v2866
    %v2868 = vrot.slane %v261, %v2867
    %2870 = vbcast.lane.b32.xlu0 %v2868, 256
    %v2871 = vpop.permute.xlu0 %2870
    %v2872 = vlaneseq
    %v2873 = vshrl.u32 %v2872, 7
    %v2874 = vsub.s32 0, %v2873
    %v2875 = vrot.slane %v262, %v2874
    %2877 = vbcast.lane.b32.xlu0 %v2875, 256
    %v2878 = vpop.permute.xlu0 %2877
    %v2879 = vlaneseq
    %v2880 = vshrl.u32 %v2879, 7
    %v2881 = vsub.s32 1, %v2880
    %v2882 = vrot.slane %v262, %v2881
    %2884 = vbcast.lane.b32.xlu0 %v2882, 256
    %v2885 = vpop.permute.xlu0 %2884
    %v2886 = vlaneseq
    %v2887 = vshrl.u32 %v2886, 7
    %v2888 = vsub.s32 2, %v2887
    %v2889 = vrot.slane %v262, %v2888
    %2891 = vbcast.lane.b32.xlu0 %v2889, 256
    %v2892 = vpop.permute.xlu0 %2891
    %v2893 = vlaneseq
    %v2894 = vshrl.u32 %v2893, 7
    %v2895 = vsub.s32 3, %v2894
    %v2896 = vrot.slane %v262, %v2895
    %2898 = vbcast.lane.b32.xlu0 %v2896, 256
    %v2899 = vpop.permute.xlu0 %2898
    %v2900 = vlaneseq
    %v2901 = vshrl.u32 %v2900, 7
    %v2902 = vsub.s32 4, %v2901
    %v2903 = vrot.slane %v262, %v2902
    %2905 = vbcast.lane.b32.xlu0 %v2903, 256
    %v2906 = vpop.permute.xlu0 %2905
    %v2907 = vlaneseq
    %v2908 = vshrl.u32 %v2907, 7
    %v2909 = vsub.s32 5, %v2908
    %v2910 = vrot.slane %v262, %v2909
    %2912 = vbcast.lane.b32.xlu0 %v2910, 256
    %v2913 = vpop.permute.xlu0 %2912
    %v2914 = vlaneseq
    %v2915 = vshrl.u32 %v2914, 7
    %v2916 = vsub.s32 6, %v2915
    %v2917 = vrot.slane %v262, %v2916
    %2919 = vbcast.lane.b32.xlu0 %v2917, 256
    %v2920 = vpop.permute.xlu0 %2919
    %v2921 = vlaneseq
    %v2922 = vshrl.u32 %v2921, 7
    %v2923 = vsub.s32 7, %v2922
    %v2924 = vrot.slane %v262, %v2923
    %2926 = vbcast.lane.b32.xlu0 %v2924, 256
    %v2927 = vpop.permute.xlu0 %2926
    %v2928 = vlaneseq
    %v2929 = vshrl.u32 %v2928, 7
    %v2930 = vsub.s32 0, %v2929
    %v2931 = vrot.slane %v263, %v2930
    %2933 = vbcast.lane.b32.xlu0 %v2931, 256
    %v2934 = vpop.permute.xlu0 %2933
    %v2935 = vlaneseq
    %v2936 = vshrl.u32 %v2935, 7
    %v2937 = vsub.s32 1, %v2936
    %v2938 = vrot.slane %v263, %v2937
    %2940 = vbcast.lane.b32.xlu0 %v2938, 256
    %v2941 = vpop.permute.xlu0 %2940
    %v2942 = vlaneseq
    %v2943 = vshrl.u32 %v2942, 7
    %v2944 = vsub.s32 2, %v2943
    %v2945 = vrot.slane %v263, %v2944
    %2947 = vbcast.lane.b32.xlu0 %v2945, 256
    %v2948 = vpop.permute.xlu0 %2947
    %v2949 = vlaneseq
    %v2950 = vshrl.u32 %v2949, 7
    %v2951 = vsub.s32 3, %v2950
    %v2952 = vrot.slane %v263, %v2951
    %2954 = vbcast.lane.b32.xlu0 %v2952, 256
    %v2955 = vpop.permute.xlu0 %2954
    %v2956 = vlaneseq
    %v2957 = vshrl.u32 %v2956, 7
    %v2958 = vsub.s32 4, %v2957
    %v2959 = vrot.slane %v263, %v2958
    %2961 = vbcast.lane.b32.xlu0 %v2959, 256
    %v2962 = vpop.permute.xlu0 %2961
    %v2963 = vlaneseq
    %v2964 = vshrl.u32 %v2963, 7
    %v2965 = vsub.s32 5, %v2964
    %v2966 = vrot.slane %v263, %v2965
    %2968 = vbcast.lane.b32.xlu0 %v2966, 256
    %v2969 = vpop.permute.xlu0 %2968
    %v2970 = vlaneseq
    %v2971 = vshrl.u32 %v2970, 7
    %v2972 = vsub.s32 6, %v2971
    %v2973 = vrot.slane %v263, %v2972
    %2975 = vbcast.lane.b32.xlu0 %v2973, 256
    %v2976 = vpop.permute.xlu0 %2975
    %v2977 = vlaneseq
    %v2978 = vshrl.u32 %v2977, 7
    %v2979 = vsub.s32 7, %v2978
    %v2980 = vrot.slane %v263, %v2979
    %2982 = vbcast.lane.b32.xlu0 %v2980, 256
    %v2983 = vpop.permute.xlu0 %2982
    %v2984 = vmul.f32 %v1704, %v1870
    %v2985 = vmul.f32 %v1705, %v1877
    %v2986 = vmul.f32 %v1706, %v1884
    %v2987 = vmul.f32 %v1707, %v1891
    %v2988 = vmul.f32 %v1708, %v1898
    %v2989 = vmul.f32 %v1709, %v1905
    %v2990 = vmul.f32 %v1710, %v1912
    %v2991 = vmul.f32 %v1711, %v1919
    %v2992 = vmul.f32 %v1712, %v1926
    %v2993 = vmul.f32 %v1713, %v1933
    %v2994 = vmul.f32 %v1714, %v1940
    %v2995 = vmul.f32 %v1715, %v1947
    %v2996 = vmul.f32 %v1716, %v1954
    %v2997 = vmul.f32 %v1717, %v1961
    %v2998 = vmul.f32 %v1718, %v1968
    %v2999 = vmul.f32 %v1719, %v1975
    %v3000 = vmul.f32 %v1720, %v1982
    %v3001 = vmul.f32 %v1721, %v1989
    %v3002 = vmul.f32 %v1722, %v1996
    %v3003 = vmul.f32 %v1723, %v2003
    %v3004 = vmul.f32 %v1724, %v2010
    %v3005 = vmul.f32 %v1725, %v2017
    %v3006 = vmul.f32 %v1726, %v2024
    %v3007 = vmul.f32 %v1727, %v2031
    %v3008 = vmul.f32 %v1728, %v2038
    %v3009 = vmul.f32 %v1729, %v2045
    %v3010 = vmul.f32 %v1730, %v2052
    %v3011 = vmul.f32 %v1731, %v2059
    %v3012 = vmul.f32 %v1732, %v2066
    %v3013 = vmul.f32 %v1733, %v2073
    %v3014 = vmul.f32 %v1734, %v2080
    %v3015 = vmul.f32 %v1735, %v2087
    %v3016 = vmul.f32 %v1736, %v2094
    %v3017 = vmul.f32 %v1737, %v2101
    %v3018 = vmul.f32 %v1738, %v2108
    %v3019 = vmul.f32 %v1739, %v2115
    %v3020 = vmul.f32 %v1740, %v2122
    %v3021 = vmul.f32 %v1741, %v2129
    %v3022 = vmul.f32 %v1742, %v2136
    %v3023 = vmul.f32 %v1743, %v2143
    %v3024 = vmul.f32 %v1744, %v2150
    %v3025 = vmul.f32 %v1745, %v2157
    %v3026 = vmul.f32 %v1746, %v2164
    %v3027 = vmul.f32 %v1747, %v2171
    %v3028 = vmul.f32 %v1748, %v2178
    %v3029 = vmul.f32 %v1749, %v2185
    %v3030 = vmul.f32 %v1750, %v2192
    %v3031 = vmul.f32 %v1751, %v2199
    %v3032 = vmul.f32 %v1752, %v2206
    %v3033 = vmul.f32 %v1753, %v2213
    %v3034 = vmul.f32 %v1754, %v2220
    %v3035 = vmul.f32 %v1755, %v2227
    %v3036 = vmul.f32 %v1756, %v2234
    %v3037 = vmul.f32 %v1757, %v2241
    %v3038 = vmul.f32 %v1758, %v2248
    %v3039 = vmul.f32 %v1759, %v2255
    %v3040 = vmul.f32 %v1760, %v2262
    %v3041 = vmul.f32 %v1761, %v2269
    %v3042 = vmul.f32 %v1762, %v2276
    %v3043 = vmul.f32 %v1763, %v2283
    %v3044 = vmul.f32 %v1764, %v2290
    %v3045 = vmul.f32 %v1765, %v2297
    %v3046 = vmul.f32 %v1766, %v2304
    %v3047 = vmul.f32 %v1767, %v2311
    %v3048 = vmul.f32 %v1768, %v2318
    %v3049 = vmul.f32 %v1769, %v2325
    %v3050 = vmul.f32 %v1770, %v2332
    %v3051 = vmul.f32 %v1771, %v2339
    %v3052 = vmul.f32 %v1772, %v2346
    %v3053 = vmul.f32 %v1773, %v2353
    %v3054 = vmul.f32 %v1774, %v2360
    %v3055 = vmul.f32 %v1775, %v2367
    %v3056 = vmul.f32 %v1776, %v2374
    %v3057 = vmul.f32 %v1777, %v2381
    %v3058 = vmul.f32 %v1778, %v2388
    %v3059 = vmul.f32 %v1779, %v2395
    %v3060 = vmul.f32 %v1780, %v2402
    %v3061 = vmul.f32 %v1781, %v2409
    %v3062 = vmul.f32 %v1782, %v2416
    %v3063 = vmul.f32 %v1783, %v2423
    %v3064 = vmul.f32 %v1784, %v2430
    %v3065 = vmul.f32 %v1785, %v2437
    %v3066 = vmul.f32 %v1786, %v2444
    %v3067 = vmul.f32 %v1787, %v2451
    %v3068 = vmul.f32 %v1788, %v2458
    %v3069 = vmul.f32 %v1789, %v2465
    %v3070 = vmul.f32 %v1790, %v2472
    %v3071 = vmul.f32 %v1791, %v2479
    %v3072 = vmul.f32 %v1792, %v2486
    %v3073 = vmul.f32 %v1793, %v2493
    %v3074 = vmul.f32 %v1794, %v2500
    %v3075 = vmul.f32 %v1795, %v2507
    %v3076 = vmul.f32 %v1796, %v2514
    %v3077 = vmul.f32 %v1797, %v2521
    %v3078 = vmul.f32 %v1798, %v2528
    %v3079 = vmul.f32 %v1799, %v2535
    %v3080 = vmul.f32 %v1800, %v2542
    %v3081 = vmul.f32 %v1801, %v2549
    %v3082 = vmul.f32 %v1802, %v2556
    %v3083 = vmul.f32 %v1803, %v2563
    %v3084 = vmul.f32 %v1804, %v2570
    %v3085 = vmul.f32 %v1805, %v2577
    %v3086 = vmul.f32 %v1806, %v2584
    %v3087 = vmul.f32 %v1807, %v2591
    %v3088 = vmul.f32 %v1808, %v2598
    %v3089 = vmul.f32 %v1809, %v2605
    %v3090 = vmul.f32 %v1810, %v2612
    %v3091 = vmul.f32 %v1811, %v2619
    %v3092 = vmul.f32 %v1812, %v2626
    %v3093 = vmul.f32 %v1813, %v2633
    %v3094 = vmul.f32 %v1814, %v2640
    %v3095 = vmul.f32 %v1815, %v2647
    %v3096 = vmul.f32 %v1816, %v2654
    %v3097 = vmul.f32 %v1817, %v2661
    %v3098 = vmul.f32 %v1818, %v2668
    %v3099 = vmul.f32 %v1819, %v2675
    %v3100 = vmul.f32 %v1820, %v2682
    %v3101 = vmul.f32 %v1821, %v2689
    %v3102 = vmul.f32 %v1822, %v2696
    %v3103 = vmul.f32 %v1823, %v2703
    %v3104 = vmul.f32 %v1824, %v2710
    %v3105 = vmul.f32 %v1825, %v2717
    %v3106 = vmul.f32 %v1826, %v2724
    %v3107 = vmul.f32 %v1827, %v2731
    %v3108 = vmul.f32 %v1828, %v2738
    %v3109 = vmul.f32 %v1829, %v2745
    %v3110 = vmul.f32 %v1830, %v2752
    %v3111 = vmul.f32 %v1831, %v2759
    %v3112 = vmul.f32 %v1832, %v2766
    %v3113 = vmul.f32 %v1833, %v2773
    %v3114 = vmul.f32 %v1834, %v2780
    %v3115 = vmul.f32 %v1835, %v2787
    %v3116 = vmul.f32 %v1836, %v2794
    %v3117 = vmul.f32 %v1837, %v2801
    %v3118 = vmul.f32 %v1838, %v2808
    %v3119 = vmul.f32 %v1839, %v2815
    %v3120 = vmul.f32 %v1840, %v2822
    %v3121 = vmul.f32 %v1841, %v2829
    %v3122 = vmul.f32 %v1842, %v2836
    %v3123 = vmul.f32 %v1843, %v2843
    %v3124 = vmul.f32 %v1844, %v2850
    %v3125 = vmul.f32 %v1845, %v2857
    %v3126 = vmul.f32 %v1846, %v2864
    %v3127 = vmul.f32 %v1847, %v2871
    %v3128 = vmul.f32 %v1848, %v2878
    %v3129 = vmul.f32 %v1849, %v2885
    %v3130 = vmul.f32 %v1850, %v2892
    %v3131 = vmul.f32 %v1851, %v2899
    %v3132 = vmul.f32 %v1852, %v2906
    %v3133 = vmul.f32 %v1853, %v2913
    %v3134 = vmul.f32 %v1854, %v2920
    %v3135 = vmul.f32 %v1855, %v2927
    %v3136 = vmul.f32 %v1856, %v2934
    %v3137 = vmul.f32 %v1857, %v2941
    %v3138 = vmul.f32 %v1858, %v2948
    %v3139 = vmul.f32 %v1859, %v2955
    %v3140 = vmul.f32 %v1860, %v2962
    %v3141 = vmul.f32 %v1861, %v2969
    %v3142 = vmul.f32 %v1862, %v2976
    %v3143 = vmul.f32 %v1863, %v2983
    %vm3144 = vcmask 520192
    %v3145 = vsel %vm3144, %v2984, 0.0
    %v3146 = vrot.slane %v3145, 4
    %v3147 = vadd.f32 %v3145, %v3146
    %v3148 = vrot.slane %v3147, 2
    %v3149 = vadd.f32 %v3147, %v3148
    %v3150 = vrot.slane %v3149, 1
    %v3151 = vadd.f32 %v3149, %v3150
    %v3152 = vsel %vm3144, %v2985, 0.0
    %v3153 = vrot.slane %v3152, 4
    %v3154 = vadd.f32 %v3152, %v3153
    %v3155 = vrot.slane %v3154, 2
    %v3156 = vadd.f32 %v3154, %v3155
    %v3157 = vrot.slane %v3156, 1
    %v3158 = vadd.f32 %v3156, %v3157
    %v3159 = vsel %vm3144, %v2986, 0.0
    %v3160 = vrot.slane %v3159, 4
    %v3161 = vadd.f32 %v3159, %v3160
    %v3162 = vrot.slane %v3161, 2
    %v3163 = vadd.f32 %v3161, %v3162
    %v3164 = vrot.slane %v3163, 1
    %v3165 = vadd.f32 %v3163, %v3164
    %v3166 = vsel %vm3144, %v2987, 0.0
    %v3167 = vrot.slane %v3166, 4
    %v3168 = vadd.f32 %v3166, %v3167
    %v3169 = vrot.slane %v3168, 2
    %v3170 = vadd.f32 %v3168, %v3169
    %v3171 = vrot.slane %v3170, 1
    %v3172 = vadd.f32 %v3170, %v3171
    %v3173 = vsel %vm3144, %v2988, 0.0
    %v3174 = vrot.slane %v3173, 4
    %v3175 = vadd.f32 %v3173, %v3174
    %v3176 = vrot.slane %v3175, 2
    %v3177 = vadd.f32 %v3175, %v3176
    %v3178 = vrot.slane %v3177, 1
    %v3179 = vadd.f32 %v3177, %v3178
    %v3180 = vsel %vm3144, %v2989, 0.0
    %v3181 = vrot.slane %v3180, 4
    %v3182 = vadd.f32 %v3180, %v3181
    %v3183 = vrot.slane %v3182, 2
    %v3184 = vadd.f32 %v3182, %v3183
    %v3185 = vrot.slane %v3184, 1
    %v3186 = vadd.f32 %v3184, %v3185
    %v3187 = vsel %vm3144, %v2990, 0.0
    %v3188 = vrot.slane %v3187, 4
    %v3189 = vadd.f32 %v3187, %v3188
    %v3190 = vrot.slane %v3189, 2
    %v3191 = vadd.f32 %v3189, %v3190
    %v3192 = vrot.slane %v3191, 1
    %v3193 = vadd.f32 %v3191, %v3192
    %v3194 = vsel %vm3144, %v2991, 0.0
    %v3195 = vrot.slane %v3194, 4
    %v3196 = vadd.f32 %v3194, %v3195
    %v3197 = vrot.slane %v3196, 2
    %v3198 = vadd.f32 %v3196, %v3197
    %v3199 = vrot.slane %v3198, 1
    %v3200 = vadd.f32 %v3198, %v3199
    %v3201 = vsel %vm3144, %v2992, 0.0
    %v3202 = vrot.slane %v3201, 4
    %v3203 = vadd.f32 %v3201, %v3202
    %v3204 = vrot.slane %v3203, 2
    %v3205 = vadd.f32 %v3203, %v3204
    %v3206 = vrot.slane %v3205, 1
    %v3207 = vadd.f32 %v3205, %v3206
    %v3208 = vsel %vm3144, %v2993, 0.0
    %v3209 = vrot.slane %v3208, 4
    %v3210 = vadd.f32 %v3208, %v3209
    %v3211 = vrot.slane %v3210, 2
    %v3212 = vadd.f32 %v3210, %v3211
    %v3213 = vrot.slane %v3212, 1
    %v3214 = vadd.f32 %v3212, %v3213
    %v3215 = vsel %vm3144, %v2994, 0.0
    %v3216 = vrot.slane %v3215, 4
    %v3217 = vadd.f32 %v3215, %v3216
    %v3218 = vrot.slane %v3217, 2
    %v3219 = vadd.f32 %v3217, %v3218
    %v3220 = vrot.slane %v3219, 1
    %v3221 = vadd.f32 %v3219, %v3220
    %v3222 = vsel %vm3144, %v2995, 0.0
    %v3223 = vrot.slane %v3222, 4
    %v3224 = vadd.f32 %v3222, %v3223
    %v3225 = vrot.slane %v3224, 2
    %v3226 = vadd.f32 %v3224, %v3225
    %v3227 = vrot.slane %v3226, 1
    %v3228 = vadd.f32 %v3226, %v3227
    %v3229 = vsel %vm3144, %v2996, 0.0
    %v3230 = vrot.slane %v3229, 4
    %v3231 = vadd.f32 %v3229, %v3230
    %v3232 = vrot.slane %v3231, 2
    %v3233 = vadd.f32 %v3231, %v3232
    %v3234 = vrot.slane %v3233, 1
    %v3235 = vadd.f32 %v3233, %v3234
    %v3236 = vsel %vm3144, %v2997, 0.0
    %v3237 = vrot.slane %v3236, 4
    %v3238 = vadd.f32 %v3236, %v3237
    %v3239 = vrot.slane %v3238, 2
    %v3240 = vadd.f32 %v3238, %v3239
    %v3241 = vrot.slane %v3240, 1
    %v3242 = vadd.f32 %v3240, %v3241
    %v3243 = vsel %vm3144, %v2998, 0.0
    %v3244 = vrot.slane %v3243, 4
    %v3245 = vadd.f32 %v3243, %v3244
    %v3246 = vrot.slane %v3245, 2
    %v3247 = vadd.f32 %v3245, %v3246
    %v3248 = vrot.slane %v3247, 1
    %v3249 = vadd.f32 %v3247, %v3248
    %v3250 = vsel %vm3144, %v2999, 0.0
    %v3251 = vrot.slane %v3250, 4
    %v3252 = vadd.f32 %v3250, %v3251
    %v3253 = vrot.slane %v3252, 2
    %v3254 = vadd.f32 %v3252, %v3253
    %v3255 = vrot.slane %v3254, 1
    %v3256 = vadd.f32 %v3254, %v3255
    %v3257 = vsel %vm3144, %v3000, 0.0
    %v3258 = vrot.slane %v3257, 4
    %v3259 = vadd.f32 %v3257, %v3258
    %v3260 = vrot.slane %v3259, 2
    %v3261 = vadd.f32 %v3259, %v3260
    %v3262 = vrot.slane %v3261, 1
    %v3263 = vadd.f32 %v3261, %v3262
    %v3264 = vsel %vm3144, %v3001, 0.0
    %v3265 = vrot.slane %v3264, 4
    %v3266 = vadd.f32 %v3264, %v3265
    %v3267 = vrot.slane %v3266, 2
    %v3268 = vadd.f32 %v3266, %v3267
    %v3269 = vrot.slane %v3268, 1
    %v3270 = vadd.f32 %v3268, %v3269
    %v3271 = vsel %vm3144, %v3002, 0.0
    %v3272 = vrot.slane %v3271, 4
    %v3273 = vadd.f32 %v3271, %v3272
    %v3274 = vrot.slane %v3273, 2
    %v3275 = vadd.f32 %v3273, %v3274
    %v3276 = vrot.slane %v3275, 1
    %v3277 = vadd.f32 %v3275, %v3276
    %v3278 = vsel %vm3144, %v3003, 0.0
    %v3279 = vrot.slane %v3278, 4
    %v3280 = vadd.f32 %v3278, %v3279
    %v3281 = vrot.slane %v3280, 2
    %v3282 = vadd.f32 %v3280, %v3281
    %v3283 = vrot.slane %v3282, 1
    %v3284 = vadd.f32 %v3282, %v3283
    %v3285 = vsel %vm3144, %v3004, 0.0
    %v3286 = vrot.slane %v3285, 4
    %v3287 = vadd.f32 %v3285, %v3286
    %v3288 = vrot.slane %v3287, 2
    %v3289 = vadd.f32 %v3287, %v3288
    %v3290 = vrot.slane %v3289, 1
    %v3291 = vadd.f32 %v3289, %v3290
    %v3292 = vsel %vm3144, %v3005, 0.0
    %v3293 = vrot.slane %v3292, 4
    %v3294 = vadd.f32 %v3292, %v3293
    %v3295 = vrot.slane %v3294, 2
    %v3296 = vadd.f32 %v3294, %v3295
    %v3297 = vrot.slane %v3296, 1
    %v3298 = vadd.f32 %v3296, %v3297
    %v3299 = vsel %vm3144, %v3006, 0.0
    %v3300 = vrot.slane %v3299, 4
    %v3301 = vadd.f32 %v3299, %v3300
    %v3302 = vrot.slane %v3301, 2
    %v3303 = vadd.f32 %v3301, %v3302
    %v3304 = vrot.slane %v3303, 1
    %v3305 = vadd.f32 %v3303, %v3304
    %v3306 = vsel %vm3144, %v3007, 0.0
    %v3307 = vrot.slane %v3306, 4
    %v3308 = vadd.f32 %v3306, %v3307
    %v3309 = vrot.slane %v3308, 2
    %v3310 = vadd.f32 %v3308, %v3309
    %v3311 = vrot.slane %v3310, 1
    %v3312 = vadd.f32 %v3310, %v3311
    %v3313 = vsel %vm3144, %v3008, 0.0
    %v3314 = vrot.slane %v3313, 4
    %v3315 = vadd.f32 %v3313, %v3314
    %v3316 = vrot.slane %v3315, 2
    %v3317 = vadd.f32 %v3315, %v3316
    %v3318 = vrot.slane %v3317, 1
    %v3319 = vadd.f32 %v3317, %v3318
    %v3320 = vsel %vm3144, %v3009, 0.0
    %v3321 = vrot.slane %v3320, 4
    %v3322 = vadd.f32 %v3320, %v3321
    %v3323 = vrot.slane %v3322, 2
    %v3324 = vadd.f32 %v3322, %v3323
    %v3325 = vrot.slane %v3324, 1
    %v3326 = vadd.f32 %v3324, %v3325
    %v3327 = vsel %vm3144, %v3010, 0.0
    %v3328 = vrot.slane %v3327, 4
    %v3329 = vadd.f32 %v3327, %v3328
    %v3330 = vrot.slane %v3329, 2
    %v3331 = vadd.f32 %v3329, %v3330
    %v3332 = vrot.slane %v3331, 1
    %v3333 = vadd.f32 %v3331, %v3332
    %v3334 = vsel %vm3144, %v3011, 0.0
    %v3335 = vrot.slane %v3334, 4
    %v3336 = vadd.f32 %v3334, %v3335
    %v3337 = vrot.slane %v3336, 2
    %v3338 = vadd.f32 %v3336, %v3337
    %v3339 = vrot.slane %v3338, 1
    %v3340 = vadd.f32 %v3338, %v3339
    %v3341 = vsel %vm3144, %v3012, 0.0
    %v3342 = vrot.slane %v3341, 4
    %v3343 = vadd.f32 %v3341, %v3342
    %v3344 = vrot.slane %v3343, 2
    %v3345 = vadd.f32 %v3343, %v3344
    %v3346 = vrot.slane %v3345, 1
    %v3347 = vadd.f32 %v3345, %v3346
    %v3348 = vsel %vm3144, %v3013, 0.0
    %v3349 = vrot.slane %v3348, 4
    %v3350 = vadd.f32 %v3348, %v3349
    %v3351 = vrot.slane %v3350, 2
    %v3352 = vadd.f32 %v3350, %v3351
    %v3353 = vrot.slane %v3352, 1
    %v3354 = vadd.f32 %v3352, %v3353
    %v3355 = vsel %vm3144, %v3014, 0.0
    %v3356 = vrot.slane %v3355, 4
    %v3357 = vadd.f32 %v3355, %v3356
    %v3358 = vrot.slane %v3357, 2
    %v3359 = vadd.f32 %v3357, %v3358
    %v3360 = vrot.slane %v3359, 1
    %v3361 = vadd.f32 %v3359, %v3360
    %v3362 = vsel %vm3144, %v3015, 0.0
    %v3363 = vrot.slane %v3362, 4
    %v3364 = vadd.f32 %v3362, %v3363
    %v3365 = vrot.slane %v3364, 2
    %v3366 = vadd.f32 %v3364, %v3365
    %v3367 = vrot.slane %v3366, 1
    %v3368 = vadd.f32 %v3366, %v3367
    %v3369 = vsel %vm3144, %v3016, 0.0
    %v3370 = vrot.slane %v3369, 4
    %v3371 = vadd.f32 %v3369, %v3370
    %v3372 = vrot.slane %v3371, 2
    %v3373 = vadd.f32 %v3371, %v3372
    %v3374 = vrot.slane %v3373, 1
    %v3375 = vadd.f32 %v3373, %v3374
    %v3376 = vsel %vm3144, %v3017, 0.0
    %v3377 = vrot.slane %v3376, 4
    %v3378 = vadd.f32 %v3376, %v3377
    %v3379 = vrot.slane %v3378, 2
    %v3380 = vadd.f32 %v3378, %v3379
    %v3381 = vrot.slane %v3380, 1
    %v3382 = vadd.f32 %v3380, %v3381
    %v3383 = vsel %vm3144, %v3018, 0.0
    %v3384 = vrot.slane %v3383, 4
    %v3385 = vadd.f32 %v3383, %v3384
    %v3386 = vrot.slane %v3385, 2
    %v3387 = vadd.f32 %v3385, %v3386
    %v3388 = vrot.slane %v3387, 1
    %v3389 = vadd.f32 %v3387, %v3388
    %v3390 = vsel %vm3144, %v3019, 0.0
    %v3391 = vrot.slane %v3390, 4
    %v3392 = vadd.f32 %v3390, %v3391
    %v3393 = vrot.slane %v3392, 2
    %v3394 = vadd.f32 %v3392, %v3393
    %v3395 = vrot.slane %v3394, 1
    %v3396 = vadd.f32 %v3394, %v3395
    %v3397 = vsel %vm3144, %v3020, 0.0
    %v3398 = vrot.slane %v3397, 4
    %v3399 = vadd.f32 %v3397, %v3398
    %v3400 = vrot.slane %v3399, 2
    %v3401 = vadd.f32 %v3399, %v3400
    %v3402 = vrot.slane %v3401, 1
    %v3403 = vadd.f32 %v3401, %v3402
    %v3404 = vsel %vm3144, %v3021, 0.0
    %v3405 = vrot.slane %v3404, 4
    %v3406 = vadd.f32 %v3404, %v3405
    %v3407 = vrot.slane %v3406, 2
    %v3408 = vadd.f32 %v3406, %v3407
    %v3409 = vrot.slane %v3408, 1
    %v3410 = vadd.f32 %v3408, %v3409
    %v3411 = vsel %vm3144, %v3022, 0.0
    %v3412 = vrot.slane %v3411, 4
    %v3413 = vadd.f32 %v3411, %v3412
    %v3414 = vrot.slane %v3413, 2
    %v3415 = vadd.f32 %v3413, %v3414
    %v3416 = vrot.slane %v3415, 1
    %v3417 = vadd.f32 %v3415, %v3416
    %v3418 = vsel %vm3144, %v3023, 0.0
    %v3419 = vrot.slane %v3418, 4
    %v3420 = vadd.f32 %v3418, %v3419
    %v3421 = vrot.slane %v3420, 2
    %v3422 = vadd.f32 %v3420, %v3421
    %v3423 = vrot.slane %v3422, 1
    %v3424 = vadd.f32 %v3422, %v3423
    %v3425 = vsel %vm3144, %v3024, 0.0
    %v3426 = vrot.slane %v3425, 4
    %v3427 = vadd.f32 %v3425, %v3426
    %v3428 = vrot.slane %v3427, 2
    %v3429 = vadd.f32 %v3427, %v3428
    %v3430 = vrot.slane %v3429, 1
    %v3431 = vadd.f32 %v3429, %v3430
    %v3432 = vsel %vm3144, %v3025, 0.0
    %v3433 = vrot.slane %v3432, 4
    %v3434 = vadd.f32 %v3432, %v3433
    %v3435 = vrot.slane %v3434, 2
    %v3436 = vadd.f32 %v3434, %v3435
    %v3437 = vrot.slane %v3436, 1
    %v3438 = vadd.f32 %v3436, %v3437
    %v3439 = vsel %vm3144, %v3026, 0.0
    %v3440 = vrot.slane %v3439, 4
    %v3441 = vadd.f32 %v3439, %v3440
    %v3442 = vrot.slane %v3441, 2
    %v3443 = vadd.f32 %v3441, %v3442
    %v3444 = vrot.slane %v3443, 1
    %v3445 = vadd.f32 %v3443, %v3444
    %v3446 = vsel %vm3144, %v3027, 0.0
    %v3447 = vrot.slane %v3446, 4
    %v3448 = vadd.f32 %v3446, %v3447
    %v3449 = vrot.slane %v3448, 2
    %v3450 = vadd.f32 %v3448, %v3449
    %v3451 = vrot.slane %v3450, 1
    %v3452 = vadd.f32 %v3450, %v3451
    %v3453 = vsel %vm3144, %v3028, 0.0
    %v3454 = vrot.slane %v3453, 4
    %v3455 = vadd.f32 %v3453, %v3454
    %v3456 = vrot.slane %v3455, 2
    %v3457 = vadd.f32 %v3455, %v3456
    %v3458 = vrot.slane %v3457, 1
    %v3459 = vadd.f32 %v3457, %v3458
    %v3460 = vsel %vm3144, %v3029, 0.0
    %v3461 = vrot.slane %v3460, 4
    %v3462 = vadd.f32 %v3460, %v3461
    %v3463 = vrot.slane %v3462, 2
    %v3464 = vadd.f32 %v3462, %v3463
    %v3465 = vrot.slane %v3464, 1
    %v3466 = vadd.f32 %v3464, %v3465
    %v3467 = vsel %vm3144, %v3030, 0.0
    %v3468 = vrot.slane %v3467, 4
    %v3469 = vadd.f32 %v3467, %v3468
    %v3470 = vrot.slane %v3469, 2
    %v3471 = vadd.f32 %v3469, %v3470
    %v3472 = vrot.slane %v3471, 1
    %v3473 = vadd.f32 %v3471, %v3472
    %v3474 = vsel %vm3144, %v3031, 0.0
    %v3475 = vrot.slane %v3474, 4
    %v3476 = vadd.f32 %v3474, %v3475
    %v3477 = vrot.slane %v3476, 2
    %v3478 = vadd.f32 %v3476, %v3477
    %v3479 = vrot.slane %v3478, 1
    %v3480 = vadd.f32 %v3478, %v3479
    %v3481 = vsel %vm3144, %v3032, 0.0
    %v3482 = vrot.slane %v3481, 4
    %v3483 = vadd.f32 %v3481, %v3482
    %v3484 = vrot.slane %v3483, 2
    %v3485 = vadd.f32 %v3483, %v3484
    %v3486 = vrot.slane %v3485, 1
    %v3487 = vadd.f32 %v3485, %v3486
    %v3488 = vsel %vm3144, %v3033, 0.0
    %v3489 = vrot.slane %v3488, 4
    %v3490 = vadd.f32 %v3488, %v3489
    %v3491 = vrot.slane %v3490, 2
    %v3492 = vadd.f32 %v3490, %v3491
    %v3493 = vrot.slane %v3492, 1
    %v3494 = vadd.f32 %v3492, %v3493
    %v3495 = vsel %vm3144, %v3034, 0.0
    %v3496 = vrot.slane %v3495, 4
    %v3497 = vadd.f32 %v3495, %v3496
    %v3498 = vrot.slane %v3497, 2
    %v3499 = vadd.f32 %v3497, %v3498
    %v3500 = vrot.slane %v3499, 1
    %v3501 = vadd.f32 %v3499, %v3500
    %v3502 = vsel %vm3144, %v3035, 0.0
    %v3503 = vrot.slane %v3502, 4
    %v3504 = vadd.f32 %v3502, %v3503
    %v3505 = vrot.slane %v3504, 2
    %v3506 = vadd.f32 %v3504, %v3505
    %v3507 = vrot.slane %v3506, 1
    %v3508 = vadd.f32 %v3506, %v3507
    %v3509 = vsel %vm3144, %v3036, 0.0
    %v3510 = vrot.slane %v3509, 4
    %v3511 = vadd.f32 %v3509, %v3510
    %v3512 = vrot.slane %v3511, 2
    %v3513 = vadd.f32 %v3511, %v3512
    %v3514 = vrot.slane %v3513, 1
    %v3515 = vadd.f32 %v3513, %v3514
    %v3516 = vsel %vm3144, %v3037, 0.0
    %v3517 = vrot.slane %v3516, 4
    %v3518 = vadd.f32 %v3516, %v3517
    %v3519 = vrot.slane %v3518, 2
    %v3520 = vadd.f32 %v3518, %v3519
    %v3521 = vrot.slane %v3520, 1
    %v3522 = vadd.f32 %v3520, %v3521
    %v3523 = vsel %vm3144, %v3038, 0.0
    %v3524 = vrot.slane %v3523, 4
    %v3525 = vadd.f32 %v3523, %v3524
    %v3526 = vrot.slane %v3525, 2
    %v3527 = vadd.f32 %v3525, %v3526
    %v3528 = vrot.slane %v3527, 1
    %v3529 = vadd.f32 %v3527, %v3528
    %v3530 = vsel %vm3144, %v3039, 0.0
    %v3531 = vrot.slane %v3530, 4
    %v3532 = vadd.f32 %v3530, %v3531
    %v3533 = vrot.slane %v3532, 2
    %v3534 = vadd.f32 %v3532, %v3533
    %v3535 = vrot.slane %v3534, 1
    %v3536 = vadd.f32 %v3534, %v3535
    %v3537 = vsel %vm3144, %v3040, 0.0
    %v3538 = vrot.slane %v3537, 4
    %v3539 = vadd.f32 %v3537, %v3538
    %v3540 = vrot.slane %v3539, 2
    %v3541 = vadd.f32 %v3539, %v3540
    %v3542 = vrot.slane %v3541, 1
    %v3543 = vadd.f32 %v3541, %v3542
    %v3544 = vsel %vm3144, %v3041, 0.0
    %v3545 = vrot.slane %v3544, 4
    %v3546 = vadd.f32 %v3544, %v3545
    %v3547 = vrot.slane %v3546, 2
    %v3548 = vadd.f32 %v3546, %v3547
    %v3549 = vrot.slane %v3548, 1
    %v3550 = vadd.f32 %v3548, %v3549
    %v3551 = vsel %vm3144, %v3042, 0.0
    %v3552 = vrot.slane %v3551, 4
    %v3553 = vadd.f32 %v3551, %v3552
    %v3554 = vrot.slane %v3553, 2
    %v3555 = vadd.f32 %v3553, %v3554
    %v3556 = vrot.slane %v3555, 1
    %v3557 = vadd.f32 %v3555, %v3556
    %v3558 = vsel %vm3144, %v3043, 0.0
    %v3559 = vrot.slane %v3558, 4
    %v3560 = vadd.f32 %v3558, %v3559
    %v3561 = vrot.slane %v3560, 2
    %v3562 = vadd.f32 %v3560, %v3561
    %v3563 = vrot.slane %v3562, 1
    %v3564 = vadd.f32 %v3562, %v3563
    %v3565 = vsel %vm3144, %v3044, 0.0
    %v3566 = vrot.slane %v3565, 4
    %v3567 = vadd.f32 %v3565, %v3566
    %v3568 = vrot.slane %v3567, 2
    %v3569 = vadd.f32 %v3567, %v3568
    %v3570 = vrot.slane %v3569, 1
    %v3571 = vadd.f32 %v3569, %v3570
    %v3572 = vsel %vm3144, %v3045, 0.0
    %v3573 = vrot.slane %v3572, 4
    %v3574 = vadd.f32 %v3572, %v3573
    %v3575 = vrot.slane %v3574, 2
    %v3576 = vadd.f32 %v3574, %v3575
    %v3577 = vrot.slane %v3576, 1
    %v3578 = vadd.f32 %v3576, %v3577
    %v3579 = vsel %vm3144, %v3046, 0.0
    %v3580 = vrot.slane %v3579, 4
    %v3581 = vadd.f32 %v3579, %v3580
    %v3582 = vrot.slane %v3581, 2
    %v3583 = vadd.f32 %v3581, %v3582
    %v3584 = vrot.slane %v3583, 1
    %v3585 = vadd.f32 %v3583, %v3584
    %v3586 = vsel %vm3144, %v3047, 0.0
    %v3587 = vrot.slane %v3586, 4
    %v3588 = vadd.f32 %v3586, %v3587
    %v3589 = vrot.slane %v3588, 2
    %v3590 = vadd.f32 %v3588, %v3589
    %v3591 = vrot.slane %v3590, 1
    %v3592 = vadd.f32 %v3590, %v3591
    %v3593 = vsel %vm3144, %v3048, 0.0
    %v3594 = vrot.slane %v3593, 4
    %v3595 = vadd.f32 %v3593, %v3594
    %v3596 = vrot.slane %v3595, 2
    %v3597 = vadd.f32 %v3595, %v3596
    %v3598 = vrot.slane %v3597, 1
    %v3599 = vadd.f32 %v3597, %v3598
    %v3600 = vsel %vm3144, %v3049, 0.0
    %v3601 = vrot.slane %v3600, 4
    %v3602 = vadd.f32 %v3600, %v3601
    %v3603 = vrot.slane %v3602, 2
    %v3604 = vadd.f32 %v3602, %v3603
    %v3605 = vrot.slane %v3604, 1
    %v3606 = vadd.f32 %v3604, %v3605
    %v3607 = vsel %vm3144, %v3050, 0.0
    %v3608 = vrot.slane %v3607, 4
    %v3609 = vadd.f32 %v3607, %v3608
    %v3610 = vrot.slane %v3609, 2
    %v3611 = vadd.f32 %v3609, %v3610
    %v3612 = vrot.slane %v3611, 1
    %v3613 = vadd.f32 %v3611, %v3612
    %v3614 = vsel %vm3144, %v3051, 0.0
    %v3615 = vrot.slane %v3614, 4
    %v3616 = vadd.f32 %v3614, %v3615
    %v3617 = vrot.slane %v3616, 2
    %v3618 = vadd.f32 %v3616, %v3617
    %v3619 = vrot.slane %v3618, 1
    %v3620 = vadd.f32 %v3618, %v3619
    %v3621 = vsel %vm3144, %v3052, 0.0
    %v3622 = vrot.slane %v3621, 4
    %v3623 = vadd.f32 %v3621, %v3622
    %v3624 = vrot.slane %v3623, 2
    %v3625 = vadd.f32 %v3623, %v3624
    %v3626 = vrot.slane %v3625, 1
    %v3627 = vadd.f32 %v3625, %v3626
    %v3628 = vsel %vm3144, %v3053, 0.0
    %v3629 = vrot.slane %v3628, 4
    %v3630 = vadd.f32 %v3628, %v3629
    %v3631 = vrot.slane %v3630, 2
    %v3632 = vadd.f32 %v3630, %v3631
    %v3633 = vrot.slane %v3632, 1
    %v3634 = vadd.f32 %v3632, %v3633
    %v3635 = vsel %vm3144, %v3054, 0.0
    %v3636 = vrot.slane %v3635, 4
    %v3637 = vadd.f32 %v3635, %v3636
    %v3638 = vrot.slane %v3637, 2
    %v3639 = vadd.f32 %v3637, %v3638
    %v3640 = vrot.slane %v3639, 1
    %v3641 = vadd.f32 %v3639, %v3640
    %v3642 = vsel %vm3144, %v3055, 0.0
    %v3643 = vrot.slane %v3642, 4
    %v3644 = vadd.f32 %v3642, %v3643
    %v3645 = vrot.slane %v3644, 2
    %v3646 = vadd.f32 %v3644, %v3645
    %v3647 = vrot.slane %v3646, 1
    %v3648 = vadd.f32 %v3646, %v3647
    %v3649 = vsel %vm3144, %v3056, 0.0
    %v3650 = vrot.slane %v3649, 4
    %v3651 = vadd.f32 %v3649, %v3650
    %v3652 = vrot.slane %v3651, 2
    %v3653 = vadd.f32 %v3651, %v3652
    %v3654 = vrot.slane %v3653, 1
    %v3655 = vadd.f32 %v3653, %v3654
    %v3656 = vsel %vm3144, %v3057, 0.0
    %v3657 = vrot.slane %v3656, 4
    %v3658 = vadd.f32 %v3656, %v3657
    %v3659 = vrot.slane %v3658, 2
    %v3660 = vadd.f32 %v3658, %v3659
    %v3661 = vrot.slane %v3660, 1
    %v3662 = vadd.f32 %v3660, %v3661
    %v3663 = vsel %vm3144, %v3058, 0.0
    %v3664 = vrot.slane %v3663, 4
    %v3665 = vadd.f32 %v3663, %v3664
    %v3666 = vrot.slane %v3665, 2
    %v3667 = vadd.f32 %v3665, %v3666
    %v3668 = vrot.slane %v3667, 1
    %v3669 = vadd.f32 %v3667, %v3668
    %v3670 = vsel %vm3144, %v3059, 0.0
    %v3671 = vrot.slane %v3670, 4
    %v3672 = vadd.f32 %v3670, %v3671
    %v3673 = vrot.slane %v3672, 2
    %v3674 = vadd.f32 %v3672, %v3673
    %v3675 = vrot.slane %v3674, 1
    %v3676 = vadd.f32 %v3674, %v3675
    %v3677 = vsel %vm3144, %v3060, 0.0
    %v3678 = vrot.slane %v3677, 4
    %v3679 = vadd.f32 %v3677, %v3678
    %v3680 = vrot.slane %v3679, 2
    %v3681 = vadd.f32 %v3679, %v3680
    %v3682 = vrot.slane %v3681, 1
    %v3683 = vadd.f32 %v3681, %v3682
    %v3684 = vsel %vm3144, %v3061, 0.0
    %v3685 = vrot.slane %v3684, 4
    %v3686 = vadd.f32 %v3684, %v3685
    %v3687 = vrot.slane %v3686, 2
    %v3688 = vadd.f32 %v3686, %v3687
    %v3689 = vrot.slane %v3688, 1
    %v3690 = vadd.f32 %v3688, %v3689
    %v3691 = vsel %vm3144, %v3062, 0.0
    %v3692 = vrot.slane %v3691, 4
    %v3693 = vadd.f32 %v3691, %v3692
    %v3694 = vrot.slane %v3693, 2
    %v3695 = vadd.f32 %v3693, %v3694
    %v3696 = vrot.slane %v3695, 1
    %v3697 = vadd.f32 %v3695, %v3696
    %v3698 = vsel %vm3144, %v3063, 0.0
    %v3699 = vrot.slane %v3698, 4
    %v3700 = vadd.f32 %v3698, %v3699
    %v3701 = vrot.slane %v3700, 2
    %v3702 = vadd.f32 %v3700, %v3701
    %v3703 = vrot.slane %v3702, 1
    %v3704 = vadd.f32 %v3702, %v3703
    %v3705 = vsel %vm3144, %v3064, 0.0
    %v3706 = vrot.slane %v3705, 4
    %v3707 = vadd.f32 %v3705, %v3706
    %v3708 = vrot.slane %v3707, 2
    %v3709 = vadd.f32 %v3707, %v3708
    %v3710 = vrot.slane %v3709, 1
    %v3711 = vadd.f32 %v3709, %v3710
    %v3712 = vsel %vm3144, %v3065, 0.0
    %v3713 = vrot.slane %v3712, 4
    %v3714 = vadd.f32 %v3712, %v3713
    %v3715 = vrot.slane %v3714, 2
    %v3716 = vadd.f32 %v3714, %v3715
    %v3717 = vrot.slane %v3716, 1
    %v3718 = vadd.f32 %v3716, %v3717
    %v3719 = vsel %vm3144, %v3066, 0.0
    %v3720 = vrot.slane %v3719, 4
    %v3721 = vadd.f32 %v3719, %v3720
    %v3722 = vrot.slane %v3721, 2
    %v3723 = vadd.f32 %v3721, %v3722
    %v3724 = vrot.slane %v3723, 1
    %v3725 = vadd.f32 %v3723, %v3724
    %v3726 = vsel %vm3144, %v3067, 0.0
    %v3727 = vrot.slane %v3726, 4
    %v3728 = vadd.f32 %v3726, %v3727
    %v3729 = vrot.slane %v3728, 2
    %v3730 = vadd.f32 %v3728, %v3729
    %v3731 = vrot.slane %v3730, 1
    %v3732 = vadd.f32 %v3730, %v3731
    %v3733 = vsel %vm3144, %v3068, 0.0
    %v3734 = vrot.slane %v3733, 4
    %v3735 = vadd.f32 %v3733, %v3734
    %v3736 = vrot.slane %v3735, 2
    %v3737 = vadd.f32 %v3735, %v3736
    %v3738 = vrot.slane %v3737, 1
    %v3739 = vadd.f32 %v3737, %v3738
    %v3740 = vsel %vm3144, %v3069, 0.0
    %v3741 = vrot.slane %v3740, 4
    %v3742 = vadd.f32 %v3740, %v3741
    %v3743 = vrot.slane %v3742, 2
    %v3744 = vadd.f32 %v3742, %v3743
    %v3745 = vrot.slane %v3744, 1
    %v3746 = vadd.f32 %v3744, %v3745
    %v3747 = vsel %vm3144, %v3070, 0.0
    %v3748 = vrot.slane %v3747, 4
    %v3749 = vadd.f32 %v3747, %v3748
    %v3750 = vrot.slane %v3749, 2
    %v3751 = vadd.f32 %v3749, %v3750
    %v3752 = vrot.slane %v3751, 1
    %v3753 = vadd.f32 %v3751, %v3752
    %v3754 = vsel %vm3144, %v3071, 0.0
    %v3755 = vrot.slane %v3754, 4
    %v3756 = vadd.f32 %v3754, %v3755
    %v3757 = vrot.slane %v3756, 2
    %v3758 = vadd.f32 %v3756, %v3757
    %v3759 = vrot.slane %v3758, 1
    %v3760 = vadd.f32 %v3758, %v3759
    %v3761 = vsel %vm3144, %v3072, 0.0
    %v3762 = vrot.slane %v3761, 4
    %v3763 = vadd.f32 %v3761, %v3762
    %v3764 = vrot.slane %v3763, 2
    %v3765 = vadd.f32 %v3763, %v3764
    %v3766 = vrot.slane %v3765, 1
    %v3767 = vadd.f32 %v3765, %v3766
    %v3768 = vsel %vm3144, %v3073, 0.0
    %v3769 = vrot.slane %v3768, 4
    %v3770 = vadd.f32 %v3768, %v3769
    %v3771 = vrot.slane %v3770, 2
    %v3772 = vadd.f32 %v3770, %v3771
    %v3773 = vrot.slane %v3772, 1
    %v3774 = vadd.f32 %v3772, %v3773
    %v3775 = vsel %vm3144, %v3074, 0.0
    %v3776 = vrot.slane %v3775, 4
    %v3777 = vadd.f32 %v3775, %v3776
    %v3778 = vrot.slane %v3777, 2
    %v3779 = vadd.f32 %v3777, %v3778
    %v3780 = vrot.slane %v3779, 1
    %v3781 = vadd.f32 %v3779, %v3780
    %v3782 = vsel %vm3144, %v3075, 0.0
    %v3783 = vrot.slane %v3782, 4
    %v3784 = vadd.f32 %v3782, %v3783
    %v3785 = vrot.slane %v3784, 2
    %v3786 = vadd.f32 %v3784, %v3785
    %v3787 = vrot.slane %v3786, 1
    %v3788 = vadd.f32 %v3786, %v3787
    %v3789 = vsel %vm3144, %v3076, 0.0
    %v3790 = vrot.slane %v3789, 4
    %v3791 = vadd.f32 %v3789, %v3790
    %v3792 = vrot.slane %v3791, 2
    %v3793 = vadd.f32 %v3791, %v3792
    %v3794 = vrot.slane %v3793, 1
    %v3795 = vadd.f32 %v3793, %v3794
    %v3796 = vsel %vm3144, %v3077, 0.0
    %v3797 = vrot.slane %v3796, 4
    %v3798 = vadd.f32 %v3796, %v3797
    %v3799 = vrot.slane %v3798, 2
    %v3800 = vadd.f32 %v3798, %v3799
    %v3801 = vrot.slane %v3800, 1
    %v3802 = vadd.f32 %v3800, %v3801
    %v3803 = vsel %vm3144, %v3078, 0.0
    %v3804 = vrot.slane %v3803, 4
    %v3805 = vadd.f32 %v3803, %v3804
    %v3806 = vrot.slane %v3805, 2
    %v3807 = vadd.f32 %v3805, %v3806
    %v3808 = vrot.slane %v3807, 1
    %v3809 = vadd.f32 %v3807, %v3808
    %v3810 = vsel %vm3144, %v3079, 0.0
    %v3811 = vrot.slane %v3810, 4
    %v3812 = vadd.f32 %v3810, %v3811
    %v3813 = vrot.slane %v3812, 2
    %v3814 = vadd.f32 %v3812, %v3813
    %v3815 = vrot.slane %v3814, 1
    %v3816 = vadd.f32 %v3814, %v3815
    %v3817 = vsel %vm3144, %v3080, 0.0
    %v3818 = vrot.slane %v3817, 4
    %v3819 = vadd.f32 %v3817, %v3818
    %v3820 = vrot.slane %v3819, 2
    %v3821 = vadd.f32 %v3819, %v3820
    %v3822 = vrot.slane %v3821, 1
    %v3823 = vadd.f32 %v3821, %v3822
    %v3824 = vsel %vm3144, %v3081, 0.0
    %v3825 = vrot.slane %v3824, 4
    %v3826 = vadd.f32 %v3824, %v3825
    %v3827 = vrot.slane %v3826, 2
    %v3828 = vadd.f32 %v3826, %v3827
    %v3829 = vrot.slane %v3828, 1
    %v3830 = vadd.f32 %v3828, %v3829
    %v3831 = vsel %vm3144, %v3082, 0.0
    %v3832 = vrot.slane %v3831, 4
    %v3833 = vadd.f32 %v3831, %v3832
    %v3834 = vrot.slane %v3833, 2
    %v3835 = vadd.f32 %v3833, %v3834
    %v3836 = vrot.slane %v3835, 1
    %v3837 = vadd.f32 %v3835, %v3836
    %v3838 = vsel %vm3144, %v3083, 0.0
    %v3839 = vrot.slane %v3838, 4
    %v3840 = vadd.f32 %v3838, %v3839
    %v3841 = vrot.slane %v3840, 2
    %v3842 = vadd.f32 %v3840, %v3841
    %v3843 = vrot.slane %v3842, 1
    %v3844 = vadd.f32 %v3842, %v3843
    %v3845 = vsel %vm3144, %v3084, 0.0
    %v3846 = vrot.slane %v3845, 4
    %v3847 = vadd.f32 %v3845, %v3846
    %v3848 = vrot.slane %v3847, 2
    %v3849 = vadd.f32 %v3847, %v3848
    %v3850 = vrot.slane %v3849, 1
    %v3851 = vadd.f32 %v3849, %v3850
    %v3852 = vsel %vm3144, %v3085, 0.0
    %v3853 = vrot.slane %v3852, 4
    %v3854 = vadd.f32 %v3852, %v3853
    %v3855 = vrot.slane %v3854, 2
    %v3856 = vadd.f32 %v3854, %v3855
    %v3857 = vrot.slane %v3856, 1
    %v3858 = vadd.f32 %v3856, %v3857
    %v3859 = vsel %vm3144, %v3086, 0.0
    %v3860 = vrot.slane %v3859, 4
    %v3861 = vadd.f32 %v3859, %v3860
    %v3862 = vrot.slane %v3861, 2
    %v3863 = vadd.f32 %v3861, %v3862
    %v3864 = vrot.slane %v3863, 1
    %v3865 = vadd.f32 %v3863, %v3864
    %v3866 = vsel %vm3144, %v3087, 0.0
    %v3867 = vrot.slane %v3866, 4
    %v3868 = vadd.f32 %v3866, %v3867
    %v3869 = vrot.slane %v3868, 2
    %v3870 = vadd.f32 %v3868, %v3869
    %v3871 = vrot.slane %v3870, 1
    %v3872 = vadd.f32 %v3870, %v3871
    %v3873 = vsel %vm3144, %v3088, 0.0
    %v3874 = vrot.slane %v3873, 4
    %v3875 = vadd.f32 %v3873, %v3874
    %v3876 = vrot.slane %v3875, 2
    %v3877 = vadd.f32 %v3875, %v3876
    %v3878 = vrot.slane %v3877, 1
    %v3879 = vadd.f32 %v3877, %v3878
    %v3880 = vsel %vm3144, %v3089, 0.0
    %v3881 = vrot.slane %v3880, 4
    %v3882 = vadd.f32 %v3880, %v3881
    %v3883 = vrot.slane %v3882, 2
    %v3884 = vadd.f32 %v3882, %v3883
    %v3885 = vrot.slane %v3884, 1
    %v3886 = vadd.f32 %v3884, %v3885
    %v3887 = vsel %vm3144, %v3090, 0.0
    %v3888 = vrot.slane %v3887, 4
    %v3889 = vadd.f32 %v3887, %v3888
    %v3890 = vrot.slane %v3889, 2
    %v3891 = vadd.f32 %v3889, %v3890
    %v3892 = vrot.slane %v3891, 1
    %v3893 = vadd.f32 %v3891, %v3892
    %v3894 = vsel %vm3144, %v3091, 0.0
    %v3895 = vrot.slane %v3894, 4
    %v3896 = vadd.f32 %v3894, %v3895
    %v3897 = vrot.slane %v3896, 2
    %v3898 = vadd.f32 %v3896, %v3897
    %v3899 = vrot.slane %v3898, 1
    %v3900 = vadd.f32 %v3898, %v3899
    %v3901 = vsel %vm3144, %v3092, 0.0
    %v3902 = vrot.slane %v3901, 4
    %v3903 = vadd.f32 %v3901, %v3902
    %v3904 = vrot.slane %v3903, 2
    %v3905 = vadd.f32 %v3903, %v3904
    %v3906 = vrot.slane %v3905, 1
    %v3907 = vadd.f32 %v3905, %v3906
    %v3908 = vsel %vm3144, %v3093, 0.0
    %v3909 = vrot.slane %v3908, 4
    %v3910 = vadd.f32 %v3908, %v3909
    %v3911 = vrot.slane %v3910, 2
    %v3912 = vadd.f32 %v3910, %v3911
    %v3913 = vrot.slane %v3912, 1
    %v3914 = vadd.f32 %v3912, %v3913
    %v3915 = vsel %vm3144, %v3094, 0.0
    %v3916 = vrot.slane %v3915, 4
    %v3917 = vadd.f32 %v3915, %v3916
    %v3918 = vrot.slane %v3917, 2
    %v3919 = vadd.f32 %v3917, %v3918
    %v3920 = vrot.slane %v3919, 1
    %v3921 = vadd.f32 %v3919, %v3920
    %v3922 = vsel %vm3144, %v3095, 0.0
    %v3923 = vrot.slane %v3922, 4
    %v3924 = vadd.f32 %v3922, %v3923
    %v3925 = vrot.slane %v3924, 2
    %v3926 = vadd.f32 %v3924, %v3925
    %v3927 = vrot.slane %v3926, 1
    %v3928 = vadd.f32 %v3926, %v3927
    %v3929 = vsel %vm3144, %v3096, 0.0
    %v3930 = vrot.slane %v3929, 4
    %v3931 = vadd.f32 %v3929, %v3930
    %v3932 = vrot.slane %v3931, 2
    %v3933 = vadd.f32 %v3931, %v3932
    %v3934 = vrot.slane %v3933, 1
    %v3935 = vadd.f32 %v3933, %v3934
    %v3936 = vsel %vm3144, %v3097, 0.0
    %v3937 = vrot.slane %v3936, 4
    %v3938 = vadd.f32 %v3936, %v3937
    %v3939 = vrot.slane %v3938, 2
    %v3940 = vadd.f32 %v3938, %v3939
    %v3941 = vrot.slane %v3940, 1
    %v3942 = vadd.f32 %v3940, %v3941
    %v3943 = vsel %vm3144, %v3098, 0.0
    %v3944 = vrot.slane %v3943, 4
    %v3945 = vadd.f32 %v3943, %v3944
    %v3946 = vrot.slane %v3945, 2
    %v3947 = vadd.f32 %v3945, %v3946
    %v3948 = vrot.slane %v3947, 1
    %v3949 = vadd.f32 %v3947, %v3948
    %v3950 = vsel %vm3144, %v3099, 0.0
    %v3951 = vrot.slane %v3950, 4
    %v3952 = vadd.f32 %v3950, %v3951
    %v3953 = vrot.slane %v3952, 2
    %v3954 = vadd.f32 %v3952, %v3953
    %v3955 = vrot.slane %v3954, 1
    %v3956 = vadd.f32 %v3954, %v3955
    %v3957 = vsel %vm3144, %v3100, 0.0
    %v3958 = vrot.slane %v3957, 4
    %v3959 = vadd.f32 %v3957, %v3958
    %v3960 = vrot.slane %v3959, 2
    %v3961 = vadd.f32 %v3959, %v3960
    %v3962 = vrot.slane %v3961, 1
    %v3963 = vadd.f32 %v3961, %v3962
    %v3964 = vsel %vm3144, %v3101, 0.0
    %v3965 = vrot.slane %v3964, 4
    %v3966 = vadd.f32 %v3964, %v3965
    %v3967 = vrot.slane %v3966, 2
    %v3968 = vadd.f32 %v3966, %v3967
    %v3969 = vrot.slane %v3968, 1
    %v3970 = vadd.f32 %v3968, %v3969
    %v3971 = vsel %vm3144, %v3102, 0.0
    %v3972 = vrot.slane %v3971, 4
    %v3973 = vadd.f32 %v3971, %v3972
    %v3974 = vrot.slane %v3973, 2
    %v3975 = vadd.f32 %v3973, %v3974
    %v3976 = vrot.slane %v3975, 1
    %v3977 = vadd.f32 %v3975, %v3976
    %v3978 = vsel %vm3144, %v3103, 0.0
    %v3979 = vrot.slane %v3978, 4
    %v3980 = vadd.f32 %v3978, %v3979
    %v3981 = vrot.slane %v3980, 2
    %v3982 = vadd.f32 %v3980, %v3981
    %v3983 = vrot.slane %v3982, 1
    %v3984 = vadd.f32 %v3982, %v3983
    %v3985 = vsel %vm3144, %v3104, 0.0
    %v3986 = vrot.slane %v3985, 4
    %v3987 = vadd.f32 %v3985, %v3986
    %v3988 = vrot.slane %v3987, 2
    %v3989 = vadd.f32 %v3987, %v3988
    %v3990 = vrot.slane %v3989, 1
    %v3991 = vadd.f32 %v3989, %v3990
    %v3992 = vsel %vm3144, %v3105, 0.0
    %v3993 = vrot.slane %v3992, 4
    %v3994 = vadd.f32 %v3992, %v3993
    %v3995 = vrot.slane %v3994, 2
    %v3996 = vadd.f32 %v3994, %v3995
    %v3997 = vrot.slane %v3996, 1
    %v3998 = vadd.f32 %v3996, %v3997
    %v3999 = vsel %vm3144, %v3106, 0.0
    %v4000 = vrot.slane %v3999, 4
    %v4001 = vadd.f32 %v3999, %v4000
    %v4002 = vrot.slane %v4001, 2
    %v4003 = vadd.f32 %v4001, %v4002
    %v4004 = vrot.slane %v4003, 1
    %v4005 = vadd.f32 %v4003, %v4004
    %v4006 = vsel %vm3144, %v3107, 0.0
    %v4007 = vrot.slane %v4006, 4
    %v4008 = vadd.f32 %v4006, %v4007
    %v4009 = vrot.slane %v4008, 2
    %v4010 = vadd.f32 %v4008, %v4009
    %v4011 = vrot.slane %v4010, 1
    %v4012 = vadd.f32 %v4010, %v4011
    %v4013 = vsel %vm3144, %v3108, 0.0
    %v4014 = vrot.slane %v4013, 4
    %v4015 = vadd.f32 %v4013, %v4014
    %v4016 = vrot.slane %v4015, 2
    %v4017 = vadd.f32 %v4015, %v4016
    %v4018 = vrot.slane %v4017, 1
    %v4019 = vadd.f32 %v4017, %v4018
    %v4020 = vsel %vm3144, %v3109, 0.0
    %v4021 = vrot.slane %v4020, 4
    %v4022 = vadd.f32 %v4020, %v4021
    %v4023 = vrot.slane %v4022, 2
    %v4024 = vadd.f32 %v4022, %v4023
    %v4025 = vrot.slane %v4024, 1
    %v4026 = vadd.f32 %v4024, %v4025
    %v4027 = vsel %vm3144, %v3110, 0.0
    %v4028 = vrot.slane %v4027, 4
    %v4029 = vadd.f32 %v4027, %v4028
    %v4030 = vrot.slane %v4029, 2
    %v4031 = vadd.f32 %v4029, %v4030
    %v4032 = vrot.slane %v4031, 1
    %v4033 = vadd.f32 %v4031, %v4032
    %v4034 = vsel %vm3144, %v3111, 0.0
    %v4035 = vrot.slane %v4034, 4
    %v4036 = vadd.f32 %v4034, %v4035
    %v4037 = vrot.slane %v4036, 2
    %v4038 = vadd.f32 %v4036, %v4037
    %v4039 = vrot.slane %v4038, 1
    %v4040 = vadd.f32 %v4038, %v4039
    %v4041 = vsel %vm3144, %v3112, 0.0
    %v4042 = vrot.slane %v4041, 4
    %v4043 = vadd.f32 %v4041, %v4042
    %v4044 = vrot.slane %v4043, 2
    %v4045 = vadd.f32 %v4043, %v4044
    %v4046 = vrot.slane %v4045, 1
    %v4047 = vadd.f32 %v4045, %v4046
    %v4048 = vsel %vm3144, %v3113, 0.0
    %v4049 = vrot.slane %v4048, 4
    %v4050 = vadd.f32 %v4048, %v4049
    %v4051 = vrot.slane %v4050, 2
    %v4052 = vadd.f32 %v4050, %v4051
    %v4053 = vrot.slane %v4052, 1
    %v4054 = vadd.f32 %v4052, %v4053
    %v4055 = vsel %vm3144, %v3114, 0.0
    %v4056 = vrot.slane %v4055, 4
    %v4057 = vadd.f32 %v4055, %v4056
    %v4058 = vrot.slane %v4057, 2
    %v4059 = vadd.f32 %v4057, %v4058
    %v4060 = vrot.slane %v4059, 1
    %v4061 = vadd.f32 %v4059, %v4060
    %v4062 = vsel %vm3144, %v3115, 0.0
    %v4063 = vrot.slane %v4062, 4
    %v4064 = vadd.f32 %v4062, %v4063
    %v4065 = vrot.slane %v4064, 2
    %v4066 = vadd.f32 %v4064, %v4065
    %v4067 = vrot.slane %v4066, 1
    %v4068 = vadd.f32 %v4066, %v4067
    %v4069 = vsel %vm3144, %v3116, 0.0
    %v4070 = vrot.slane %v4069, 4
    %v4071 = vadd.f32 %v4069, %v4070
    %v4072 = vrot.slane %v4071, 2
    %v4073 = vadd.f32 %v4071, %v4072
    %v4074 = vrot.slane %v4073, 1
    %v4075 = vadd.f32 %v4073, %v4074
    %v4076 = vsel %vm3144, %v3117, 0.0
    %v4077 = vrot.slane %v4076, 4
    %v4078 = vadd.f32 %v4076, %v4077
    %v4079 = vrot.slane %v4078, 2
    %v4080 = vadd.f32 %v4078, %v4079
    %v4081 = vrot.slane %v4080, 1
    %v4082 = vadd.f32 %v4080, %v4081
    %v4083 = vsel %vm3144, %v3118, 0.0
    %v4084 = vrot.slane %v4083, 4
    %v4085 = vadd.f32 %v4083, %v4084
    %v4086 = vrot.slane %v4085, 2
    %v4087 = vadd.f32 %v4085, %v4086
    %v4088 = vrot.slane %v4087, 1
    %v4089 = vadd.f32 %v4087, %v4088
    %v4090 = vsel %vm3144, %v3119, 0.0
    %v4091 = vrot.slane %v4090, 4
    %v4092 = vadd.f32 %v4090, %v4091
    %v4093 = vrot.slane %v4092, 2
    %v4094 = vadd.f32 %v4092, %v4093
    %v4095 = vrot.slane %v4094, 1
    %v4096 = vadd.f32 %v4094, %v4095
    %v4097 = vsel %vm3144, %v3120, 0.0
    %v4098 = vrot.slane %v4097, 4
    %v4099 = vadd.f32 %v4097, %v4098
    %v4100 = vrot.slane %v4099, 2
    %v4101 = vadd.f32 %v4099, %v4100
    %v4102 = vrot.slane %v4101, 1
    %v4103 = vadd.f32 %v4101, %v4102
    %v4104 = vsel %vm3144, %v3121, 0.0
    %v4105 = vrot.slane %v4104, 4
    %v4106 = vadd.f32 %v4104, %v4105
    %v4107 = vrot.slane %v4106, 2
    %v4108 = vadd.f32 %v4106, %v4107
    %v4109 = vrot.slane %v4108, 1
    %v4110 = vadd.f32 %v4108, %v4109
    %v4111 = vsel %vm3144, %v3122, 0.0
    %v4112 = vrot.slane %v4111, 4
    %v4113 = vadd.f32 %v4111, %v4112
    %v4114 = vrot.slane %v4113, 2
    %v4115 = vadd.f32 %v4113, %v4114
    %v4116 = vrot.slane %v4115, 1
    %v4117 = vadd.f32 %v4115, %v4116
    %v4118 = vsel %vm3144, %v3123, 0.0
    %v4119 = vrot.slane %v4118, 4
    %v4120 = vadd.f32 %v4118, %v4119
    %v4121 = vrot.slane %v4120, 2
    %v4122 = vadd.f32 %v4120, %v4121
    %v4123 = vrot.slane %v4122, 1
    %v4124 = vadd.f32 %v4122, %v4123
    %v4125 = vsel %vm3144, %v3124, 0.0
    %v4126 = vrot.slane %v4125, 4
    %v4127 = vadd.f32 %v4125, %v4126
    %v4128 = vrot.slane %v4127, 2
    %v4129 = vadd.f32 %v4127, %v4128
    %v4130 = vrot.slane %v4129, 1
    %v4131 = vadd.f32 %v4129, %v4130
    %v4132 = vsel %vm3144, %v3125, 0.0
    %v4133 = vrot.slane %v4132, 4
    %v4134 = vadd.f32 %v4132, %v4133
    %v4135 = vrot.slane %v4134, 2
    %v4136 = vadd.f32 %v4134, %v4135
    %v4137 = vrot.slane %v4136, 1
    %v4138 = vadd.f32 %v4136, %v4137
    %v4139 = vsel %vm3144, %v3126, 0.0
    %v4140 = vrot.slane %v4139, 4
    %v4141 = vadd.f32 %v4139, %v4140
    %v4142 = vrot.slane %v4141, 2
    %v4143 = vadd.f32 %v4141, %v4142
    %v4144 = vrot.slane %v4143, 1
    %v4145 = vadd.f32 %v4143, %v4144
    %v4146 = vsel %vm3144, %v3127, 0.0
    %v4147 = vrot.slane %v4146, 4
    %v4148 = vadd.f32 %v4146, %v4147
    %v4149 = vrot.slane %v4148, 2
    %v4150 = vadd.f32 %v4148, %v4149
    %v4151 = vrot.slane %v4150, 1
    %v4152 = vadd.f32 %v4150, %v4151
    %v4153 = vsel %vm3144, %v3128, 0.0
    %v4154 = vrot.slane %v4153, 4
    %v4155 = vadd.f32 %v4153, %v4154
    %v4156 = vrot.slane %v4155, 2
    %v4157 = vadd.f32 %v4155, %v4156
    %v4158 = vrot.slane %v4157, 1
    %v4159 = vadd.f32 %v4157, %v4158
    %v4160 = vsel %vm3144, %v3129, 0.0
    %v4161 = vrot.slane %v4160, 4
    %v4162 = vadd.f32 %v4160, %v4161
    %v4163 = vrot.slane %v4162, 2
    %v4164 = vadd.f32 %v4162, %v4163
    %v4165 = vrot.slane %v4164, 1
    %v4166 = vadd.f32 %v4164, %v4165
    %v4167 = vsel %vm3144, %v3130, 0.0
    %v4168 = vrot.slane %v4167, 4
    %v4169 = vadd.f32 %v4167, %v4168
    %v4170 = vrot.slane %v4169, 2
    %v4171 = vadd.f32 %v4169, %v4170
    %v4172 = vrot.slane %v4171, 1
    %v4173 = vadd.f32 %v4171, %v4172
    %v4174 = vsel %vm3144, %v3131, 0.0
    %v4175 = vrot.slane %v4174, 4
    %v4176 = vadd.f32 %v4174, %v4175
    %v4177 = vrot.slane %v4176, 2
    %v4178 = vadd.f32 %v4176, %v4177
    %v4179 = vrot.slane %v4178, 1
    %v4180 = vadd.f32 %v4178, %v4179
    %v4181 = vsel %vm3144, %v3132, 0.0
    %v4182 = vrot.slane %v4181, 4
    %v4183 = vadd.f32 %v4181, %v4182
    %v4184 = vrot.slane %v4183, 2
    %v4185 = vadd.f32 %v4183, %v4184
    %v4186 = vrot.slane %v4185, 1
    %v4187 = vadd.f32 %v4185, %v4186
    %v4188 = vsel %vm3144, %v3133, 0.0
    %v4189 = vrot.slane %v4188, 4
    %v4190 = vadd.f32 %v4188, %v4189
    %v4191 = vrot.slane %v4190, 2
    %v4192 = vadd.f32 %v4190, %v4191
    %v4193 = vrot.slane %v4192, 1
    %v4194 = vadd.f32 %v4192, %v4193
    %v4195 = vsel %vm3144, %v3134, 0.0
    %v4196 = vrot.slane %v4195, 4
    %v4197 = vadd.f32 %v4195, %v4196
    %v4198 = vrot.slane %v4197, 2
    %v4199 = vadd.f32 %v4197, %v4198
    %v4200 = vrot.slane %v4199, 1
    %v4201 = vadd.f32 %v4199, %v4200
    %v4202 = vsel %vm3144, %v3135, 0.0
    %v4203 = vrot.slane %v4202, 4
    %v4204 = vadd.f32 %v4202, %v4203
    %v4205 = vrot.slane %v4204, 2
    %v4206 = vadd.f32 %v4204, %v4205
    %v4207 = vrot.slane %v4206, 1
    %v4208 = vadd.f32 %v4206, %v4207
    %v4209 = vsel %vm3144, %v3136, 0.0
    %v4210 = vrot.slane %v4209, 4
    %v4211 = vadd.f32 %v4209, %v4210
    %v4212 = vrot.slane %v4211, 2
    %v4213 = vadd.f32 %v4211, %v4212
    %v4214 = vrot.slane %v4213, 1
    %v4215 = vadd.f32 %v4213, %v4214
    %v4216 = vsel %vm3144, %v3137, 0.0
    %v4217 = vrot.slane %v4216, 4
    %v4218 = vadd.f32 %v4216, %v4217
    %v4219 = vrot.slane %v4218, 2
    %v4220 = vadd.f32 %v4218, %v4219
    %v4221 = vrot.slane %v4220, 1
    %v4222 = vadd.f32 %v4220, %v4221
    %v4223 = vsel %vm3144, %v3138, 0.0
    %v4224 = vrot.slane %v4223, 4
    %v4225 = vadd.f32 %v4223, %v4224
    %v4226 = vrot.slane %v4225, 2
    %v4227 = vadd.f32 %v4225, %v4226
    %v4228 = vrot.slane %v4227, 1
    %v4229 = vadd.f32 %v4227, %v4228
    %v4230 = vsel %vm3144, %v3139, 0.0
    %v4231 = vrot.slane %v4230, 4
    %v4232 = vadd.f32 %v4230, %v4231
    %v4233 = vrot.slane %v4232, 2
    %v4234 = vadd.f32 %v4232, %v4233
    %v4235 = vrot.slane %v4234, 1
    %v4236 = vadd.f32 %v4234, %v4235
    %v4237 = vsel %vm3144, %v3140, 0.0
    %v4238 = vrot.slane %v4237, 4
    %v4239 = vadd.f32 %v4237, %v4238
    %v4240 = vrot.slane %v4239, 2
    %v4241 = vadd.f32 %v4239, %v4240
    %v4242 = vrot.slane %v4241, 1
    %v4243 = vadd.f32 %v4241, %v4242
    %v4244 = vsel %vm3144, %v3141, 0.0
    %v4245 = vrot.slane %v4244, 4
    %v4246 = vadd.f32 %v4244, %v4245
    %v4247 = vrot.slane %v4246, 2
    %v4248 = vadd.f32 %v4246, %v4247
    %v4249 = vrot.slane %v4248, 1
    %v4250 = vadd.f32 %v4248, %v4249
    %v4251 = vsel %vm3144, %v3142, 0.0
    %v4252 = vrot.slane %v4251, 4
    %v4253 = vadd.f32 %v4251, %v4252
    %v4254 = vrot.slane %v4253, 2
    %v4255 = vadd.f32 %v4253, %v4254
    %v4256 = vrot.slane %v4255, 1
    %v4257 = vadd.f32 %v4255, %v4256
    %v4258 = vsel %vm3144, %v3143, 0.0
    %v4259 = vrot.slane %v4258, 4
    %v4260 = vadd.f32 %v4258, %v4259
    %v4261 = vrot.slane %v4260, 2
    %v4262 = vadd.f32 %v4260, %v4261
    %v4263 = vrot.slane %v4262, 1
    %v4264 = vadd.f32 %v4262, %v4263
    %vm4265 = vcmask 39936
    %v4266 = vsel %vm4265, %v244, 0.0
    %4267 = vadd.xlane.f32.xlu0 %v4266
    %v4268 = vpop.xlane.xlu0 %4267
    %v4269 = vsel %vm4265, %v245, 0.0
    %4270 = vadd.xlane.f32.xlu0 %v4269
    %v4271 = vpop.xlane.xlu0 %4270
    %v4272 = vsel %vm4265, %v246, 0.0
    %4273 = vadd.xlane.f32.xlu0 %v4272
    %v4274 = vpop.xlane.xlu0 %4273
    %v4275 = vsel %vm4265, %v247, 0.0
    %4276 = vadd.xlane.f32.xlu0 %v4275
    %v4277 = vpop.xlane.xlu0 %4276
    %v4278 = vsel %vm4265, %v248, 0.0
    %4279 = vadd.xlane.f32.xlu0 %v4278
    %v4280 = vpop.xlane.xlu0 %4279
    %v4281 = vsel %vm4265, %v249, 0.0
    %4282 = vadd.xlane.f32.xlu0 %v4281
    %v4283 = vpop.xlane.xlu0 %4282
    %v4284 = vsel %vm4265, %v250, 0.0
    %4285 = vadd.xlane.f32.xlu0 %v4284
    %v4286 = vpop.xlane.xlu0 %4285
    %v4287 = vsel %vm4265, %v251, 0.0
    %4288 = vadd.xlane.f32.xlu0 %v4287
    %v4289 = vpop.xlane.xlu0 %4288
    %v4290 = vsel %vm4265, %v252, 0.0
    %4291 = vadd.xlane.f32.xlu0 %v4290
    %v4292 = vpop.xlane.xlu0 %4291
    %v4293 = vsel %vm4265, %v253, 0.0
    %4294 = vadd.xlane.f32.xlu0 %v4293
    %v4295 = vpop.xlane.xlu0 %4294
    %v4296 = vsel %vm4265, %v254, 0.0
    %4297 = vadd.xlane.f32.xlu0 %v4296
    %v4298 = vpop.xlane.xlu0 %4297
    %v4299 = vsel %vm4265, %v255, 0.0
    %4300 = vadd.xlane.f32.xlu0 %v4299
    %v4301 = vpop.xlane.xlu0 %4300
    %v4302 = vsel %vm4265, %v256, 0.0
    %4303 = vadd.xlane.f32.xlu0 %v4302
    %v4304 = vpop.xlane.xlu0 %4303
    %v4305 = vsel %vm4265, %v257, 0.0
    %4306 = vadd.xlane.f32.xlu0 %v4305
    %v4307 = vpop.xlane.xlu0 %4306
    %v4308 = vsel %vm4265, %v258, 0.0
    %4309 = vadd.xlane.f32.xlu0 %v4308
    %v4310 = vpop.xlane.xlu0 %4309
    %v4311 = vsel %vm4265, %v259, 0.0
    %4312 = vadd.xlane.f32.xlu0 %v4311
    %v4313 = vpop.xlane.xlu0 %4312
    %v4314 = vsel %vm4265, %v260, 0.0
    %4315 = vadd.xlane.f32.xlu0 %v4314
    %v4316 = vpop.xlane.xlu0 %4315
    %v4317 = vsel %vm4265, %v261, 0.0
    %4318 = vadd.xlane.f32.xlu0 %v4317
    %v4319 = vpop.xlane.xlu0 %4318
    %v4320 = vsel %vm4265, %v262, 0.0
    %4321 = vadd.xlane.f32.xlu0 %v4320
    %v4322 = vpop.xlane.xlu0 %4321
    %v4323 = vsel %vm4265, %v263, 0.0
    %4324 = vadd.xlane.f32.xlu0 %v4323
    %v4325 = vpop.xlane.xlu0 %4324
    %v4326 = vmax.f32 %v4268, 1e-08
    %v4327 = vmax.f32 %v4271, 1e-08
    %v4328 = vmax.f32 %v4274, 1e-08
    %v4329 = vmax.f32 %v4277, 1e-08
    %v4330 = vmax.f32 %v4280, 1e-08
    %v4331 = vmax.f32 %v4283, 1e-08
    %v4332 = vmax.f32 %v4286, 1e-08
    %v4333 = vmax.f32 %v4289, 1e-08
    %v4334 = vmax.f32 %v4292, 1e-08
    %v4335 = vmax.f32 %v4295, 1e-08
    %v4336 = vmax.f32 %v4298, 1e-08
    %v4337 = vmax.f32 %v4301, 1e-08
    %v4338 = vmax.f32 %v4304, 1e-08
    %v4339 = vmax.f32 %v4307, 1e-08
    %v4340 = vmax.f32 %v4310, 1e-08
    %v4341 = vmax.f32 %v4313, 1e-08
    %v4342 = vmax.f32 %v4316, 1e-08
    %v4343 = vmax.f32 %v4319, 1e-08
    %v4344 = vmax.f32 %v4322, 1e-08
    %v4345 = vmax.f32 %v4325, 1e-08
    %v4346 = vrcp.pop %v4326
    %v4347 = vrcp.pop %v4327
    %v4348 = vrcp.pop %v4328
    %v4349 = vrcp.pop %v4329
    %v4350 = vrcp.pop %v4330
    %v4351 = vrcp.pop %v4331
    %v4352 = vrcp.pop %v4332
    %v4353 = vrcp.pop %v4333
    %v4354 = vrcp.pop %v4334
    %v4355 = vrcp.pop %v4335
    %v4356 = vrcp.pop %v4336
    %v4357 = vrcp.pop %v4337
    %v4358 = vrcp.pop %v4338
    %v4359 = vrcp.pop %v4339
    %v4360 = vrcp.pop %v4340
    %v4361 = vrcp.pop %v4341
    %v4362 = vrcp.pop %v4342
    %v4363 = vrcp.pop %v4343
    %v4364 = vrcp.pop %v4344
    %v4365 = vrcp.pop %v4345
    %vm4526 = vcmask 1041409
    %v4527 = vsel %vm4526, %v3158, %v3151
    %vm4528 = vcmask 1042434
    %v4529 = vsel %vm4528, %v3165, %v4527
    %vm4530 = vcmask 1043459
    %v4531 = vsel %vm4530, %v3172, %v4529
    %vm4532 = vcmask 1044484
    %v4533 = vsel %vm4532, %v3179, %v4531
    %vm4534 = vcmask 1045509
    %v4535 = vsel %vm4534, %v3186, %v4533
    %vm4536 = vcmask 1046534
    %v4537 = vsel %vm4536, %v3193, %v4535
    %vm4538 = vcmask 1047559
    %v4539 = vsel %vm4538, %v3200, %v4537
    %v4540 = vsel %vm4526, %v3214, %v3207
    %v4541 = vsel %vm4528, %v3221, %v4540
    %v4542 = vsel %vm4530, %v3228, %v4541
    %v4543 = vsel %vm4532, %v3235, %v4542
    %v4544 = vsel %vm4534, %v3242, %v4543
    %v4545 = vsel %vm4536, %v3249, %v4544
    %v4546 = vsel %vm4538, %v3256, %v4545
    %v4547 = vsel %vm4526, %v3270, %v3263
    %v4548 = vsel %vm4528, %v3277, %v4547
    %v4549 = vsel %vm4530, %v3284, %v4548
    %v4550 = vsel %vm4532, %v3291, %v4549
    %v4551 = vsel %vm4534, %v3298, %v4550
    %v4552 = vsel %vm4536, %v3305, %v4551
    %v4553 = vsel %vm4538, %v3312, %v4552
    %v4554 = vsel %vm4526, %v3326, %v3319
    %v4555 = vsel %vm4528, %v3333, %v4554
    %v4556 = vsel %vm4530, %v3340, %v4555
    %v4557 = vsel %vm4532, %v3347, %v4556
    %v4558 = vsel %vm4534, %v3354, %v4557
    %v4559 = vsel %vm4536, %v3361, %v4558
    %v4560 = vsel %vm4538, %v3368, %v4559
    %v4561 = vsel %vm4526, %v3382, %v3375
    %v4562 = vsel %vm4528, %v3389, %v4561
    %v4563 = vsel %vm4530, %v3396, %v4562
    %v4564 = vsel %vm4532, %v3403, %v4563
    %v4565 = vsel %vm4534, %v3410, %v4564
    %v4566 = vsel %vm4536, %v3417, %v4565
    %v4567 = vsel %vm4538, %v3424, %v4566
    %v4568 = vsel %vm4526, %v3438, %v3431
    %v4569 = vsel %vm4528, %v3445, %v4568
    %v4570 = vsel %vm4530, %v3452, %v4569
    %v4571 = vsel %vm4532, %v3459, %v4570
    %v4572 = vsel %vm4534, %v3466, %v4571
    %v4573 = vsel %vm4536, %v3473, %v4572
    %v4574 = vsel %vm4538, %v3480, %v4573
    %v4575 = vsel %vm4526, %v3494, %v3487
    %v4576 = vsel %vm4528, %v3501, %v4575
    %v4577 = vsel %vm4530, %v3508, %v4576
    %v4578 = vsel %vm4532, %v3515, %v4577
    %v4579 = vsel %vm4534, %v3522, %v4578
    %v4580 = vsel %vm4536, %v3529, %v4579
    %v4581 = vsel %vm4538, %v3536, %v4580
    %v4582 = vsel %vm4526, %v3550, %v3543
    %v4583 = vsel %vm4528, %v3557, %v4582
    %v4584 = vsel %vm4530, %v3564, %v4583
    %v4585 = vsel %vm4532, %v3571, %v4584
    %v4586 = vsel %vm4534, %v3578, %v4585
    %v4587 = vsel %vm4536, %v3585, %v4586
    %v4588 = vsel %vm4538, %v3592, %v4587
    %v4589 = vsel %vm4526, %v3606, %v3599
    %v4590 = vsel %vm4528, %v3613, %v4589
    %v4591 = vsel %vm4530, %v3620, %v4590
    %v4592 = vsel %vm4532, %v3627, %v4591
    %v4593 = vsel %vm4534, %v3634, %v4592
    %v4594 = vsel %vm4536, %v3641, %v4593
    %v4595 = vsel %vm4538, %v3648, %v4594
    %v4596 = vsel %vm4526, %v3662, %v3655
    %v4597 = vsel %vm4528, %v3669, %v4596
    %v4598 = vsel %vm4530, %v3676, %v4597
    %v4599 = vsel %vm4532, %v3683, %v4598
    %v4600 = vsel %vm4534, %v3690, %v4599
    %v4601 = vsel %vm4536, %v3697, %v4600
    %v4602 = vsel %vm4538, %v3704, %v4601
    %v4603 = vsel %vm4526, %v3718, %v3711
    %v4604 = vsel %vm4528, %v3725, %v4603
    %v4605 = vsel %vm4530, %v3732, %v4604
    %v4606 = vsel %vm4532, %v3739, %v4605
    %v4607 = vsel %vm4534, %v3746, %v4606
    %v4608 = vsel %vm4536, %v3753, %v4607
    %v4609 = vsel %vm4538, %v3760, %v4608
    %v4610 = vsel %vm4526, %v3774, %v3767
    %v4611 = vsel %vm4528, %v3781, %v4610
    %v4612 = vsel %vm4530, %v3788, %v4611
    %v4613 = vsel %vm4532, %v3795, %v4612
    %v4614 = vsel %vm4534, %v3802, %v4613
    %v4615 = vsel %vm4536, %v3809, %v4614
    %v4616 = vsel %vm4538, %v3816, %v4615
    %v4617 = vsel %vm4526, %v3830, %v3823
    %v4618 = vsel %vm4528, %v3837, %v4617
    %v4619 = vsel %vm4530, %v3844, %v4618
    %v4620 = vsel %vm4532, %v3851, %v4619
    %v4621 = vsel %vm4534, %v3858, %v4620
    %v4622 = vsel %vm4536, %v3865, %v4621
    %v4623 = vsel %vm4538, %v3872, %v4622
    %v4624 = vsel %vm4526, %v3886, %v3879
    %v4625 = vsel %vm4528, %v3893, %v4624
    %v4626 = vsel %vm4530, %v3900, %v4625
    %v4627 = vsel %vm4532, %v3907, %v4626
    %v4628 = vsel %vm4534, %v3914, %v4627
    %v4629 = vsel %vm4536, %v3921, %v4628
    %v4630 = vsel %vm4538, %v3928, %v4629
    %v4631 = vsel %vm4526, %v3942, %v3935
    %v4632 = vsel %vm4528, %v3949, %v4631
    %v4633 = vsel %vm4530, %v3956, %v4632
    %v4634 = vsel %vm4532, %v3963, %v4633
    %v4635 = vsel %vm4534, %v3970, %v4634
    %v4636 = vsel %vm4536, %v3977, %v4635
    %v4637 = vsel %vm4538, %v3984, %v4636
    %v4638 = vsel %vm4526, %v3998, %v3991
    %v4639 = vsel %vm4528, %v4005, %v4638
    %v4640 = vsel %vm4530, %v4012, %v4639
    %v4641 = vsel %vm4532, %v4019, %v4640
    %v4642 = vsel %vm4534, %v4026, %v4641
    %v4643 = vsel %vm4536, %v4033, %v4642
    %v4644 = vsel %vm4538, %v4040, %v4643
    %v4645 = vsel %vm4526, %v4054, %v4047
    %v4646 = vsel %vm4528, %v4061, %v4645
    %v4647 = vsel %vm4530, %v4068, %v4646
    %v4648 = vsel %vm4532, %v4075, %v4647
    %v4649 = vsel %vm4534, %v4082, %v4648
    %v4650 = vsel %vm4536, %v4089, %v4649
    %v4651 = vsel %vm4538, %v4096, %v4650
    %v4652 = vsel %vm4526, %v4110, %v4103
    %v4653 = vsel %vm4528, %v4117, %v4652
    %v4654 = vsel %vm4530, %v4124, %v4653
    %v4655 = vsel %vm4532, %v4131, %v4654
    %v4656 = vsel %vm4534, %v4138, %v4655
    %v4657 = vsel %vm4536, %v4145, %v4656
    %v4658 = vsel %vm4538, %v4152, %v4657
    %v4659 = vsel %vm4526, %v4166, %v4159
    %v4660 = vsel %vm4528, %v4173, %v4659
    %v4661 = vsel %vm4530, %v4180, %v4660
    %v4662 = vsel %vm4532, %v4187, %v4661
    %v4663 = vsel %vm4534, %v4194, %v4662
    %v4664 = vsel %vm4536, %v4201, %v4663
    %v4665 = vsel %vm4538, %v4208, %v4664
    %v4666 = vsel %vm4526, %v4222, %v4215
    %v4667 = vsel %vm4528, %v4229, %v4666
    %v4668 = vsel %vm4530, %v4236, %v4667
    %v4669 = vsel %vm4532, %v4243, %v4668
    %v4670 = vsel %vm4534, %v4250, %v4669
    %v4671 = vsel %vm4536, %v4257, %v4670
    %v4672 = vsel %vm4538, %v4264, %v4671
    %v4673 = vsel %vm67, %v4539, 0
    %v4675 = vsel %vm67, %v4546, 0
    %v4677 = vsel %vm67, %v4553, 0
    %v4679 = vsel %vm67, %v4560, 0
    %v4681 = vsel %vm67, %v4567, 0
    %v4683 = vsel %vm67, %v4574, 0
    %v4685 = vsel %vm67, %v4581, 0
    %v4687 = vsel %vm67, %v4588, 0
    %v4689 = vsel %vm67, %v4595, 0
    %v4691 = vsel %vm67, %v4602, 0
    %v4693 = vsel %vm67, %v4609, 0
    %v4695 = vsel %vm67, %v4616, 0
    %v4697 = vsel %vm67, %v4623, 0
    %v4699 = vsel %vm67, %v4630, 0
    %v4701 = vsel %vm67, %v4637, 0
    %v4703 = vsel %vm67, %v4644, 0
    %v4705 = vsel %vm67, %v4651, 0
    %v4707 = vsel %vm67, %v4658, 0
    %v4709 = vsel %vm67, %v4665, 0
    %v4711 = vsel %vm67, %v4672, 0
    %4713 = vmatprep.subr.mxu0 0.0
    %4714 = vmatpush1.msra.mxu0 %v50
    %4715 = vmatprep.subr.mxu0 0.0
    %4716 = vmatpush1.msra.mxu0 %v51
    %4717 = vmatprep.subr.mxu0 0.0
    %4718 = vmatpush1.msra.mxu0 %v52
    %4719 = vmatprep.subr.mxu0 0.0
    %4720 = vmatpush1.msra.mxu0 %v53
    %4721 = vmatprep.subr.mxu0 0.0
    %4722 = vmatpush1.msra.mxu0 %v54
    %4723 = vmatprep.subr.mxu0 0.0
    %4724 = vmatpush1.msra.mxu0 %v55
    %4725 = vmatprep.subr.mxu0 0.0
    %4726 = vmatpush1.msra.mxu0 %v56
    %4727 = vmatprep.subr.mxu0 0.0
    %4728 = vmatpush1.msra.mxu0 %v57
    %4729 = vmatprep.subr.mxu0 0.0
    %4730 = vmatpush1.msra.mxu0 0.0
    %4731 = vmatprep.subr.mxu0 0.0
    %4732 = vmatpush1.msra.mxu0 0.0
    %4733 = vmatprep.subr.mxu0 0.0
    %4734 = vmatpush1.msra.mxu0 0.0
    %4735 = vmatprep.subr.mxu0 0.0
    %4736 = vmatpush1.msra.mxu0 0.0
    %4737 = vmatprep.subr.mxu0 0.0
    %4738 = vmatpush1.msra.mxu0 0.0
    %4739 = vmatprep.subr.mxu0 0.0
    %4740 = vmatpush1.msra.mxu0 0.0
    %4741 = vmatprep.subr.mxu0 0.0
    %4742 = vmatpush1.msra.mxu0 0.0
    %4743 = vmatprep.subr.mxu0 0.0
    %4744 = vmatpush1.msra.mxu0 0.0
    %4745 = vmatprep.subr.mxu0 0.0
    %4746 = vmatpush1.msra.mxu0 0.0
    %4747 = vmatprep.subr.mxu0 0.0
    %4748 = vmatpush1.msra.mxu0 0.0
    %4749 = vmatprep.subr.mxu0 0.0
    %4750 = vmatpush1.msra.mxu0 0.0
    %4751 = vmatprep.subr.mxu0 0.0
    %4752 = vmatpush1.msra.mxu0 0.0
    %4753 = vmatprep.subr.mxu0 0.0
    %4754 = vmatpush1.msra.mxu0 0.0
    %4755 = vmatprep.subr.mxu0 0.0
    %4756 = vmatpush1.msra.mxu0 0.0
    %4757 = vmatprep.subr.mxu0 0.0
    %4758 = vmatpush1.msra.mxu0 0.0
    %4759 = vmatprep.subr.mxu0 0.0
    %4760 = vmatpush1.msra.mxu0 0.0
    %4761 = vmatprep.subr.mxu0 0.0
    %4762 = vmatpush1.msra.mxu0 0.0
    %4763 = vmatprep.subr.mxu0 0.0
    %4764 = vmatpush1.msra.mxu0 0.0
    %4765 = vmatprep.subr.mxu0 0.0
    %4766 = vmatpush1.msra.mxu0 0.0
    %4767 = vmatprep.subr.mxu0 0.0
    %4768 = vmatpush1.msra.mxu0 0.0
    %4769 = vmatprep.subr.mxu0 0.0
    %4770 = vmatpush1.msra.mxu0 0.0
    %4771 = vmatprep.subr.mxu0 0.0
    %4772 = vmatpush1.msra.mxu0 0.0
    %4773 = vmatprep.subr.mxu0 0.0
    %4774 = vmatpush1.msra.mxu0 0.0
    %4775 = vmatprep.subr.mxu0 0.0
    %4776 = vmatpush1.msra.mxu0 0.0
    %4777 = vmatprep.mubr.f32.mxu0 0.0
    %4778 = vmatmul.mubr.f32.gmra.mrb[0].mxu0 %v4673
    %v4779 = vpop.f32.mrb[0].mxu0
    %v4780 = vadd.f32 0.0, %v4779
    %v4781 = vpop.f32.mrb[0].mxu0
    %4782 = vmatprep.mubr.f32.mxu0 0.0
    %4783 = vmatmul.mubr.f32.gmra.mrb[0].mxu0 %v4675
    %v4784 = vpop.f32.mrb[0].mxu0
    %v4785 = vadd.f32 0.0, %v4784
    %v4786 = vpop.f32.mrb[0].mxu0
    %4787 = vmatprep.mubr.f32.mxu0 0.0
    %4788 = vmatmul.mubr.f32.gmra.mrb[0].mxu0 %v4677
    %v4789 = vpop.f32.mrb[0].mxu0
    %v4790 = vadd.f32 0.0, %v4789
    %v4791 = vpop.f32.mrb[0].mxu0
    %4792 = vmatprep.mubr.f32.mxu0 0.0
    %4793 = vmatmul.mubr.f32.gmra.mrb[0].mxu0 %v4679
    %v4794 = vpop.f32.mrb[0].mxu0
    %v4795 = vadd.f32 0.0, %v4794
    %v4796 = vpop.f32.mrb[0].mxu0
    %4797 = vmatprep.mubr.f32.mxu0 0.0
    %4798 = vmatmul.mubr.f32.gmra.mrb[0].mxu0 %v4681
    %v4799 = vpop.f32.mrb[0].mxu0
    %v4800 = vadd.f32 0.0, %v4799
    %v4801 = vpop.f32.mrb[0].mxu0
    %4802 = vmatprep.mubr.f32.mxu0 0.0
    %4803 = vmatmul.mubr.f32.gmra.mrb[0].mxu0 %v4683
    %v4804 = vpop.f32.mrb[0].mxu0
    %v4805 = vadd.f32 0.0, %v4804
    %v4806 = vpop.f32.mrb[0].mxu0
    %4807 = vmatprep.mubr.f32.mxu0 0.0
    %4808 = vmatmul.mubr.f32.gmra.mrb[0].mxu0 %v4685
    %v4809 = vpop.f32.mrb[0].mxu0
    %v4810 = vadd.f32 0.0, %v4809
    %v4811 = vpop.f32.mrb[0].mxu0
    %4812 = vmatprep.mubr.f32.mxu0 0.0
    %4813 = vmatmul.mubr.f32.gmra.mrb[0].mxu0 %v4687
    %v4814 = vpop.f32.mrb[0].mxu0
    %v4815 = vadd.f32 0.0, %v4814
    %v4816 = vpop.f32.mrb[0].mxu0
    %4817 = vmatprep.mubr.f32.mxu0 0.0
    %4818 = vmatmul.mubr.f32.gmra.mrb[0].mxu0 %v4689
    %v4819 = vpop.f32.mrb[0].mxu0
    %v4820 = vadd.f32 0.0, %v4819
    %v4821 = vpop.f32.mrb[0].mxu0
    %4822 = vmatprep.mubr.f32.mxu0 0.0
    %4823 = vmatmul.mubr.f32.gmra.mrb[0].mxu0 %v4691
    %v4824 = vpop.f32.mrb[0].mxu0
    %v4825 = vadd.f32 0.0, %v4824
    %v4826 = vpop.f32.mrb[0].mxu0
    %4827 = vmatprep.mubr.f32.mxu0 0.0
    %4828 = vmatmul.mubr.f32.gmra.mrb[0].mxu0 %v4693
    %v4829 = vpop.f32.mrb[0].mxu0
    %v4830 = vadd.f32 0.0, %v4829
    %v4831 = vpop.f32.mrb[0].mxu0
    %4832 = vmatprep.mubr.f32.mxu0 0.0
    %4833 = vmatmul.mubr.f32.gmra.mrb[0].mxu0 %v4695
    %v4834 = vpop.f32.mrb[0].mxu0
    %v4835 = vadd.f32 0.0, %v4834
    %v4836 = vpop.f32.mrb[0].mxu0
    %4837 = vmatprep.mubr.f32.mxu0 0.0
    %4838 = vmatmul.mubr.f32.gmra.mrb[0].mxu0 %v4697
    %v4839 = vpop.f32.mrb[0].mxu0
    %v4840 = vadd.f32 0.0, %v4839
    %v4841 = vpop.f32.mrb[0].mxu0
    %4842 = vmatprep.mubr.f32.mxu0 0.0
    %4843 = vmatmul.mubr.f32.gmra.mrb[0].mxu0 %v4699
    %v4844 = vpop.f32.mrb[0].mxu0
    %v4845 = vadd.f32 0.0, %v4844
    %v4846 = vpop.f32.mrb[0].mxu0
    %4847 = vmatprep.mubr.f32.mxu0 0.0
    %4848 = vmatmul.mubr.f32.gmra.mrb[0].mxu0 %v4701
    %v4849 = vpop.f32.mrb[0].mxu0
    %v4850 = vadd.f32 0.0, %v4849
    %v4851 = vpop.f32.mrb[0].mxu0
    %4852 = vmatprep.mubr.f32.mxu0 0.0
    %4853 = vmatmul.mubr.f32.gmra.mrb[0].mxu0 %v4703
    %v4854 = vpop.f32.mrb[0].mxu0
    %v4855 = vadd.f32 0.0, %v4854
    %v4856 = vpop.f32.mrb[0].mxu0
    %4857 = vmatprep.mubr.f32.mxu0 0.0
    %4858 = vmatmul.mubr.f32.gmra.mrb[0].mxu0 %v4705
    %v4859 = vpop.f32.mrb[0].mxu0
    %v4860 = vadd.f32 0.0, %v4859
    %v4861 = vpop.f32.mrb[0].mxu0
    %4862 = vmatprep.mubr.f32.mxu0 0.0
    %4863 = vmatmul.mubr.f32.gmra.mrb[0].mxu0 %v4707
    %v4864 = vpop.f32.mrb[0].mxu0
    %v4865 = vadd.f32 0.0, %v4864
    %v4866 = vpop.f32.mrb[0].mxu0
    %4867 = vmatprep.mubr.f32.mxu0 0.0
    %4868 = vmatmul.mubr.f32.gmra.mrb[0].mxu0 %v4709
    %v4869 = vpop.f32.mrb[0].mxu0
    %v4870 = vadd.f32 0.0, %v4869
    %v4871 = vpop.f32.mrb[0].mxu0
    %4872 = vmatprep.mubr.f32.mxu0 0.0
    %4873 = vmatmul.mubr.f32.gmra.mrb[0].mxu0 %v4711
    %v4874 = vpop.f32.mrb[0].mxu0
    %v4875 = vadd.f32 0.0, %v4874
    %v4876 = vpop.f32.mrb[0].mxu0
    %4877 = vdwg.mxu0
    %v4878 = vmul.f32 %v4780, %v4346
    %v4879 = vmul.f32 %v4785, %v4347
    %v4880 = vmul.f32 %v4790, %v4348
    %v4881 = vmul.f32 %v4795, %v4349
    %v4882 = vmul.f32 %v4800, %v4350
    %v4883 = vmul.f32 %v4805, %v4351
    %v4884 = vmul.f32 %v4810, %v4352
    %v4885 = vmul.f32 %v4815, %v4353
    %v4886 = vmul.f32 %v4820, %v4354
    %v4887 = vmul.f32 %v4825, %v4355
    %v4888 = vmul.f32 %v4830, %v4356
    %v4889 = vmul.f32 %v4835, %v4357
    %v4890 = vmul.f32 %v4840, %v4358
    %v4891 = vmul.f32 %v4845, %v4359
    %v4892 = vmul.f32 %v4850, %v4360
    %v4893 = vmul.f32 %v4855, %v4361
    %v4894 = vmul.f32 %v4860, %v4362
    %v4895 = vmul.f32 %v4865, %v4363
    %v4896 = vmul.f32 %v4870, %v4364
    %v4897 = vmul.f32 %v4875, %v4365
    %v4898 = vlaneseq
    %v4899 = vshrl.u32 %v4898, 7
    %v4900 = vsub.s32 0, %v4899
    %v4901 = vrot.slane %v59, %v4900
    %vm4902 = vcmask 261120
    %v4904 = vsel %vm4902, %v4878, 0
    %v4907 = vsel %vm4902, %v4879, 0
    %v4910 = vsel %vm4902, %v4880, 0
    %v4913 = vsel %vm4902, %v4881, 0
    %v4916 = vsel %vm4902, %v4882, 0
    %v4919 = vsel %vm4902, %v4883, 0
    %v4922 = vsel %vm4902, %v4884, 0
    %v4925 = vsel %vm4902, %v4885, 0
    %v4928 = vsel %vm4902, %v4886, 0
    %v4931 = vsel %vm4902, %v4887, 0
    %v4934 = vsel %vm4902, %v4888, 0
    %v4937 = vsel %vm4902, %v4889, 0
    %v4940 = vsel %vm4902, %v4890, 0
    %v4943 = vsel %vm4902, %v4891, 0
    %v4946 = vsel %vm4902, %v4892, 0
    %v4949 = vsel %vm4902, %v4893, 0
    %v4952 = vsel %vm4902, %v4894, 0
    %v4955 = vsel %vm4902, %v4895, 0
    %v4958 = vsel %vm4902, %v4896, 0
    %v4961 = vsel %vm4902, %v4897, 0
    %4963 = vmatprep.subr.mxu0 0.0
    %4964 = vmatpush1.msra.mxu0 %v37
    %4965 = vmatprep.subr.mxu0 0.0
    %4966 = vmatpush1.msra.mxu0 %v38
    %4967 = vmatprep.subr.mxu0 0.0
    %4968 = vmatpush1.msra.mxu0 %v39
    %4969 = vmatprep.subr.mxu0 0.0
    %4970 = vmatpush1.msra.mxu0 %v40
    %4971 = vmatprep.subr.mxu0 0.0
    %4972 = vmatpush1.msra.mxu0 0.0
    %4973 = vmatprep.subr.mxu0 0.0
    %4974 = vmatpush1.msra.mxu0 0.0
    %4975 = vmatprep.subr.mxu0 0.0
    %4976 = vmatpush1.msra.mxu0 0.0
    %4977 = vmatprep.subr.mxu0 0.0
    %4978 = vmatpush1.msra.mxu0 0.0
    %4979 = vmatprep.subr.mxu0 0.0
    %4980 = vmatpush1.msra.mxu0 0.0
    %4981 = vmatprep.subr.mxu0 0.0
    %4982 = vmatpush1.msra.mxu0 0.0
    %4983 = vmatprep.subr.mxu0 0.0
    %4984 = vmatpush1.msra.mxu0 0.0
    %4985 = vmatprep.subr.mxu0 0.0
    %4986 = vmatpush1.msra.mxu0 0.0
    %4987 = vmatprep.subr.mxu0 0.0
    %4988 = vmatpush1.msra.mxu0 0.0
    %4989 = vmatprep.subr.mxu0 0.0
    %4990 = vmatpush1.msra.mxu0 0.0
    %4991 = vmatprep.subr.mxu0 0.0
    %4992 = vmatpush1.msra.mxu0 0.0
    %4993 = vmatprep.subr.mxu0 0.0
    %4994 = vmatpush1.msra.mxu0 0.0
    %4995 = vmatprep.subr.mxu0 0.0
    %4996 = vmatpush1.msra.mxu0 0.0
    %4997 = vmatprep.subr.mxu0 0.0
    %4998 = vmatpush1.msra.mxu0 0.0
    %4999 = vmatprep.subr.mxu0 0.0
    %5000 = vmatpush1.msra.mxu0 0.0
    %5001 = vmatprep.subr.mxu0 0.0
    %5002 = vmatpush1.msra.mxu0 0.0
    %5003 = vmatprep.subr.mxu0 0.0
    %5004 = vmatpush1.msra.mxu0 0.0
    %5005 = vmatprep.subr.mxu0 0.0
    %5006 = vmatpush1.msra.mxu0 0.0
    %5007 = vmatprep.subr.mxu0 0.0
    %5008 = vmatpush1.msra.mxu0 0.0
    %5009 = vmatprep.subr.mxu0 0.0
    %5010 = vmatpush1.msra.mxu0 0.0
    %5011 = vmatprep.subr.mxu0 0.0
    %5012 = vmatpush1.msra.mxu0 0.0
    %5013 = vmatprep.subr.mxu0 0.0
    %5014 = vmatpush1.msra.mxu0 0.0
    %5015 = vmatprep.subr.mxu0 0.0
    %5016 = vmatpush1.msra.mxu0 0.0
    %5017 = vmatprep.subr.mxu0 0.0
    %5018 = vmatpush1.msra.mxu0 0.0
    %5019 = vmatprep.subr.mxu0 0.0
    %5020 = vmatpush1.msra.mxu0 0.0
    %5021 = vmatprep.subr.mxu0 0.0
    %5022 = vmatpush1.msra.mxu0 0.0
    %5023 = vmatprep.subr.mxu0 0.0
    %5024 = vmatpush1.msra.mxu0 0.0
    %5025 = vmatprep.subr.mxu0 0.0
    %5026 = vmatpush1.msra.mxu0 0.0
    %5027 = vmatprep.mubr.f32.mxu0 0.0
    %5028 = vmatmul.mubr.f32.gmra.mrb[0].mxu0 %v4904
    %v5029 = vpop.f32.mrb[0].mxu0
    %v5030 = vadd.f32 %v4901, %v5029
    %v5031 = vpop.f32.mrb[0].mxu0
    %5032 = vmatprep.mubr.f32.mxu0 0.0
    %5033 = vmatmul.mubr.f32.gmra.mrb[0].mxu0 %v4907
    %v5034 = vpop.f32.mrb[0].mxu0
    %v5035 = vadd.f32 %v4901, %v5034
    %v5036 = vpop.f32.mrb[0].mxu0
    %5037 = vmatprep.mubr.f32.mxu0 0.0
    %5038 = vmatmul.mubr.f32.gmra.mrb[0].mxu0 %v4910
    %v5039 = vpop.f32.mrb[0].mxu0
    %v5040 = vadd.f32 %v4901, %v5039
    %v5041 = vpop.f32.mrb[0].mxu0
    %5042 = vmatprep.mubr.f32.mxu0 0.0
    %5043 = vmatmul.mubr.f32.gmra.mrb[0].mxu0 %v4913
    %v5044 = vpop.f32.mrb[0].mxu0
    %v5045 = vadd.f32 %v4901, %v5044
    %v5046 = vpop.f32.mrb[0].mxu0
    %5047 = vmatprep.mubr.f32.mxu0 0.0
    %5048 = vmatmul.mubr.f32.gmra.mrb[0].mxu0 %v4916
    %v5049 = vpop.f32.mrb[0].mxu0
    %v5050 = vadd.f32 %v4901, %v5049
    %v5051 = vpop.f32.mrb[0].mxu0
    %5052 = vmatprep.mubr.f32.mxu0 0.0
    %5053 = vmatmul.mubr.f32.gmra.mrb[0].mxu0 %v4919
    %v5054 = vpop.f32.mrb[0].mxu0
    %v5055 = vadd.f32 %v4901, %v5054
    %v5056 = vpop.f32.mrb[0].mxu0
    %5057 = vmatprep.mubr.f32.mxu0 0.0
    %5058 = vmatmul.mubr.f32.gmra.mrb[0].mxu0 %v4922
    %v5059 = vpop.f32.mrb[0].mxu0
    %v5060 = vadd.f32 %v4901, %v5059
    %v5061 = vpop.f32.mrb[0].mxu0
    %5062 = vmatprep.mubr.f32.mxu0 0.0
    %5063 = vmatmul.mubr.f32.gmra.mrb[0].mxu0 %v4925
    %v5064 = vpop.f32.mrb[0].mxu0
    %v5065 = vadd.f32 %v4901, %v5064
    %v5066 = vpop.f32.mrb[0].mxu0
    %5067 = vmatprep.mubr.f32.mxu0 0.0
    %5068 = vmatmul.mubr.f32.gmra.mrb[0].mxu0 %v4928
    %v5069 = vpop.f32.mrb[0].mxu0
    %v5070 = vadd.f32 %v4901, %v5069
    %v5071 = vpop.f32.mrb[0].mxu0
    %5072 = vmatprep.mubr.f32.mxu0 0.0
    %5073 = vmatmul.mubr.f32.gmra.mrb[0].mxu0 %v4931
    %v5074 = vpop.f32.mrb[0].mxu0
    %v5075 = vadd.f32 %v4901, %v5074
    %v5076 = vpop.f32.mrb[0].mxu0
    %5077 = vmatprep.mubr.f32.mxu0 0.0
    %5078 = vmatmul.mubr.f32.gmra.mrb[0].mxu0 %v4934
    %v5079 = vpop.f32.mrb[0].mxu0
    %v5080 = vadd.f32 %v4901, %v5079
    %v5081 = vpop.f32.mrb[0].mxu0
    %5082 = vmatprep.mubr.f32.mxu0 0.0
    %5083 = vmatmul.mubr.f32.gmra.mrb[0].mxu0 %v4937
    %v5084 = vpop.f32.mrb[0].mxu0
    %v5085 = vadd.f32 %v4901, %v5084
    %v5086 = vpop.f32.mrb[0].mxu0
    %5087 = vmatprep.mubr.f32.mxu0 0.0
    %5088 = vmatmul.mubr.f32.gmra.mrb[0].mxu0 %v4940
    %v5089 = vpop.f32.mrb[0].mxu0
    %v5090 = vadd.f32 %v4901, %v5089
    %v5091 = vpop.f32.mrb[0].mxu0
    %5092 = vmatprep.mubr.f32.mxu0 0.0
    %5093 = vmatmul.mubr.f32.gmra.mrb[0].mxu0 %v4943
    %v5094 = vpop.f32.mrb[0].mxu0
    %v5095 = vadd.f32 %v4901, %v5094
    %v5096 = vpop.f32.mrb[0].mxu0
    %5097 = vmatprep.mubr.f32.mxu0 0.0
    %5098 = vmatmul.mubr.f32.gmra.mrb[0].mxu0 %v4946
    %v5099 = vpop.f32.mrb[0].mxu0
    %v5100 = vadd.f32 %v4901, %v5099
    %v5101 = vpop.f32.mrb[0].mxu0
    %5102 = vmatprep.mubr.f32.mxu0 0.0
    %5103 = vmatmul.mubr.f32.gmra.mrb[0].mxu0 %v4949
    %v5104 = vpop.f32.mrb[0].mxu0
    %v5105 = vadd.f32 %v4901, %v5104
    %v5106 = vpop.f32.mrb[0].mxu0
    %5107 = vmatprep.mubr.f32.mxu0 0.0
    %5108 = vmatmul.mubr.f32.gmra.mrb[0].mxu0 %v4952
    %v5109 = vpop.f32.mrb[0].mxu0
    %v5110 = vadd.f32 %v4901, %v5109
    %v5111 = vpop.f32.mrb[0].mxu0
    %5112 = vmatprep.mubr.f32.mxu0 0.0
    %5113 = vmatmul.mubr.f32.gmra.mrb[0].mxu0 %v4955
    %v5114 = vpop.f32.mrb[0].mxu0
    %v5115 = vadd.f32 %v4901, %v5114
    %v5116 = vpop.f32.mrb[0].mxu0
    %5117 = vmatprep.mubr.f32.mxu0 0.0
    %5118 = vmatmul.mubr.f32.gmra.mrb[0].mxu0 %v4958
    %v5119 = vpop.f32.mrb[0].mxu0
    %v5120 = vadd.f32 %v4901, %v5119
    %v5121 = vpop.f32.mrb[0].mxu0
    %5122 = vmatprep.mubr.f32.mxu0 0.0
    %5123 = vmatmul.mubr.f32.gmra.mrb[0].mxu0 %v4961
    %v5124 = vpop.f32.mrb[0].mxu0
    %v5125 = vadd.f32 %v4901, %v5124
    %v5126 = vpop.f32.mrb[0].mxu0
    %5127 = vdwg.mxu0
    %5128 = vst.msk [vmem:[#allocation2] sm:$0xff] %vm4902, %v5030
    %5129 = vst.msk [vmem:[#allocation2 + $0x8] sm:$0xff] %vm4902, %v5035
    %5130 = vst.msk [vmem:[#allocation2 + $0x10] sm:$0xff] %vm4902, %v5040
    %5131 = vst.msk [vmem:[#allocation2 + $0x18] sm:$0xff] %vm4902, %v5045
    %5132 = vst.msk [vmem:[#allocation2 + $0x20] sm:$0xff] %vm4902, %v5050
    %5133 = vst.msk [vmem:[#allocation2 + $0x28] sm:$0xff] %vm4902, %v5055
    %5134 = vst.msk [vmem:[#allocation2 + $0x30] sm:$0xff] %vm4902, %v5060
    %5135 = vst.msk [vmem:[#allocation2 + $0x38] sm:$0xff] %vm4902, %v5065
    %5136 = vst.msk [vmem:[#allocation2 + $0x40] sm:$0xff] %vm4902, %v5070
    %5137 = vst.msk [vmem:[#allocation2 + $0x48] sm:$0xff] %vm4902, %v5075
    %5138 = vst.msk [vmem:[#allocation2 + $0x50] sm:$0xff] %vm4902, %v5080
    %5139 = vst.msk [vmem:[#allocation2 + $0x58] sm:$0xff] %vm4902, %v5085
    %5140 = vst.msk [vmem:[#allocation2 + $0x60] sm:$0xff] %vm4902, %v5090
    %5141 = vst.msk [vmem:[#allocation2 + $0x68] sm:$0xff] %vm4902, %v5095
    %5142 = vst.msk [vmem:[#allocation2 + $0x70] sm:$0xff] %vm4902, %v5100
    %5143 = vst.msk [vmem:[#allocation2 + $0x78] sm:$0xff] %vm4902, %v5105
    %5144 = vst.msk [vmem:[#allocation2 + $0x80] sm:$0xff] %vm4902, %v5110
    %5145 = vst.msk [vmem:[#allocation2 + $0x88] sm:$0xff] %vm4902, %v5115
    %5146 = vst.msk [vmem:[#allocation2 + $0x90] sm:$0xff] %vm4902, %v5120
    %5147 = vst.msk [vmem:[#allocation2 + $0x98] sm:$0xff] %vm4902, %v5125
    %v5148 = vld [vmem:[#allocation2] sm:$0xf]
    %vm5149 = vcmask 257024
    %5150 = vst.msk [vmem:[#allocation3] sm:$0xf] %vm5149, %v5148
    %v5151 = vld [vmem:[#allocation2 + $0x4] sm:$0xf]
    %s5152 = scalar_lea.vmem [#allocation3], 4
    %5153 = vst.msk [vmem:[%s5152] sm:$0xf] %vm5149, %v5151
    %v5154 = vld [vmem:[#allocation2 + $0x8] sm:$0xf]
    %s5155 = scalar_lea.vmem [#allocation3], 8
    %5156 = vst.msk [vmem:[%s5155] sm:$0xf] %vm5149, %v5154
    %v5157 = vld [vmem:[#allocation2 + $0xc] sm:$0xf]
    %s5158 = scalar_lea.vmem [#allocation3], 12
    %5159 = vst.msk [vmem:[%s5158] sm:$0xf] %vm5149, %v5157
    %v5160 = vld [vmem:[#allocation2 + $0x10] sm:$0xf]
    %s5161 = scalar_lea.vmem [#allocation3], 16
    %5162 = vst.msk [vmem:[%s5161] sm:$0xf] %vm5149, %v5160
    %v5163 = vld [vmem:[#allocation2 + $0x14] sm:$0xf]
    %s5164 = scalar_lea.vmem [#allocation3], 20
    %5165 = vst.msk [vmem:[%s5164] sm:$0xf] %vm5149, %v5163
    %v5166 = vld [vmem:[#allocation2 + $0x18] sm:$0xf]
    %s5167 = scalar_lea.vmem [#allocation3], 24
    %5168 = vst.msk [vmem:[%s5167] sm:$0xf] %vm5149, %v5166
    %v5169 = vld [vmem:[#allocation2 + $0x1c] sm:$0xf]
    %s5170 = scalar_lea.vmem [#allocation3], 28
    %5171 = vst.msk [vmem:[%s5170] sm:$0xf] %vm5149, %v5169
    %v5172 = vld [vmem:[#allocation2 + $0x20] sm:$0xf]
    %5173 = vst.msk [vmem:[#allocation4] sm:$0xf] %vm5149, %v5172
    %v5174 = vld [vmem:[#allocation2 + $0x24] sm:$0xf]
    %s5175 = scalar_lea.vmem [#allocation4], 4
    %5176 = vst.msk [vmem:[%s5175] sm:$0xf] %vm5149, %v5174
    %v5177 = vld [vmem:[#allocation2 + $0x28] sm:$0xf]
    %s5178 = scalar_lea.vmem [#allocation4], 8
    %5179 = vst.msk [vmem:[%s5178] sm:$0xf] %vm5149, %v5177
    %v5180 = vld [vmem:[#allocation2 + $0x2c] sm:$0xf]
    %s5181 = scalar_lea.vmem [#allocation4], 12
    %5182 = vst.msk [vmem:[%s5181] sm:$0xf] %vm5149, %v5180
    %v5183 = vld [vmem:[#allocation2 + $0x30] sm:$0xf]
    %s5184 = scalar_lea.vmem [#allocation4], 16
    %5185 = vst.msk [vmem:[%s5184] sm:$0xf] %vm5149, %v5183
    %v5186 = vld [vmem:[#allocation2 + $0x34] sm:$0xf]
    %s5187 = scalar_lea.vmem [#allocation4], 20
    %5188 = vst.msk [vmem:[%s5187] sm:$0xf] %vm5149, %v5186
    %v5189 = vld [vmem:[#allocation2 + $0x38] sm:$0xf]
    %s5190 = scalar_lea.vmem [#allocation4], 24
    %5191 = vst.msk [vmem:[%s5190] sm:$0xf] %vm5149, %v5189
    %v5192 = vld [vmem:[#allocation2 + $0x3c] sm:$0xf]
    %s5193 = scalar_lea.vmem [#allocation4], 28
    %5194 = vst.msk [vmem:[%s5193] sm:$0xf] %vm5149, %v5192
    %v5195 = vld [vmem:[#allocation2 + $0x40] sm:$0xf]
    %s5196 = scalar_lea.vmem [#allocation4], 32
    %5197 = vst.msk [vmem:[%s5196] sm:$0xf] %vm5149, %v5195
    %v5198 = vld [vmem:[#allocation2 + $0x44] sm:$0xf]
    %s5199 = scalar_lea.vmem [#allocation4], 36
    %5200 = vst.msk [vmem:[%s5199] sm:$0xf] %vm5149, %v5198
    %v5201 = vld [vmem:[#allocation2 + $0x48] sm:$0xf]
    %s5202 = scalar_lea.vmem [#allocation4], 40
    %5203 = vst.msk [vmem:[%s5202] sm:$0xf] %vm5149, %v5201
    %v5204 = vld [vmem:[#allocation2 + $0x4c] sm:$0xf]
    %s5205 = scalar_lea.vmem [#allocation4], 44
    %5206 = vst.msk [vmem:[%s5205] sm:$0xf] %vm5149, %v5204
    %v5207 = vld [vmem:[#allocation2 + $0x50] sm:$0xf]
    %s5208 = scalar_lea.vmem [#allocation4], 48
    %5209 = vst.msk [vmem:[%s5208] sm:$0xf] %vm5149, %v5207
    %v5210 = vld [vmem:[#allocation2 + $0x54] sm:$0xf]
    %s5211 = scalar_lea.vmem [#allocation4], 52
    %5212 = vst.msk [vmem:[%s5211] sm:$0xf] %vm5149, %v5210
    %v5213 = vld [vmem:[#allocation2 + $0x58] sm:$0xf]
    %s5214 = scalar_lea.vmem [#allocation4], 56
    %5215 = vst.msk [vmem:[%s5214] sm:$0xf] %vm5149, %v5213
    %v5216 = vld [vmem:[#allocation2 + $0x5c] sm:$0xf]
    %s5217 = scalar_lea.vmem [#allocation4], 60
    %5218 = vst.msk [vmem:[%s5217] sm:$0xf] %vm5149, %v5216
    %v5219 = vld [vmem:[#allocation2 + $0x60] sm:$0xf]
    %s5220 = scalar_lea.vmem [#allocation4], 64
    %5221 = vst.msk [vmem:[%s5220] sm:$0xf] %vm5149, %v5219
    %v5222 = vld [vmem:[#allocation2 + $0x64] sm:$0xf]
    %s5223 = scalar_lea.vmem [#allocation4], 68
    %5224 = vst.msk [vmem:[%s5223] sm:$0xf] %vm5149, %v5222
    %v5225 = vld [vmem:[#allocation2 + $0x68] sm:$0xf]
    %s5226 = scalar_lea.vmem [#allocation4], 72
    %5227 = vst.msk [vmem:[%s5226] sm:$0xf] %vm5149, %v5225
    %v5228 = vld [vmem:[#allocation2 + $0x6c] sm:$0xf]
    %s5229 = scalar_lea.vmem [#allocation4], 76
    %5230 = vst.msk [vmem:[%s5229] sm:$0xf] %vm5149, %v5228
    %v5231 = vld [vmem:[#allocation2 + $0x70] sm:$0xf]
    %s5232 = scalar_lea.vmem [#allocation4], 80
    %5233 = vst.msk [vmem:[%s5232] sm:$0xf] %vm5149, %v5231
    %v5234 = vld [vmem:[#allocation2 + $0x74] sm:$0xf]
    %s5235 = scalar_lea.vmem [#allocation4], 84
    %5236 = vst.msk [vmem:[%s5235] sm:$0xf] %vm5149, %v5234
    %v5237 = vld [vmem:[#allocation2 + $0x78] sm:$0xf]
    %s5238 = scalar_lea.vmem [#allocation4], 88
    %5239 = vst.msk [vmem:[%s5238] sm:$0xf] %vm5149, %v5237
    %v5240 = vld [vmem:[#allocation2 + $0x7c] sm:$0xf]
    %s5241 = scalar_lea.vmem [#allocation4], 92
    %5242 = vst.msk [vmem:[%s5241] sm:$0xf] %vm5149, %v5240
    %v5243 = vld [vmem:[#allocation2 + $0x80] sm:$0xf]
    %s5244 = scalar_lea.vmem [#allocation4], 96
    %5245 = vst.msk [vmem:[%s5244] sm:$0xf] %vm5149, %v5243
    %v5246 = vld [vmem:[#allocation2 + $0x84] sm:$0xf]
    %s5247 = scalar_lea.vmem [#allocation4], 100
    %5248 = vst.msk [vmem:[%s5247] sm:$0xf] %vm5149, %v5246
    %v5249 = vld [vmem:[#allocation2 + $0x88] sm:$0xf]
    %s5250 = scalar_lea.vmem [#allocation4], 104
    %5251 = vst.msk [vmem:[%s5250] sm:$0xf] %vm5149, %v5249
    %v5252 = vld [vmem:[#allocation2 + $0x8c] sm:$0xf]
    %s5253 = scalar_lea.vmem [#allocation4], 108
    %5254 = vst.msk [vmem:[%s5253] sm:$0xf] %vm5149, %v5252
    %v5255 = vld [vmem:[#allocation2 + $0x90] sm:$0xf]
    %s5256 = scalar_lea.vmem [#allocation4], 112
    %5257 = vst.msk [vmem:[%s5256] sm:$0xf] %vm5149, %v5255
    %v5258 = vld [vmem:[#allocation2 + $0x94] sm:$0xf]
    %s5259 = scalar_lea.vmem [#allocation4], 116
    %5260 = vst.msk [vmem:[%s5259] sm:$0xf] %vm5149, %v5258
    %v5261 = vld [vmem:[#allocation2 + $0x98] sm:$0xf]
    %s5262 = scalar_lea.vmem [#allocation4], 120
    %5263 = vst.msk [vmem:[%s5262] sm:$0xf] %vm5149, %v5261
    %v5264 = vld [vmem:[#allocation2 + $0x9c] sm:$0xf]
    %s5265 = scalar_lea.vmem [#allocation4], 124
    %5266 = vst.msk [vmem:[%s5265] sm:$0xf] %vm5149, %v5264
    %v5267 = vld [vmem:[#allocation3] sm:$0xf]
    %v5268 = vld [vmem:[#allocation3 + $0x4] sm:$0xf]
    %v5269 = vld [vmem:[#allocation3 + $0x8] sm:$0xf]
    %v5270 = vld [vmem:[#allocation3 + $0xc] sm:$0xf]
    %v5271 = vld [vmem:[#allocation3 + $0x10] sm:$0xf]
    %v5272 = vld [vmem:[#allocation3 + $0x14] sm:$0xf]
    %v5273 = vld [vmem:[#allocation3 + $0x18] sm:$0xf]
    %v5274 = vld [vmem:[#allocation3 + $0x1c] sm:$0xf]
    %v5275 = vld [vmem:[#allocation4] sm:$0xf]
    %v5276 = vld [vmem:[#allocation4 + $0x4] sm:$0xf]
    %v5277 = vld [vmem:[#allocation4 + $0x8] sm:$0xf]
    %v5278 = vld [vmem:[#allocation4 + $0xc] sm:$0xf]
    %v5279 = vld [vmem:[#allocation4 + $0x10] sm:$0xf]
    %v5280 = vld [vmem:[#allocation4 + $0x14] sm:$0xf]
    %v5281 = vld [vmem:[#allocation4 + $0x18] sm:$0xf]
    %v5282 = vld [vmem:[#allocation4 + $0x1c] sm:$0xf]
    %v5283 = vld [vmem:[#allocation4 + $0x20] sm:$0xf]
    %v5284 = vld [vmem:[#allocation4 + $0x24] sm:$0xf]
    %v5285 = vld [vmem:[#allocation4 + $0x28] sm:$0xf]
    %v5286 = vld [vmem:[#allocation4 + $0x2c] sm:$0xf]
    %v5287 = vld [vmem:[#allocation4 + $0x30] sm:$0xf]
    %v5288 = vld [vmem:[#allocation4 + $0x34] sm:$0xf]
    %v5289 = vld [vmem:[#allocation4 + $0x38] sm:$0xf]
    %v5290 = vld [vmem:[#allocation4 + $0x3c] sm:$0xf]
    %v5291 = vld [vmem:[#allocation4 + $0x40] sm:$0xf]
    %v5292 = vld [vmem:[#allocation4 + $0x44] sm:$0xf]
    %v5293 = vld [vmem:[#allocation4 + $0x48] sm:$0xf]
    %v5294 = vld [vmem:[#allocation4 + $0x4c] sm:$0xf]
    %v5295 = vld [vmem:[#allocation4 + $0x50] sm:$0xf]
    %v5296 = vld [vmem:[#allocation4 + $0x54] sm:$0xf]
    %v5297 = vld [vmem:[#allocation4 + $0x58] sm:$0xf]
    %v5298 = vld [vmem:[#allocation4 + $0x5c] sm:$0xf]
    %v5299 = vld [vmem:[#allocation4 + $0x60] sm:$0xf]
    %v5300 = vld [vmem:[#allocation4 + $0x64] sm:$0xf]
    %v5301 = vld [vmem:[#allocation4 + $0x68] sm:$0xf]
    %v5302 = vld [vmem:[#allocation4 + $0x6c] sm:$0xf]
    %v5303 = vld [vmem:[#allocation4 + $0x70] sm:$0xf]
    %v5304 = vld [vmem:[#allocation4 + $0x74] sm:$0xf]
    %v5305 = vld [vmem:[#allocation4 + $0x78] sm:$0xf]
    %v5306 = vld [vmem:[#allocation4 + $0x7c] sm:$0xf]
    %v5307 = vld [vmem:[%s4] sm:$0xf]
    %v5308 = vld [vmem:[%s4 + $0x4] sm:$0xf]
    %v5309 = vld [vmem:[%s4 + $0x8] sm:$0xf]
    %v5310 = vld [vmem:[%s4 + $0xc] sm:$0xf]
    %v5311 = vld [vmem:[%s4 + $0x10] sm:$0xf]
    %v5312 = vld [vmem:[%s4 + $0x14] sm:$0xf]
    %v5313 = vld [vmem:[%s4 + $0x18] sm:$0xf]
    %v5314 = vld [vmem:[%s4 + $0x1c] sm:$0xf]
    %s5315 = scalar_lea.vmem %s4, 32
    %v5316 = vld [vmem:[%s5315] sm:$0xf]
    %v5317 = vld [vmem:[%s5315 + $0x4] sm:$0xf]
    %v5318 = vld [vmem:[%s5315 + $0x8] sm:$0xf]
    %v5319 = vld [vmem:[%s5315 + $0xc] sm:$0xf]
    %v5320 = vld [vmem:[%s5315 + $0x10] sm:$0xf]
    %v5321 = vld [vmem:[%s5315 + $0x14] sm:$0xf]
    %v5322 = vld [vmem:[%s5315 + $0x18] sm:$0xf]
    %v5323 = vld [vmem:[%s5315 + $0x1c] sm:$0xf]
    %s5324 = scalar_lea.vmem %s4, 64
    %v5325 = vld [vmem:[%s5324] sm:$0xf]
    %v5326 = vld [vmem:[%s5324 + $0x4] sm:$0xf]
    %v5327 = vld [vmem:[%s5324 + $0x8] sm:$0xf]
    %v5328 = vld [vmem:[%s5324 + $0xc] sm:$0xf]
    %v5329 = vld [vmem:[%s5324 + $0x10] sm:$0xf]
    %v5330 = vld [vmem:[%s5324 + $0x14] sm:$0xf]
    %v5331 = vld [vmem:[%s5324 + $0x18] sm:$0xf]
    %v5332 = vld [vmem:[%s5324 + $0x1c] sm:$0xf]
    %s5333 = scalar_lea.vmem %s4, 96
    %v5334 = vld [vmem:[%s5333] sm:$0xf]
    %v5335 = vld [vmem:[%s5333 + $0x4] sm:$0xf]
    %v5336 = vld [vmem:[%s5333 + $0x8] sm:$0xf]
    %v5337 = vld [vmem:[%s5333 + $0xc] sm:$0xf]
    %v5338 = vld [vmem:[%s5333 + $0x10] sm:$0xf]
    %v5339 = vld [vmem:[%s5333 + $0x14] sm:$0xf]
    %v5340 = vld [vmem:[%s5333 + $0x18] sm:$0xf]
    %v5341 = vld [vmem:[%s5333 + $0x1c] sm:$0xf]
    %vm5342 = vcmp.ne.f32.partialorder %v5325, 0.0
    %vm5343 = vcmp.ne.f32.partialorder %v5326, 0.0
    %vm5344 = vcmp.ne.f32.partialorder %v5327, 0.0
    %vm5345 = vcmp.ne.f32.partialorder %v5328, 0.0
    %vm5346 = vcmp.ne.f32.partialorder %v5329, 0.0
    %vm5347 = vcmp.ne.f32.partialorder %v5330, 0.0
    %vm5348 = vcmp.ne.f32.partialorder %v5331, 0.0
    %vm5349 = vcmp.ne.f32.partialorder %v5332, 0.0
    %vm5350 = vcmp.ne.f32.partialorder %v5334, 0.0
    %vm5351 = vcmp.ne.f32.partialorder %v5335, 0.0
    %vm5352 = vcmp.ne.f32.partialorder %v5336, 0.0
    %vm5353 = vcmp.ne.f32.partialorder %v5337, 0.0
    %vm5354 = vcmp.ne.f32.partialorder %v5338, 0.0
    %vm5355 = vcmp.ne.f32.partialorder %v5339, 0.0
    %vm5356 = vcmp.ne.f32.partialorder %v5340, 0.0
    %vm5357 = vcmp.ne.f32.partialorder %v5341, 0.0
    %v5358 = vsel %vm5350, 1, 0
    %v5359 = vsel %vm5351, 1, 0
    %v5360 = vsel %vm5352, 1, 0
    %v5361 = vsel %vm5353, 1, 0
    %v5362 = vsel %vm5354, 1, 0
    %v5363 = vsel %vm5355, 1, 0
    %v5364 = vsel %vm5356, 1, 0
    %v5365 = vsel %vm5357, 1, 0
    %v5366 = vcvt.s32.f32 %v5358
    %v5367 = vcvt.s32.f32 %v5359
    %v5368 = vcvt.s32.f32 %v5360
    %v5369 = vcvt.s32.f32 %v5361
    %v5370 = vcvt.s32.f32 %v5362
    %v5371 = vcvt.s32.f32 %v5363
    %v5372 = vcvt.s32.f32 %v5364
    %v5373 = vcvt.s32.f32 %v5365
    %v5375 = vcombine.high %v221, %v221
    %v5377 = vunpack.c.l.s4 1966171168
    %v5378 = vunpack.c.0.s8 %v5377
    %v5379 = vlaneseq
    %v5380 = vshrl.u32 %v5379, 7
    %v5381 = vsub.s32 %v5378, %v5380
    %v5382 = vrot.slane %v221, %v5381
    %v5384 = vunpack.c.l.s4 1966171168
    %v5385 = vunpack.c.0.s8 %v5384
    %v5386 = vlaneseq
    %v5387 = vshrl.u32 %v5386, 7
    %v5388 = vsub.s32 %v5385, %v5387
    %v5389 = vrot.slane %v5375, %v5388
    %v5390 = vcombine.high %v5382, %v5382
    %v5391 = vcombine.high %v5389, %v5389
    %v5393 = vunpack.c.l.s4 1966171168
    %v5394 = vunpack.c.0.s8 %v5393
    %v5395 = vlaneseq
    %v5396 = vshrl.u32 %v5395, 7
    %v5397 = vsub.s32 %v5394, %v5396
    %v5398 = vrot.slane %v5382, %v5397
    %v5400 = vunpack.c.l.s4 1966171168
    %v5401 = vunpack.c.0.s8 %v5400
    %v5402 = vlaneseq
    %v5403 = vshrl.u32 %v5402, 7
    %v5404 = vsub.s32 %v5401, %v5403
    %v5405 = vrot.slane %v5389, %v5404
    %v5407 = vunpack.c.l.s4 1966171168
    %v5408 = vunpack.c.0.s8 %v5407
    %v5409 = vlaneseq
    %v5410 = vshrl.u32 %v5409, 7
    %v5411 = vsub.s32 %v5408, %v5410
    %v5412 = vrot.slane %v5390, %v5411
    %v5414 = vunpack.c.l.s4 1966171168
    %v5415 = vunpack.c.0.s8 %v5414
    %v5416 = vlaneseq
    %v5417 = vshrl.u32 %v5416, 7
    %v5418 = vsub.s32 %v5415, %v5417
    %v5419 = vrot.slane %v5391, %v5418
    %v5420 = vcombine.high %v5398, %v5398
    %v5421 = vcombine.high %v5405, %v5405
    %v5422 = vcombine.high %v5412, %v5412
    %v5423 = vcombine.high %v5419, %v5419
    %v5432 = vlaneseq
    %v5433 = vshrl.u32 %v5432, 7
    %v5434 = vsub.s32 0, %v5433
    %v5435 = vrot.slane %v5398, %v5434
    %v5436 = vlaneseq
    %v5437 = vshrl.u32 %v5436, 7
    %v5438 = vsub.s32 0, %v5437
    %v5439 = vrot.slane %v5412, %v5438
    %v5440 = vlaneseq
    %v5441 = vshrl.u32 %v5440, 7
    %v5442 = vsub.s32 0, %v5441
    %v5443 = vrot.slane %v5420, %v5442
    %v5444 = vlaneseq
    %v5445 = vshrl.u32 %v5444, 7
    %v5446 = vsub.s32 0, %v5445
    %v5447 = vrot.slane %v5422, %v5446
    %v5448 = vlaneseq
    %v5449 = vshrl.u32 %v5448, 7
    %v5450 = vsub.s32 0, %v5449
    %v5451 = vrot.slane %v5405, %v5450
    %v5452 = vlaneseq
    %v5453 = vshrl.u32 %v5452, 7
    %v5454 = vsub.s32 0, %v5453
    %v5455 = vrot.slane %v5419, %v5454
    %v5456 = vlaneseq
    %v5457 = vshrl.u32 %v5456, 7
    %v5458 = vsub.s32 0, %v5457
    %v5459 = vrot.slane %v5421, %v5458
    %v5460 = vlaneseq
    %v5461 = vshrl.u32 %v5460, 7
    %v5462 = vsub.s32 0, %v5461
    %v5463 = vrot.slane %v5423, %v5462
    %v5472 = vmul.f32 %v5435, %v5275
    %v5473 = vmul.f32 %v5435, %v5276
    %v5474 = vmul.f32 %v5435, %v5277
    %v5475 = vmul.f32 %v5435, %v5278
    %v5476 = vmul.f32 %v5439, %v5279
    %v5477 = vmul.f32 %v5439, %v5280
    %v5478 = vmul.f32 %v5439, %v5281
    %v5479 = vmul.f32 %v5439, %v5282
    %v5480 = vmul.f32 %v5443, %v5283
    %v5481 = vmul.f32 %v5443, %v5284
    %v5482 = vmul.f32 %v5443, %v5285
    %v5483 = vmul.f32 %v5443, %v5286
    %v5484 = vmul.f32 %v5447, %v5287
    %v5485 = vmul.f32 %v5447, %v5288
    %v5486 = vmul.f32 %v5447, %v5289
    %v5487 = vmul.f32 %v5447, %v5290
    %v5488 = vmul.f32 %v5451, %v5291
    %v5489 = vmul.f32 %v5451, %v5292
    %v5490 = vmul.f32 %v5451, %v5293
    %v5491 = vmul.f32 %v5451, %v5294
    %v5492 = vmul.f32 %v5455, %v5295
    %v5493 = vmul.f32 %v5455, %v5296
    %v5494 = vmul.f32 %v5455, %v5297
    %v5495 = vmul.f32 %v5455, %v5298
    %v5496 = vmul.f32 %v5459, %v5299
    %v5497 = vmul.f32 %v5459, %v5300
    %v5498 = vmul.f32 %v5459, %v5301
    %v5499 = vmul.f32 %v5459, %v5302
    %v5500 = vmul.f32 %v5463, %v5303
    %v5501 = vmul.f32 %v5463, %v5304
    %v5502 = vmul.f32 %v5463, %v5305
    %v5503 = vmul.f32 %v5463, %v5306
    %v5504 = vsel %vm5149, %v5472, 0.0
    %5505 = vadd.xlane.f32.xlu0 %v5504
    %v5506 = vpop.xlane.xlu0 %5505
    %v5507 = vsel %vm5149, %v5473, 0.0
    %5508 = vadd.xlane.f32.xlu0 %v5507
    %v5509 = vpop.xlane.xlu0 %5508
    %v5510 = vsel %vm5149, %v5474, 0.0
    %5511 = vadd.xlane.f32.xlu0 %v5510
    %v5512 = vpop.xlane.xlu0 %5511
    %v5513 = vsel %vm5149, %v5475, 0.0
    %5514 = vadd.xlane.f32.xlu0 %v5513
    %v5515 = vpop.xlane.xlu0 %5514
    %v5516 = vsel %vm5149, %v5476, 0.0
    %5517 = vadd.xlane.f32.xlu0 %v5516
    %v5518 = vpop.xlane.xlu0 %5517
    %v5519 = vsel %vm5149, %v5477, 0.0
    %5520 = vadd.xlane.f32.xlu0 %v5519
    %v5521 = vpop.xlane.xlu0 %5520
    %v5522 = vsel %vm5149, %v5478, 0.0
    %5523 = vadd.xlane.f32.xlu0 %v5522
    %v5524 = vpop.xlane.xlu0 %5523
    %v5525 = vsel %vm5149, %v5479, 0.0
    %5526 = vadd.xlane.f32.xlu0 %v5525
    %v5527 = vpop.xlane.xlu0 %5526
    %v5528 = vsel %vm5149, %v5480, 0.0
    %5529 = vadd.xlane.f32.xlu0 %v5528
    %v5530 = vpop.xlane.xlu0 %5529
    %v5531 = vsel %vm5149, %v5481, 0.0
    %5532 = vadd.xlane.f32.xlu0 %v5531
    %v5533 = vpop.xlane.xlu0 %5532
    %v5534 = vsel %vm5149, %v5482, 0.0
    %5535 = vadd.xlane.f32.xlu0 %v5534
    %v5536 = vpop.xlane.xlu0 %5535
    %v5537 = vsel %vm5149, %v5483, 0.0
    %5538 = vadd.xlane.f32.xlu0 %v5537
    %v5539 = vpop.xlane.xlu0 %5538
    %v5540 = vsel %vm5149, %v5484, 0.0
    %5541 = vadd.xlane.f32.xlu0 %v5540
    %v5542 = vpop.xlane.xlu0 %5541
    %v5543 = vsel %vm5149, %v5485, 0.0
    %5544 = vadd.xlane.f32.xlu0 %v5543
    %v5545 = vpop.xlane.xlu0 %5544
    %v5546 = vsel %vm5149, %v5486, 0.0
    %5547 = vadd.xlane.f32.xlu0 %v5546
    %v5548 = vpop.xlane.xlu0 %5547
    %v5549 = vsel %vm5149, %v5487, 0.0
    %5550 = vadd.xlane.f32.xlu0 %v5549
    %v5551 = vpop.xlane.xlu0 %5550
    %v5552 = vsel %vm5149, %v5488, 0.0
    %5553 = vadd.xlane.f32.xlu0 %v5552
    %v5554 = vpop.xlane.xlu0 %5553
    %v5555 = vsel %vm5149, %v5489, 0.0
    %5556 = vadd.xlane.f32.xlu0 %v5555
    %v5557 = vpop.xlane.xlu0 %5556
    %v5558 = vsel %vm5149, %v5490, 0.0
    %5559 = vadd.xlane.f32.xlu0 %v5558
    %v5560 = vpop.xlane.xlu0 %5559
    %v5561 = vsel %vm5149, %v5491, 0.0
    %5562 = vadd.xlane.f32.xlu0 %v5561
    %v5563 = vpop.xlane.xlu0 %5562
    %v5564 = vsel %vm5149, %v5492, 0.0
    %5565 = vadd.xlane.f32.xlu0 %v5564
    %v5566 = vpop.xlane.xlu0 %5565
    %v5567 = vsel %vm5149, %v5493, 0.0
    %5568 = vadd.xlane.f32.xlu0 %v5567
    %v5569 = vpop.xlane.xlu0 %5568
    %v5570 = vsel %vm5149, %v5494, 0.0
    %5571 = vadd.xlane.f32.xlu0 %v5570
    %v5572 = vpop.xlane.xlu0 %5571
    %v5573 = vsel %vm5149, %v5495, 0.0
    %5574 = vadd.xlane.f32.xlu0 %v5573
    %v5575 = vpop.xlane.xlu0 %5574
    %v5576 = vsel %vm5149, %v5496, 0.0
    %5577 = vadd.xlane.f32.xlu0 %v5576
    %v5578 = vpop.xlane.xlu0 %5577
    %v5579 = vsel %vm5149, %v5497, 0.0
    %5580 = vadd.xlane.f32.xlu0 %v5579
    %v5581 = vpop.xlane.xlu0 %5580
    %v5582 = vsel %vm5149, %v5498, 0.0
    %5583 = vadd.xlane.f32.xlu0 %v5582
    %v5584 = vpop.xlane.xlu0 %5583
    %v5585 = vsel %vm5149, %v5499, 0.0
    %5586 = vadd.xlane.f32.xlu0 %v5585
    %v5587 = vpop.xlane.xlu0 %5586
    %v5588 = vsel %vm5149, %v5500, 0.0
    %5589 = vadd.xlane.f32.xlu0 %v5588
    %v5590 = vpop.xlane.xlu0 %5589
    %v5591 = vsel %vm5149, %v5501, 0.0
    %5592 = vadd.xlane.f32.xlu0 %v5591
    %v5593 = vpop.xlane.xlu0 %5592
    %v5594 = vsel %vm5149, %v5502, 0.0
    %5595 = vadd.xlane.f32.xlu0 %v5594
    %v5596 = vpop.xlane.xlu0 %5595
    %v5597 = vsel %vm5149, %v5503, 0.0
    %5598 = vadd.xlane.f32.xlu0 %v5597
    %v5599 = vpop.xlane.xlu0 %5598
    %v5600 = vmul.f32 %v5398, %v5398
    %v5601 = vmul.f32 %v5412, %v5412
    %v5602 = vmul.f32 %v5420, %v5420
    %v5603 = vmul.f32 %v5422, %v5422
    %v5604 = vmul.f32 %v5405, %v5405
    %v5605 = vmul.f32 %v5419, %v5419
    %v5606 = vmul.f32 %v5421, %v5421
    %v5607 = vmul.f32 %v5423, %v5423
    %vm5608 = vcmask 253952
    %v5609 = vsel %vm5608, %v5600, 0.0
    %5610 = vadd.xlane.f32.xlu0 %v5609
    %v5611 = vpop.xlane.xlu0 %5610
    %v5612 = vsel %vm5608, %v5601, 0.0
    %5613 = vadd.xlane.f32.xlu0 %v5612
    %v5614 = vpop.xlane.xlu0 %5613
    %v5615 = vsel %vm5608, %v5602, 0.0
    %5616 = vadd.xlane.f32.xlu0 %v5615
    %v5617 = vpop.xlane.xlu0 %5616
    %v5618 = vsel %vm5608, %v5603, 0.0
    %5619 = vadd.xlane.f32.xlu0 %v5618
    %v5620 = vpop.xlane.xlu0 %5619
    %v5621 = vsel %vm5608, %v5604, 0.0
    %5622 = vadd.xlane.f32.xlu0 %v5621
    %v5623 = vpop.xlane.xlu0 %5622
    %v5624 = vsel %vm5608, %v5605, 0.0
    %5625 = vadd.xlane.f32.xlu0 %v5624
    %v5626 = vpop.xlane.xlu0 %5625
    %v5627 = vsel %vm5608, %v5606, 0.0
    %5628 = vadd.xlane.f32.xlu0 %v5627
    %v5629 = vpop.xlane.xlu0 %5628
    %v5630 = vsel %vm5608, %v5607, 0.0
    %5631 = vadd.xlane.f32.xlu0 %v5630
    %v5632 = vpop.xlane.xlu0 %5631
    %v5633 = vrsqrt.pop %v5611
    %v5634 = vmul.f32 %v5611, %v5633
    %vm5635 = vcmp.eq.f32.partialorder %v5611, inf
    %v5636 = vsel %vm5635, %v5611, %v5634
    %vm5637 = vcmp.eq.f32.partialorder %v5611, 0.0
    %v5638 = vand.u32 %v5611, 2147483648
    %v5639 = vsel %vm5637, %v5638, %v5636
    %v5640 = vrsqrt.pop %v5614
    %v5641 = vmul.f32 %v5614, %v5640
    %vm5642 = vcmp.eq.f32.partialorder %v5614, inf
    %v5643 = vsel %vm5642, %v5614, %v5641
    %vm5644 = vcmp.eq.f32.partialorder %v5614, 0.0
    %v5645 = vand.u32 %v5614, 2147483648
    %v5646 = vsel %vm5644, %v5645, %v5643
    %v5647 = vrsqrt.pop %v5617
    %v5648 = vmul.f32 %v5617, %v5647
    %vm5649 = vcmp.eq.f32.partialorder %v5617, inf
    %v5650 = vsel %vm5649, %v5617, %v5648
    %vm5651 = vcmp.eq.f32.partialorder %v5617, 0.0
    %v5652 = vand.u32 %v5617, 2147483648
    %v5653 = vsel %vm5651, %v5652, %v5650
    %v5654 = vrsqrt.pop %v5620
    %v5655 = vmul.f32 %v5620, %v5654
    %vm5656 = vcmp.eq.f32.partialorder %v5620, inf
    %v5657 = vsel %vm5656, %v5620, %v5655
    %vm5658 = vcmp.eq.f32.partialorder %v5620, 0.0
    %v5659 = vand.u32 %v5620, 2147483648
    %v5660 = vsel %vm5658, %v5659, %v5657
    %v5661 = vrsqrt.pop %v5623
    %v5662 = vmul.f32 %v5623, %v5661
    %vm5663 = vcmp.eq.f32.partialorder %v5623, inf
    %v5664 = vsel %vm5663, %v5623, %v5662
    %vm5665 = vcmp.eq.f32.partialorder %v5623, 0.0
    %v5666 = vand.u32 %v5623, 2147483648
    %v5667 = vsel %vm5665, %v5666, %v5664
    %v5668 = vrsqrt.pop %v5626
    %v5669 = vmul.f32 %v5626, %v5668
    %vm5670 = vcmp.eq.f32.partialorder %v5626, inf
    %v5671 = vsel %vm5670, %v5626, %v5669
    %vm5672 = vcmp.eq.f32.partialorder %v5626, 0.0
    %v5673 = vand.u32 %v5626, 2147483648
    %v5674 = vsel %vm5672, %v5673, %v5671
    %v5675 = vrsqrt.pop %v5629
    %v5676 = vmul.f32 %v5629, %v5675
    %vm5677 = vcmp.eq.f32.partialorder %v5629, inf
    %v5678 = vsel %vm5677, %v5629, %v5676
    %vm5679 = vcmp.eq.f32.partialorder %v5629, 0.0
    %v5680 = vand.u32 %v5629, 2147483648
    %v5681 = vsel %vm5679, %v5680, %v5678
    %v5682 = vrsqrt.pop %v5632
    %v5683 = vmul.f32 %v5632, %v5682
    %vm5684 = vcmp.eq.f32.partialorder %v5632, inf
    %v5685 = vsel %vm5684, %v5632, %v5683
    %vm5686 = vcmp.eq.f32.partialorder %v5632, 0.0
    %v5687 = vand.u32 %v5632, 2147483648
    %v5688 = vsel %vm5686, %v5687, %v5685
    %v5689 = vmul.f32 %v5275, %v5275
    %v5690 = vmul.f32 %v5276, %v5276
    %v5691 = vmul.f32 %v5277, %v5277
    %v5692 = vmul.f32 %v5278, %v5278
    %v5693 = vmul.f32 %v5279, %v5279
    %v5694 = vmul.f32 %v5280, %v5280
    %v5695 = vmul.f32 %v5281, %v5281
    %v5696 = vmul.f32 %v5282, %v5282
    %v5697 = vmul.f32 %v5283, %v5283
    %v5698 = vmul.f32 %v5284, %v5284
    %v5699 = vmul.f32 %v5285, %v5285
    %v5700 = vmul.f32 %v5286, %v5286
    %v5701 = vmul.f32 %v5287, %v5287
    %v5702 = vmul.f32 %v5288, %v5288
    %v5703 = vmul.f32 %v5289, %v5289
    %v5704 = vmul.f32 %v5290, %v5290
    %v5705 = vmul.f32 %v5291, %v5291
    %v5706 = vmul.f32 %v5292, %v5292
    %v5707 = vmul.f32 %v5293, %v5293
    %v5708 = vmul.f32 %v5294, %v5294
    %v5709 = vmul.f32 %v5295, %v5295
    %v5710 = vmul.f32 %v5296, %v5296
    %v5711 = vmul.f32 %v5297, %v5297
    %v5712 = vmul.f32 %v5298, %v5298
    %v5713 = vmul.f32 %v5299, %v5299
    %v5714 = vmul.f32 %v5300, %v5300
    %v5715 = vmul.f32 %v5301, %v5301
    %v5716 = vmul.f32 %v5302, %v5302
    %v5717 = vmul.f32 %v5303, %v5303
    %v5718 = vmul.f32 %v5304, %v5304
    %v5719 = vmul.f32 %v5305, %v5305
    %v5720 = vmul.f32 %v5306, %v5306
    %v5721 = vsel %vm5149, %v5689, 0.0
    %5722 = vadd.xlane.f32.xlu0 %v5721
    %v5723 = vpop.xlane.xlu0 %5722
    %v5724 = vsel %vm5149, %v5690, 0.0
    %5725 = vadd.xlane.f32.xlu0 %v5724
    %v5726 = vpop.xlane.xlu0 %5725
    %v5727 = vsel %vm5149, %v5691, 0.0
    %5728 = vadd.xlane.f32.xlu0 %v5727
    %v5729 = vpop.xlane.xlu0 %5728
    %v5730 = vsel %vm5149, %v5692, 0.0
    %5731 = vadd.xlane.f32.xlu0 %v5730
    %v5732 = vpop.xlane.xlu0 %5731
    %v5733 = vsel %vm5149, %v5693, 0.0
    %5734 = vadd.xlane.f32.xlu0 %v5733
    %v5735 = vpop.xlane.xlu0 %5734
    %v5736 = vsel %vm5149, %v5694, 0.0
    %5737 = vadd.xlane.f32.xlu0 %v5736
    %v5738 = vpop.xlane.xlu0 %5737
    %v5739 = vsel %vm5149, %v5695, 0.0
    %5740 = vadd.xlane.f32.xlu0 %v5739
    %v5741 = vpop.xlane.xlu0 %5740
    %v5742 = vsel %vm5149, %v5696, 0.0
    %5743 = vadd.xlane.f32.xlu0 %v5742
    %v5744 = vpop.xlane.xlu0 %5743
    %v5745 = vsel %vm5149, %v5697, 0.0
    %5746 = vadd.xlane.f32.xlu0 %v5745
    %v5747 = vpop.xlane.xlu0 %5746
    %v5748 = vsel %vm5149, %v5698, 0.0
    %5749 = vadd.xlane.f32.xlu0 %v5748
    %v5750 = vpop.xlane.xlu0 %5749
    %v5751 = vsel %vm5149, %v5699, 0.0
    %5752 = vadd.xlane.f32.xlu0 %v5751
    %v5753 = vpop.xlane.xlu0 %5752
    %v5754 = vsel %vm5149, %v5700, 0.0
    %5755 = vadd.xlane.f32.xlu0 %v5754
    %v5756 = vpop.xlane.xlu0 %5755
    %v5757 = vsel %vm5149, %v5701, 0.0
    %5758 = vadd.xlane.f32.xlu0 %v5757
    %v5759 = vpop.xlane.xlu0 %5758
    %v5760 = vsel %vm5149, %v5702, 0.0
    %5761 = vadd.xlane.f32.xlu0 %v5760
    %v5762 = vpop.xlane.xlu0 %5761
    %v5763 = vsel %vm5149, %v5703, 0.0
    %5764 = vadd.xlane.f32.xlu0 %v5763
    %v5765 = vpop.xlane.xlu0 %5764
    %v5766 = vsel %vm5149, %v5704, 0.0
    %5767 = vadd.xlane.f32.xlu0 %v5766
    %v5768 = vpop.xlane.xlu0 %5767
    %v5769 = vsel %vm5149, %v5705, 0.0
    %5770 = vadd.xlane.f32.xlu0 %v5769
    %v5771 = vpop.xlane.xlu0 %5770
    %v5772 = vsel %vm5149, %v5706, 0.0
    %5773 = vadd.xlane.f32.xlu0 %v5772
    %v5774 = vpop.xlane.xlu0 %5773
    %v5775 = vsel %vm5149, %v5707, 0.0
    %5776 = vadd.xlane.f32.xlu0 %v5775
    %v5777 = vpop.xlane.xlu0 %5776
    %v5778 = vsel %vm5149, %v5708, 0.0
    %5779 = vadd.xlane.f32.xlu0 %v5778
    %v5780 = vpop.xlane.xlu0 %5779
    %v5781 = vsel %vm5149, %v5709, 0.0
    %5782 = vadd.xlane.f32.xlu0 %v5781
    %v5783 = vpop.xlane.xlu0 %5782
    %v5784 = vsel %vm5149, %v5710, 0.0
    %5785 = vadd.xlane.f32.xlu0 %v5784
    %v5786 = vpop.xlane.xlu0 %5785
    %v5787 = vsel %vm5149, %v5711, 0.0
    %5788 = vadd.xlane.f32.xlu0 %v5787
    %v5789 = vpop.xlane.xlu0 %5788
    %v5790 = vsel %vm5149, %v5712, 0.0
    %5791 = vadd.xlane.f32.xlu0 %v5790
    %v5792 = vpop.xlane.xlu0 %5791
    %v5793 = vsel %vm5149, %v5713, 0.0
    %5794 = vadd.xlane.f32.xlu0 %v5793
    %v5795 = vpop.xlane.xlu0 %5794
    %v5796 = vsel %vm5149, %v5714, 0.0
    %5797 = vadd.xlane.f32.xlu0 %v5796
    %v5798 = vpop.xlane.xlu0 %5797
    %v5799 = vsel %vm5149, %v5715, 0.0
    %5800 = vadd.xlane.f32.xlu0 %v5799
    %v5801 = vpop.xlane.xlu0 %5800
    %v5802 = vsel %vm5149, %v5716, 0.0
    %5803 = vadd.xlane.f32.xlu0 %v5802
    %v5804 = vpop.xlane.xlu0 %5803
    %v5805 = vsel %vm5149, %v5717, 0.0
    %5806 = vadd.xlane.f32.xlu0 %v5805
    %v5807 = vpop.xlane.xlu0 %5806
    %v5808 = vsel %vm5149, %v5718, 0.0
    %5809 = vadd.xlane.f32.xlu0 %v5808
    %v5810 = vpop.xlane.xlu0 %5809
    %v5811 = vsel %vm5149, %v5719, 0.0
    %5812 = vadd.xlane.f32.xlu0 %v5811
    %v5813 = vpop.xlane.xlu0 %5812
    %v5814 = vsel %vm5149, %v5720, 0.0
    %5815 = vadd.xlane.f32.xlu0 %v5814
    %v5816 = vpop.xlane.xlu0 %5815
    %v5817 = vrsqrt.pop %v5723
    %v5818 = vmul.f32 %v5723, %v5817
    %vm5819 = vcmp.eq.f32.partialorder %v5723, inf
    %v5820 = vsel %vm5819, %v5723, %v5818
    %vm5821 = vcmp.eq.f32.partialorder %v5723, 0.0
    %v5822 = vand.u32 %v5723, 2147483648
    %v5823 = vsel %vm5821, %v5822, %v5820
    %v5824 = vrsqrt.pop %v5726
    %v5825 = vmul.f32 %v5726, %v5824
    %vm5826 = vcmp.eq.f32.partialorder %v5726, inf
    %v5827 = vsel %vm5826, %v5726, %v5825
    %vm5828 = vcmp.eq.f32.partialorder %v5726, 0.0
    %v5829 = vand.u32 %v5726, 2147483648
    %v5830 = vsel %vm5828, %v5829, %v5827
    %v5831 = vrsqrt.pop %v5729
    %v5832 = vmul.f32 %v5729, %v5831
    %vm5833 = vcmp.eq.f32.partialorder %v5729, inf
    %v5834 = vsel %vm5833, %v5729, %v5832
    %vm5835 = vcmp.eq.f32.partialorder %v5729, 0.0
    %v5836 = vand.u32 %v5729, 2147483648
    %v5837 = vsel %vm5835, %v5836, %v5834
    %v5838 = vrsqrt.pop %v5732
    %v5839 = vmul.f32 %v5732, %v5838
    %vm5840 = vcmp.eq.f32.partialorder %v5732, inf
    %v5841 = vsel %vm5840, %v5732, %v5839
    %vm5842 = vcmp.eq.f32.partialorder %v5732, 0.0
    %v5843 = vand.u32 %v5732, 2147483648
    %v5844 = vsel %vm5842, %v5843, %v5841
    %v5845 = vrsqrt.pop %v5735
    %v5846 = vmul.f32 %v5735, %v5845
    %vm5847 = vcmp.eq.f32.partialorder %v5735, inf
    %v5848 = vsel %vm5847, %v5735, %v5846
    %vm5849 = vcmp.eq.f32.partialorder %v5735, 0.0
    %v5850 = vand.u32 %v5735, 2147483648
    %v5851 = vsel %vm5849, %v5850, %v5848
    %v5852 = vrsqrt.pop %v5738
    %v5853 = vmul.f32 %v5738, %v5852
    %vm5854 = vcmp.eq.f32.partialorder %v5738, inf
    %v5855 = vsel %vm5854, %v5738, %v5853
    %vm5856 = vcmp.eq.f32.partialorder %v5738, 0.0
    %v5857 = vand.u32 %v5738, 2147483648
    %v5858 = vsel %vm5856, %v5857, %v5855
    %v5859 = vrsqrt.pop %v5741
    %v5860 = vmul.f32 %v5741, %v5859
    %vm5861 = vcmp.eq.f32.partialorder %v5741, inf
    %v5862 = vsel %vm5861, %v5741, %v5860
    %vm5863 = vcmp.eq.f32.partialorder %v5741, 0.0
    %v5864 = vand.u32 %v5741, 2147483648
    %v5865 = vsel %vm5863, %v5864, %v5862
    %v5866 = vrsqrt.pop %v5744
    %v5867 = vmul.f32 %v5744, %v5866
    %vm5868 = vcmp.eq.f32.partialorder %v5744, inf
    %v5869 = vsel %vm5868, %v5744, %v5867
    %vm5870 = vcmp.eq.f32.partialorder %v5744, 0.0
    %v5871 = vand.u32 %v5744, 2147483648
    %v5872 = vsel %vm5870, %v5871, %v5869
    %v5873 = vrsqrt.pop %v5747
    %v5874 = vmul.f32 %v5747, %v5873
    %vm5875 = vcmp.eq.f32.partialorder %v5747, inf
    %v5876 = vsel %vm5875, %v5747, %v5874
    %vm5877 = vcmp.eq.f32.partialorder %v5747, 0.0
    %v5878 = vand.u32 %v5747, 2147483648
    %v5879 = vsel %vm5877, %v5878, %v5876
    %v5880 = vrsqrt.pop %v5750
    %v5881 = vmul.f32 %v5750, %v5880
    %vm5882 = vcmp.eq.f32.partialorder %v5750, inf
    %v5883 = vsel %vm5882, %v5750, %v5881
    %vm5884 = vcmp.eq.f32.partialorder %v5750, 0.0
    %v5885 = vand.u32 %v5750, 2147483648
    %v5886 = vsel %vm5884, %v5885, %v5883
    %v5887 = vrsqrt.pop %v5753
    %v5888 = vmul.f32 %v5753, %v5887
    %vm5889 = vcmp.eq.f32.partialorder %v5753, inf
    %v5890 = vsel %vm5889, %v5753, %v5888
    %vm5891 = vcmp.eq.f32.partialorder %v5753, 0.0
    %v5892 = vand.u32 %v5753, 2147483648
    %v5893 = vsel %vm5891, %v5892, %v5890
    %v5894 = vrsqrt.pop %v5756
    %v5895 = vmul.f32 %v5756, %v5894
    %vm5896 = vcmp.eq.f32.partialorder %v5756, inf
    %v5897 = vsel %vm5896, %v5756, %v5895
    %vm5898 = vcmp.eq.f32.partialorder %v5756, 0.0
    %v5899 = vand.u32 %v5756, 2147483648
    %v5900 = vsel %vm5898, %v5899, %v5897
    %v5901 = vrsqrt.pop %v5759
    %v5902 = vmul.f32 %v5759, %v5901
    %vm5903 = vcmp.eq.f32.partialorder %v5759, inf
    %v5904 = vsel %vm5903, %v5759, %v5902
    %vm5905 = vcmp.eq.f32.partialorder %v5759, 0.0
    %v5906 = vand.u32 %v5759, 2147483648
    %v5907 = vsel %vm5905, %v5906, %v5904
    %v5908 = vrsqrt.pop %v5762
    %v5909 = vmul.f32 %v5762, %v5908
    %vm5910 = vcmp.eq.f32.partialorder %v5762, inf
    %v5911 = vsel %vm5910, %v5762, %v5909
    %vm5912 = vcmp.eq.f32.partialorder %v5762, 0.0
    %v5913 = vand.u32 %v5762, 2147483648
    %v5914 = vsel %vm5912, %v5913, %v5911
    %v5915 = vrsqrt.pop %v5765
    %v5916 = vmul.f32 %v5765, %v5915
    %vm5917 = vcmp.eq.f32.partialorder %v5765, inf
    %v5918 = vsel %vm5917, %v5765, %v5916
    %vm5919 = vcmp.eq.f32.partialorder %v5765, 0.0
    %v5920 = vand.u32 %v5765, 2147483648
    %v5921 = vsel %vm5919, %v5920, %v5918
    %v5922 = vrsqrt.pop %v5768
    %v5923 = vmul.f32 %v5768, %v5922
    %vm5924 = vcmp.eq.f32.partialorder %v5768, inf
    %v5925 = vsel %vm5924, %v5768, %v5923
    %vm5926 = vcmp.eq.f32.partialorder %v5768, 0.0
    %v5927 = vand.u32 %v5768, 2147483648
    %v5928 = vsel %vm5926, %v5927, %v5925
    %v5929 = vrsqrt.pop %v5771
    %v5930 = vmul.f32 %v5771, %v5929
    %vm5931 = vcmp.eq.f32.partialorder %v5771, inf
    %v5932 = vsel %vm5931, %v5771, %v5930
    %vm5933 = vcmp.eq.f32.partialorder %v5771, 0.0
    %v5934 = vand.u32 %v5771, 2147483648
    %v5935 = vsel %vm5933, %v5934, %v5932
    %v5936 = vrsqrt.pop %v5774
    %v5937 = vmul.f32 %v5774, %v5936
    %vm5938 = vcmp.eq.f32.partialorder %v5774, inf
    %v5939 = vsel %vm5938, %v5774, %v5937
    %vm5940 = vcmp.eq.f32.partialorder %v5774, 0.0
    %v5941 = vand.u32 %v5774, 2147483648
    %v5942 = vsel %vm5940, %v5941, %v5939
    %v5943 = vrsqrt.pop %v5777
    %v5944 = vmul.f32 %v5777, %v5943
    %vm5945 = vcmp.eq.f32.partialorder %v5777, inf
    %v5946 = vsel %vm5945, %v5777, %v5944
    %vm5947 = vcmp.eq.f32.partialorder %v5777, 0.0
    %v5948 = vand.u32 %v5777, 2147483648
    %v5949 = vsel %vm5947, %v5948, %v5946
    %v5950 = vrsqrt.pop %v5780
    %v5951 = vmul.f32 %v5780, %v5950
    %vm5952 = vcmp.eq.f32.partialorder %v5780, inf
    %v5953 = vsel %vm5952, %v5780, %v5951
    %vm5954 = vcmp.eq.f32.partialorder %v5780, 0.0
    %v5955 = vand.u32 %v5780, 2147483648
    %v5956 = vsel %vm5954, %v5955, %v5953
    %v5957 = vrsqrt.pop %v5783
    %v5958 = vmul.f32 %v5783, %v5957
    %vm5959 = vcmp.eq.f32.partialorder %v5783, inf
    %v5960 = vsel %vm5959, %v5783, %v5958
    %vm5961 = vcmp.eq.f32.partialorder %v5783, 0.0
    %v5962 = vand.u32 %v5783, 2147483648
    %v5963 = vsel %vm5961, %v5962, %v5960
    %v5964 = vrsqrt.pop %v5786
    %v5965 = vmul.f32 %v5786, %v5964
    %vm5966 = vcmp.eq.f32.partialorder %v5786, inf
    %v5967 = vsel %vm5966, %v5786, %v5965
    %vm5968 = vcmp.eq.f32.partialorder %v5786, 0.0
    %v5969 = vand.u32 %v5786, 2147483648
    %v5970 = vsel %vm5968, %v5969, %v5967
    %v5971 = vrsqrt.pop %v5789
    %v5972 = vmul.f32 %v5789, %v5971
    %vm5973 = vcmp.eq.f32.partialorder %v5789, inf
    %v5974 = vsel %vm5973, %v5789, %v5972
    %vm5975 = vcmp.eq.f32.partialorder %v5789, 0.0
    %v5976 = vand.u32 %v5789, 2147483648
    %v5977 = vsel %vm5975, %v5976, %v5974
    %v5978 = vrsqrt.pop %v5792
    %v5979 = vmul.f32 %v5792, %v5978
    %vm5980 = vcmp.eq.f32.partialorder %v5792, inf
    %v5981 = vsel %vm5980, %v5792, %v5979
    %vm5982 = vcmp.eq.f32.partialorder %v5792, 0.0
    %v5983 = vand.u32 %v5792, 2147483648
    %v5984 = vsel %vm5982, %v5983, %v5981
    %v5985 = vrsqrt.pop %v5795
    %v5986 = vmul.f32 %v5795, %v5985
    %vm5987 = vcmp.eq.f32.partialorder %v5795, inf
    %v5988 = vsel %vm5987, %v5795, %v5986
    %vm5989 = vcmp.eq.f32.partialorder %v5795, 0.0
    %v5990 = vand.u32 %v5795, 2147483648
    %v5991 = vsel %vm5989, %v5990, %v5988
    %v5992 = vrsqrt.pop %v5798
    %v5993 = vmul.f32 %v5798, %v5992
    %vm5994 = vcmp.eq.f32.partialorder %v5798, inf
    %v5995 = vsel %vm5994, %v5798, %v5993
    %vm5996 = vcmp.eq.f32.partialorder %v5798, 0.0
    %v5997 = vand.u32 %v5798, 2147483648
    %v5998 = vsel %vm5996, %v5997, %v5995
    %v5999 = vrsqrt.pop %v5801
    %v6000 = vmul.f32 %v5801, %v5999
    %vm6001 = vcmp.eq.f32.partialorder %v5801, inf
    %v6002 = vsel %vm6001, %v5801, %v6000
    %vm6003 = vcmp.eq.f32.partialorder %v5801, 0.0
    %v6004 = vand.u32 %v5801, 2147483648
    %v6005 = vsel %vm6003, %v6004, %v6002
    %v6006 = vrsqrt.pop %v5804
    %v6007 = vmul.f32 %v5804, %v6006
    %vm6008 = vcmp.eq.f32.partialorder %v5804, inf
    %v6009 = vsel %vm6008, %v5804, %v6007
    %vm6010 = vcmp.eq.f32.partialorder %v5804, 0.0
    %v6011 = vand.u32 %v5804, 2147483648
    %v6012 = vsel %vm6010, %v6011, %v6009
    %v6013 = vrsqrt.pop %v5807
    %v6014 = vmul.f32 %v5807, %v6013
    %vm6015 = vcmp.eq.f32.partialorder %v5807, inf
    %v6016 = vsel %vm6015, %v5807, %v6014
    %vm6017 = vcmp.eq.f32.partialorder %v5807, 0.0
    %v6018 = vand.u32 %v5807, 2147483648
    %v6019 = vsel %vm6017, %v6018, %v6016
    %v6020 = vrsqrt.pop %v5810
    %v6021 = vmul.f32 %v5810, %v6020
    %vm6022 = vcmp.eq.f32.partialorder %v5810, inf
    %v6023 = vsel %vm6022, %v5810, %v6021
    %vm6024 = vcmp.eq.f32.partialorder %v5810, 0.0
    %v6025 = vand.u32 %v5810, 2147483648
    %v6026 = vsel %vm6024, %v6025, %v6023
    %v6027 = vrsqrt.pop %v5813
    %v6028 = vmul.f32 %v5813, %v6027
    %vm6029 = vcmp.eq.f32.partialorder %v5813, inf
    %v6030 = vsel %vm6029, %v5813, %v6028
    %vm6031 = vcmp.eq.f32.partialorder %v5813, 0.0
    %v6032 = vand.u32 %v5813, 2147483648
    %v6033 = vsel %vm6031, %v6032, %v6030
    %v6034 = vrsqrt.pop %v5816
    %v6035 = vmul.f32 %v5816, %v6034
    %vm6036 = vcmp.eq.f32.partialorder %v5816, inf
    %v6037 = vsel %vm6036, %v5816, %v6035
    %vm6038 = vcmp.eq.f32.partialorder %v5816, 0.0
    %v6039 = vand.u32 %v5816, 2147483648
    %v6040 = vsel %vm6038, %v6039, %v6037
    %v6041 = vlaneseq
    %v6042 = vshrl.u32 %v6041, 7
    %v6043 = vsub.s32 0, %v6042
    %v6044 = vrot.slane %v5639, %v6043
    %v6045 = vlaneseq
    %v6046 = vshrl.u32 %v6045, 7
    %v6047 = vsub.s32 0, %v6046
    %v6048 = vrot.slane %v5646, %v6047
    %v6049 = vlaneseq
    %v6050 = vshrl.u32 %v6049, 7
    %v6051 = vsub.s32 0, %v6050
    %v6052 = vrot.slane %v5653, %v6051
    %v6053 = vlaneseq
    %v6054 = vshrl.u32 %v6053, 7
    %v6055 = vsub.s32 0, %v6054
    %v6056 = vrot.slane %v5660, %v6055
    %v6057 = vlaneseq
    %v6058 = vshrl.u32 %v6057, 7
    %v6059 = vsub.s32 0, %v6058
    %v6060 = vrot.slane %v5667, %v6059
    %v6061 = vlaneseq
    %v6062 = vshrl.u32 %v6061, 7
    %v6063 = vsub.s32 0, %v6062
    %v6064 = vrot.slane %v5674, %v6063
    %v6065 = vlaneseq
    %v6066 = vshrl.u32 %v6065, 7
    %v6067 = vsub.s32 0, %v6066
    %v6068 = vrot.slane %v5681, %v6067
    %v6069 = vlaneseq
    %v6070 = vshrl.u32 %v6069, 7
    %v6071 = vsub.s32 0, %v6070
    %v6072 = vrot.slane %v5688, %v6071
    %v6073 = vmul.f32 %v6044, %v5823
    %v6074 = vmul.f32 %v6044, %v5830
    %v6075 = vmul.f32 %v6044, %v5837
    %v6076 = vmul.f32 %v6044, %v5844
    %v6077 = vmul.f32 %v6048, %v5851
    %v6078 = vmul.f32 %v6048, %v5858
    %v6079 = vmul.f32 %v6048, %v5865
    %v6080 = vmul.f32 %v6048, %v5872
    %v6081 = vmul.f32 %v6052, %v5879
    %v6082 = vmul.f32 %v6052, %v5886
    %v6083 = vmul.f32 %v6052, %v5893
    %v6084 = vmul.f32 %v6052, %v5900
    %v6085 = vmul.f32 %v6056, %v5907
    %v6086 = vmul.f32 %v6056, %v5914
    %v6087 = vmul.f32 %v6056, %v5921
    %v6088 = vmul.f32 %v6056, %v5928
    %v6089 = vmul.f32 %v6060, %v5935
    %v6090 = vmul.f32 %v6060, %v5942
    %v6091 = vmul.f32 %v6060, %v5949
    %v6092 = vmul.f32 %v6060, %v5956
    %v6093 = vmul.f32 %v6064, %v5963
    %v6094 = vmul.f32 %v6064, %v5970
    %v6095 = vmul.f32 %v6064, %v5977
    %v6096 = vmul.f32 %v6064, %v5984
    %v6097 = vmul.f32 %v6068, %v5991
    %v6098 = vmul.f32 %v6068, %v5998
    %v6099 = vmul.f32 %v6068, %v6005
    %v6100 = vmul.f32 %v6068, %v6012
    %v6101 = vmul.f32 %v6072, %v6019
    %v6102 = vmul.f32 %v6072, %v6026
    %v6103 = vmul.f32 %v6072, %v6033
    %v6104 = vmul.f32 %v6072, %v6040
    %v6105 = vmax.f32 %v6073, 1e-08
    %v6106 = vmax.f32 %v6074, 1e-08
    %v6107 = vmax.f32 %v6075, 1e-08
    %v6108 = vmax.f32 %v6076, 1e-08
    %v6109 = vmax.f32 %v6077, 1e-08
    %v6110 = vmax.f32 %v6078, 1e-08
    %v6111 = vmax.f32 %v6079, 1e-08
    %v6112 = vmax.f32 %v6080, 1e-08
    %v6113 = vmax.f32 %v6081, 1e-08
    %v6114 = vmax.f32 %v6082, 1e-08
    %v6115 = vmax.f32 %v6083, 1e-08
    %v6116 = vmax.f32 %v6084, 1e-08
    %v6117 = vmax.f32 %v6085, 1e-08
    %v6118 = vmax.f32 %v6086, 1e-08
    %v6119 = vmax.f32 %v6087, 1e-08
    %v6120 = vmax.f32 %v6088, 1e-08
    %v6121 = vmax.f32 %v6089, 1e-08
    %v6122 = vmax.f32 %v6090, 1e-08
    %v6123 = vmax.f32 %v6091, 1e-08
    %v6124 = vmax.f32 %v6092, 1e-08
    %v6125 = vmax.f32 %v6093, 1e-08
    %v6126 = vmax.f32 %v6094, 1e-08
    %v6127 = vmax.f32 %v6095, 1e-08
    %v6128 = vmax.f32 %v6096, 1e-08
    %v6129 = vmax.f32 %v6097, 1e-08
    %v6130 = vmax.f32 %v6098, 1e-08
    %v6131 = vmax.f32 %v6099, 1e-08
    %v6132 = vmax.f32 %v6100, 1e-08
    %v6133 = vmax.f32 %v6101, 1e-08
    %v6134 = vmax.f32 %v6102, 1e-08
    %v6135 = vmax.f32 %v6103, 1e-08
    %v6136 = vmax.f32 %v6104, 1e-08
    %v6137 = vrcp.pop %v6105
    %v6138 = vrcp.pop %v6106
    %v6139 = vrcp.pop %v6107
    %v6140 = vrcp.pop %v6108
    %v6141 = vrcp.pop %v6109
    %v6142 = vrcp.pop %v6110
    %v6143 = vrcp.pop %v6111
    %v6144 = vrcp.pop %v6112
    %v6145 = vrcp.pop %v6113
    %v6146 = vrcp.pop %v6114
    %v6147 = vrcp.pop %v6115
    %v6148 = vrcp.pop %v6116
    %v6149 = vrcp.pop %v6117
    %v6150 = vrcp.pop %v6118
    %v6151 = vrcp.pop %v6119
    %v6152 = vrcp.pop %v6120
    %v6153 = vrcp.pop %v6121
    %v6154 = vrcp.pop %v6122
    %v6155 = vrcp.pop %v6123
    %v6156 = vrcp.pop %v6124
    %v6157 = vrcp.pop %v6125
    %v6158 = vrcp.pop %v6126
    %v6159 = vrcp.pop %v6127
    %v6160 = vrcp.pop %v6128
    %v6161 = vrcp.pop %v6129
    %v6162 = vrcp.pop %v6130
    %v6163 = vrcp.pop %v6131
    %v6164 = vrcp.pop %v6132
    %v6165 = vrcp.pop %v6133
    %v6166 = vrcp.pop %v6134
    %v6167 = vrcp.pop %v6135
    %v6168 = vrcp.pop %v6136
    %v6169 = vmul.f32 %v5506, %v6137
    %v6170 = vmul.f32 %v5509, %v6138
    %v6171 = vmul.f32 %v5512, %v6139
    %v6172 = vmul.f32 %v5515, %v6140
    %v6173 = vmul.f32 %v5518, %v6141
    %v6174 = vmul.f32 %v5521, %v6142
    %v6175 = vmul.f32 %v5524, %v6143
    %v6176 = vmul.f32 %v5527, %v6144
    %v6177 = vmul.f32 %v5530, %v6145
    %v6178 = vmul.f32 %v5533, %v6146
    %v6179 = vmul.f32 %v5536, %v6147
    %v6180 = vmul.f32 %v5539, %v6148
    %v6181 = vmul.f32 %v5542, %v6149
    %v6182 = vmul.f32 %v5545, %v6150
    %v6183 = vmul.f32 %v5548, %v6151
    %v6184 = vmul.f32 %v5551, %v6152
    %v6185 = vmul.f32 %v5554, %v6153
    %v6186 = vmul.f32 %v5557, %v6154
    %v6187 = vmul.f32 %v5560, %v6155
    %v6188 = vmul.f32 %v5563, %v6156
    %v6189 = vmul.f32 %v5566, %v6157
    %v6190 = vmul.f32 %v5569, %v6158
    %v6191 = vmul.f32 %v5572, %v6159
    %v6192 = vmul.f32 %v5575, %v6160
    %v6193 = vmul.f32 %v5578, %v6161
    %v6194 = vmul.f32 %v5581, %v6162
    %v6195 = vmul.f32 %v5584, %v6163
    %v6196 = vmul.f32 %v5587, %v6164
    %v6197 = vmul.f32 %v5590, %v6165
    %v6198 = vmul.f32 %v5593, %v6166
    %v6199 = vmul.f32 %v5596, %v6167
    %v6200 = vmul.f32 %v5599, %v6168
    %v6201 = vand.u32 2147483647, %v6169
    %v6202 = vand.u32 2147483647, %v6170
    %v6203 = vand.u32 2147483647, %v6171
    %v6204 = vand.u32 2147483647, %v6172
    %v6205 = vand.u32 2147483647, %v6173
    %v6206 = vand.u32 2147483647, %v6174
    %v6207 = vand.u32 2147483647, %v6175
    %v6208 = vand.u32 2147483647, %v6176
    %v6209 = vand.u32 2147483647, %v6177
    %v6210 = vand.u32 2147483647, %v6178
    %v6211 = vand.u32 2147483647, %v6179
    %v6212 = vand.u32 2147483647, %v6180
    %v6213 = vand.u32 2147483647, %v6181
    %v6214 = vand.u32 2147483647, %v6182
    %v6215 = vand.u32 2147483647, %v6183
    %v6216 = vand.u32 2147483647, %v6184
    %v6217 = vand.u32 2147483647, %v6185
    %v6218 = vand.u32 2147483647, %v6186
    %v6219 = vand.u32 2147483647, %v6187
    %v6220 = vand.u32 2147483647, %v6188
    %v6221 = vand.u32 2147483647, %v6189
    %v6222 = vand.u32 2147483647, %v6190
    %v6223 = vand.u32 2147483647, %v6191
    %v6224 = vand.u32 2147483647, %v6192
    %v6225 = vand.u32 2147483647, %v6193
    %v6226 = vand.u32 2147483647, %v6194
    %v6227 = vand.u32 2147483647, %v6195
    %v6228 = vand.u32 2147483647, %v6196
    %v6229 = vand.u32 2147483647, %v6197
    %v6230 = vand.u32 2147483647, %v6198
    %v6231 = vand.u32 2147483647, %v6199
    %v6232 = vand.u32 2147483647, %v6200
    %v6265 = vlaneseq
    %v6266 = vshrl.u32 %v6265, 7
    %v6267 = vsub.s32 %v143, %v6266
    %v6268 = vrot.slane %v6201, %v6267
    %v6269 = vlaneseq
    %v6270 = vshrl.u32 %v6269, 7
    %v6271 = vsub.s32 %v143, %v6270
    %v6272 = vrot.slane %v6202, %v6271
    %v6273 = vlaneseq
    %v6274 = vshrl.u32 %v6273, 7
    %v6275 = vsub.s32 %v143, %v6274
    %v6276 = vrot.slane %v6203, %v6275
    %v6277 = vlaneseq
    %v6278 = vshrl.u32 %v6277, 7
    %v6279 = vsub.s32 %v143, %v6278
    %v6280 = vrot.slane %v6204, %v6279
    %v6281 = vlaneseq
    %v6282 = vshrl.u32 %v6281, 7
    %v6283 = vsub.s32 %v143, %v6282
    %v6284 = vrot.slane %v6205, %v6283
    %v6285 = vlaneseq
    %v6286 = vshrl.u32 %v6285, 7
    %v6287 = vsub.s32 %v143, %v6286
    %v6288 = vrot.slane %v6206, %v6287
    %v6289 = vlaneseq
    %v6290 = vshrl.u32 %v6289, 7
    %v6291 = vsub.s32 %v143, %v6290
    %v6292 = vrot.slane %v6207, %v6291
    %v6293 = vlaneseq
    %v6294 = vshrl.u32 %v6293, 7
    %v6295 = vsub.s32 %v143, %v6294
    %v6296 = vrot.slane %v6208, %v6295
    %v6297 = vlaneseq
    %v6298 = vshrl.u32 %v6297, 7
    %v6299 = vsub.s32 %v143, %v6298
    %v6300 = vrot.slane %v6209, %v6299
    %v6301 = vlaneseq
    %v6302 = vshrl.u32 %v6301, 7
    %v6303 = vsub.s32 %v143, %v6302
    %v6304 = vrot.slane %v6210, %v6303
    %v6305 = vlaneseq
    %v6306 = vshrl.u32 %v6305, 7
    %v6307 = vsub.s32 %v143, %v6306
    %v6308 = vrot.slane %v6211, %v6307
    %v6309 = vlaneseq
    %v6310 = vshrl.u32 %v6309, 7
    %v6311 = vsub.s32 %v143, %v6310
    %v6312 = vrot.slane %v6212, %v6311
    %v6313 = vlaneseq
    %v6314 = vshrl.u32 %v6313, 7
    %v6315 = vsub.s32 %v143, %v6314
    %v6316 = vrot.slane %v6213, %v6315
    %v6317 = vlaneseq
    %v6318 = vshrl.u32 %v6317, 7
    %v6319 = vsub.s32 %v143, %v6318
    %v6320 = vrot.slane %v6214, %v6319
    %v6321 = vlaneseq
    %v6322 = vshrl.u32 %v6321, 7
    %v6323 = vsub.s32 %v143, %v6322
    %v6324 = vrot.slane %v6215, %v6323
    %v6325 = vlaneseq
    %v6326 = vshrl.u32 %v6325, 7
    %v6327 = vsub.s32 %v143, %v6326
    %v6328 = vrot.slane %v6216, %v6327
    %v6329 = vlaneseq
    %v6330 = vshrl.u32 %v6329, 7
    %v6331 = vsub.s32 %v143, %v6330
    %v6332 = vrot.slane %v6217, %v6331
    %v6333 = vlaneseq
    %v6334 = vshrl.u32 %v6333, 7
    %v6335 = vsub.s32 %v143, %v6334
    %v6336 = vrot.slane %v6218, %v6335
    %v6337 = vlaneseq
    %v6338 = vshrl.u32 %v6337, 7
    %v6339 = vsub.s32 %v143, %v6338
    %v6340 = vrot.slane %v6219, %v6339
    %v6341 = vlaneseq
    %v6342 = vshrl.u32 %v6341, 7
    %v6343 = vsub.s32 %v143, %v6342
    %v6344 = vrot.slane %v6220, %v6343
    %v6345 = vlaneseq
    %v6346 = vshrl.u32 %v6345, 7
    %v6347 = vsub.s32 %v143, %v6346
    %v6348 = vrot.slane %v6221, %v6347
    %v6349 = vlaneseq
    %v6350 = vshrl.u32 %v6349, 7
    %v6351 = vsub.s32 %v143, %v6350
    %v6352 = vrot.slane %v6222, %v6351
    %v6353 = vlaneseq
    %v6354 = vshrl.u32 %v6353, 7
    %v6355 = vsub.s32 %v143, %v6354
    %v6356 = vrot.slane %v6223, %v6355
    %v6357 = vlaneseq
    %v6358 = vshrl.u32 %v6357, 7
    %v6359 = vsub.s32 %v143, %v6358
    %v6360 = vrot.slane %v6224, %v6359
    %v6361 = vlaneseq
    %v6362 = vshrl.u32 %v6361, 7
    %v6363 = vsub.s32 %v143, %v6362
    %v6364 = vrot.slane %v6225, %v6363
    %v6365 = vlaneseq
    %v6366 = vshrl.u32 %v6365, 7
    %v6367 = vsub.s32 %v143, %v6366
    %v6368 = vrot.slane %v6226, %v6367
    %v6369 = vlaneseq
    %v6370 = vshrl.u32 %v6369, 7
    %v6371 = vsub.s32 %v143, %v6370
    %v6372 = vrot.slane %v6227, %v6371
    %v6373 = vlaneseq
    %v6374 = vshrl.u32 %v6373, 7
    %v6375 = vsub.s32 %v143, %v6374
    %v6376 = vrot.slane %v6228, %v6375
    %v6377 = vlaneseq
    %v6378 = vshrl.u32 %v6377, 7
    %v6379 = vsub.s32 %v143, %v6378
    %v6380 = vrot.slane %v6229, %v6379
    %v6381 = vlaneseq
    %v6382 = vshrl.u32 %v6381, 7
    %v6383 = vsub.s32 %v143, %v6382
    %v6384 = vrot.slane %v6230, %v6383
    %v6385 = vlaneseq
    %v6386 = vshrl.u32 %v6385, 7
    %v6387 = vsub.s32 %v143, %v6386
    %v6388 = vrot.slane %v6231, %v6387
    %v6389 = vlaneseq
    %v6390 = vshrl.u32 %v6389, 7
    %v6391 = vsub.s32 %v143, %v6390
    %v6392 = vrot.slane %v6232, %v6391
    %v6393 = vsel %vm4526, %v6272, %v6268
    %v6394 = vsel %vm4528, %v6276, %v6393
    %v6395 = vsel %vm4530, %v6280, %v6394
    %v6396 = vsel %vm4526, %v6288, %v6284
    %v6397 = vsel %vm4528, %v6292, %v6396
    %v6398 = vsel %vm4530, %v6296, %v6397
    %v6399 = vsel %vm4526, %v6304, %v6300
    %v6400 = vsel %vm4528, %v6308, %v6399
    %v6401 = vsel %vm4530, %v6312, %v6400
    %v6402 = vsel %vm4526, %v6320, %v6316
    %v6403 = vsel %vm4528, %v6324, %v6402
    %v6404 = vsel %vm4530, %v6328, %v6403
    %v6405 = vsel %vm4526, %v6336, %v6332
    %v6406 = vsel %vm4528, %v6340, %v6405
    %v6407 = vsel %vm4530, %v6344, %v6406
    %v6408 = vsel %vm4526, %v6352, %v6348
    %v6409 = vsel %vm4528, %v6356, %v6408
    %v6410 = vsel %vm4530, %v6360, %v6409
    %v6411 = vsel %vm4526, %v6368, %v6364
    %v6412 = vsel %vm4528, %v6372, %v6411
    %v6413 = vsel %vm4530, %v6376, %v6412
    %v6414 = vsel %vm4526, %v6384, %v6380
    %v6415 = vsel %vm4528, %v6388, %v6414
    %v6416 = vsel %vm4530, %v6392, %v6415
    %v6425 = vmul.f32 %v5307, %v6395
    %v6426 = vmul.f32 %v5308, %v6398
    %v6427 = vmul.f32 %v5309, %v6401
    %v6428 = vmul.f32 %v5310, %v6404
    %v6429 = vmul.f32 %v5311, %v6407
    %v6430 = vmul.f32 %v5312, %v6410
    %v6431 = vmul.f32 %v5313, %v6413
    %v6432 = vmul.f32 %v5314, %v6416
    %v6433 = vmul.f32 %v6425, 0.5
    %v6434 = vmul.f32 %v6426, 0.5
    %v6435 = vmul.f32 %v6427, 0.5
    %v6436 = vmul.f32 %v6428, 0.5
    %v6437 = vmul.f32 %v6429, 0.5
    %v6438 = vmul.f32 %v6430, 0.5
    %v6439 = vmul.f32 %v6431, 0.5
    %v6440 = vmul.f32 %v6432, 0.5
    %v6441 = vand.u32 2147483647, %v5316
    %v6442 = vand.u32 2147483647, %v5317
    %v6443 = vand.u32 2147483647, %v5318
    %v6444 = vand.u32 2147483647, %v5319
    %v6445 = vand.u32 2147483647, %v5320
    %v6446 = vand.u32 2147483647, %v5321
    %v6447 = vand.u32 2147483647, %v5322
    %v6448 = vand.u32 2147483647, %v5323
    %v6449 = vmul.f32 %v6441, 0.5
    %v6450 = vmul.f32 %v6442, 0.5
    %v6451 = vmul.f32 %v6443, 0.5
    %v6452 = vmul.f32 %v6444, 0.5
    %v6453 = vmul.f32 %v6445, 0.5
    %v6454 = vmul.f32 %v6446, 0.5
    %v6455 = vmul.f32 %v6447, 0.5
    %v6456 = vmul.f32 %v6448, 0.5
    %v6457 = vadd.f32 %v6433, %v6449
    %v6458 = vadd.f32 %v6434, %v6450
    %v6459 = vadd.f32 %v6435, %v6451
    %v6460 = vadd.f32 %v6436, %v6452
    %v6461 = vadd.f32 %v6437, %v6453
    %v6462 = vadd.f32 %v6438, %v6454
    %v6463 = vadd.f32 %v6439, %v6455
    %v6464 = vadd.f32 %v6440, %v6456
    %v6465 = vsel %vm5342, %v6457, -1e+30
    %v6466 = vsel %vm5343, %v6458, -1e+30
    %v6467 = vsel %vm5344, %v6459, -1e+30
    %v6468 = vsel %vm5345, %v6460, -1e+30
    %v6469 = vsel %vm5346, %v6461, -1e+30
    %v6470 = vsel %vm5347, %v6462, -1e+30
    %v6471 = vsel %vm5348, %v6463, -1e+30
    %v6472 = vsel %vm5349, %v6464, -1e+30
    %vm6473 = vcmask 27648
    %v6474 = vsel %vm6473, %v6465, -inf
    %6475 = vmax.xlane.f32.xlu0 %v6474
    %v6476 = vpop.xlane.xlu0 %6475
    %v6477 = vsel %vm6473, %v6466, -inf
    %6478 = vmax.xlane.f32.xlu0 %v6477
    %v6479 = vpop.xlane.xlu0 %6478
    %v6480 = vsel %vm6473, %v6467, -inf
    %6481 = vmax.xlane.f32.xlu0 %v6480
    %v6482 = vpop.xlane.xlu0 %6481
    %v6483 = vsel %vm6473, %v6468, -inf
    %6484 = vmax.xlane.f32.xlu0 %v6483
    %v6485 = vpop.xlane.xlu0 %6484
    %v6486 = vsel %vm6473, %v6469, -inf
    %6487 = vmax.xlane.f32.xlu0 %v6486
    %v6488 = vpop.xlane.xlu0 %6487
    %v6489 = vsel %vm6473, %v6470, -inf
    %6490 = vmax.xlane.f32.xlu0 %v6489
    %v6491 = vpop.xlane.xlu0 %6490
    %v6492 = vsel %vm6473, %v6471, -inf
    %6493 = vmax.xlane.f32.xlu0 %v6492
    %v6494 = vpop.xlane.xlu0 %6493
    %v6495 = vsel %vm6473, %v6472, -inf
    %6496 = vmax.xlane.f32.xlu0 %v6495
    %v6497 = vpop.xlane.xlu0 %6496
    %v6498 = vsub.f32 %v6465, %v6476
    %v6499 = vsub.f32 %v6466, %v6479
    %v6500 = vsub.f32 %v6467, %v6482
    %v6501 = vsub.f32 %v6468, %v6485
    %v6502 = vsub.f32 %v6469, %v6488
    %v6503 = vsub.f32 %v6470, %v6491
    %v6504 = vsub.f32 %v6471, %v6494
    %v6505 = vsub.f32 %v6472, %v6497
    %v6506 = vmul.f32 %v6498, 1.442695
    %v6507 = vpow.pop %v6506
    %v6508 = vmul.f32 %v6499, 1.442695
    %v6509 = vpow.pop %v6508
    %v6510 = vmul.f32 %v6500, 1.442695
    %v6511 = vpow.pop %v6510
    %v6512 = vmul.f32 %v6501, 1.442695
    %v6513 = vpow.pop %v6512
    %v6514 = vmul.f32 %v6502, 1.442695
    %v6515 = vpow.pop %v6514
    %v6516 = vmul.f32 %v6503, 1.442695
    %v6517 = vpow.pop %v6516
    %v6518 = vmul.f32 %v6504, 1.442695
    %v6519 = vpow.pop %v6518
    %v6520 = vmul.f32 %v6505, 1.442695
    %v6521 = vpow.pop %v6520
    %v6522 = vsel %vm6473, %v6507, 0.0
    %6523 = vadd.xlane.f32.xlu0 %v6522
    %v6524 = vpop.xlane.xlu0 %6523
    %v6525 = vsel %vm6473, %v6509, 0.0
    %6526 = vadd.xlane.f32.xlu0 %v6525
    %v6527 = vpop.xlane.xlu0 %6526
    %v6528 = vsel %vm6473, %v6511, 0.0
    %6529 = vadd.xlane.f32.xlu0 %v6528
    %v6530 = vpop.xlane.xlu0 %6529
    %v6531 = vsel %vm6473, %v6513, 0.0
    %6532 = vadd.xlane.f32.xlu0 %v6531
    %v6533 = vpop.xlane.xlu0 %6532
    %v6534 = vsel %vm6473, %v6515, 0.0
    %6535 = vadd.xlane.f32.xlu0 %v6534
    %v6536 = vpop.xlane.xlu0 %6535
    %v6537 = vsel %vm6473, %v6517, 0.0
    %6538 = vadd.xlane.f32.xlu0 %v6537
    %v6539 = vpop.xlane.xlu0 %6538
    %v6540 = vsel %vm6473, %v6519, 0.0
    %6541 = vadd.xlane.f32.xlu0 %v6540
    %v6542 = vpop.xlane.xlu0 %6541
    %v6543 = vsel %vm6473, %v6521, 0.0
    %6544 = vadd.xlane.f32.xlu0 %v6543
    %v6545 = vpop.xlane.xlu0 %6544
    %v6546 = vrcp.pop %v6524
    %v6547 = vrcp.pop %v6527
    %v6548 = vrcp.pop %v6530
    %v6549 = vrcp.pop %v6533
    %v6550 = vrcp.pop %v6536
    %v6551 = vrcp.pop %v6539
    %v6552 = vrcp.pop %v6542
    %v6553 = vrcp.pop %v6545
    %v6554 = vmul.f32 %v6507, %v6546
    %v6555 = vmul.f32 %v6509, %v6547
    %v6556 = vmul.f32 %v6511, %v6548
    %v6557 = vmul.f32 %v6513, %v6549
    %v6558 = vmul.f32 %v6515, %v6550
    %v6559 = vmul.f32 %v6517, %v6551
    %v6560 = vmul.f32 %v6519, %v6552
    %v6561 = vmul.f32 %v6521, %v6553
    %6563 = vset.pattern.permute.xlu0 0
    %6564 = vperm.xlu0 %6563, %v5334
    %v6565 = vpop.permute.xlu0 %6564
    %6568 = vset.pattern.permute.xlu0 0
    %6569 = vperm.xlu0 %6568, %v5335
    %v6570 = vpop.permute.xlu0 %6569
    %6573 = vset.pattern.permute.xlu0 0
    %6574 = vperm.xlu0 %6573, %v5336
    %v6575 = vpop.permute.xlu0 %6574
    %6578 = vset.pattern.permute.xlu0 0
    %6579 = vperm.xlu0 %6578, %v5337
    %v6580 = vpop.permute.xlu0 %6579
    %6583 = vset.pattern.permute.xlu0 0
    %6584 = vperm.xlu0 %6583, %v5338
    %v6585 = vpop.permute.xlu0 %6584
    %6588 = vset.pattern.permute.xlu0 0
    %6589 = vperm.xlu0 %6588, %v5339
    %v6590 = vpop.permute.xlu0 %6589
    %6593 = vset.pattern.permute.xlu0 0
    %6594 = vperm.xlu0 %6593, %v5340
    %v6595 = vpop.permute.xlu0 %6594
    %6598 = vset.pattern.permute.xlu0 0
    %6599 = vperm.xlu0 %6598, %v5341
    %v6600 = vpop.permute.xlu0 %6599
    %v6602 = vmul.f32 %v6565, %v6554
    %v6603 = vmul.f32 %v6570, %v6555
    %v6604 = vmul.f32 %v6575, %v6556
    %v6605 = vmul.f32 %v6580, %v6557
    %v6606 = vmul.f32 %v6585, %v6558
    %v6607 = vmul.f32 %v6590, %v6559
    %v6608 = vmul.f32 %v6595, %v6560
    %v6609 = vmul.f32 %v6600, %v6561
    %v6610 = vlaneseq
    %v6611 = vshrl.u32 %v6610, 7
    %v6612 = vsub.s32 0, %v6611
    %v6613 = vrot.slane %v6602, %v6612
    %6615 = vbcast.lane.b32.xlu0 %v6613, 256
    %v6616 = vpop.permute.xlu0 %6615
    %v6617 = vlaneseq
    %v6618 = vshrl.u32 %v6617, 7
    %v6619 = vsub.s32 1, %v6618
    %v6620 = vrot.slane %v6602, %v6619
    %6622 = vbcast.lane.b32.xlu0 %v6620, 256
    %v6623 = vpop.permute.xlu0 %6622
    %v6624 = vlaneseq
    %v6625 = vshrl.u32 %v6624, 7
    %v6626 = vsub.s32 2, %v6625
    %v6627 = vrot.slane %v6602, %v6626
    %6629 = vbcast.lane.b32.xlu0 %v6627, 256
    %v6630 = vpop.permute.xlu0 %6629
    %v6631 = vlaneseq
    %v6632 = vshrl.u32 %v6631, 7
    %v6633 = vsub.s32 3, %v6632
    %v6634 = vrot.slane %v6602, %v6633
    %6636 = vbcast.lane.b32.xlu0 %v6634, 256
    %v6637 = vpop.permute.xlu0 %6636
    %v6638 = vlaneseq
    %v6639 = vshrl.u32 %v6638, 7
    %v6640 = vsub.s32 0, %v6639
    %v6641 = vrot.slane %v6603, %v6640
    %6643 = vbcast.lane.b32.xlu0 %v6641, 256
    %v6644 = vpop.permute.xlu0 %6643
    %v6645 = vlaneseq
    %v6646 = vshrl.u32 %v6645, 7
    %v6647 = vsub.s32 1, %v6646
    %v6648 = vrot.slane %v6603, %v6647
    %6650 = vbcast.lane.b32.xlu0 %v6648, 256
    %v6651 = vpop.permute.xlu0 %6650
    %v6652 = vlaneseq
    %v6653 = vshrl.u32 %v6652, 7
    %v6654 = vsub.s32 2, %v6653
    %v6655 = vrot.slane %v6603, %v6654
    %6657 = vbcast.lane.b32.xlu0 %v6655, 256
    %v6658 = vpop.permute.xlu0 %6657
    %v6659 = vlaneseq
    %v6660 = vshrl.u32 %v6659, 7
    %v6661 = vsub.s32 3, %v6660
    %v6662 = vrot.slane %v6603, %v6661
    %6664 = vbcast.lane.b32.xlu0 %v6662, 256
    %v6665 = vpop.permute.xlu0 %6664
    %v6666 = vlaneseq
    %v6667 = vshrl.u32 %v6666, 7
    %v6668 = vsub.s32 0, %v6667
    %v6669 = vrot.slane %v6604, %v6668
    %6671 = vbcast.lane.b32.xlu0 %v6669, 256
    %v6672 = vpop.permute.xlu0 %6671
    %v6673 = vlaneseq
    %v6674 = vshrl.u32 %v6673, 7
    %v6675 = vsub.s32 1, %v6674
    %v6676 = vrot.slane %v6604, %v6675
    %6678 = vbcast.lane.b32.xlu0 %v6676, 256
    %v6679 = vpop.permute.xlu0 %6678
    %v6680 = vlaneseq
    %v6681 = vshrl.u32 %v6680, 7
    %v6682 = vsub.s32 2, %v6681
    %v6683 = vrot.slane %v6604, %v6682
    %6685 = vbcast.lane.b32.xlu0 %v6683, 256
    %v6686 = vpop.permute.xlu0 %6685
    %v6687 = vlaneseq
    %v6688 = vshrl.u32 %v6687, 7
    %v6689 = vsub.s32 3, %v6688
    %v6690 = vrot.slane %v6604, %v6689
    %6692 = vbcast.lane.b32.xlu0 %v6690, 256
    %v6693 = vpop.permute.xlu0 %6692
    %v6694 = vlaneseq
    %v6695 = vshrl.u32 %v6694, 7
    %v6696 = vsub.s32 0, %v6695
    %v6697 = vrot.slane %v6605, %v6696
    %6699 = vbcast.lane.b32.xlu0 %v6697, 256
    %v6700 = vpop.permute.xlu0 %6699
    %v6701 = vlaneseq
    %v6702 = vshrl.u32 %v6701, 7
    %v6703 = vsub.s32 1, %v6702
    %v6704 = vrot.slane %v6605, %v6703
    %6706 = vbcast.lane.b32.xlu0 %v6704, 256
    %v6707 = vpop.permute.xlu0 %6706
    %v6708 = vlaneseq
    %v6709 = vshrl.u32 %v6708, 7
    %v6710 = vsub.s32 2, %v6709
    %v6711 = vrot.slane %v6605, %v6710
    %6713 = vbcast.lane.b32.xlu0 %v6711, 256
    %v6714 = vpop.permute.xlu0 %6713
    %v6715 = vlaneseq
    %v6716 = vshrl.u32 %v6715, 7
    %v6717 = vsub.s32 3, %v6716
    %v6718 = vrot.slane %v6605, %v6717
    %6720 = vbcast.lane.b32.xlu0 %v6718, 256
    %v6721 = vpop.permute.xlu0 %6720
    %v6722 = vlaneseq
    %v6723 = vshrl.u32 %v6722, 7
    %v6724 = vsub.s32 0, %v6723
    %v6725 = vrot.slane %v6606, %v6724
    %6727 = vbcast.lane.b32.xlu0 %v6725, 256
    %v6728 = vpop.permute.xlu0 %6727
    %v6729 = vlaneseq
    %v6730 = vshrl.u32 %v6729, 7
    %v6731 = vsub.s32 1, %v6730
    %v6732 = vrot.slane %v6606, %v6731
    %6734 = vbcast.lane.b32.xlu0 %v6732, 256
    %v6735 = vpop.permute.xlu0 %6734
    %v6736 = vlaneseq
    %v6737 = vshrl.u32 %v6736, 7
    %v6738 = vsub.s32 2, %v6737
    %v6739 = vrot.slane %v6606, %v6738
    %6741 = vbcast.lane.b32.xlu0 %v6739, 256
    %v6742 = vpop.permute.xlu0 %6741
    %v6743 = vlaneseq
    %v6744 = vshrl.u32 %v6743, 7
    %v6745 = vsub.s32 3, %v6744
    %v6746 = vrot.slane %v6606, %v6745
    %6748 = vbcast.lane.b32.xlu0 %v6746, 256
    %v6749 = vpop.permute.xlu0 %6748
    %v6750 = vlaneseq
    %v6751 = vshrl.u32 %v6750, 7
    %v6752 = vsub.s32 0, %v6751
    %v6753 = vrot.slane %v6607, %v6752
    %6755 = vbcast.lane.b32.xlu0 %v6753, 256
    %v6756 = vpop.permute.xlu0 %6755
    %v6757 = vlaneseq
    %v6758 = vshrl.u32 %v6757, 7
    %v6759 = vsub.s32 1, %v6758
    %v6760 = vrot.slane %v6607, %v6759
    %6762 = vbcast.lane.b32.xlu0 %v6760, 256
    %v6763 = vpop.permute.xlu0 %6762
    %v6764 = vlaneseq
    %v6765 = vshrl.u32 %v6764, 7
    %v6766 = vsub.s32 2, %v6765
    %v6767 = vrot.slane %v6607, %v6766
    %6769 = vbcast.lane.b32.xlu0 %v6767, 256
    %v6770 = vpop.permute.xlu0 %6769
    %v6771 = vlaneseq
    %v6772 = vshrl.u32 %v6771, 7
    %v6773 = vsub.s32 3, %v6772
    %v6774 = vrot.slane %v6607, %v6773
    %6776 = vbcast.lane.b32.xlu0 %v6774, 256
    %v6777 = vpop.permute.xlu0 %6776
    %v6778 = vlaneseq
    %v6779 = vshrl.u32 %v6778, 7
    %v6780 = vsub.s32 0, %v6779
    %v6781 = vrot.slane %v6608, %v6780
    %6783 = vbcast.lane.b32.xlu0 %v6781, 256
    %v6784 = vpop.permute.xlu0 %6783
    %v6785 = vlaneseq
    %v6786 = vshrl.u32 %v6785, 7
    %v6787 = vsub.s32 1, %v6786
    %v6788 = vrot.slane %v6608, %v6787
    %6790 = vbcast.lane.b32.xlu0 %v6788, 256
    %v6791 = vpop.permute.xlu0 %6790
    %v6792 = vlaneseq
    %v6793 = vshrl.u32 %v6792, 7
    %v6794 = vsub.s32 2, %v6793
    %v6795 = vrot.slane %v6608, %v6794
    %6797 = vbcast.lane.b32.xlu0 %v6795, 256
    %v6798 = vpop.permute.xlu0 %6797
    %v6799 = vlaneseq
    %v6800 = vshrl.u32 %v6799, 7
    %v6801 = vsub.s32 3, %v6800
    %v6802 = vrot.slane %v6608, %v6801
    %6804 = vbcast.lane.b32.xlu0 %v6802, 256
    %v6805 = vpop.permute.xlu0 %6804
    %v6806 = vlaneseq
    %v6807 = vshrl.u32 %v6806, 7
    %v6808 = vsub.s32 0, %v6807
    %v6809 = vrot.slane %v6609, %v6808
    %6811 = vbcast.lane.b32.xlu0 %v6809, 256
    %v6812 = vpop.permute.xlu0 %6811
    %v6813 = vlaneseq
    %v6814 = vshrl.u32 %v6813, 7
    %v6815 = vsub.s32 1, %v6814
    %v6816 = vrot.slane %v6609, %v6815
    %6818 = vbcast.lane.b32.xlu0 %v6816, 256
    %v6819 = vpop.permute.xlu0 %6818
    %v6820 = vlaneseq
    %v6821 = vshrl.u32 %v6820, 7
    %v6822 = vsub.s32 2, %v6821
    %v6823 = vrot.slane %v6609, %v6822
    %6825 = vbcast.lane.b32.xlu0 %v6823, 256
    %v6826 = vpop.permute.xlu0 %6825
    %v6827 = vlaneseq
    %v6828 = vshrl.u32 %v6827, 7
    %v6829 = vsub.s32 3, %v6828
    %v6830 = vrot.slane %v6609, %v6829
    %6832 = vbcast.lane.b32.xlu0 %v6830, 256
    %v6833 = vpop.permute.xlu0 %6832
    %v6834 = vmul.f32 %v6616, %v5275
    %v6835 = vmul.f32 %v6623, %v5276
    %v6836 = vmul.f32 %v6630, %v5277
    %v6837 = vmul.f32 %v6637, %v5278
    %v6838 = vmul.f32 %v6644, %v5279
    %v6839 = vmul.f32 %v6651, %v5280
    %v6840 = vmul.f32 %v6658, %v5281
    %v6841 = vmul.f32 %v6665, %v5282
    %v6842 = vmul.f32 %v6672, %v5283
    %v6843 = vmul.f32 %v6679, %v5284
    %v6844 = vmul.f32 %v6686, %v5285
    %v6845 = vmul.f32 %v6693, %v5286
    %v6846 = vmul.f32 %v6700, %v5287
    %v6847 = vmul.f32 %v6707, %v5288
    %v6848 = vmul.f32 %v6714, %v5289
    %v6849 = vmul.f32 %v6721, %v5290
    %v6850 = vmul.f32 %v6728, %v5291
    %v6851 = vmul.f32 %v6735, %v5292
    %v6852 = vmul.f32 %v6742, %v5293
    %v6853 = vmul.f32 %v6749, %v5294
    %v6854 = vmul.f32 %v6756, %v5295
    %v6855 = vmul.f32 %v6763, %v5296
    %v6856 = vmul.f32 %v6770, %v5297
    %v6857 = vmul.f32 %v6777, %v5298
    %v6858 = vmul.f32 %v6784, %v5299
    %v6859 = vmul.f32 %v6791, %v5300
    %v6860 = vmul.f32 %v6798, %v5301
    %v6861 = vmul.f32 %v6805, %v5302
    %v6862 = vmul.f32 %v6812, %v5303
    %v6863 = vmul.f32 %v6819, %v5304
    %v6864 = vmul.f32 %v6826, %v5305
    %v6865 = vmul.f32 %v6833, %v5306
    %v6866 = vld [vmem:[%s5] sm:$0xf]
    %v6867 = vld [vmem:[%s5 + $0x4] sm:$0xf]
    %v6868 = vld [vmem:[%s5 + $0x8] sm:$0xf]
    %v6869 = vld [vmem:[%s5 + $0xc] sm:$0xf]
    %v6870 = vld [vmem:[%s5 + $0x10] sm:$0xf]
    %v6871 = vld [vmem:[%s5 + $0x14] sm:$0xf]
    %v6872 = vld [vmem:[%s5 + $0x18] sm:$0xf]
    %v6873 = vld [vmem:[%s5 + $0x1c] sm:$0xf]
    %v6874 = vlaneseq
    %v6875 = vshrl.u32 %v6874, 7
    %v6876 = vsub.s32 0, %v6875
    %v6877 = vrot.slane %v6866, %v6876
    %6879 = vbcast.lane.b32.xlu0 %v6877, 256
    %v6880 = vpop.permute.xlu0 %6879
    %v6881 = vlaneseq
    %v6882 = vshrl.u32 %v6881, 7
    %v6883 = vsub.s32 1, %v6882
    %v6884 = vrot.slane %v6866, %v6883
    %6886 = vbcast.lane.b32.xlu0 %v6884, 256
    %v6887 = vpop.permute.xlu0 %6886
    %v6888 = vlaneseq
    %v6889 = vshrl.u32 %v6888, 7
    %v6890 = vsub.s32 2, %v6889
    %v6891 = vrot.slane %v6866, %v6890
    %6893 = vbcast.lane.b32.xlu0 %v6891, 256
    %v6894 = vpop.permute.xlu0 %6893
    %v6895 = vlaneseq
    %v6896 = vshrl.u32 %v6895, 7
    %v6897 = vsub.s32 3, %v6896
    %v6898 = vrot.slane %v6866, %v6897
    %6900 = vbcast.lane.b32.xlu0 %v6898, 256
    %v6901 = vpop.permute.xlu0 %6900
    %v6902 = vlaneseq
    %v6903 = vshrl.u32 %v6902, 7
    %v6904 = vsub.s32 0, %v6903
    %v6905 = vrot.slane %v6867, %v6904
    %6907 = vbcast.lane.b32.xlu0 %v6905, 256
    %v6908 = vpop.permute.xlu0 %6907
    %v6909 = vlaneseq
    %v6910 = vshrl.u32 %v6909, 7
    %v6911 = vsub.s32 1, %v6910
    %v6912 = vrot.slane %v6867, %v6911
    %6914 = vbcast.lane.b32.xlu0 %v6912, 256
    %v6915 = vpop.permute.xlu0 %6914
    %v6916 = vlaneseq
    %v6917 = vshrl.u32 %v6916, 7
    %v6918 = vsub.s32 2, %v6917
    %v6919 = vrot.slane %v6867, %v6918
    %6921 = vbcast.lane.b32.xlu0 %v6919, 256
    %v6922 = vpop.permute.xlu0 %6921
    %v6923 = vlaneseq
    %v6924 = vshrl.u32 %v6923, 7
    %v6925 = vsub.s32 3, %v6924
    %v6926 = vrot.slane %v6867, %v6925
    %6928 = vbcast.lane.b32.xlu0 %v6926, 256
    %v6929 = vpop.permute.xlu0 %6928
    %v6930 = vlaneseq
    %v6931 = vshrl.u32 %v6930, 7
    %v6932 = vsub.s32 0, %v6931
    %v6933 = vrot.slane %v6868, %v6932
    %6935 = vbcast.lane.b32.xlu0 %v6933, 256
    %v6936 = vpop.permute.xlu0 %6935
    %v6937 = vlaneseq
    %v6938 = vshrl.u32 %v6937, 7
    %v6939 = vsub.s32 1, %v6938
    %v6940 = vrot.slane %v6868, %v6939
    %6942 = vbcast.lane.b32.xlu0 %v6940, 256
    %v6943 = vpop.permute.xlu0 %6942
    %v6944 = vlaneseq
    %v6945 = vshrl.u32 %v6944, 7
    %v6946 = vsub.s32 2, %v6945
    %v6947 = vrot.slane %v6868, %v6946
    %6949 = vbcast.lane.b32.xlu0 %v6947, 256
    %v6950 = vpop.permute.xlu0 %6949
    %v6951 = vlaneseq
    %v6952 = vshrl.u32 %v6951, 7
    %v6953 = vsub.s32 3, %v6952
    %v6954 = vrot.slane %v6868, %v6953
    %6956 = vbcast.lane.b32.xlu0 %v6954, 256
    %v6957 = vpop.permute.xlu0 %6956
    %v6958 = vlaneseq
    %v6959 = vshrl.u32 %v6958, 7
    %v6960 = vsub.s32 0, %v6959
    %v6961 = vrot.slane %v6869, %v6960
    %6963 = vbcast.lane.b32.xlu0 %v6961, 256
    %v6964 = vpop.permute.xlu0 %6963
    %v6965 = vlaneseq
    %v6966 = vshrl.u32 %v6965, 7
    %v6967 = vsub.s32 1, %v6966
    %v6968 = vrot.slane %v6869, %v6967
    %6970 = vbcast.lane.b32.xlu0 %v6968, 256
    %v6971 = vpop.permute.xlu0 %6970
    %v6972 = vlaneseq
    %v6973 = vshrl.u32 %v6972, 7
    %v6974 = vsub.s32 2, %v6973
    %v6975 = vrot.slane %v6869, %v6974
    %6977 = vbcast.lane.b32.xlu0 %v6975, 256
    %v6978 = vpop.permute.xlu0 %6977
    %v6979 = vlaneseq
    %v6980 = vshrl.u32 %v6979, 7
    %v6981 = vsub.s32 3, %v6980
    %v6982 = vrot.slane %v6869, %v6981
    %6984 = vbcast.lane.b32.xlu0 %v6982, 256
    %v6985 = vpop.permute.xlu0 %6984
    %v6986 = vlaneseq
    %v6987 = vshrl.u32 %v6986, 7
    %v6988 = vsub.s32 0, %v6987
    %v6989 = vrot.slane %v6870, %v6988
    %6991 = vbcast.lane.b32.xlu0 %v6989, 256
    %v6992 = vpop.permute.xlu0 %6991
    %v6993 = vlaneseq
    %v6994 = vshrl.u32 %v6993, 7
    %v6995 = vsub.s32 1, %v6994
    %v6996 = vrot.slane %v6870, %v6995
    %6998 = vbcast.lane.b32.xlu0 %v6996, 256
    %v6999 = vpop.permute.xlu0 %6998
    %v7000 = vlaneseq
    %v7001 = vshrl.u32 %v7000, 7
    %v7002 = vsub.s32 2, %v7001
    %v7003 = vrot.slane %v6870, %v7002
    %7005 = vbcast.lane.b32.xlu0 %v7003, 256
    %v7006 = vpop.permute.xlu0 %7005
    %v7007 = vlaneseq
    %v7008 = vshrl.u32 %v7007, 7
    %v7009 = vsub.s32 3, %v7008
    %v7010 = vrot.slane %v6870, %v7009
    %7012 = vbcast.lane.b32.xlu0 %v7010, 256
    %v7013 = vpop.permute.xlu0 %7012
    %v7014 = vlaneseq
    %v7015 = vshrl.u32 %v7014, 7
    %v7016 = vsub.s32 0, %v7015
    %v7017 = vrot.slane %v6871, %v7016
    %7019 = vbcast.lane.b32.xlu0 %v7017, 256
    %v7020 = vpop.permute.xlu0 %7019
    %v7021 = vlaneseq
    %v7022 = vshrl.u32 %v7021, 7
    %v7023 = vsub.s32 1, %v7022
    %v7024 = vrot.slane %v6871, %v7023
    %7026 = vbcast.lane.b32.xlu0 %v7024, 256
    %v7027 = vpop.permute.xlu0 %7026
    %v7028 = vlaneseq
    %v7029 = vshrl.u32 %v7028, 7
    %v7030 = vsub.s32 2, %v7029
    %v7031 = vrot.slane %v6871, %v7030
    %7033 = vbcast.lane.b32.xlu0 %v7031, 256
    %v7034 = vpop.permute.xlu0 %7033
    %v7035 = vlaneseq
    %v7036 = vshrl.u32 %v7035, 7
    %v7037 = vsub.s32 3, %v7036
    %v7038 = vrot.slane %v6871, %v7037
    %7040 = vbcast.lane.b32.xlu0 %v7038, 256
    %v7041 = vpop.permute.xlu0 %7040
    %v7042 = vlaneseq
    %v7043 = vshrl.u32 %v7042, 7
    %v7044 = vsub.s32 0, %v7043
    %v7045 = vrot.slane %v6872, %v7044
    %7047 = vbcast.lane.b32.xlu0 %v7045, 256
    %v7048 = vpop.permute.xlu0 %7047
    %v7049 = vlaneseq
    %v7050 = vshrl.u32 %v7049, 7
    %v7051 = vsub.s32 1, %v7050
    %v7052 = vrot.slane %v6872, %v7051
    %7054 = vbcast.lane.b32.xlu0 %v7052, 256
    %v7055 = vpop.permute.xlu0 %7054
    %v7056 = vlaneseq
    %v7057 = vshrl.u32 %v7056, 7
    %v7058 = vsub.s32 2, %v7057
    %v7059 = vrot.slane %v6872, %v7058
    %7061 = vbcast.lane.b32.xlu0 %v7059, 256
    %v7062 = vpop.permute.xlu0 %7061
    %v7063 = vlaneseq
    %v7064 = vshrl.u32 %v7063, 7
    %v7065 = vsub.s32 3, %v7064
    %v7066 = vrot.slane %v6872, %v7065
    %7068 = vbcast.lane.b32.xlu0 %v7066, 256
    %v7069 = vpop.permute.xlu0 %7068
    %v7070 = vlaneseq
    %v7071 = vshrl.u32 %v7070, 7
    %v7072 = vsub.s32 0, %v7071
    %v7073 = vrot.slane %v6873, %v7072
    %7075 = vbcast.lane.b32.xlu0 %v7073, 256
    %v7076 = vpop.permute.xlu0 %7075
    %v7077 = vlaneseq
    %v7078 = vshrl.u32 %v7077, 7
    %v7079 = vsub.s32 1, %v7078
    %v7080 = vrot.slane %v6873, %v7079
    %7082 = vbcast.lane.b32.xlu0 %v7080, 256
    %v7083 = vpop.permute.xlu0 %7082
    %v7084 = vlaneseq
    %v7085 = vshrl.u32 %v7084, 7
    %v7086 = vsub.s32 2, %v7085
    %v7087 = vrot.slane %v6873, %v7086
    %7089 = vbcast.lane.b32.xlu0 %v7087, 256
    %v7090 = vpop.permute.xlu0 %7089
    %v7091 = vlaneseq
    %v7092 = vshrl.u32 %v7091, 7
    %v7093 = vsub.s32 3, %v7092
    %v7094 = vrot.slane %v6873, %v7093
    %7096 = vbcast.lane.b32.xlu0 %v7094, 256
    %v7097 = vpop.permute.xlu0 %7096
    %vm7098 = vcmp.eq.s32.totalorder %v6880, 0
    %vm7099 = vcmp.eq.s32.totalorder %v6887, 0
    %vm7100 = vcmp.eq.s32.totalorder %v6894, 0
    %vm7101 = vcmp.eq.s32.totalorder %v6901, 0
    %vm7102 = vcmp.eq.s32.totalorder %v6908, 0
    %vm7103 = vcmp.eq.s32.totalorder %v6915, 0
    %vm7104 = vcmp.eq.s32.totalorder %v6922, 0
    %vm7105 = vcmp.eq.s32.totalorder %v6929, 0
    %vm7106 = vcmp.eq.s32.totalorder %v6936, 0
    %vm7107 = vcmp.eq.s32.totalorder %v6943, 0
    %vm7108 = vcmp.eq.s32.totalorder %v6950, 0
    %vm7109 = vcmp.eq.s32.totalorder %v6957, 0
    %vm7110 = vcmp.eq.s32.totalorder %v6964, 0
    %vm7111 = vcmp.eq.s32.totalorder %v6971, 0
    %vm7112 = vcmp.eq.s32.totalorder %v6978, 0
    %vm7113 = vcmp.eq.s32.totalorder %v6985, 0
    %vm7114 = vcmp.eq.s32.totalorder %v6992, 0
    %vm7115 = vcmp.eq.s32.totalorder %v6999, 0
    %vm7116 = vcmp.eq.s32.totalorder %v7006, 0
    %vm7117 = vcmp.eq.s32.totalorder %v7013, 0
    %vm7118 = vcmp.eq.s32.totalorder %v7020, 0
    %vm7119 = vcmp.eq.s32.totalorder %v7027, 0
    %vm7120 = vcmp.eq.s32.totalorder %v7034, 0
    %vm7121 = vcmp.eq.s32.totalorder %v7041, 0
    %vm7122 = vcmp.eq.s32.totalorder %v7048, 0
    %vm7123 = vcmp.eq.s32.totalorder %v7055, 0
    %vm7124 = vcmp.eq.s32.totalorder %v7062, 0
    %vm7125 = vcmp.eq.s32.totalorder %v7069, 0
    %vm7126 = vcmp.eq.s32.totalorder %v7076, 0
    %vm7127 = vcmp.eq.s32.totalorder %v7083, 0
    %vm7128 = vcmp.eq.s32.totalorder %v7090, 0
    %vm7129 = vcmp.eq.s32.totalorder %v7097, 0
    %vm7130 = vcmp.eq.s32.totalorder %v6880, 1
    %vm7131 = vcmp.eq.s32.totalorder %v6887, 1
    %vm7132 = vcmp.eq.s32.totalorder %v6894, 1
    %vm7133 = vcmp.eq.s32.totalorder %v6901, 1
    %vm7134 = vcmp.eq.s32.totalorder %v6908, 1
    %vm7135 = vcmp.eq.s32.totalorder %v6915, 1
    %vm7136 = vcmp.eq.s32.totalorder %v6922, 1
    %vm7137 = vcmp.eq.s32.totalorder %v6929, 1
    %vm7138 = vcmp.eq.s32.totalorder %v6936, 1
    %vm7139 = vcmp.eq.s32.totalorder %v6943, 1
    %vm7140 = vcmp.eq.s32.totalorder %v6950, 1
    %vm7141 = vcmp.eq.s32.totalorder %v6957, 1
    %vm7142 = vcmp.eq.s32.totalorder %v6964, 1
    %vm7143 = vcmp.eq.s32.totalorder %v6971, 1
    %vm7144 = vcmp.eq.s32.totalorder %v6978, 1
    %vm7145 = vcmp.eq.s32.totalorder %v6985, 1
    %vm7146 = vcmp.eq.s32.totalorder %v6992, 1
    %vm7147 = vcmp.eq.s32.totalorder %v6999, 1
    %vm7148 = vcmp.eq.s32.totalorder %v7006, 1
    %vm7149 = vcmp.eq.s32.totalorder %v7013, 1
    %vm7150 = vcmp.eq.s32.totalorder %v7020, 1
    %vm7151 = vcmp.eq.s32.totalorder %v7027, 1
    %vm7152 = vcmp.eq.s32.totalorder %v7034, 1
    %vm7153 = vcmp.eq.s32.totalorder %v7041, 1
    %vm7154 = vcmp.eq.s32.totalorder %v7048, 1
    %vm7155 = vcmp.eq.s32.totalorder %v7055, 1
    %vm7156 = vcmp.eq.s32.totalorder %v7062, 1
    %vm7157 = vcmp.eq.s32.totalorder %v7069, 1
    %vm7158 = vcmp.eq.s32.totalorder %v7076, 1
    %vm7159 = vcmp.eq.s32.totalorder %v7083, 1
    %vm7160 = vcmp.eq.s32.totalorder %v7090, 1
    %vm7161 = vcmp.eq.s32.totalorder %v7097, 1
    %v7162 = vsel %vm7130, 1, 0
    %v7163 = vsel %vm7131, 1, 0
    %v7164 = vsel %vm7132, 1, 0
    %v7165 = vsel %vm7133, 1, 0
    %v7166 = vsel %vm7134, 1, 0
    %v7167 = vsel %vm7135, 1, 0
    %v7168 = vsel %vm7136, 1, 0
    %v7169 = vsel %vm7137, 1, 0
    %v7170 = vsel %vm7138, 1, 0
    %v7171 = vsel %vm7139, 1, 0
    %v7172 = vsel %vm7140, 1, 0
    %v7173 = vsel %vm7141, 1, 0
    %v7174 = vsel %vm7142, 1, 0
    %v7175 = vsel %vm7143, 1, 0
    %v7176 = vsel %vm7144, 1, 0
    %v7177 = vsel %vm7145, 1, 0
    %v7178 = vsel %vm7146, 1, 0
    %v7179 = vsel %vm7147, 1, 0
    %v7180 = vsel %vm7148, 1, 0
    %v7181 = vsel %vm7149, 1, 0
    %v7182 = vsel %vm7150, 1, 0
    %v7183 = vsel %vm7151, 1, 0
    %v7184 = vsel %vm7152, 1, 0
    %v7185 = vsel %vm7153, 1, 0
    %v7186 = vsel %vm7154, 1, 0
    %v7187 = vsel %vm7155, 1, 0
    %v7188 = vsel %vm7156, 1, 0
    %v7189 = vsel %vm7157, 1, 0
    %v7190 = vsel %vm7158, 1, 0
    %v7191 = vsel %vm7159, 1, 0
    %v7192 = vsel %vm7160, 1, 0
    %v7193 = vsel %vm7161, 1, 0
    %vm7194 = vcmp.eq.s32.totalorder %v7162, 1
    %vm7195 = vcmp.eq.s32.totalorder %v7163, 1
    %vm7196 = vcmp.eq.s32.totalorder %v7164, 1
    %vm7197 = vcmp.eq.s32.totalorder %v7165, 1
    %vm7198 = vcmp.eq.s32.totalorder %v7166, 1
    %vm7199 = vcmp.eq.s32.totalorder %v7167, 1
    %vm7200 = vcmp.eq.s32.totalorder %v7168, 1
    %vm7201 = vcmp.eq.s32.totalorder %v7169, 1
    %vm7202 = vcmp.eq.s32.totalorder %v7170, 1
    %vm7203 = vcmp.eq.s32.totalorder %v7171, 1
    %vm7204 = vcmp.eq.s32.totalorder %v7172, 1
    %vm7205 = vcmp.eq.s32.totalorder %v7173, 1
    %vm7206 = vcmp.eq.s32.totalorder %v7174, 1
    %vm7207 = vcmp.eq.s32.totalorder %v7175, 1
    %vm7208 = vcmp.eq.s32.totalorder %v7176, 1
    %vm7209 = vcmp.eq.s32.totalorder %v7177, 1
    %vm7210 = vcmp.eq.s32.totalorder %v7178, 1
    %vm7211 = vcmp.eq.s32.totalorder %v7179, 1
    %vm7212 = vcmp.eq.s32.totalorder %v7180, 1
    %vm7213 = vcmp.eq.s32.totalorder %v7181, 1
    %vm7214 = vcmp.eq.s32.totalorder %v7182, 1
    %vm7215 = vcmp.eq.s32.totalorder %v7183, 1
    %vm7216 = vcmp.eq.s32.totalorder %v7184, 1
    %vm7217 = vcmp.eq.s32.totalorder %v7185, 1
    %vm7218 = vcmp.eq.s32.totalorder %v7186, 1
    %vm7219 = vcmp.eq.s32.totalorder %v7187, 1
    %vm7220 = vcmp.eq.s32.totalorder %v7188, 1
    %vm7221 = vcmp.eq.s32.totalorder %v7189, 1
    %vm7222 = vcmp.eq.s32.totalorder %v7190, 1
    %vm7223 = vcmp.eq.s32.totalorder %v7191, 1
    %vm7224 = vcmp.eq.s32.totalorder %v7192, 1
    %vm7225 = vcmp.eq.s32.totalorder %v7193, 1
    %v7226 = vlaneseq
    %v7227 = vshrl.u32 %v7226, 7
    %v7228 = vsub.s32 1, %v7227
    %v7229 = vrot.slane %v49, %v7228
    %v7230 = vlaneseq
    %v7231 = vshrl.u32 %v7230, 7
    %v7232 = vsub.s32 2, %v7231
    %v7233 = vrot.slane %v49, %v7232
    %v7234 = vsel %vm7194, %v7229, %v7233
    %v7235 = vsel %vm7195, %v7229, %v7233
    %v7236 = vsel %vm7196, %v7229, %v7233
    %v7237 = vsel %vm7197, %v7229, %v7233
    %v7238 = vsel %vm7198, %v7229, %v7233
    %v7239 = vsel %vm7199, %v7229, %v7233
    %v7240 = vsel %vm7200, %v7229, %v7233
    %v7241 = vsel %vm7201, %v7229, %v7233
    %v7242 = vsel %vm7202, %v7229, %v7233
    %v7243 = vsel %vm7203, %v7229, %v7233
    %v7244 = vsel %vm7204, %v7229, %v7233
    %v7245 = vsel %vm7205, %v7229, %v7233
    %v7246 = vsel %vm7206, %v7229, %v7233
    %v7247 = vsel %vm7207, %v7229, %v7233
    %v7248 = vsel %vm7208, %v7229, %v7233
    %v7249 = vsel %vm7209, %v7229, %v7233
    %v7250 = vsel %vm7210, %v7229, %v7233
    %v7251 = vsel %vm7211, %v7229, %v7233
    %v7252 = vsel %vm7212, %v7229, %v7233
    %v7253 = vsel %vm7213, %v7229, %v7233
    %v7254 = vsel %vm7214, %v7229, %v7233
    %v7255 = vsel %vm7215, %v7229, %v7233
    %v7256 = vsel %vm7216, %v7229, %v7233
    %v7257 = vsel %vm7217, %v7229, %v7233
    %v7258 = vsel %vm7218, %v7229, %v7233
    %v7259 = vsel %vm7219, %v7229, %v7233
    %v7260 = vsel %vm7220, %v7229, %v7233
    %v7261 = vsel %vm7221, %v7229, %v7233
    %v7262 = vsel %vm7222, %v7229, %v7233
    %v7263 = vsel %vm7223, %v7229, %v7233
    %v7264 = vsel %vm7224, %v7229, %v7233
    %v7265 = vsel %vm7225, %v7229, %v7233
    %v7266 = vsel %vm7098, 1, 0
    %v7267 = vsel %vm7099, 1, 0
    %v7268 = vsel %vm7100, 1, 0
    %v7269 = vsel %vm7101, 1, 0
    %v7270 = vsel %vm7102, 1, 0
    %v7271 = vsel %vm7103, 1, 0
    %v7272 = vsel %vm7104, 1, 0
    %v7273 = vsel %vm7105, 1, 0
    %v7274 = vsel %vm7106, 1, 0
    %v7275 = vsel %vm7107, 1, 0
    %v7276 = vsel %vm7108, 1, 0
    %v7277 = vsel %vm7109, 1, 0
    %v7278 = vsel %vm7110, 1, 0
    %v7279 = vsel %vm7111, 1, 0
    %v7280 = vsel %vm7112, 1, 0
    %v7281 = vsel %vm7113, 1, 0
    %v7282 = vsel %vm7114, 1, 0
    %v7283 = vsel %vm7115, 1, 0
    %v7284 = vsel %vm7116, 1, 0
    %v7285 = vsel %vm7117, 1, 0
    %v7286 = vsel %vm7118, 1, 0
    %v7287 = vsel %vm7119, 1, 0
    %v7288 = vsel %vm7120, 1, 0
    %v7289 = vsel %vm7121, 1, 0
    %v7290 = vsel %vm7122, 1, 0
    %v7291 = vsel %vm7123, 1, 0
    %v7292 = vsel %vm7124, 1, 0
    %v7293 = vsel %vm7125, 1, 0
    %v7294 = vsel %vm7126, 1, 0
    %v7295 = vsel %vm7127, 1, 0
    %v7296 = vsel %vm7128, 1, 0
    %v7297 = vsel %vm7129, 1, 0
    %vm7298 = vcmp.eq.s32.totalorder %v7266, 1
    %vm7299 = vcmp.eq.s32.totalorder %v7267, 1
    %vm7300 = vcmp.eq.s32.totalorder %v7268, 1
    %vm7301 = vcmp.eq.s32.totalorder %v7269, 1
    %vm7302 = vcmp.eq.s32.totalorder %v7270, 1
    %vm7303 = vcmp.eq.s32.totalorder %v7271, 1
    %vm7304 = vcmp.eq.s32.totalorder %v7272, 1
    %vm7305 = vcmp.eq.s32.totalorder %v7273, 1
    %vm7306 = vcmp.eq.s32.totalorder %v7274, 1
    %vm7307 = vcmp.eq.s32.totalorder %v7275, 1
    %vm7308 = vcmp.eq.s32.totalorder %v7276, 1
    %vm7309 = vcmp.eq.s32.totalorder %v7277, 1
    %vm7310 = vcmp.eq.s32.totalorder %v7278, 1
    %vm7311 = vcmp.eq.s32.totalorder %v7279, 1
    %vm7312 = vcmp.eq.s32.totalorder %v7280, 1
    %vm7313 = vcmp.eq.s32.totalorder %v7281, 1
    %vm7314 = vcmp.eq.s32.totalorder %v7282, 1
    %vm7315 = vcmp.eq.s32.totalorder %v7283, 1
    %vm7316 = vcmp.eq.s32.totalorder %v7284, 1
    %vm7317 = vcmp.eq.s32.totalorder %v7285, 1
    %vm7318 = vcmp.eq.s32.totalorder %v7286, 1
    %vm7319 = vcmp.eq.s32.totalorder %v7287, 1
    %vm7320 = vcmp.eq.s32.totalorder %v7288, 1
    %vm7321 = vcmp.eq.s32.totalorder %v7289, 1
    %vm7322 = vcmp.eq.s32.totalorder %v7290, 1
    %vm7323 = vcmp.eq.s32.totalorder %v7291, 1
    %vm7324 = vcmp.eq.s32.totalorder %v7292, 1
    %vm7325 = vcmp.eq.s32.totalorder %v7293, 1
    %vm7326 = vcmp.eq.s32.totalorder %v7294, 1
    %vm7327 = vcmp.eq.s32.totalorder %v7295, 1
    %vm7328 = vcmp.eq.s32.totalorder %v7296, 1
    %vm7329 = vcmp.eq.s32.totalorder %v7297, 1
    %v7330 = vlaneseq
    %v7331 = vshrl.u32 %v7330, 7
    %v7332 = vsub.s32 0, %v7331
    %v7333 = vrot.slane %v49, %v7332
    %v7334 = vsel %vm7298, %v7333, %v7234
    %v7335 = vsel %vm7299, %v7333, %v7235
    %v7336 = vsel %vm7300, %v7333, %v7236
    %v7337 = vsel %vm7301, %v7333, %v7237
    %v7338 = vsel %vm7302, %v7333, %v7238
    %v7339 = vsel %vm7303, %v7333, %v7239
    %v7340 = vsel %vm7304, %v7333, %v7240
    %v7341 = vsel %vm7305, %v7333, %v7241
    %v7342 = vsel %vm7306, %v7333, %v7242
    %v7343 = vsel %vm7307, %v7333, %v7243
    %v7344 = vsel %vm7308, %v7333, %v7244
    %v7345 = vsel %vm7309, %v7333, %v7245
    %v7346 = vsel %vm7310, %v7333, %v7246
    %v7347 = vsel %vm7311, %v7333, %v7247
    %v7348 = vsel %vm7312, %v7333, %v7248
    %v7349 = vsel %vm7313, %v7333, %v7249
    %v7350 = vsel %vm7314, %v7333, %v7250
    %v7351 = vsel %vm7315, %v7333, %v7251
    %v7352 = vsel %vm7316, %v7333, %v7252
    %v7353 = vsel %vm7317, %v7333, %v7253
    %v7354 = vsel %vm7318, %v7333, %v7254
    %v7355 = vsel %vm7319, %v7333, %v7255
    %v7356 = vsel %vm7320, %v7333, %v7256
    %v7357 = vsel %vm7321, %v7333, %v7257
    %v7358 = vsel %vm7322, %v7333, %v7258
    %v7359 = vsel %vm7323, %v7333, %v7259
    %v7360 = vsel %vm7324, %v7333, %v7260
    %v7361 = vsel %vm7325, %v7333, %v7261
    %v7362 = vsel %vm7326, %v7333, %v7262
    %v7363 = vsel %vm7327, %v7333, %v7263
    %v7364 = vsel %vm7328, %v7333, %v7264
    %v7365 = vsel %vm7329, %v7333, %v7265
    %v7366 = vmul.f32 %v7334, %v6834
    %v7367 = vmul.f32 %v7335, %v6835
    %v7368 = vmul.f32 %v7336, %v6836
    %v7369 = vmul.f32 %v7337, %v6837
    %v7370 = vmul.f32 %v7338, %v6838
    %v7371 = vmul.f32 %v7339, %v6839
    %v7372 = vmul.f32 %v7340, %v6840
    %v7373 = vmul.f32 %v7341, %v6841
    %v7374 = vmul.f32 %v7342, %v6842
    %v7375 = vmul.f32 %v7343, %v6843
    %v7376 = vmul.f32 %v7344, %v6844
    %v7377 = vmul.f32 %v7345, %v6845
    %v7378 = vmul.f32 %v7346, %v6846
    %v7379 = vmul.f32 %v7347, %v6847
    %v7380 = vmul.f32 %v7348, %v6848
    %v7381 = vmul.f32 %v7349, %v6849
    %v7382 = vmul.f32 %v7350, %v6850
    %v7383 = vmul.f32 %v7351, %v6851
    %v7384 = vmul.f32 %v7352, %v6852
    %v7385 = vmul.f32 %v7353, %v6853
    %v7386 = vmul.f32 %v7354, %v6854
    %v7387 = vmul.f32 %v7355, %v6855
    %v7388 = vmul.f32 %v7356, %v6856
    %v7389 = vmul.f32 %v7357, %v6857
    %v7390 = vmul.f32 %v7358, %v6858
    %v7391 = vmul.f32 %v7359, %v6859
    %v7392 = vmul.f32 %v7360, %v6860
    %v7393 = vmul.f32 %v7361, %v6861
    %v7394 = vmul.f32 %v7362, %v6862
    %v7395 = vmul.f32 %v7363, %v6863
    %v7396 = vmul.f32 %v7364, %v6864
    %v7397 = vmul.f32 %v7365, %v6865
    %v7407 = vunpack.c.l.s4 1966171168
    %v7408 = vunpack.c.0.s8 %v7407
    %v7409 = vlaneseq
    %v7410 = vshrl.u32 %v7409, 7
    %v7411 = vsub.s32 %v7408, %v7410
    %v7412 = vrot.slane %v5267, %v7411
    %v7413 = vcombine.high %v7412, %v7412
    %v7415 = vunpack.c.l.s4 1966171168
    %v7416 = vunpack.c.0.s8 %v7415
    %v7417 = vlaneseq
    %v7418 = vshrl.u32 %v7417, 7
    %v7419 = vsub.s32 %v7416, %v7418
    %v7420 = vrot.slane %v7412, %v7419
    %v7422 = vunpack.c.l.s4 1966171168
    %v7423 = vunpack.c.0.s8 %v7422
    %v7424 = vlaneseq
    %v7425 = vshrl.u32 %v7424, 7
    %v7426 = vsub.s32 %v7423, %v7425
    %v7427 = vrot.slane %v7413, %v7426
    %v7428 = vcombine.high %v7420, %v7420
    %v7429 = vcombine.high %v7427, %v7427
    %v7431 = vunpack.c.l.s4 1966171168
    %v7432 = vunpack.c.0.s8 %v7431
    %v7433 = vlaneseq
    %v7434 = vshrl.u32 %v7433, 7
    %v7435 = vsub.s32 %v7432, %v7434
    %v7436 = vrot.slane %v5268, %v7435
    %v7437 = vcombine.high %v7436, %v7436
    %v7439 = vunpack.c.l.s4 1966171168
    %v7440 = vunpack.c.0.s8 %v7439
    %v7441 = vlaneseq
    %v7442 = vshrl.u32 %v7441, 7
    %v7443 = vsub.s32 %v7440, %v7442
    %v7444 = vrot.slane %v7436, %v7443
    %v7446 = vunpack.c.l.s4 1966171168
    %v7447 = vunpack.c.0.s8 %v7446
    %v7448 = vlaneseq
    %v7449 = vshrl.u32 %v7448, 7
    %v7450 = vsub.s32 %v7447, %v7449
    %v7451 = vrot.slane %v7437, %v7450
    %v7452 = vcombine.high %v7444, %v7444
    %v7453 = vcombine.high %v7451, %v7451
    %v7455 = vunpack.c.l.s4 1966171168
    %v7456 = vunpack.c.0.s8 %v7455
    %v7457 = vlaneseq
    %v7458 = vshrl.u32 %v7457, 7
    %v7459 = vsub.s32 %v7456, %v7458
    %v7460 = vrot.slane %v5269, %v7459
    %v7461 = vcombine.high %v7460, %v7460
    %v7463 = vunpack.c.l.s4 1966171168
    %v7464 = vunpack.c.0.s8 %v7463
    %v7465 = vlaneseq
    %v7466 = vshrl.u32 %v7465, 7
    %v7467 = vsub.s32 %v7464, %v7466
    %v7468 = vrot.slane %v7460, %v7467
    %v7470 = vunpack.c.l.s4 1966171168
    %v7471 = vunpack.c.0.s8 %v7470
    %v7472 = vlaneseq
    %v7473 = vshrl.u32 %v7472, 7
    %v7474 = vsub.s32 %v7471, %v7473
    %v7475 = vrot.slane %v7461, %v7474
    %v7476 = vcombine.high %v7468, %v7468
    %v7477 = vcombine.high %v7475, %v7475
    %v7479 = vunpack.c.l.s4 1966171168
    %v7480 = vunpack.c.0.s8 %v7479
    %v7481 = vlaneseq
    %v7482 = vshrl.u32 %v7481, 7
    %v7483 = vsub.s32 %v7480, %v7482
    %v7484 = vrot.slane %v5270, %v7483
    %v7485 = vcombine.high %v7484, %v7484
    %v7487 = vunpack.c.l.s4 1966171168
    %v7488 = vunpack.c.0.s8 %v7487
    %v7489 = vlaneseq
    %v7490 = vshrl.u32 %v7489, 7
    %v7491 = vsub.s32 %v7488, %v7490
    %v7492 = vrot.slane %v7484, %v7491
    %v7494 = vunpack.c.l.s4 1966171168
    %v7495 = vunpack.c.0.s8 %v7494
    %v7496 = vlaneseq
    %v7497 = vshrl.u32 %v7496, 7
    %v7498 = vsub.s32 %v7495, %v7497
    %v7499 = vrot.slane %v7485, %v7498
    %v7500 = vcombine.high %v7492, %v7492
    %v7501 = vcombine.high %v7499, %v7499
    %v7503 = vunpack.c.l.s4 1966171168
    %v7504 = vunpack.c.0.s8 %v7503
    %v7505 = vlaneseq
    %v7506 = vshrl.u32 %v7505, 7
    %v7507 = vsub.s32 %v7504, %v7506
    %v7508 = vrot.slane %v5271, %v7507
    %v7509 = vcombine.high %v7508, %v7508
    %v7511 = vunpack.c.l.s4 1966171168
    %v7512 = vunpack.c.0.s8 %v7511
    %v7513 = vlaneseq
    %v7514 = vshrl.u32 %v7513, 7
    %v7515 = vsub.s32 %v7512, %v7514
    %v7516 = vrot.slane %v7508, %v7515
    %v7518 = vunpack.c.l.s4 1966171168
    %v7519 = vunpack.c.0.s8 %v7518
    %v7520 = vlaneseq
    %v7521 = vshrl.u32 %v7520, 7
    %v7522 = vsub.s32 %v7519, %v7521
    %v7523 = vrot.slane %v7509, %v7522
    %v7524 = vcombine.high %v7516, %v7516
    %v7525 = vcombine.high %v7523, %v7523
    %v7527 = vunpack.c.l.s4 1966171168
    %v7528 = vunpack.c.0.s8 %v7527
    %v7529 = vlaneseq
    %v7530 = vshrl.u32 %v7529, 7
    %v7531 = vsub.s32 %v7528, %v7530
    %v7532 = vrot.slane %v5272, %v7531
    %v7533 = vcombine.high %v7532, %v7532
    %v7535 = vunpack.c.l.s4 1966171168
    %v7536 = vunpack.c.0.s8 %v7535
    %v7537 = vlaneseq
    %v7538 = vshrl.u32 %v7537, 7
    %v7539 = vsub.s32 %v7536, %v7538
    %v7540 = vrot.slane %v7532, %v7539
    %v7542 = vunpack.c.l.s4 1966171168
    %v7543 = vunpack.c.0.s8 %v7542
    %v7544 = vlaneseq
    %v7545 = vshrl.u32 %v7544, 7
    %v7546 = vsub.s32 %v7543, %v7545
    %v7547 = vrot.slane %v7533, %v7546
    %v7548 = vcombine.high %v7540, %v7540
    %v7549 = vcombine.high %v7547, %v7547
    %v7551 = vunpack.c.l.s4 1966171168
    %v7552 = vunpack.c.0.s8 %v7551
    %v7553 = vlaneseq
    %v7554 = vshrl.u32 %v7553, 7
    %v7555 = vsub.s32 %v7552, %v7554
    %v7556 = vrot.slane %v5273, %v7555
    %v7557 = vcombine.high %v7556, %v7556
    %v7559 = vunpack.c.l.s4 1966171168
    %v7560 = vunpack.c.0.s8 %v7559
    %v7561 = vlaneseq
    %v7562 = vshrl.u32 %v7561, 7
    %v7563 = vsub.s32 %v7560, %v7562
    %v7564 = vrot.slane %v7556, %v7563
    %v7566 = vunpack.c.l.s4 1966171168
    %v7567 = vunpack.c.0.s8 %v7566
    %v7568 = vlaneseq
    %v7569 = vshrl.u32 %v7568, 7
    %v7570 = vsub.s32 %v7567, %v7569
    %v7571 = vrot.slane %v7557, %v7570
    %v7572 = vcombine.high %v7564, %v7564
    %v7573 = vcombine.high %v7571, %v7571
    %v7575 = vunpack.c.l.s4 1966171168
    %v7576 = vunpack.c.0.s8 %v7575
    %v7577 = vlaneseq
    %v7578 = vshrl.u32 %v7577, 7
    %v7579 = vsub.s32 %v7576, %v7578
    %v7580 = vrot.slane %v5274, %v7579
    %v7581 = vcombine.high %v7580, %v7580
    %v7583 = vunpack.c.l.s4 1966171168
    %v7584 = vunpack.c.0.s8 %v7583
    %v7585 = vlaneseq
    %v7586 = vshrl.u32 %v7585, 7
    %v7587 = vsub.s32 %v7584, %v7586
    %v7588 = vrot.slane %v7580, %v7587
    %v7590 = vunpack.c.l.s4 1966171168
    %v7591 = vunpack.c.0.s8 %v7590
    %v7592 = vlaneseq
    %v7593 = vshrl.u32 %v7592, 7
    %v7594 = vsub.s32 %v7591, %v7593
    %v7595 = vrot.slane %v7581, %v7594
    %v7596 = vcombine.high %v7588, %v7588
    %v7597 = vcombine.high %v7595, %v7595
    %v7598 = vlaneseq
    %v7599 = vshrl.u32 %v7598, 7
    %v7600 = vsub.s32 0, %v7599
    %v7601 = vrot.slane %v7420, %v7600
    %v7602 = vlaneseq
    %v7603 = vshrl.u32 %v7602, 7
    %v7604 = vsub.s32 0, %v7603
    %v7605 = vrot.slane %v7427, %v7604
    %v7606 = vlaneseq
    %v7607 = vshrl.u32 %v7606, 7
    %v7608 = vsub.s32 0, %v7607
    %v7609 = vrot.slane %v7428, %v7608
    %v7610 = vlaneseq
    %v7611 = vshrl.u32 %v7610, 7
    %v7612 = vsub.s32 0, %v7611
    %v7613 = vrot.slane %v7429, %v7612
    %v7614 = vlaneseq
    %v7615 = vshrl.u32 %v7614, 7
    %v7616 = vsub.s32 0, %v7615
    %v7617 = vrot.slane %v7444, %v7616
    %v7618 = vlaneseq
    %v7619 = vshrl.u32 %v7618, 7
    %v7620 = vsub.s32 0, %v7619
    %v7621 = vrot.slane %v7451, %v7620
    %v7622 = vlaneseq
    %v7623 = vshrl.u32 %v7622, 7
    %v7624 = vsub.s32 0, %v7623
    %v7625 = vrot.slane %v7452, %v7624
    %v7626 = vlaneseq
    %v7627 = vshrl.u32 %v7626, 7
    %v7628 = vsub.s32 0, %v7627
    %v7629 = vrot.slane %v7453, %v7628
    %v7630 = vlaneseq
    %v7631 = vshrl.u32 %v7630, 7
    %v7632 = vsub.s32 0, %v7631
    %v7633 = vrot.slane %v7468, %v7632
    %v7634 = vlaneseq
    %v7635 = vshrl.u32 %v7634, 7
    %v7636 = vsub.s32 0, %v7635
    %v7637 = vrot.slane %v7475, %v7636
    %v7638 = vlaneseq
    %v7639 = vshrl.u32 %v7638, 7
    %v7640 = vsub.s32 0, %v7639
    %v7641 = vrot.slane %v7476, %v7640
    %v7642 = vlaneseq
    %v7643 = vshrl.u32 %v7642, 7
    %v7644 = vsub.s32 0, %v7643
    %v7645 = vrot.slane %v7477, %v7644
    %v7646 = vlaneseq
    %v7647 = vshrl.u32 %v7646, 7
    %v7648 = vsub.s32 0, %v7647
    %v7649 = vrot.slane %v7492, %v7648
    %v7650 = vlaneseq
    %v7651 = vshrl.u32 %v7650, 7
    %v7652 = vsub.s32 0, %v7651
    %v7653 = vrot.slane %v7499, %v7652
    %v7654 = vlaneseq
    %v7655 = vshrl.u32 %v7654, 7
    %v7656 = vsub.s32 0, %v7655
    %v7657 = vrot.slane %v7500, %v7656
    %v7658 = vlaneseq
    %v7659 = vshrl.u32 %v7658, 7
    %v7660 = vsub.s32 0, %v7659
    %v7661 = vrot.slane %v7501, %v7660
    %v7662 = vlaneseq
    %v7663 = vshrl.u32 %v7662, 7
    %v7664 = vsub.s32 0, %v7663
    %v7665 = vrot.slane %v7516, %v7664
    %v7666 = vlaneseq
    %v7667 = vshrl.u32 %v7666, 7
    %v7668 = vsub.s32 0, %v7667
    %v7669 = vrot.slane %v7523, %v7668
    %v7670 = vlaneseq
    %v7671 = vshrl.u32 %v7670, 7
    %v7672 = vsub.s32 0, %v7671
    %v7673 = vrot.slane %v7524, %v7672
    %v7674 = vlaneseq
    %v7675 = vshrl.u32 %v7674, 7
    %v7676 = vsub.s32 0, %v7675
    %v7677 = vrot.slane %v7525, %v7676
    %v7678 = vlaneseq
    %v7679 = vshrl.u32 %v7678, 7
    %v7680 = vsub.s32 0, %v7679
    %v7681 = vrot.slane %v7540, %v7680
    %v7682 = vlaneseq
    %v7683 = vshrl.u32 %v7682, 7
    %v7684 = vsub.s32 0, %v7683
    %v7685 = vrot.slane %v7547, %v7684
    %v7686 = vlaneseq
    %v7687 = vshrl.u32 %v7686, 7
    %v7688 = vsub.s32 0, %v7687
    %v7689 = vrot.slane %v7548, %v7688
    %v7690 = vlaneseq
    %v7691 = vshrl.u32 %v7690, 7
    %v7692 = vsub.s32 0, %v7691
    %v7693 = vrot.slane %v7549, %v7692
    %v7694 = vlaneseq
    %v7695 = vshrl.u32 %v7694, 7
    %v7696 = vsub.s32 0, %v7695
    %v7697 = vrot.slane %v7564, %v7696
    %v7698 = vlaneseq
    %v7699 = vshrl.u32 %v7698, 7
    %v7700 = vsub.s32 0, %v7699
    %v7701 = vrot.slane %v7571, %v7700
    %v7702 = vlaneseq
    %v7703 = vshrl.u32 %v7702, 7
    %v7704 = vsub.s32 0, %v7703
    %v7705 = vrot.slane %v7572, %v7704
    %v7706 = vlaneseq
    %v7707 = vshrl.u32 %v7706, 7
    %v7708 = vsub.s32 0, %v7707
    %v7709 = vrot.slane %v7573, %v7708
    %v7710 = vlaneseq
    %v7711 = vshrl.u32 %v7710, 7
    %v7712 = vsub.s32 0, %v7711
    %v7713 = vrot.slane %v7588, %v7712
    %v7714 = vlaneseq
    %v7715 = vshrl.u32 %v7714, 7
    %v7716 = vsub.s32 0, %v7715
    %v7717 = vrot.slane %v7595, %v7716
    %v7718 = vlaneseq
    %v7719 = vshrl.u32 %v7718, 7
    %v7720 = vsub.s32 0, %v7719
    %v7721 = vrot.slane %v7596, %v7720
    %v7722 = vlaneseq
    %v7723 = vshrl.u32 %v7722, 7
    %v7724 = vsub.s32 0, %v7723
    %v7725 = vrot.slane %v7597, %v7724
    %v7758 = vmul.f32 %v7601, %v7366
    %v7759 = vmul.f32 %v7605, %v7367
    %v7760 = vmul.f32 %v7609, %v7368
    %v7761 = vmul.f32 %v7613, %v7369
    %v7762 = vmul.f32 %v7617, %v7370
    %v7763 = vmul.f32 %v7621, %v7371
    %v7764 = vmul.f32 %v7625, %v7372
    %v7765 = vmul.f32 %v7629, %v7373
    %v7766 = vmul.f32 %v7633, %v7374
    %v7767 = vmul.f32 %v7637, %v7375
    %v7768 = vmul.f32 %v7641, %v7376
    %v7769 = vmul.f32 %v7645, %v7377
    %v7770 = vmul.f32 %v7649, %v7378
    %v7771 = vmul.f32 %v7653, %v7379
    %v7772 = vmul.f32 %v7657, %v7380
    %v7773 = vmul.f32 %v7661, %v7381
    %v7774 = vmul.f32 %v7665, %v7382
    %v7775 = vmul.f32 %v7669, %v7383
    %v7776 = vmul.f32 %v7673, %v7384
    %v7777 = vmul.f32 %v7677, %v7385
    %v7778 = vmul.f32 %v7681, %v7386
    %v7779 = vmul.f32 %v7685, %v7387
    %v7780 = vmul.f32 %v7689, %v7388
    %v7781 = vmul.f32 %v7693, %v7389
    %v7782 = vmul.f32 %v7697, %v7390
    %v7783 = vmul.f32 %v7701, %v7391
    %v7784 = vmul.f32 %v7705, %v7392
    %v7785 = vmul.f32 %v7709, %v7393
    %v7786 = vmul.f32 %v7713, %v7394
    %v7787 = vmul.f32 %v7717, %v7395
    %v7788 = vmul.f32 %v7721, %v7396
    %v7789 = vmul.f32 %v7725, %v7397
    %v7790 = vsel %vm5149, %v7758, 0.0
    %7791 = vadd.xlane.f32.xlu0 %v7790
    %v7792 = vpop.xlane.xlu0 %7791
    %v7793 = vsel %vm5149, %v7759, 0.0
    %7794 = vadd.xlane.f32.xlu0 %v7793
    %v7795 = vpop.xlane.xlu0 %7794
    %v7796 = vsel %vm5149, %v7760, 0.0
    %7797 = vadd.xlane.f32.xlu0 %v7796
    %v7798 = vpop.xlane.xlu0 %7797
    %v7799 = vsel %vm5149, %v7761, 0.0
    %7800 = vadd.xlane.f32.xlu0 %v7799
    %v7801 = vpop.xlane.xlu0 %7800
    %v7802 = vsel %vm5149, %v7762, 0.0
    %7803 = vadd.xlane.f32.xlu0 %v7802
    %v7804 = vpop.xlane.xlu0 %7803
    %v7805 = vsel %vm5149, %v7763, 0.0
    %7806 = vadd.xlane.f32.xlu0 %v7805
    %v7807 = vpop.xlane.xlu0 %7806
    %v7808 = vsel %vm5149, %v7764, 0.0
    %7809 = vadd.xlane.f32.xlu0 %v7808
    %v7810 = vpop.xlane.xlu0 %7809
    %v7811 = vsel %vm5149, %v7765, 0.0
    %7812 = vadd.xlane.f32.xlu0 %v7811
    %v7813 = vpop.xlane.xlu0 %7812
    %v7814 = vsel %vm5149, %v7766, 0.0
    %7815 = vadd.xlane.f32.xlu0 %v7814
    %v7816 = vpop.xlane.xlu0 %7815
    %v7817 = vsel %vm5149, %v7767, 0.0
    %7818 = vadd.xlane.f32.xlu0 %v7817
    %v7819 = vpop.xlane.xlu0 %7818
    %v7820 = vsel %vm5149, %v7768, 0.0
    %7821 = vadd.xlane.f32.xlu0 %v7820
    %v7822 = vpop.xlane.xlu0 %7821
    %v7823 = vsel %vm5149, %v7769, 0.0
    %7824 = vadd.xlane.f32.xlu0 %v7823
    %v7825 = vpop.xlane.xlu0 %7824
    %v7826 = vsel %vm5149, %v7770, 0.0
    %7827 = vadd.xlane.f32.xlu0 %v7826
    %v7828 = vpop.xlane.xlu0 %7827
    %v7829 = vsel %vm5149, %v7771, 0.0
    %7830 = vadd.xlane.f32.xlu0 %v7829
    %v7831 = vpop.xlane.xlu0 %7830
    %v7832 = vsel %vm5149, %v7772, 0.0
    %7833 = vadd.xlane.f32.xlu0 %v7832
    %v7834 = vpop.xlane.xlu0 %7833
    %v7835 = vsel %vm5149, %v7773, 0.0
    %7836 = vadd.xlane.f32.xlu0 %v7835
    %v7837 = vpop.xlane.xlu0 %7836
    %v7838 = vsel %vm5149, %v7774, 0.0
    %7839 = vadd.xlane.f32.xlu0 %v7838
    %v7840 = vpop.xlane.xlu0 %7839
    %v7841 = vsel %vm5149, %v7775, 0.0
    %7842 = vadd.xlane.f32.xlu0 %v7841
    %v7843 = vpop.xlane.xlu0 %7842
    %v7844 = vsel %vm5149, %v7776, 0.0
    %7845 = vadd.xlane.f32.xlu0 %v7844
    %v7846 = vpop.xlane.xlu0 %7845
    %v7847 = vsel %vm5149, %v7777, 0.0
    %7848 = vadd.xlane.f32.xlu0 %v7847
    %v7849 = vpop.xlane.xlu0 %7848
    %v7850 = vsel %vm5149, %v7778, 0.0
    %7851 = vadd.xlane.f32.xlu0 %v7850
    %v7852 = vpop.xlane.xlu0 %7851
    %v7853 = vsel %vm5149, %v7779, 0.0
    %7854 = vadd.xlane.f32.xlu0 %v7853
    %v7855 = vpop.xlane.xlu0 %7854
    %v7856 = vsel %vm5149, %v7780, 0.0
    %7857 = vadd.xlane.f32.xlu0 %v7856
    %v7858 = vpop.xlane.xlu0 %7857
    %v7859 = vsel %vm5149, %v7781, 0.0
    %7860 = vadd.xlane.f32.xlu0 %v7859
    %v7861 = vpop.xlane.xlu0 %7860
    %v7862 = vsel %vm5149, %v7782, 0.0
    %7863 = vadd.xlane.f32.xlu0 %v7862
    %v7864 = vpop.xlane.xlu0 %7863
    %v7865 = vsel %vm5149, %v7783, 0.0
    %7866 = vadd.xlane.f32.xlu0 %v7865
    %v7867 = vpop.xlane.xlu0 %7866
    %v7868 = vsel %vm5149, %v7784, 0.0
    %7869 = vadd.xlane.f32.xlu0 %v7868
    %v7870 = vpop.xlane.xlu0 %7869
    %v7871 = vsel %vm5149, %v7785, 0.0
    %7872 = vadd.xlane.f32.xlu0 %v7871
    %v7873 = vpop.xlane.xlu0 %7872
    %v7874 = vsel %vm5149, %v7786, 0.0
    %7875 = vadd.xlane.f32.xlu0 %v7874
    %v7876 = vpop.xlane.xlu0 %7875
    %v7877 = vsel %vm5149, %v7787, 0.0
    %7878 = vadd.xlane.f32.xlu0 %v7877
    %v7879 = vpop.xlane.xlu0 %7878
    %v7880 = vsel %vm5149, %v7788, 0.0
    %7881 = vadd.xlane.f32.xlu0 %v7880
    %v7882 = vpop.xlane.xlu0 %7881
    %v7883 = vsel %vm5149, %v7789, 0.0
    %7884 = vadd.xlane.f32.xlu0 %v7883
    %v7885 = vpop.xlane.xlu0 %7884
    %v7918 = vlaneseq
    %v7919 = vshrl.u32 %v7918, 7
    %v7920 = vsub.s32 %v143, %v7919
    %v7921 = vrot.slane %v7792, %v7920
    %v7922 = vlaneseq
    %v7923 = vshrl.u32 %v7922, 7
    %v7924 = vsub.s32 %v143, %v7923
    %v7925 = vrot.slane %v7795, %v7924
    %v7926 = vlaneseq
    %v7927 = vshrl.u32 %v7926, 7
    %v7928 = vsub.s32 %v143, %v7927
    %v7929 = vrot.slane %v7798, %v7928
    %v7930 = vlaneseq
    %v7931 = vshrl.u32 %v7930, 7
    %v7932 = vsub.s32 %v143, %v7931
    %v7933 = vrot.slane %v7801, %v7932
    %v7934 = vlaneseq
    %v7935 = vshrl.u32 %v7934, 7
    %v7936 = vsub.s32 %v143, %v7935
    %v7937 = vrot.slane %v7804, %v7936
    %v7938 = vlaneseq
    %v7939 = vshrl.u32 %v7938, 7
    %v7940 = vsub.s32 %v143, %v7939
    %v7941 = vrot.slane %v7807, %v7940
    %v7942 = vlaneseq
    %v7943 = vshrl.u32 %v7942, 7
    %v7944 = vsub.s32 %v143, %v7943
    %v7945 = vrot.slane %v7810, %v7944
    %v7946 = vlaneseq
    %v7947 = vshrl.u32 %v7946, 7
    %v7948 = vsub.s32 %v143, %v7947
    %v7949 = vrot.slane %v7813, %v7948
    %v7950 = vlaneseq
    %v7951 = vshrl.u32 %v7950, 7
    %v7952 = vsub.s32 %v143, %v7951
    %v7953 = vrot.slane %v7816, %v7952
    %v7954 = vlaneseq
    %v7955 = vshrl.u32 %v7954, 7
    %v7956 = vsub.s32 %v143, %v7955
    %v7957 = vrot.slane %v7819, %v7956
    %v7958 = vlaneseq
    %v7959 = vshrl.u32 %v7958, 7
    %v7960 = vsub.s32 %v143, %v7959
    %v7961 = vrot.slane %v7822, %v7960
    %v7962 = vlaneseq
    %v7963 = vshrl.u32 %v7962, 7
    %v7964 = vsub.s32 %v143, %v7963
    %v7965 = vrot.slane %v7825, %v7964
    %v7966 = vlaneseq
    %v7967 = vshrl.u32 %v7966, 7
    %v7968 = vsub.s32 %v143, %v7967
    %v7969 = vrot.slane %v7828, %v7968
    %v7970 = vlaneseq
    %v7971 = vshrl.u32 %v7970, 7
    %v7972 = vsub.s32 %v143, %v7971
    %v7973 = vrot.slane %v7831, %v7972
    %v7974 = vlaneseq
    %v7975 = vshrl.u32 %v7974, 7
    %v7976 = vsub.s32 %v143, %v7975
    %v7977 = vrot.slane %v7834, %v7976
    %v7978 = vlaneseq
    %v7979 = vshrl.u32 %v7978, 7
    %v7980 = vsub.s32 %v143, %v7979
    %v7981 = vrot.slane %v7837, %v7980
    %v7982 = vlaneseq
    %v7983 = vshrl.u32 %v7982, 7
    %v7984 = vsub.s32 %v143, %v7983
    %v7985 = vrot.slane %v7840, %v7984
    %v7986 = vlaneseq
    %v7987 = vshrl.u32 %v7986, 7
    %v7988 = vsub.s32 %v143, %v7987
    %v7989 = vrot.slane %v7843, %v7988
    %v7990 = vlaneseq
    %v7991 = vshrl.u32 %v7990, 7
    %v7992 = vsub.s32 %v143, %v7991
    %v7993 = vrot.slane %v7846, %v7992
    %v7994 = vlaneseq
    %v7995 = vshrl.u32 %v7994, 7
    %v7996 = vsub.s32 %v143, %v7995
    %v7997 = vrot.slane %v7849, %v7996
    %v7998 = vlaneseq
    %v7999 = vshrl.u32 %v7998, 7
    %v8000 = vsub.s32 %v143, %v7999
    %v8001 = vrot.slane %v7852, %v8000
    %v8002 = vlaneseq
    %v8003 = vshrl.u32 %v8002, 7
    %v8004 = vsub.s32 %v143, %v8003
    %v8005 = vrot.slane %v7855, %v8004
    %v8006 = vlaneseq
    %v8007 = vshrl.u32 %v8006, 7
    %v8008 = vsub.s32 %v143, %v8007
    %v8009 = vrot.slane %v7858, %v8008
    %v8010 = vlaneseq
    %v8011 = vshrl.u32 %v8010, 7
    %v8012 = vsub.s32 %v143, %v8011
    %v8013 = vrot.slane %v7861, %v8012
    %v8014 = vlaneseq
    %v8015 = vshrl.u32 %v8014, 7
    %v8016 = vsub.s32 %v143, %v8015
    %v8017 = vrot.slane %v7864, %v8016
    %v8018 = vlaneseq
    %v8019 = vshrl.u32 %v8018, 7
    %v8020 = vsub.s32 %v143, %v8019
    %v8021 = vrot.slane %v7867, %v8020
    %v8022 = vlaneseq
    %v8023 = vshrl.u32 %v8022, 7
    %v8024 = vsub.s32 %v143, %v8023
    %v8025 = vrot.slane %v7870, %v8024
    %v8026 = vlaneseq
    %v8027 = vshrl.u32 %v8026, 7
    %v8028 = vsub.s32 %v143, %v8027
    %v8029 = vrot.slane %v7873, %v8028
    %v8030 = vlaneseq
    %v8031 = vshrl.u32 %v8030, 7
    %v8032 = vsub.s32 %v143, %v8031
    %v8033 = vrot.slane %v7876, %v8032
    %v8034 = vlaneseq
    %v8035 = vshrl.u32 %v8034, 7
    %v8036 = vsub.s32 %v143, %v8035
    %v8037 = vrot.slane %v7879, %v8036
    %v8038 = vlaneseq
    %v8039 = vshrl.u32 %v8038, 7
    %v8040 = vsub.s32 %v143, %v8039
    %v8041 = vrot.slane %v7882, %v8040
    %v8042 = vlaneseq
    %v8043 = vshrl.u32 %v8042, 7
    %v8044 = vsub.s32 %v143, %v8043
    %v8045 = vrot.slane %v7885, %v8044
    %v8046 = vsel %vm4526, %v7925, %v7921
    %v8047 = vsel %vm4528, %v7929, %v8046
    %v8048 = vsel %vm4530, %v7933, %v8047
    %v8049 = vsel %vm4526, %v7941, %v7937
    %v8050 = vsel %vm4528, %v7945, %v8049
    %v8051 = vsel %vm4530, %v7949, %v8050
    %v8052 = vsel %vm4526, %v7957, %v7953
    %v8053 = vsel %vm4528, %v7961, %v8052
    %v8054 = vsel %vm4530, %v7965, %v8053
    %v8055 = vsel %vm4526, %v7973, %v7969
    %v8056 = vsel %vm4528, %v7977, %v8055
    %v8057 = vsel %vm4530, %v7981, %v8056
    %v8058 = vsel %vm4526, %v7989, %v7985
    %v8059 = vsel %vm4528, %v7993, %v8058
    %v8060 = vsel %vm4530, %v7997, %v8059
    %v8061 = vsel %vm4526, %v8005, %v8001
    %v8062 = vsel %vm4528, %v8009, %v8061
    %v8063 = vsel %vm4530, %v8013, %v8062
    %v8064 = vsel %vm4526, %v8021, %v8017
    %v8065 = vsel %vm4528, %v8025, %v8064
    %v8066 = vsel %vm4530, %v8029, %v8065
    %v8067 = vsel %vm4526, %v8037, %v8033
    %v8068 = vsel %vm4528, %v8041, %v8067
    %v8069 = vsel %vm4530, %v8045, %v8068
    %v8078 = vsel %vm5342, %v8048, -1e+30
    %v8079 = vsel %vm5343, %v8051, -1e+30
    %v8080 = vsel %vm5344, %v8054, -1e+30
    %v8081 = vsel %vm5345, %v8057, -1e+30
    %v8082 = vsel %vm5346, %v8060, -1e+30
    %v8083 = vsel %vm5347, %v8063, -1e+30
    %v8084 = vsel %vm5348, %v8066, -1e+30
    %v8085 = vsel %vm5349, %v8069, -1e+30
    %v8086 = vsel %vm6473, %v8078, -inf
    %8087 = vmax.xlane.f32.xlu0 %v8086
    %v8088 = vpop.xlane.xlu0 %8087
    %v8089 = vsel %vm6473, %v8079, -inf
    %8090 = vmax.xlane.f32.xlu0 %v8089
    %v8091 = vpop.xlane.xlu0 %8090
    %v8092 = vsel %vm6473, %v8080, -inf
    %8093 = vmax.xlane.f32.xlu0 %v8092
    %v8094 = vpop.xlane.xlu0 %8093
    %v8095 = vsel %vm6473, %v8081, -inf
    %8096 = vmax.xlane.f32.xlu0 %v8095
    %v8097 = vpop.xlane.xlu0 %8096
    %v8098 = vsel %vm6473, %v8082, -inf
    %8099 = vmax.xlane.f32.xlu0 %v8098
    %v8100 = vpop.xlane.xlu0 %8099
    %v8101 = vsel %vm6473, %v8083, -inf
    %8102 = vmax.xlane.f32.xlu0 %v8101
    %v8103 = vpop.xlane.xlu0 %8102
    %v8104 = vsel %vm6473, %v8084, -inf
    %8105 = vmax.xlane.f32.xlu0 %v8104
    %v8106 = vpop.xlane.xlu0 %8105
    %v8107 = vsel %vm6473, %v8085, -inf
    %8108 = vmax.xlane.f32.xlu0 %v8107
    %v8109 = vpop.xlane.xlu0 %8108
    %v8110 = vsub.f32 %v8078, %v8088
    %v8111 = vsub.f32 %v8079, %v8091
    %v8112 = vsub.f32 %v8080, %v8094
    %v8113 = vsub.f32 %v8081, %v8097
    %v8114 = vsub.f32 %v8082, %v8100
    %v8115 = vsub.f32 %v8083, %v8103
    %v8116 = vsub.f32 %v8084, %v8106
    %v8117 = vsub.f32 %v8085, %v8109
    %v8118 = vmul.f32 %v8110, 1.442695
    %v8119 = vpow.pop %v8118
    %v8120 = vmul.f32 %v8111, 1.442695
    %v8121 = vpow.pop %v8120
    %v8122 = vmul.f32 %v8112, 1.442695
    %v8123 = vpow.pop %v8122
    %v8124 = vmul.f32 %v8113, 1.442695
    %v8125 = vpow.pop %v8124
    %v8126 = vmul.f32 %v8114, 1.442695
    %v8127 = vpow.pop %v8126
    %v8128 = vmul.f32 %v8115, 1.442695
    %v8129 = vpow.pop %v8128
    %v8130 = vmul.f32 %v8116, 1.442695
    %v8131 = vpow.pop %v8130
    %v8132 = vmul.f32 %v8117, 1.442695
    %v8133 = vpow.pop %v8132
    %v8134 = vsel %vm6473, %v8119, 0.0
    %8135 = vadd.xlane.f32.xlu0 %v8134
    %v8136 = vpop.xlane.xlu0 %8135
    %v8137 = vsel %vm6473, %v8121, 0.0
    %8138 = vadd.xlane.f32.xlu0 %v8137
    %v8139 = vpop.xlane.xlu0 %8138
    %v8140 = vsel %vm6473, %v8123, 0.0
    %8141 = vadd.xlane.f32.xlu0 %v8140
    %v8142 = vpop.xlane.xlu0 %8141
    %v8143 = vsel %vm6473, %v8125, 0.0
    %8144 = vadd.xlane.f32.xlu0 %v8143
    %v8145 = vpop.xlane.xlu0 %8144
    %v8146 = vsel %vm6473, %v8127, 0.0
    %8147 = vadd.xlane.f32.xlu0 %v8146
    %v8148 = vpop.xlane.xlu0 %8147
    %v8149 = vsel %vm6473, %v8129, 0.0
    %8150 = vadd.xlane.f32.xlu0 %v8149
    %v8151 = vpop.xlane.xlu0 %8150
    %v8152 = vsel %vm6473, %v8131, 0.0
    %8153 = vadd.xlane.f32.xlu0 %v8152
    %v8154 = vpop.xlane.xlu0 %8153
    %v8155 = vsel %vm6473, %v8133, 0.0
    %8156 = vadd.xlane.f32.xlu0 %v8155
    %v8157 = vpop.xlane.xlu0 %8156
    %v8158 = vrcp.pop %v8136
    %v8159 = vrcp.pop %v8139
    %v8160 = vrcp.pop %v8142
    %v8161 = vrcp.pop %v8145
    %v8162 = vrcp.pop %v8148
    %v8163 = vrcp.pop %v8151
    %v8164 = vrcp.pop %v8154
    %v8165 = vrcp.pop %v8157
    %v8166 = vmul.f32 %v8119, %v8158
    %v8167 = vmul.f32 %v8121, %v8159
    %v8168 = vmul.f32 %v8123, %v8160
    %v8169 = vmul.f32 %v8125, %v8161
    %v8170 = vmul.f32 %v8127, %v8162
    %v8171 = vmul.f32 %v8129, %v8163
    %v8172 = vmul.f32 %v8131, %v8164
    %v8173 = vmul.f32 %v8133, %v8165
    %8175 = vset.pattern.permute.xlu0 0
    %8176 = vperm.xlu0 %8175, %v5366
    %v8177 = vpop.permute.xlu0 %8176
    %8180 = vset.pattern.permute.xlu0 0
    %8181 = vperm.xlu0 %8180, %v5367
    %v8182 = vpop.permute.xlu0 %8181
    %8185 = vset.pattern.permute.xlu0 0
    %8186 = vperm.xlu0 %8185, %v5368
    %v8187 = vpop.permute.xlu0 %8186
    %8190 = vset.pattern.permute.xlu0 0
    %8191 = vperm.xlu0 %8190, %v5369
    %v8192 = vpop.permute.xlu0 %8191
    %8195 = vset.pattern.permute.xlu0 0
    %8196 = vperm.xlu0 %8195, %v5370
    %v8197 = vpop.permute.xlu0 %8196
    %8200 = vset.pattern.permute.xlu0 0
    %8201 = vperm.xlu0 %8200, %v5371
    %v8202 = vpop.permute.xlu0 %8201
    %8205 = vset.pattern.permute.xlu0 0
    %8206 = vperm.xlu0 %8205, %v5372
    %v8207 = vpop.permute.xlu0 %8206
    %8210 = vset.pattern.permute.xlu0 0
    %8211 = vperm.xlu0 %8210, %v5373
    %v8212 = vpop.permute.xlu0 %8211
    %v8214 = vmul.f32 %v8166, %v8177
    %v8215 = vmul.f32 %v8167, %v8182
    %v8216 = vmul.f32 %v8168, %v8187
    %v8217 = vmul.f32 %v8169, %v8192
    %v8218 = vmul.f32 %v8170, %v8197
    %v8219 = vmul.f32 %v8171, %v8202
    %v8220 = vmul.f32 %v8172, %v8207
    %v8221 = vmul.f32 %v8173, %v8212
    %v8222 = vlaneseq
    %v8223 = vshrl.u32 %v8222, 7
    %v8224 = vsub.s32 0, %v8223
    %v8225 = vrot.slane %v8214, %v8224
    %8227 = vbcast.lane.b32.xlu0 %v8225, 256
    %v8228 = vpop.permute.xlu0 %8227
    %v8229 = vlaneseq
    %v8230 = vshrl.u32 %v8229, 7
    %v8231 = vsub.s32 1, %v8230
    %v8232 = vrot.slane %v8214, %v8231
    %8234 = vbcast.lane.b32.xlu0 %v8232, 256
    %v8235 = vpop.permute.xlu0 %8234
    %v8236 = vlaneseq
    %v8237 = vshrl.u32 %v8236, 7
    %v8238 = vsub.s32 2, %v8237
    %v8239 = vrot.slane %v8214, %v8238
    %8241 = vbcast.lane.b32.xlu0 %v8239, 256
    %v8242 = vpop.permute.xlu0 %8241
    %v8243 = vlaneseq
    %v8244 = vshrl.u32 %v8243, 7
    %v8245 = vsub.s32 3, %v8244
    %v8246 = vrot.slane %v8214, %v8245
    %8248 = vbcast.lane.b32.xlu0 %v8246, 256
    %v8249 = vpop.permute.xlu0 %8248
    %v8250 = vlaneseq
    %v8251 = vshrl.u32 %v8250, 7
    %v8252 = vsub.s32 0, %v8251
    %v8253 = vrot.slane %v8215, %v8252
    %8255 = vbcast.lane.b32.xlu0 %v8253, 256
    %v8256 = vpop.permute.xlu0 %8255
    %v8257 = vlaneseq
    %v8258 = vshrl.u32 %v8257, 7
    %v8259 = vsub.s32 1, %v8258
    %v8260 = vrot.slane %v8215, %v8259
    %8262 = vbcast.lane.b32.xlu0 %v8260, 256
    %v8263 = vpop.permute.xlu0 %8262
    %v8264 = vlaneseq
    %v8265 = vshrl.u32 %v8264, 7
    %v8266 = vsub.s32 2, %v8265
    %v8267 = vrot.slane %v8215, %v8266
    %8269 = vbcast.lane.b32.xlu0 %v8267, 256
    %v8270 = vpop.permute.xlu0 %8269
    %v8271 = vlaneseq
    %v8272 = vshrl.u32 %v8271, 7
    %v8273 = vsub.s32 3, %v8272
    %v8274 = vrot.slane %v8215, %v8273
    %8276 = vbcast.lane.b32.xlu0 %v8274, 256
    %v8277 = vpop.permute.xlu0 %8276
    %v8278 = vlaneseq
    %v8279 = vshrl.u32 %v8278, 7
    %v8280 = vsub.s32 0, %v8279
    %v8281 = vrot.slane %v8216, %v8280
    %8283 = vbcast.lane.b32.xlu0 %v8281, 256
    %v8284 = vpop.permute.xlu0 %8283
    %v8285 = vlaneseq
    %v8286 = vshrl.u32 %v8285, 7
    %v8287 = vsub.s32 1, %v8286
    %v8288 = vrot.slane %v8216, %v8287
    %8290 = vbcast.lane.b32.xlu0 %v8288, 256
    %v8291 = vpop.permute.xlu0 %8290
    %v8292 = vlaneseq
    %v8293 = vshrl.u32 %v8292, 7
    %v8294 = vsub.s32 2, %v8293
    %v8295 = vrot.slane %v8216, %v8294
    %8297 = vbcast.lane.b32.xlu0 %v8295, 256
    %v8298 = vpop.permute.xlu0 %8297
    %v8299 = vlaneseq
    %v8300 = vshrl.u32 %v8299, 7
    %v8301 = vsub.s32 3, %v8300
    %v8302 = vrot.slane %v8216, %v8301
    %8304 = vbcast.lane.b32.xlu0 %v8302, 256
    %v8305 = vpop.permute.xlu0 %8304
    %v8306 = vlaneseq
    %v8307 = vshrl.u32 %v8306, 7
    %v8308 = vsub.s32 0, %v8307
    %v8309 = vrot.slane %v8217, %v8308
    %8311 = vbcast.lane.b32.xlu0 %v8309, 256
    %v8312 = vpop.permute.xlu0 %8311
    %v8313 = vlaneseq
    %v8314 = vshrl.u32 %v8313, 7
    %v8315 = vsub.s32 1, %v8314
    %v8316 = vrot.slane %v8217, %v8315
    %8318 = vbcast.lane.b32.xlu0 %v8316, 256
    %v8319 = vpop.permute.xlu0 %8318
    %v8320 = vlaneseq
    %v8321 = vshrl.u32 %v8320, 7
    %v8322 = vsub.s32 2, %v8321
    %v8323 = vrot.slane %v8217, %v8322
    %8325 = vbcast.lane.b32.xlu0 %v8323, 256
    %v8326 = vpop.permute.xlu0 %8325
    %v8327 = vlaneseq
    %v8328 = vshrl.u32 %v8327, 7
    %v8329 = vsub.s32 3, %v8328
    %v8330 = vrot.slane %v8217, %v8329
    %8332 = vbcast.lane.b32.xlu0 %v8330, 256
    %v8333 = vpop.permute.xlu0 %8332
    %v8334 = vlaneseq
    %v8335 = vshrl.u32 %v8334, 7
    %v8336 = vsub.s32 0, %v8335
    %v8337 = vrot.slane %v8218, %v8336
    %8339 = vbcast.lane.b32.xlu0 %v8337, 256
    %v8340 = vpop.permute.xlu0 %8339
    %v8341 = vlaneseq
    %v8342 = vshrl.u32 %v8341, 7
    %v8343 = vsub.s32 1, %v8342
    %v8344 = vrot.slane %v8218, %v8343
    %8346 = vbcast.lane.b32.xlu0 %v8344, 256
    %v8347 = vpop.permute.xlu0 %8346
    %v8348 = vlaneseq
    %v8349 = vshrl.u32 %v8348, 7
    %v8350 = vsub.s32 2, %v8349
    %v8351 = vrot.slane %v8218, %v8350
    %8353 = vbcast.lane.b32.xlu0 %v8351, 256
    %v8354 = vpop.permute.xlu0 %8353
    %v8355 = vlaneseq
    %v8356 = vshrl.u32 %v8355, 7
    %v8357 = vsub.s32 3, %v8356
    %v8358 = vrot.slane %v8218, %v8357
    %8360 = vbcast.lane.b32.xlu0 %v8358, 256
    %v8361 = vpop.permute.xlu0 %8360
    %v8362 = vlaneseq
    %v8363 = vshrl.u32 %v8362, 7
    %v8364 = vsub.s32 0, %v8363
    %v8365 = vrot.slane %v8219, %v8364
    %8367 = vbcast.lane.b32.xlu0 %v8365, 256
    %v8368 = vpop.permute.xlu0 %8367
    %v8369 = vlaneseq
    %v8370 = vshrl.u32 %v8369, 7
    %v8371 = vsub.s32 1, %v8370
    %v8372 = vrot.slane %v8219, %v8371
    %8374 = vbcast.lane.b32.xlu0 %v8372, 256
    %v8375 = vpop.permute.xlu0 %8374
    %v8376 = vlaneseq
    %v8377 = vshrl.u32 %v8376, 7
    %v8378 = vsub.s32 2, %v8377
    %v8379 = vrot.slane %v8219, %v8378
    %8381 = vbcast.lane.b32.xlu0 %v8379, 256
    %v8382 = vpop.permute.xlu0 %8381
    %v8383 = vlaneseq
    %v8384 = vshrl.u32 %v8383, 7
    %v8385 = vsub.s32 3, %v8384
    %v8386 = vrot.slane %v8219, %v8385
    %8388 = vbcast.lane.b32.xlu0 %v8386, 256
    %v8389 = vpop.permute.xlu0 %8388
    %v8390 = vlaneseq
    %v8391 = vshrl.u32 %v8390, 7
    %v8392 = vsub.s32 0, %v8391
    %v8393 = vrot.slane %v8220, %v8392
    %8395 = vbcast.lane.b32.xlu0 %v8393, 256
    %v8396 = vpop.permute.xlu0 %8395
    %v8397 = vlaneseq
    %v8398 = vshrl.u32 %v8397, 7
    %v8399 = vsub.s32 1, %v8398
    %v8400 = vrot.slane %v8220, %v8399
    %8402 = vbcast.lane.b32.xlu0 %v8400, 256
    %v8403 = vpop.permute.xlu0 %8402
    %v8404 = vlaneseq
    %v8405 = vshrl.u32 %v8404, 7
    %v8406 = vsub.s32 2, %v8405
    %v8407 = vrot.slane %v8220, %v8406
    %8409 = vbcast.lane.b32.xlu0 %v8407, 256
    %v8410 = vpop.permute.xlu0 %8409
    %v8411 = vlaneseq
    %v8412 = vshrl.u32 %v8411, 7
    %v8413 = vsub.s32 3, %v8412
    %v8414 = vrot.slane %v8220, %v8413
    %8416 = vbcast.lane.b32.xlu0 %v8414, 256
    %v8417 = vpop.permute.xlu0 %8416
    %v8418 = vlaneseq
    %v8419 = vshrl.u32 %v8418, 7
    %v8420 = vsub.s32 0, %v8419
    %v8421 = vrot.slane %v8221, %v8420
    %8423 = vbcast.lane.b32.xlu0 %v8421, 256
    %v8424 = vpop.permute.xlu0 %8423
    %v8425 = vlaneseq
    %v8426 = vshrl.u32 %v8425, 7
    %v8427 = vsub.s32 1, %v8426
    %v8428 = vrot.slane %v8221, %v8427
    %8430 = vbcast.lane.b32.xlu0 %v8428, 256
    %v8431 = vpop.permute.xlu0 %8430
    %v8432 = vlaneseq
    %v8433 = vshrl.u32 %v8432, 7
    %v8434 = vsub.s32 2, %v8433
    %v8435 = vrot.slane %v8221, %v8434
    %8437 = vbcast.lane.b32.xlu0 %v8435, 256
    %v8438 = vpop.permute.xlu0 %8437
    %v8439 = vlaneseq
    %v8440 = vshrl.u32 %v8439, 7
    %v8441 = vsub.s32 3, %v8440
    %v8442 = vrot.slane %v8221, %v8441
    %8444 = vbcast.lane.b32.xlu0 %v8442, 256
    %v8445 = vpop.permute.xlu0 %8444
    %v8446 = vmul.f32 %v8228, %v7366
    %v8447 = vmul.f32 %v8235, %v7367
    %v8448 = vmul.f32 %v8242, %v7368
    %v8449 = vmul.f32 %v8249, %v7369
    %v8450 = vmul.f32 %v8256, %v7370
    %v8451 = vmul.f32 %v8263, %v7371
    %v8452 = vmul.f32 %v8270, %v7372
    %v8453 = vmul.f32 %v8277, %v7373
    %v8454 = vmul.f32 %v8284, %v7374
    %v8455 = vmul.f32 %v8291, %v7375
    %v8456 = vmul.f32 %v8298, %v7376
    %v8457 = vmul.f32 %v8305, %v7377
    %v8458 = vmul.f32 %v8312, %v7378
    %v8459 = vmul.f32 %v8319, %v7379
    %v8460 = vmul.f32 %v8326, %v7380
    %v8461 = vmul.f32 %v8333, %v7381
    %v8462 = vmul.f32 %v8340, %v7382
    %v8463 = vmul.f32 %v8347, %v7383
    %v8464 = vmul.f32 %v8354, %v7384
    %v8465 = vmul.f32 %v8361, %v7385
    %v8466 = vmul.f32 %v8368, %v7386
    %v8467 = vmul.f32 %v8375, %v7387
    %v8468 = vmul.f32 %v8382, %v7388
    %v8469 = vmul.f32 %v8389, %v7389
    %v8470 = vmul.f32 %v8396, %v7390
    %v8471 = vmul.f32 %v8403, %v7391
    %v8472 = vmul.f32 %v8410, %v7392
    %v8473 = vmul.f32 %v8417, %v7393
    %v8474 = vmul.f32 %v8424, %v7394
    %v8475 = vmul.f32 %v8431, %v7395
    %v8476 = vmul.f32 %v8438, %v7396
    %v8477 = vmul.f32 %v8445, %v7397
    %v8478 = vsel %vm5149, %v8446, 0.0
    %v8479 = vrot.slane %v8478, 4
    %v8480 = vadd.f32 %v8478, %v8479
    %v8481 = vrot.slane %v8480, 2
    %v8482 = vadd.f32 %v8480, %v8481
    %v8483 = vrot.slane %v8482, 1
    %v8484 = vadd.f32 %v8482, %v8483
    %v8485 = vsel %vm5149, %v8447, 0.0
    %v8486 = vrot.slane %v8485, 4
    %v8487 = vadd.f32 %v8485, %v8486
    %v8488 = vrot.slane %v8487, 2
    %v8489 = vadd.f32 %v8487, %v8488
    %v8490 = vrot.slane %v8489, 1
    %v8491 = vadd.f32 %v8489, %v8490
    %v8492 = vsel %vm5149, %v8448, 0.0
    %v8493 = vrot.slane %v8492, 4
    %v8494 = vadd.f32 %v8492, %v8493
    %v8495 = vrot.slane %v8494, 2
    %v8496 = vadd.f32 %v8494, %v8495
    %v8497 = vrot.slane %v8496, 1
    %v8498 = vadd.f32 %v8496, %v8497
    %v8499 = vsel %vm5149, %v8449, 0.0
    %v8500 = vrot.slane %v8499, 4
    %v8501 = vadd.f32 %v8499, %v8500
    %v8502 = vrot.slane %v8501, 2
    %v8503 = vadd.f32 %v8501, %v8502
    %v8504 = vrot.slane %v8503, 1
    %v8505 = vadd.f32 %v8503, %v8504
    %v8506 = vsel %vm5149, %v8450, 0.0
    %v8507 = vrot.slane %v8506, 4
    %v8508 = vadd.f32 %v8506, %v8507
    %v8509 = vrot.slane %v8508, 2
    %v8510 = vadd.f32 %v8508, %v8509
    %v8511 = vrot.slane %v8510, 1
    %v8512 = vadd.f32 %v8510, %v8511
    %v8513 = vsel %vm5149, %v8451, 0.0
    %v8514 = vrot.slane %v8513, 4
    %v8515 = vadd.f32 %v8513, %v8514
    %v8516 = vrot.slane %v8515, 2
    %v8517 = vadd.f32 %v8515, %v8516
    %v8518 = vrot.slane %v8517, 1
    %v8519 = vadd.f32 %v8517, %v8518
    %v8520 = vsel %vm5149, %v8452, 0.0
    %v8521 = vrot.slane %v8520, 4
    %v8522 = vadd.f32 %v8520, %v8521
    %v8523 = vrot.slane %v8522, 2
    %v8524 = vadd.f32 %v8522, %v8523
    %v8525 = vrot.slane %v8524, 1
    %v8526 = vadd.f32 %v8524, %v8525
    %v8527 = vsel %vm5149, %v8453, 0.0
    %v8528 = vrot.slane %v8527, 4
    %v8529 = vadd.f32 %v8527, %v8528
    %v8530 = vrot.slane %v8529, 2
    %v8531 = vadd.f32 %v8529, %v8530
    %v8532 = vrot.slane %v8531, 1
    %v8533 = vadd.f32 %v8531, %v8532
    %v8534 = vsel %vm5149, %v8454, 0.0
    %v8535 = vrot.slane %v8534, 4
    %v8536 = vadd.f32 %v8534, %v8535
    %v8537 = vrot.slane %v8536, 2
    %v8538 = vadd.f32 %v8536, %v8537
    %v8539 = vrot.slane %v8538, 1
    %v8540 = vadd.f32 %v8538, %v8539
    %v8541 = vsel %vm5149, %v8455, 0.0
    %v8542 = vrot.slane %v8541, 4
    %v8543 = vadd.f32 %v8541, %v8542
    %v8544 = vrot.slane %v8543, 2
    %v8545 = vadd.f32 %v8543, %v8544
    %v8546 = vrot.slane %v8545, 1
    %v8547 = vadd.f32 %v8545, %v8546
    %v8548 = vsel %vm5149, %v8456, 0.0
    %v8549 = vrot.slane %v8548, 4
    %v8550 = vadd.f32 %v8548, %v8549
    %v8551 = vrot.slane %v8550, 2
    %v8552 = vadd.f32 %v8550, %v8551
    %v8553 = vrot.slane %v8552, 1
    %v8554 = vadd.f32 %v8552, %v8553
    %v8555 = vsel %vm5149, %v8457, 0.0
    %v8556 = vrot.slane %v8555, 4
    %v8557 = vadd.f32 %v8555, %v8556
    %v8558 = vrot.slane %v8557, 2
    %v8559 = vadd.f32 %v8557, %v8558
    %v8560 = vrot.slane %v8559, 1
    %v8561 = vadd.f32 %v8559, %v8560
    %v8562 = vsel %vm5149, %v8458, 0.0
    %v8563 = vrot.slane %v8562, 4
    %v8564 = vadd.f32 %v8562, %v8563
    %v8565 = vrot.slane %v8564, 2
    %v8566 = vadd.f32 %v8564, %v8565
    %v8567 = vrot.slane %v8566, 1
    %v8568 = vadd.f32 %v8566, %v8567
    %v8569 = vsel %vm5149, %v8459, 0.0
    %v8570 = vrot.slane %v8569, 4
    %v8571 = vadd.f32 %v8569, %v8570
    %v8572 = vrot.slane %v8571, 2
    %v8573 = vadd.f32 %v8571, %v8572
    %v8574 = vrot.slane %v8573, 1
    %v8575 = vadd.f32 %v8573, %v8574
    %v8576 = vsel %vm5149, %v8460, 0.0
    %v8577 = vrot.slane %v8576, 4
    %v8578 = vadd.f32 %v8576, %v8577
    %v8579 = vrot.slane %v8578, 2
    %v8580 = vadd.f32 %v8578, %v8579
    %v8581 = vrot.slane %v8580, 1
    %v8582 = vadd.f32 %v8580, %v8581
    %v8583 = vsel %vm5149, %v8461, 0.0
    %v8584 = vrot.slane %v8583, 4
    %v8585 = vadd.f32 %v8583, %v8584
    %v8586 = vrot.slane %v8585, 2
    %v8587 = vadd.f32 %v8585, %v8586
    %v8588 = vrot.slane %v8587, 1
    %v8589 = vadd.f32 %v8587, %v8588
    %v8590 = vsel %vm5149, %v8462, 0.0
    %v8591 = vrot.slane %v8590, 4
    %v8592 = vadd.f32 %v8590, %v8591
    %v8593 = vrot.slane %v8592, 2
    %v8594 = vadd.f32 %v8592, %v8593
    %v8595 = vrot.slane %v8594, 1
    %v8596 = vadd.f32 %v8594, %v8595
    %v8597 = vsel %vm5149, %v8463, 0.0
    %v8598 = vrot.slane %v8597, 4
    %v8599 = vadd.f32 %v8597, %v8598
    %v8600 = vrot.slane %v8599, 2
    %v8601 = vadd.f32 %v8599, %v8600
    %v8602 = vrot.slane %v8601, 1
    %v8603 = vadd.f32 %v8601, %v8602
    %v8604 = vsel %vm5149, %v8464, 0.0
    %v8605 = vrot.slane %v8604, 4
    %v8606 = vadd.f32 %v8604, %v8605
    %v8607 = vrot.slane %v8606, 2
    %v8608 = vadd.f32 %v8606, %v8607
    %v8609 = vrot.slane %v8608, 1
    %v8610 = vadd.f32 %v8608, %v8609
    %v8611 = vsel %vm5149, %v8465, 0.0
    %v8612 = vrot.slane %v8611, 4
    %v8613 = vadd.f32 %v8611, %v8612
    %v8614 = vrot.slane %v8613, 2
    %v8615 = vadd.f32 %v8613, %v8614
    %v8616 = vrot.slane %v8615, 1
    %v8617 = vadd.f32 %v8615, %v8616
    %v8618 = vsel %vm5149, %v8466, 0.0
    %v8619 = vrot.slane %v8618, 4
    %v8620 = vadd.f32 %v8618, %v8619
    %v8621 = vrot.slane %v8620, 2
    %v8622 = vadd.f32 %v8620, %v8621
    %v8623 = vrot.slane %v8622, 1
    %v8624 = vadd.f32 %v8622, %v8623
    %v8625 = vsel %vm5149, %v8467, 0.0
    %v8626 = vrot.slane %v8625, 4
    %v8627 = vadd.f32 %v8625, %v8626
    %v8628 = vrot.slane %v8627, 2
    %v8629 = vadd.f32 %v8627, %v8628
    %v8630 = vrot.slane %v8629, 1
    %v8631 = vadd.f32 %v8629, %v8630
    %v8632 = vsel %vm5149, %v8468, 0.0
    %v8633 = vrot.slane %v8632, 4
    %v8634 = vadd.f32 %v8632, %v8633
    %v8635 = vrot.slane %v8634, 2
    %v8636 = vadd.f32 %v8634, %v8635
    %v8637 = vrot.slane %v8636, 1
    %v8638 = vadd.f32 %v8636, %v8637
    %v8639 = vsel %vm5149, %v8469, 0.0
    %v8640 = vrot.slane %v8639, 4
    %v8641 = vadd.f32 %v8639, %v8640
    %v8642 = vrot.slane %v8641, 2
    %v8643 = vadd.f32 %v8641, %v8642
    %v8644 = vrot.slane %v8643, 1
    %v8645 = vadd.f32 %v8643, %v8644
    %v8646 = vsel %vm5149, %v8470, 0.0
    %v8647 = vrot.slane %v8646, 4
    %v8648 = vadd.f32 %v8646, %v8647
    %v8649 = vrot.slane %v8648, 2
    %v8650 = vadd.f32 %v8648, %v8649
    %v8651 = vrot.slane %v8650, 1
    %v8652 = vadd.f32 %v8650, %v8651
    %v8653 = vsel %vm5149, %v8471, 0.0
    %v8654 = vrot.slane %v8653, 4
    %v8655 = vadd.f32 %v8653, %v8654
    %v8656 = vrot.slane %v8655, 2
    %v8657 = vadd.f32 %v8655, %v8656
    %v8658 = vrot.slane %v8657, 1
    %v8659 = vadd.f32 %v8657, %v8658
    %v8660 = vsel %vm5149, %v8472, 0.0
    %v8661 = vrot.slane %v8660, 4
    %v8662 = vadd.f32 %v8660, %v8661
    %v8663 = vrot.slane %v8662, 2
    %v8664 = vadd.f32 %v8662, %v8663
    %v8665 = vrot.slane %v8664, 1
    %v8666 = vadd.f32 %v8664, %v8665
    %v8667 = vsel %vm5149, %v8473, 0.0
    %v8668 = vrot.slane %v8667, 4
    %v8669 = vadd.f32 %v8667, %v8668
    %v8670 = vrot.slane %v8669, 2
    %v8671 = vadd.f32 %v8669, %v8670
    %v8672 = vrot.slane %v8671, 1
    %v8673 = vadd.f32 %v8671, %v8672
    %v8674 = vsel %vm5149, %v8474, 0.0
    %v8675 = vrot.slane %v8674, 4
    %v8676 = vadd.f32 %v8674, %v8675
    %v8677 = vrot.slane %v8676, 2
    %v8678 = vadd.f32 %v8676, %v8677
    %v8679 = vrot.slane %v8678, 1
    %v8680 = vadd.f32 %v8678, %v8679
    %v8681 = vsel %vm5149, %v8475, 0.0
    %v8682 = vrot.slane %v8681, 4
    %v8683 = vadd.f32 %v8681, %v8682
    %v8684 = vrot.slane %v8683, 2
    %v8685 = vadd.f32 %v8683, %v8684
    %v8686 = vrot.slane %v8685, 1
    %v8687 = vadd.f32 %v8685, %v8686
    %v8688 = vsel %vm5149, %v8476, 0.0
    %v8689 = vrot.slane %v8688, 4
    %v8690 = vadd.f32 %v8688, %v8689
    %v8691 = vrot.slane %v8690, 2
    %v8692 = vadd.f32 %v8690, %v8691
    %v8693 = vrot.slane %v8692, 1
    %v8694 = vadd.f32 %v8692, %v8693
    %v8695 = vsel %vm5149, %v8477, 0.0
    %v8696 = vrot.slane %v8695, 4
    %v8697 = vadd.f32 %v8695, %v8696
    %v8698 = vrot.slane %v8697, 2
    %v8699 = vadd.f32 %v8697, %v8698
    %v8700 = vrot.slane %v8699, 1
    %v8701 = vadd.f32 %v8699, %v8700
    %v8734 = vsel %vm4526, %v8491, %v8484
    %v8735 = vsel %vm4528, %v8498, %v8734
    %v8736 = vsel %vm4530, %v8505, %v8735
    %v8737 = vsel %vm4526, %v8519, %v8512
    %v8738 = vsel %vm4528, %v8526, %v8737
    %v8739 = vsel %vm4530, %v8533, %v8738
    %v8740 = vsel %vm4526, %v8547, %v8540
    %v8741 = vsel %vm4528, %v8554, %v8740
    %v8742 = vsel %vm4530, %v8561, %v8741
    %v8743 = vsel %vm4526, %v8575, %v8568
    %v8744 = vsel %vm4528, %v8582, %v8743
    %v8745 = vsel %vm4530, %v8589, %v8744
    %v8746 = vsel %vm4526, %v8603, %v8596
    %v8747 = vsel %vm4528, %v8610, %v8746
    %v8748 = vsel %vm4530, %v8617, %v8747
    %v8749 = vsel %vm4526, %v8631, %v8624
    %v8750 = vsel %vm4528, %v8638, %v8749
    %v8751 = vsel %vm4530, %v8645, %v8750
    %v8752 = vsel %vm4526, %v8659, %v8652
    %v8753 = vsel %vm4528, %v8666, %v8752
    %v8754 = vsel %vm4530, %v8673, %v8753
    %v8755 = vsel %vm4526, %v8687, %v8680
    %v8756 = vsel %vm4528, %v8694, %v8755
    %v8757 = vsel %vm4530, %v8701, %v8756
    %v8766 = vadd.f32 %v5267, %v8736
    %v8767 = vadd.f32 %v5268, %v8739
    %v8768 = vadd.f32 %v5269, %v8742
    %v8769 = vadd.f32 %v5270, %v8745
    %v8770 = vadd.f32 %v5271, %v8748
    %v8771 = vadd.f32 %v5272, %v8751
    %v8772 = vadd.f32 %v5273, %v8754
    %v8773 = vadd.f32 %v5274, %v8757
    %v8774 = vmul.f32 %v8766, %v5435
    %v8775 = vmul.f32 %v8767, %v5439
    %v8776 = vmul.f32 %v8768, %v5443
    %v8777 = vmul.f32 %v8769, %v5447
    %v8778 = vmul.f32 %v8770, %v5451
    %v8779 = vmul.f32 %v8771, %v5455
    %v8780 = vmul.f32 %v8772, %v5459
    %v8781 = vmul.f32 %v8773, %v5463
    %v8782 = vsel %vm5149, %v8774, 0.0
    %8783 = vadd.xlane.f32.xlu0 %v8782
    %v8784 = vpop.xlane.xlu0 %8783
    %v8785 = vsel %vm5149, %v8775, 0.0
    %8786 = vadd.xlane.f32.xlu0 %v8785
    %v8787 = vpop.xlane.xlu0 %8786
    %v8788 = vsel %vm5149, %v8776, 0.0
    %8789 = vadd.xlane.f32.xlu0 %v8788
    %v8790 = vpop.xlane.xlu0 %8789
    %v8791 = vsel %vm5149, %v8777, 0.0
    %8792 = vadd.xlane.f32.xlu0 %v8791
    %v8793 = vpop.xlane.xlu0 %8792
    %v8794 = vsel %vm5149, %v8778, 0.0
    %8795 = vadd.xlane.f32.xlu0 %v8794
    %v8796 = vpop.xlane.xlu0 %8795
    %v8797 = vsel %vm5149, %v8779, 0.0
    %8798 = vadd.xlane.f32.xlu0 %v8797
    %v8799 = vpop.xlane.xlu0 %8798
    %v8800 = vsel %vm5149, %v8780, 0.0
    %8801 = vadd.xlane.f32.xlu0 %v8800
    %v8802 = vpop.xlane.xlu0 %8801
    %v8803 = vsel %vm5149, %v8781, 0.0
    %8804 = vadd.xlane.f32.xlu0 %v8803
    %v8805 = vpop.xlane.xlu0 %8804
    %v8806 = vsel %vm6473, %v5325, 0.0
    %8807 = vadd.xlane.f32.xlu0 %v8806
    %v8808 = vpop.xlane.xlu0 %8807
    %v8809 = vsel %vm6473, %v5326, 0.0
    %8810 = vadd.xlane.f32.xlu0 %v8809
    %v8811 = vpop.xlane.xlu0 %8810
    %v8812 = vsel %vm6473, %v5327, 0.0
    %8813 = vadd.xlane.f32.xlu0 %v8812
    %v8814 = vpop.xlane.xlu0 %8813
    %v8815 = vsel %vm6473, %v5328, 0.0
    %8816 = vadd.xlane.f32.xlu0 %v8815
    %v8817 = vpop.xlane.xlu0 %8816
    %v8818 = vsel %vm6473, %v5329, 0.0
    %8819 = vadd.xlane.f32.xlu0 %v8818
    %v8820 = vpop.xlane.xlu0 %8819
    %v8821 = vsel %vm6473, %v5330, 0.0
    %8822 = vadd.xlane.f32.xlu0 %v8821
    %v8823 = vpop.xlane.xlu0 %8822
    %v8824 = vsel %vm6473, %v5331, 0.0
    %8825 = vadd.xlane.f32.xlu0 %v8824
    %v8826 = vpop.xlane.xlu0 %8825
    %v8827 = vsel %vm6473, %v5332, 0.0
    %8828 = vadd.xlane.f32.xlu0 %v8827
    %v8829 = vpop.xlane.xlu0 %8828
    %vm8830 = vcmp.gt.f32.partialorder %v8808, 0.0
    %vm8831 = vcmp.gt.f32.partialorder %v8811, 0.0
    %vm8832 = vcmp.gt.f32.partialorder %v8814, 0.0
    %vm8833 = vcmp.gt.f32.partialorder %v8817, 0.0
    %vm8834 = vcmp.gt.f32.partialorder %v8820, 0.0
    %vm8835 = vcmp.gt.f32.partialorder %v8823, 0.0
    %vm8836 = vcmp.gt.f32.partialorder %v8826, 0.0
    %vm8837 = vcmp.gt.f32.partialorder %v8829, 0.0
    %v8838 = vsel %vm8830, %v8784, -1e+30
    %v8839 = vsel %vm8831, %v8787, -1e+30
    %v8840 = vsel %vm8832, %v8790, -1e+30
    %v8841 = vsel %vm8833, %v8793, -1e+30
    %v8842 = vsel %vm8834, %v8796, -1e+30
    %v8843 = vsel %vm8835, %v8799, -1e+30
    %v8844 = vsel %vm8836, %v8802, -1e+30
    %v8845 = vsel %vm8837, %v8805, -1e+30
    %vm8846 = vcmask 1043456
    %v8847 = vsel %vm8846, %v8838, -inf
    %v8848 = vrot.slane %v8847, 4
    %v8849 = vmax.f32 %v8847, %v8848
    %v8850 = vrot.slane %v8849, 2
    %v8851 = vmax.f32 %v8849, %v8850
    %v8852 = vrot.slane %v8851, 1
    %v8853 = vmax.f32 %v8851, %v8852
    %v8854 = vsel %vm8846, %v8839, -inf
    %v8855 = vrot.slane %v8854, 4
    %v8856 = vmax.f32 %v8854, %v8855
    %v8857 = vrot.slane %v8856, 2
    %v8858 = vmax.f32 %v8856, %v8857
    %v8859 = vrot.slane %v8858, 1
    %v8860 = vmax.f32 %v8858, %v8859
    %v8861 = vsel %vm8846, %v8840, -inf
    %v8862 = vrot.slane %v8861, 4
    %v8863 = vmax.f32 %v8861, %v8862
    %v8864 = vrot.slane %v8863, 2
    %v8865 = vmax.f32 %v8863, %v8864
    %v8866 = vrot.slane %v8865, 1
    %v8867 = vmax.f32 %v8865, %v8866
    %v8868 = vsel %vm8846, %v8841, -inf
    %v8869 = vrot.slane %v8868, 4
    %v8870 = vmax.f32 %v8868, %v8869
    %v8871 = vrot.slane %v8870, 2
    %v8872 = vmax.f32 %v8870, %v8871
    %v8873 = vrot.slane %v8872, 1
    %v8874 = vmax.f32 %v8872, %v8873
    %v8875 = vsel %vm8846, %v8842, -inf
    %v8876 = vrot.slane %v8875, 4
    %v8877 = vmax.f32 %v8875, %v8876
    %v8878 = vrot.slane %v8877, 2
    %v8879 = vmax.f32 %v8877, %v8878
    %v8880 = vrot.slane %v8879, 1
    %v8881 = vmax.f32 %v8879, %v8880
    %v8882 = vsel %vm8846, %v8843, -inf
    %v8883 = vrot.slane %v8882, 4
    %v8884 = vmax.f32 %v8882, %v8883
    %v8885 = vrot.slane %v8884, 2
    %v8886 = vmax.f32 %v8884, %v8885
    %v8887 = vrot.slane %v8886, 1
    %v8888 = vmax.f32 %v8886, %v8887
    %v8889 = vsel %vm8846, %v8844, -inf
    %v8890 = vrot.slane %v8889, 4
    %v8891 = vmax.f32 %v8889, %v8890
    %v8892 = vrot.slane %v8891, 2
    %v8893 = vmax.f32 %v8891, %v8892
    %v8894 = vrot.slane %v8893, 1
    %v8895 = vmax.f32 %v8893, %v8894
    %v8896 = vsel %vm8846, %v8845, -inf
    %v8897 = vrot.slane %v8896, 4
    %v8898 = vmax.f32 %v8896, %v8897
    %v8899 = vrot.slane %v8898, 2
    %v8900 = vmax.f32 %v8898, %v8899
    %v8901 = vrot.slane %v8900, 1
    %v8902 = vmax.f32 %v8900, %v8901
    %v8903 = vsub.f32 %v8838, %v8853
    %v8904 = vsub.f32 %v8839, %v8860
    %v8905 = vsub.f32 %v8840, %v8867
    %v8906 = vsub.f32 %v8841, %v8874
    %v8907 = vsub.f32 %v8842, %v8881
    %v8908 = vsub.f32 %v8843, %v8888
    %v8909 = vsub.f32 %v8844, %v8895
    %v8910 = vsub.f32 %v8845, %v8902
    %v8911 = vmul.f32 %v8903, 1.442695
    %v8912 = vpow.pop %v8911
    %v8913 = vmul.f32 %v8904, 1.442695
    %v8914 = vpow.pop %v8913
    %v8915 = vmul.f32 %v8905, 1.442695
    %v8916 = vpow.pop %v8915
    %v8917 = vmul.f32 %v8906, 1.442695
    %v8918 = vpow.pop %v8917
    %v8919 = vmul.f32 %v8907, 1.442695
    %v8920 = vpow.pop %v8919
    %v8921 = vmul.f32 %v8908, 1.442695
    %v8922 = vpow.pop %v8921
    %v8923 = vmul.f32 %v8909, 1.442695
    %v8924 = vpow.pop %v8923
    %v8925 = vmul.f32 %v8910, 1.442695
    %v8926 = vpow.pop %v8925
    %v8927 = vsel %vm8846, %v8912, 0.0
    %v8928 = vrot.slane %v8927, 4
    %v8929 = vadd.f32 %v8927, %v8928
    %v8930 = vrot.slane %v8929, 2
    %v8931 = vadd.f32 %v8929, %v8930
    %v8932 = vrot.slane %v8931, 1
    %v8933 = vadd.f32 %v8931, %v8932
    %v8934 = vsel %vm8846, %v8914, 0.0
    %v8935 = vrot.slane %v8934, 4
    %v8936 = vadd.f32 %v8934, %v8935
    %v8937 = vrot.slane %v8936, 2
    %v8938 = vadd.f32 %v8936, %v8937
    %v8939 = vrot.slane %v8938, 1
    %v8940 = vadd.f32 %v8938, %v8939
    %v8941 = vsel %vm8846, %v8916, 0.0
    %v8942 = vrot.slane %v8941, 4
    %v8943 = vadd.f32 %v8941, %v8942
    %v8944 = vrot.slane %v8943, 2
    %v8945 = vadd.f32 %v8943, %v8944
    %v8946 = vrot.slane %v8945, 1
    %v8947 = vadd.f32 %v8945, %v8946
    %v8948 = vsel %vm8846, %v8918, 0.0
    %v8949 = vrot.slane %v8948, 4
    %v8950 = vadd.f32 %v8948, %v8949
    %v8951 = vrot.slane %v8950, 2
    %v8952 = vadd.f32 %v8950, %v8951
    %v8953 = vrot.slane %v8952, 1
    %v8954 = vadd.f32 %v8952, %v8953
    %v8955 = vsel %vm8846, %v8920, 0.0
    %v8956 = vrot.slane %v8955, 4
    %v8957 = vadd.f32 %v8955, %v8956
    %v8958 = vrot.slane %v8957, 2
    %v8959 = vadd.f32 %v8957, %v8958
    %v8960 = vrot.slane %v8959, 1
    %v8961 = vadd.f32 %v8959, %v8960
    %v8962 = vsel %vm8846, %v8922, 0.0
    %v8963 = vrot.slane %v8962, 4
    %v8964 = vadd.f32 %v8962, %v8963
    %v8965 = vrot.slane %v8964, 2
    %v8966 = vadd.f32 %v8964, %v8965
    %v8967 = vrot.slane %v8966, 1
    %v8968 = vadd.f32 %v8966, %v8967
    %v8969 = vsel %vm8846, %v8924, 0.0
    %v8970 = vrot.slane %v8969, 4
    %v8971 = vadd.f32 %v8969, %v8970
    %v8972 = vrot.slane %v8971, 2
    %v8973 = vadd.f32 %v8971, %v8972
    %v8974 = vrot.slane %v8973, 1
    %v8975 = vadd.f32 %v8973, %v8974
    %v8976 = vsel %vm8846, %v8926, 0.0
    %v8977 = vrot.slane %v8976, 4
    %v8978 = vadd.f32 %v8976, %v8977
    %v8979 = vrot.slane %v8978, 2
    %v8980 = vadd.f32 %v8978, %v8979
    %v8981 = vrot.slane %v8980, 1
    %v8982 = vadd.f32 %v8980, %v8981
    %v8983 = vrcp.pop %v8933
    %v8984 = vrcp.pop %v8940
    %v8985 = vrcp.pop %v8947
    %v8986 = vrcp.pop %v8954
    %v8987 = vrcp.pop %v8961
    %v8988 = vrcp.pop %v8968
    %v8989 = vrcp.pop %v8975
    %v8990 = vrcp.pop %v8982
    %v8991 = vmul.f32 %v8912, %v8983
    %v8992 = vmul.f32 %v8914, %v8984
    %v8993 = vmul.f32 %v8916, %v8985
    %v8994 = vmul.f32 %v8918, %v8986
    %v8995 = vmul.f32 %v8920, %v8987
    %v8996 = vmul.f32 %v8922, %v8988
    %v8997 = vmul.f32 %v8924, %v8989
    %v8998 = vmul.f32 %v8926, %v8990
    %v8999 = vmul.f32 %v8991, %v5366
    %v9000 = vmul.f32 %v8992, %v5367
    %v9001 = vmul.f32 %v8993, %v5368
    %v9002 = vmul.f32 %v8994, %v5369
    %v9003 = vmul.f32 %v8995, %v5370
    %v9004 = vmul.f32 %v8996, %v5371
    %v9005 = vmul.f32 %v8997, %v5372
    %v9006 = vmul.f32 %v8998, %v5373
    %9008 = vset.pattern.permute.xlu0 0
    %9009 = vperm.xlu0 %9008, %v8999
    %v9010 = vpop.permute.xlu0 %9009
    %9013 = vset.pattern.permute.xlu0 0
    %9014 = vperm.xlu0 %9013, %v9000
    %v9015 = vpop.permute.xlu0 %9014
    %9018 = vset.pattern.permute.xlu0 0
    %9019 = vperm.xlu0 %9018, %v9001
    %v9020 = vpop.permute.xlu0 %9019
    %9023 = vset.pattern.permute.xlu0 0
    %9024 = vperm.xlu0 %9023, %v9002
    %v9025 = vpop.permute.xlu0 %9024
    %9028 = vset.pattern.permute.xlu0 0
    %9029 = vperm.xlu0 %9028, %v9003
    %v9030 = vpop.permute.xlu0 %9029
    %9033 = vset.pattern.permute.xlu0 0
    %9034 = vperm.xlu0 %9033, %v9004
    %v9035 = vpop.permute.xlu0 %9034
    %9038 = vset.pattern.permute.xlu0 0
    %9039 = vperm.xlu0 %9038, %v9005
    %v9040 = vpop.permute.xlu0 %9039
    %9043 = vset.pattern.permute.xlu0 0
    %9044 = vperm.xlu0 %9043, %v9006
    %v9045 = vpop.permute.xlu0 %9044
    %v9047 = vmul.f32 %v9010, %v8766
    %v9048 = vmul.f32 %v9015, %v8767
    %v9049 = vmul.f32 %v9020, %v8768
    %v9050 = vmul.f32 %v9025, %v8769
    %v9051 = vmul.f32 %v9030, %v8770
    %v9052 = vmul.f32 %v9035, %v8771
    %v9053 = vmul.f32 %v9040, %v8772
    %v9054 = vmul.f32 %v9045, %v8773
    %v9055 = vsel %vm5149, %v9047, 0.0
    %v9056 = vrot.slane %v9055, 4
    %v9057 = vadd.f32 %v9055, %v9056
    %v9058 = vrot.slane %v9057, 2
    %v9059 = vadd.f32 %v9057, %v9058
    %v9060 = vrot.slane %v9059, 1
    %v9061 = vadd.f32 %v9059, %v9060
    %v9062 = vsel %vm5149, %v9048, 0.0
    %v9063 = vrot.slane %v9062, 4
    %v9064 = vadd.f32 %v9062, %v9063
    %v9065 = vrot.slane %v9064, 2
    %v9066 = vadd.f32 %v9064, %v9065
    %v9067 = vrot.slane %v9066, 1
    %v9068 = vadd.f32 %v9066, %v9067
    %v9069 = vsel %vm5149, %v9049, 0.0
    %v9070 = vrot.slane %v9069, 4
    %v9071 = vadd.f32 %v9069, %v9070
    %v9072 = vrot.slane %v9071, 2
    %v9073 = vadd.f32 %v9071, %v9072
    %v9074 = vrot.slane %v9073, 1
    %v9075 = vadd.f32 %v9073, %v9074
    %v9076 = vsel %vm5149, %v9050, 0.0
    %v9077 = vrot.slane %v9076, 4
    %v9078 = vadd.f32 %v9076, %v9077
    %v9079 = vrot.slane %v9078, 2
    %v9080 = vadd.f32 %v9078, %v9079
    %v9081 = vrot.slane %v9080, 1
    %v9082 = vadd.f32 %v9080, %v9081
    %v9083 = vsel %vm5149, %v9051, 0.0
    %v9084 = vrot.slane %v9083, 4
    %v9085 = vadd.f32 %v9083, %v9084
    %v9086 = vrot.slane %v9085, 2
    %v9087 = vadd.f32 %v9085, %v9086
    %v9088 = vrot.slane %v9087, 1
    %v9089 = vadd.f32 %v9087, %v9088
    %v9090 = vsel %vm5149, %v9052, 0.0
    %v9091 = vrot.slane %v9090, 4
    %v9092 = vadd.f32 %v9090, %v9091
    %v9093 = vrot.slane %v9092, 2
    %v9094 = vadd.f32 %v9092, %v9093
    %v9095 = vrot.slane %v9094, 1
    %v9096 = vadd.f32 %v9094, %v9095
    %v9097 = vsel %vm5149, %v9053, 0.0
    %v9098 = vrot.slane %v9097, 4
    %v9099 = vadd.f32 %v9097, %v9098
    %v9100 = vrot.slane %v9099, 2
    %v9101 = vadd.f32 %v9099, %v9100
    %v9102 = vrot.slane %v9101, 1
    %v9103 = vadd.f32 %v9101, %v9102
    %v9104 = vsel %vm5149, %v9054, 0.0
    %v9105 = vrot.slane %v9104, 4
    %v9106 = vadd.f32 %v9104, %v9105
    %v9107 = vrot.slane %v9106, 2
    %v9108 = vadd.f32 %v9106, %v9107
    %v9109 = vrot.slane %v9108, 1
    %v9110 = vadd.f32 %v9108, %v9109
    %v9119 = vsel %vm4526, %v9068, %v9061
    %v9120 = vsel %vm4528, %v9075, %v9119
    %v9121 = vsel %vm4530, %v9082, %v9120
    %v9122 = vsel %vm4532, %v9089, %v9121
    %v9123 = vsel %vm4534, %v9096, %v9122
    %v9124 = vsel %vm4536, %v9103, %v9123
    %v9125 = vsel %vm4538, %v9110, %v9124
    %v9127 = vadd.f32 %v221, %v9125
    %v9128 = vlaneseq
    %v9129 = vshrl.u32 %v9128, 7
    %v9130 = vsub.s32 0, %v9129
    %v9131 = vrot.slane %v60, %v9130
    %v9133 = vsel %vm4902, %v9127, 0
    %9135 = vmatprep.subr.mxu0 0.0
    %9136 = vmatpush1.msra.mxu0 %v41
    %9137 = vmatprep.subr.mxu0 0.0
    %9138 = vmatpush1.msra.mxu0 %v42
    %9139 = vmatprep.subr.mxu0 0.0
    %9140 = vmatpush1.msra.mxu0 %v43
    %9141 = vmatprep.subr.mxu0 0.0
    %9142 = vmatpush1.msra.mxu0 %v44
    %9143 = vmatprep.subr.mxu0 0.0
    %9144 = vmatpush1.msra.mxu0 0.0
    %9145 = vmatprep.subr.mxu0 0.0
    %9146 = vmatpush1.msra.mxu0 0.0
    %9147 = vmatprep.subr.mxu0 0.0
    %9148 = vmatpush1.msra.mxu0 0.0
    %9149 = vmatprep.subr.mxu0 0.0
    %9150 = vmatpush1.msra.mxu0 0.0
    %9151 = vmatprep.subr.mxu0 0.0
    %9152 = vmatpush1.msra.mxu0 0.0
    %9153 = vmatprep.subr.mxu0 0.0
    %9154 = vmatpush1.msra.mxu0 0.0
    %9155 = vmatprep.subr.mxu0 0.0
    %9156 = vmatpush1.msra.mxu0 0.0
    %9157 = vmatprep.subr.mxu0 0.0
    %9158 = vmatpush1.msra.mxu0 0.0
    %9159 = vmatprep.subr.mxu0 0.0
    %9160 = vmatpush1.msra.mxu0 0.0
    %9161 = vmatprep.subr.mxu0 0.0
    %9162 = vmatpush1.msra.mxu0 0.0
    %9163 = vmatprep.subr.mxu0 0.0
    %9164 = vmatpush1.msra.mxu0 0.0
    %9165 = vmatprep.subr.mxu0 0.0
    %9166 = vmatpush1.msra.mxu0 0.0
    %9167 = vmatprep.subr.mxu0 0.0
    %9168 = vmatpush1.msra.mxu0 0.0
    %9169 = vmatprep.subr.mxu0 0.0
    %9170 = vmatpush1.msra.mxu0 0.0
    %9171 = vmatprep.subr.mxu0 0.0
    %9172 = vmatpush1.msra.mxu0 0.0
    %9173 = vmatprep.subr.mxu0 0.0
    %9174 = vmatpush1.msra.mxu0 0.0
    %9175 = vmatprep.subr.mxu0 0.0
    %9176 = vmatpush1.msra.mxu0 0.0
    %9177 = vmatprep.subr.mxu0 0.0
    %9178 = vmatpush1.msra.mxu0 0.0
    %9179 = vmatprep.subr.mxu0 0.0
    %9180 = vmatpush1.msra.mxu0 0.0
    %9181 = vmatprep.subr.mxu0 0.0
    %9182 = vmatpush1.msra.mxu0 0.0
    %9183 = vmatprep.subr.mxu0 0.0
    %9184 = vmatpush1.msra.mxu0 0.0
    %9185 = vmatprep.subr.mxu0 0.0
    %9186 = vmatpush1.msra.mxu0 0.0
    %9187 = vmatprep.subr.mxu0 0.0
    %9188 = vmatpush1.msra.mxu0 0.0
    %9189 = vmatprep.subr.mxu0 0.0
    %9190 = vmatpush1.msra.mxu0 0.0
    %9191 = vmatprep.subr.mxu0 0.0
    %9192 = vmatpush1.msra.mxu0 0.0
    %9193 = vmatprep.subr.mxu0 0.0
    %9194 = vmatpush1.msra.mxu0 0.0
    %9195 = vmatprep.subr.mxu0 0.0
    %9196 = vmatpush1.msra.mxu0 0.0
    %9197 = vmatprep.subr.mxu0 0.0
    %9198 = vmatpush1.msra.mxu0 0.0
    %9199 = vmatprep.mubr.f32.mxu0 0.0
    %9200 = vmatmul.mubr.f32.gmra.mrb[0].mxu0 %v9133
    %v9201 = vpop.f32.mrb[0].mxu0
    %v9202 = vadd.f32 %v9131, %v9201
    %v9203 = vpop.f32.mrb[0].mxu0
    %9204 = vdwg.mxu0
    %v9205 = vtanh.pop %v9202
    %v9206 = vlaneseq
    %v9207 = vshrl.u32 %v9206, 7
    %v9208 = vsub.s32 0, %v9207
    %v9209 = vrot.slane %v61, %v9208
    %v9211 = vsel %vm4902, %v9205, 0
    %9213 = vmatprep.subr.mxu0 0.0
    %9214 = vmatpush1.msra.mxu0 %v45
    %9215 = vmatprep.subr.mxu0 0.0
    %9216 = vmatpush1.msra.mxu0 %v46
    %9217 = vmatprep.subr.mxu0 0.0
    %9218 = vmatpush1.msra.mxu0 %v47
    %9219 = vmatprep.subr.mxu0 0.0
    %9220 = vmatpush1.msra.mxu0 %v48
    %9221 = vmatprep.subr.mxu0 0.0
    %9222 = vmatpush1.msra.mxu0 0.0
    %9223 = vmatprep.subr.mxu0 0.0
    %9224 = vmatpush1.msra.mxu0 0.0
    %9225 = vmatprep.subr.mxu0 0.0
    %9226 = vmatpush1.msra.mxu0 0.0
    %9227 = vmatprep.subr.mxu0 0.0
    %9228 = vmatpush1.msra.mxu0 0.0
    %9229 = vmatprep.subr.mxu0 0.0
    %9230 = vmatpush1.msra.mxu0 0.0
    %9231 = vmatprep.subr.mxu0 0.0
    %9232 = vmatpush1.msra.mxu0 0.0
    %9233 = vmatprep.subr.mxu0 0.0
    %9234 = vmatpush1.msra.mxu0 0.0
    %9235 = vmatprep.subr.mxu0 0.0
    %9236 = vmatpush1.msra.mxu0 0.0
    %9237 = vmatprep.subr.mxu0 0.0
    %9238 = vmatpush1.msra.mxu0 0.0
    %9239 = vmatprep.subr.mxu0 0.0
    %9240 = vmatpush1.msra.mxu0 0.0
    %9241 = vmatprep.subr.mxu0 0.0
    %9242 = vmatpush1.msra.mxu0 0.0
    %9243 = vmatprep.subr.mxu0 0.0
    %9244 = vmatpush1.msra.mxu0 0.0
    %9245 = vmatprep.subr.mxu0 0.0
    %9246 = vmatpush1.msra.mxu0 0.0
    %9247 = vmatprep.subr.mxu0 0.0
    %9248 = vmatpush1.msra.mxu0 0.0
    %9249 = vmatprep.subr.mxu0 0.0
    %9250 = vmatpush1.msra.mxu0 0.0
    %9251 = vmatprep.subr.mxu0 0.0
    %9252 = vmatpush1.msra.mxu0 0.0
    %9253 = vmatprep.subr.mxu0 0.0
    %9254 = vmatpush1.msra.mxu0 0.0
    %9255 = vmatprep.subr.mxu0 0.0
    %9256 = vmatpush1.msra.mxu0 0.0
    %9257 = vmatprep.subr.mxu0 0.0
    %9258 = vmatpush1.msra.mxu0 0.0
    %9259 = vmatprep.subr.mxu0 0.0
    %9260 = vmatpush1.msra.mxu0 0.0
    %9261 = vmatprep.subr.mxu0 0.0
    %9262 = vmatpush1.msra.mxu0 0.0
    %9263 = vmatprep.subr.mxu0 0.0
    %9264 = vmatpush1.msra.mxu0 0.0
    %9265 = vmatprep.subr.mxu0 0.0
    %9266 = vmatpush1.msra.mxu0 0.0
    %9267 = vmatprep.subr.mxu0 0.0
    %9268 = vmatpush1.msra.mxu0 0.0
    %9269 = vmatprep.subr.mxu0 0.0
    %9270 = vmatpush1.msra.mxu0 0.0
    %9271 = vmatprep.subr.mxu0 0.0
    %9272 = vmatpush1.msra.mxu0 0.0
    %9273 = vmatprep.subr.mxu0 0.0
    %9274 = vmatpush1.msra.mxu0 0.0
    %9275 = vmatprep.subr.mxu0 0.0
    %9276 = vmatpush1.msra.mxu0 0.0
    %9277 = vmatprep.mubr.f32.mxu0 0.0
    %9278 = vmatmul.mubr.f32.gmra.mrb[0].mxu0 %v9211
    %v9279 = vpop.f32.mrb[0].mxu0
    %v9280 = vadd.f32 %v9209, %v9279
    %v9281 = vpop.f32.mrb[0].mxu0
    %9282 = vdwg.mxu0
    %vm9283 = vcmask 31744
    %v9284 = vsel %vm9283, %v9280, -inf
    %9285 = vmax.xlane.f32.xlu0 %v9284
    %v9286 = vpop.xlane.xlu0 %9285
    %v9287 = vsub.f32 %v9280, %v9286
    %v9288 = vmul.f32 %v9287, 1.442695
    %v9289 = vpow.pop %v9288
    %v9290 = vsel %vm9283, %v9289, 0.0
    %9291 = vadd.xlane.f32.xlu0 %v9290
    %v9292 = vpop.xlane.xlu0 %9291
    %v9293 = vlog2.pop %v9292
    %v9294 = vmul.f32 %v9293, 0.6931472
    %v9295 = vadd.f32 %v9294, %v9286
    %v9296 = vsub.f32 %v9280, %v9295
    %9297 = vst.msk [vmem:[%s7] sm:$0xff] %vm9283, %v9296
    %v9298 = vld [vmem:[%s6] sm:$0xff]
    %9299 = vset.pattern.permute.xlu0 1
    %9300 = vperm.xlu0 %9299, %v9298
    %v9301 = vpop.permute.xlu0 %9300
    %vm9302 = vcmp.eq.s32.totalorder %v143, %v9301
    %v9303 = vsel %vm9302, 1, 0
    %v9304 = vcvt.s32.f32 %v9303
    %v9305 = vmul.f32 %v9304, %v9296
    %v9306 = vsel %vm9283, %v9305, 0.0
    %9307 = vadd.xlane.f32.xlu0 %v9306
    %v9308 = vpop.xlane.xlu0 %9307
    %v9309 = vrot.slane %v9308, 4
    %v9310 = vadd.f32 %v9308, %v9309
    %v9311 = vrot.slane %v9310, 2
    %v9312 = vadd.f32 %v9310, %v9311
    %v9313 = vrot.slane %v9312, 1
    %v9314 = vadd.f32 %v9312, %v9313
    %v9315 = vsub.f32 0.0, %v9314
    %v9316 = vmul.f32 %v9315, 0.015625
    %vm9317 = vcmask 0
    %9318 = vst.msk [vmem:[#allocation5] sm:$0x1] %vm9317, %v9316
    // Predicated region
    $region30: #{model_forward.1} parent=1 // pred_check
      _
    $region31: #{model_forward.1} parent=1 // pred_check_branch
      %9320 = sbr.rel (0) target = $region33
    $region32: #{model_forward.1} parent=1 // pred_region
      _
    $region33: #{model_forward.1} parent=1 // pred_fallthru
      _
    // Predicated region
    $region34: #{model_forward.1} parent=1 // pred_check
      _
    $region35: #{model_forward.1} parent=1 // pred_check_branch
      %9322 = sbr.rel (0) target = $region37
    $region36: #{model_forward.1} parent=1 // pred_region
      %s9324 = ssub.s32 16, 16
      %9325 = vsyncadd [#allocation6], %s9324
      %s9327 = sshll.u32 [#allocation5], 4
      %s9328 = int_to_ptr.vmem [resolvable:$true] %s9327
      %9330 = dma.vmem_to_hbm [thread:$0]  %s9328, 16, %s8, [#allocation6]
    $region37: #{model_forward.1} parent=1 // pred_fallthru
      _
    // Predicated region
    $region38: #{model_forward.1} parent=1 // pred_check
      _
    $region39: #{model_forward.1} parent=1 // pred_check_branch
      %9332 = sbr.rel (0) target = $region41
    $region40: #{model_forward.1} parent=1 // pred_region
      _
    $region41: #{model_forward.1} parent=1 // pred_fallthru
      _
    // Predicated region
    $region42: #{model_forward.1} parent=1 // pred_check
      _
    $region43: #{model_forward.1} parent=1 // pred_check_branch
      %9334 = sbr.rel (0) target = $region45
    $region44: #{model_forward.1} parent=1 // pred_region
      %9335 = dma.done [#allocation6], 16
    $region45: #{model_forward.1} parent=1 // pred_fallthru
      _
    %9336 = vsyncpa [#allocation6], 1

</llo_original>
